<compile_context>
chip_gen: v7x
topology: tpu7x:2x2x1
jax: 0.10.0
libtpu: 0.0.40
codegen_flags: <defaults>
</compile_context>

<pallas_src>
import math
from functools import partial

import jax
import jax.numpy as jnp
from jax.experimental import pallas as pl
from jax.experimental.pallas import tpu as pltpu

# ----------------------------- configuration --------------------------------
IMAGE_SIZE = 32
PATCH_SIZE = 8
CHANNELS = 2
N_PATCHES = (IMAGE_SIZE // PATCH_SIZE) ** 2          # 16 (= max_seq_len)
DIM_IN = CHANNELS * PATCH_SIZE ** 2                  # 128 (token dim)
DIM = 128                                            # transformer / cond dim
DEPTH = 2                                            # transformer depth (small)
HEADS = 2
DIM_HEAD = 64
INNER = HEADS * DIM_HEAD                             # 128
FF_MULT = 4
FF_DIM = FF_MULT * DIM                               # 512
MLP_DEPTH = 3
MLP_WIDTH = DIM                                      # default(mlp_width, dim)
HALF_DIM = DIM // 2                                  # learned sinusoidal half dim

SIGMA_DATA = 0.5
P_MEAN = -1.2
P_STD = 1.2
LN_EPS = 1e-5
NEG_INF = -1e30


# ------------------------------ in-kernel helpers ----------------------------
def _layernorm(x, w, b):
    mu = jnp.mean(x, axis=-1, keepdims=True)
    var = jnp.mean(jnp.square(x - mu), axis=-1, keepdims=True)
    return (x - mu) * jax.lax.rsqrt(var + LN_EPS) * w + b


def _ln_no_affine(x):
    mu = jnp.mean(x, axis=-1, keepdims=True)
    var = jnp.mean(jnp.square(x - mu), axis=-1, keepdims=True)
    return (x - mu) * jax.lax.rsqrt(var + LN_EPS)


def _bdot(a_f32, w_bf16):
    # bf16 MXU matmul with f32 accumulation (weights are pre-cast to bf16).
    return jnp.dot(a_f32.astype(jnp.bfloat16), w_bf16,
                   preferred_element_type=jnp.float32)


# ------------------------------ fused kernel ---------------------------------
def _fused_forward_kernel(
    # per-batch inputs
    tok_ref, noise_ref, sig_ref,
    # embedding / projection
    wp_ref, bp_ref, start_ref, pos_ref,
    # transformer (stacked over depth)
    ln1w_ref, ln1b_ref, wq_ref, wk_ref, wv_ref, wo_ref,
    ln2w_ref, ln2b_ref, fw1_ref, fb1_ref, fw2_ref, fb2_ref,
    # final norm
    lnf_w_ref, lnf_b_ref,
    # denoiser time embedding
    freqw_ref, wt0_ref, wts_ref, wtc_ref, bt_ref,
    # denoiser MLP (stacked over mlp_depth)
    mwg_ref, mw1_ref, mb1_ref, mw2_ref, mb2_ref, mwog_ref,
    # output
    loss_ref,
    *, depth, heads, dim_head, mlp_depth, sigma_data,
):
    tokens = tok_ref[0]                     # (N, Din) f32, also the diffusion target
    noise = noise_ref[0]                    # (N, Din) f32
    sigma = sig_ref[0]                      # (N, 1)   f32
    n, d = tokens.shape[0], pos_ref.shape[-1]

    # iotas computed once, reused for shift matrix + causal mask
    r_nn = jax.lax.broadcasted_iota(jnp.int32, (n, n), 0)
    c_nn = jax.lax.broadcasted_iota(jnp.int32, (n, n), 1)

    # ---- proj_in over ALL N tokens (tile-aligned), then shift right by one ----
    proj = _bdot(tokens, wp_ref[...]) + bp_ref[...]                  # (N, D)
    # shifted[i] = proj[i-1] (i>=1), row 0 replaced by start token below
    shift_mat = (r_nn == c_nn + 1).astype(jnp.float32)               # sub-diagonal
    shifted = jnp.dot(shift_mat, proj, preferred_element_type=jnp.float32)
    row = jax.lax.broadcasted_iota(jnp.int32, (n, d), 0)
    x = jnp.where(row == 0, start_ref[...], shifted) + pos_ref[...]  # (N, D)

    causal = r_nn >= c_nn
    scale = dim_head ** -0.5

    # ---- transformer decoder (pre-LN causal, unrolled over depth) ----
    # TODO(synk): x_transformers Decoder approximated by standard pre-LN blocks.
    for l in range(depth):
        h = _layernorm(x, ln1w_ref[l], ln1b_ref[l])
        hb = h.astype(jnp.bfloat16)
        q = jnp.dot(hb, wq_ref[l], preferred_element_type=jnp.float32)
        k = jnp.dot(hb, wk_ref[l], preferred_element_type=jnp.float32)
        v = jnp.dot(hb, wv_ref[l], preferred_element_type=jnp.float32)

        head_outs = []
        for hd in range(heads):
            sl = slice(hd * dim_head, (hd + 1) * dim_head)
            qh = q[:, sl].astype(jnp.bfloat16)
            kh = k[:, sl].astype(jnp.bfloat16)
            vh = v[:, sl].astype(jnp.bfloat16)
            s = jax.lax.dot_general(
                qh, kh, (((1,), (1,)), ((), ())),
                preferred_element_type=jnp.float32) * scale
            s = jnp.where(causal, s, NEG_INF)
            s = s - jnp.max(s, axis=-1, keepdims=True)
            p = jnp.exp(s)
            p = p * pl.reciprocal(jnp.sum(p, axis=-1, keepdims=True), approx=True)
            head_outs.append(
                jnp.dot(p.astype(jnp.bfloat16), vh,
                        preferred_element_type=jnp.float32))
        attn = jnp.concatenate(head_outs, axis=-1)                   # (N, inner)
        x = x + _bdot(attn, wo_ref[l])                               # single out-proj

        h2 = _layernorm(x, ln2w_ref[l], ln2b_ref[l])
        f = _bdot(h2, fw1_ref[l]) + fb1_ref[l]
        f = jax.nn.gelu(f, approximate=True)
        x = x + _bdot(f, fw2_ref[l]) + fb2_ref[l]

    cond = _layernorm(x, lnf_w_ref[...], lnf_b_ref[...])             # (N, Dc)

    # ---- ElucidatedDiffusion training step (EDM) ----
    sig2 = sigma * sigma
    sd2 = sigma_data ** 2
    inv_rt = jax.lax.rsqrt(sig2 + sd2)
    c_in = inv_rt
    c_skip = sd2 * (inv_rt * inv_rt)
    c_out = sigma * sigma_data * inv_rt
    times = jnp.log(jnp.maximum(sigma, 1e-20)) * 0.25                # c_noise, (N,1)

    # learned sinusoidal time embedding -> Linear(dim_cond + 1, dim_cond)
    freqs = times * freqw_ref[...] * (2.0 * math.pi)                 # (N, half)
    time_emb = (
        times * wt0_ref[...]
        + _bdot(jnp.sin(freqs), wts_ref[...])
        + _bdot(jnp.cos(freqs), wtc_ref[...])
        + bt_ref[...]
    )                                                                # (N, Dc)
    cmb = jax.nn.silu(time_emb + cond)
    cmb_b = cmb.astype(jnp.bfloat16)

    noised = tokens + sigma * noise
    dn = c_in * noised                                               # (N, Din)
    for l in range(mlp_depth):
        residual = dn
        gamma = jnp.dot(cmb_b, mwg_ref[l], preferred_element_type=jnp.float32)
        h = _ln_no_affine(dn) * (gamma + 1.0)
        h = jax.nn.silu(_bdot(h, mw1_ref[l]) + mb1_ref[l])
        h = _bdot(h, mw2_ref[l]) + mb2_ref[l]
        og = jnp.dot(cmb_b, mwog_ref[l], preferred_element_type=jnp.float32)
        dn = h * (og + 1.0) + residual

    out = c_skip * noised + c_out * dn
    # clamp_during_sampling=True is the module default and the reference forward
    # passes clamp=None, so the clamp IS applied in the training path too.
    out = jnp.clip(out, -1.0, 1.0)
    mse = jnp.mean(jnp.square(out - tokens), axis=-1, keepdims=True)     # (N, 1)
    weight = (sig2 + sd2) * pl.reciprocal(jnp.square(sigma * sigma_data),
                                          approx=True)
    batch_partial = jnp.sum(mse * weight)                                # scalar

    # lane-dense scalar writeback (one full (8,128) vreg store per grid step)
    loss_ref[...] = jnp.broadcast_to(batch_partial, loss_ref.shape)


# ------------------------------ pallas wrapper --------------------------------
def _batch_spec(shape):
    rest = tuple(shape[1:])
    zeros = (0,) * len(rest)
    return pl.BlockSpec((1,) + rest, lambda b: (b,) + zeros)


def _full_spec(shape):
    shape = tuple(shape)
    zeros = (0,) * len(shape)
    return pl.BlockSpec(shape, lambda b: zeros)


def fused_forward_pallas(tokens, noise, sigma, params):
    B, N, Din = tokens.shape
    p = params
    kernel = partial(_fused_forward_kernel, depth=DEPTH, heads=HEADS,
                     dim_head=DIM_HEAD, mlp_depth=MLP_DEPTH,
                     sigma_data=SIGMA_DATA)
    weight_args = [
        p["proj_in_w"], p["proj_in_b"], p["start_token"], p["pos_emb"],
        p["ln1_w"], p["ln1_b"], p["wq"], p["wk"], p["wv"], p["wo"],
        p["ln2_w"], p["ln2_b"], p["ff_w1"], p["ff_b1"], p["ff_w2"], p["ff_b2"],
        p["final_ln_w"], p["final_ln_b"],
        p["freq_w"], p["wt0"], p["wts"], p["wtc"], p["bt"],
        p["mlp_wg"], p["mlp_w1"], p["mlp_b1"], p["mlp_w2"], p["mlp_b2"],
        p["mlp_wog"],
    ]
    in_specs = (
        [_batch_spec(tokens.shape), _batch_spec(noise.shape),
         _batch_spec(sigma.shape)]
        + [_full_spec(w.shape) for w in weight_args]
    )
    partials = pl.pallas_call(
        kernel,
        out_shape=jax.ShapeDtypeStruct((B, 8, 128), jnp.float32),
        grid=(B,),
        in_specs=in_specs,
        out_specs=pl.BlockSpec((1, 8, 128), lambda b: (b, 0, 0)),
        compiler_params=pltpu.CompilerParams(
            dimension_semantics=("parallel",)),
    )(tokens, noise, sigma, *weight_args)
    return jnp.sum(partials[:, 0, 0]) / (B * N)


# ------------------------------ glue (plain JAX) ------------------------------
def patchify(x, p):
    # 'b c (h p1) (w p2) -> b (h w) (c p1 p2)'
    B, C, H, W = x.shape
    h, w = H // p, W // p
    x = x.reshape(B, C, h, p, w, p)
    x = jnp.transpose(x, (0, 2, 4, 1, 3, 5))
    return x.reshape(B, h * w, C * p * p)


def image_ar_diffusion_forward(images, params, key):
    # ImageAutoregressiveDiffusion.forward
    images = images * 2.0 - 1.0                              # normalize to [-1, 1]
    tokens = patchify(images, PATCH_SIZE)                    # (B, N, Din)
    B, N, Din = tokens.shape

    # ElucidatedDiffusion.forward randomness (one sigma per flattened token row)
    k1, k2 = jax.random.split(key)
    sigma = jnp.exp(P_MEAN + P_STD * jax.random.normal(k1, (B, N, 1), jnp.float32))
    noise = jax.random.normal(k2, (B, N, Din), jnp.float32)

    return fused_forward_pallas(tokens, noise, sigma, params)


# ------------------------------ parameter init --------------------------------
def init_params(key):
    keys = iter(jax.random.split(key, 64))
    bf = jnp.bfloat16

    def nrm(shape, s=0.02, dtype=jnp.float32):
        return (s * jax.random.normal(next(keys), shape)).astype(dtype)

    zeros = lambda shape, dtype=jnp.float32: jnp.zeros(shape, dtype)
    ones = lambda shape: jnp.ones(shape, jnp.float32)

    return dict(
        # proj_in / start token / abs pos emb
        proj_in_w=nrm((DIM_IN, DIM), dtype=bf),
        proj_in_b=zeros((1, DIM)),
        start_token=zeros((1, DIM)),                 # nn.Parameter(torch.zeros(dim))
        pos_emb=nrm((N_PATCHES, DIM)),
        # transformer layers, stacked over depth
        ln1_w=ones((DEPTH, 1, DIM)), ln1_b=zeros((DEPTH, 1, DIM)),
        wq=nrm((DEPTH, DIM, INNER), dtype=bf),
        wk=nrm((DEPTH, DIM, INNER), dtype=bf),
        wv=nrm((DEPTH, DIM, INNER), dtype=bf),
        wo=nrm((DEPTH, INNER, DIM), dtype=bf),
        ln2_w=ones((DEPTH, 1, DIM)), ln2_b=zeros((DEPTH, 1, DIM)),
        ff_w1=nrm((DEPTH, DIM, FF_DIM), dtype=bf), ff_b1=zeros((DEPTH, 1, FF_DIM)),
        ff_w2=nrm((DEPTH, FF_DIM, DIM), dtype=bf), ff_b2=zeros((DEPTH, 1, DIM)),
        final_ln_w=ones((1, DIM)), final_ln_b=zeros((1, DIM)),
        # denoiser time embedding (LearnedSinusoidalPosEmb + Linear(dim_cond+1, dim_cond))
        freq_w=nrm((1, HALF_DIM), 1.0),
        wt0=nrm((1, DIM)),                           # column for raw `times` input
        wts=nrm((HALF_DIM, DIM), dtype=bf),          # sin rows
        wtc=nrm((HALF_DIM, DIM), dtype=bf),          # cos rows
        bt=zeros((1, DIM)),
        # denoiser MLP, stacked over mlp_depth (to_gamma / out_gamma zero-init)
        mlp_wg=zeros((MLP_DEPTH, DIM, DIM_IN), bf),
        mlp_w1=nrm((MLP_DEPTH, DIM_IN, MLP_WIDTH), dtype=bf),
        mlp_b1=zeros((MLP_DEPTH, 1, MLP_WIDTH)),
        mlp_w2=nrm((MLP_DEPTH, MLP_WIDTH, DIM_IN), dtype=bf),
        mlp_b2=zeros((MLP_DEPTH, 1, DIM_IN)),
        mlp_wog=zeros((MLP_DEPTH, DIM, DIM_IN), bf),
    )


# ----------------------------------- main -------------------------------------
if __name__ == "__main__":
    key = jax.random.PRNGKey(0)
    pkey, ikey, dkey = jax.random.split(key, 3)
    params = init_params(pkey)
    images = jax.random.uniform(
        ikey, (2, CHANNELS, IMAGE_SIZE, IMAGE_SIZE), dtype=jnp.float32
    )
    loss = jax.jit(image_ar_diffusion_forward)(images, params, dkey)
    loss = jax.block_until_ready(loss)
    assert jnp.isfinite(loss), "loss is not finite"
    print("KERNEL_OK")
</pallas_src>

<mosaic_0001>
module attributes {stable_mosaic.version = 11 : i64} {
  func.func @_fused_forward_kernel(%arg0: i32, %arg1: memref<1x16x128xf32, #tpu.memory_space<vmem>>, %arg2: memref<1x16x128xf32, #tpu.memory_space<vmem>>, %arg3: memref<1x16x1xf32, #tpu.memory_space<vmem>>, %arg4: memref<128x128xbf16, #tpu.memory_space<vmem>>, %arg5: memref<1x128xf32, #tpu.memory_space<vmem>>, %arg6: memref<1x128xf32, #tpu.memory_space<vmem>>, %arg7: memref<16x128xf32, #tpu.memory_space<vmem>>, %arg8: memref<2x1x128xf32, #tpu.memory_space<vmem>>, %arg9: memref<2x1x128xf32, #tpu.memory_space<vmem>>, %arg10: memref<2x128x128xbf16, #tpu.memory_space<vmem>>, %arg11: memref<2x128x128xbf16, #tpu.memory_space<vmem>>, %arg12: memref<2x128x128xbf16, #tpu.memory_space<vmem>>, %arg13: memref<2x128x128xbf16, #tpu.memory_space<vmem>>, %arg14: memref<2x1x128xf32, #tpu.memory_space<vmem>>, %arg15: memref<2x1x128xf32, #tpu.memory_space<vmem>>, %arg16: memref<2x128x512xbf16, #tpu.memory_space<vmem>>, %arg17: memref<2x1x512xf32, #tpu.memory_space<vmem>>, %arg18: memref<2x512x128xbf16, #tpu.memory_space<vmem>>, %arg19: memref<2x1x128xf32, #tpu.memory_space<vmem>>, %arg20: memref<1x128xf32, #tpu.memory_space<vmem>>, %arg21: memref<1x128xf32, #tpu.memory_space<vmem>>, %arg22: memref<1x64xf32, #tpu.memory_space<vmem>>, %arg23: memref<1x128xf32, #tpu.memory_space<vmem>>, %arg24: memref<64x128xbf16, #tpu.memory_space<vmem>>, %arg25: memref<64x128xbf16, #tpu.memory_space<vmem>>, %arg26: memref<1x128xf32, #tpu.memory_space<vmem>>, %arg27: memref<3x128x128xbf16, #tpu.memory_space<vmem>>, %arg28: memref<3x128x128xbf16, #tpu.memory_space<vmem>>, %arg29: memref<3x1x128xf32, #tpu.memory_space<vmem>>, %arg30: memref<3x128x128xbf16, #tpu.memory_space<vmem>>, %arg31: memref<3x1x128xf32, #tpu.memory_space<vmem>>, %arg32: memref<3x128x128xbf16, #tpu.memory_space<vmem>>, %arg33: memref<1x8x128xf32, #tpu.memory_space<vmem>>) attributes {dimension_semantics = [#tpu.dimension_semantics<parallel>], iteration_bounds = array<i64: 2>, scalar_prefetch = 0 : i64, scratch_operands = 0 : i64, tpu.core_type = #tpu.core_type<tc>, window_params = [{transform_indices = @transform_0, window_bounds = array<i64: 1, 16, 128>}, {transform_indices = @transform_1, window_bounds = array<i64: 1, 16, 128>}, {transform_indices = @transform_2, window_bounds = array<i64: 1, 16, 1>}, {pipeline_mode = #tpu.pipeline_mode<synchronous>, transform_indices = @transform_3, window_bounds = array<i64: 128, 128>}, {pipeline_mode = #tpu.pipeline_mode<synchronous>, transform_indices = @transform_4, window_bounds = array<i64: 1, 128>}, {pipeline_mode = #tpu.pipeline_mode<synchronous>, transform_indices = @transform_5, window_bounds = array<i64: 1, 128>}, {pipeline_mode = #tpu.pipeline_mode<synchronous>, transform_indices = @transform_6, window_bounds = array<i64: 16, 128>}, {pipeline_mode = #tpu.pipeline_mode<synchronous>, transform_indices = @transform_7, window_bounds = array<i64: 2, 1, 128>}, {pipeline_mode = #tpu.pipeline_mode<synchronous>, transform_indices = @transform_8, window_bounds = array<i64: 2, 1, 128>}, {pipeline_mode = #tpu.pipeline_mode<synchronous>, transform_indices = @transform_9, window_bounds = array<i64: 2, 128, 128>}, {pipeline_mode = #tpu.pipeline_mode<synchronous>, transform_indices = @transform_10, window_bounds = array<i64: 2, 128, 128>}, {pipeline_mode = #tpu.pipeline_mode<synchronous>, transform_indices = @transform_11, window_bounds = array<i64: 2, 128, 128>}, {pipeline_mode = #tpu.pipeline_mode<synchronous>, transform_indices = @transform_12, window_bounds = array<i64: 2, 128, 128>}, {pipeline_mode = #tpu.pipeline_mode<synchronous>, transform_indices = @transform_13, window_bounds = array<i64: 2, 1, 128>}, {pipeline_mode = #tpu.pipeline_mode<synchronous>, transform_indices = @transform_14, window_bounds = array<i64: 2, 1, 128>}, {pipeline_mode = #tpu.pipeline_mode<synchronous>, transform_indices = @transform_15, window_bounds = array<i64: 2, 128, 512>}, {pipeline_mode = #tpu.pipeline_mode<synchronous>, transform_indices = @transform_16, window_bounds = array<i64: 2, 1, 512>}, {pipeline_mode = #tpu.pipeline_mode<synchronous>, transform_indices = @transform_17, window_bounds = array<i64: 2, 512, 128>}, {pipeline_mode = #tpu.pipeline_mode<synchronous>, transform_indices = @transform_18, window_bounds = array<i64: 2, 1, 128>}, {pipeline_mode = #tpu.pipeline_mode<synchronous>, transform_indices = @transform_19, window_bounds = array<i64: 1, 128>}, {pipeline_mode = #tpu.pipeline_mode<synchronous>, transform_indices = @transform_20, window_bounds = array<i64: 1, 128>}, {pipeline_mode = #tpu.pipeline_mode<synchronous>, transform_indices = @transform_21, window_bounds = array<i64: 1, 64>}, {pipeline_mode = #tpu.pipeline_mode<synchronous>, transform_indices = @transform_22, window_bounds = array<i64: 1, 128>}, {pipeline_mode = #tpu.pipeline_mode<synchronous>, transform_indices = @transform_23, window_bounds = array<i64: 64, 128>}, {pipeline_mode = #tpu.pipeline_mode<synchronous>, transform_indices = @transform_24, window_bounds = array<i64: 64, 128>}, {pipeline_mode = #tpu.pipeline_mode<synchronous>, transform_indices = @transform_25, window_bounds = array<i64: 1, 128>}, {pipeline_mode = #tpu.pipeline_mode<synchronous>, transform_indices = @transform_26, window_bounds = array<i64: 3, 128, 128>}, {pipeline_mode = #tpu.pipeline_mode<synchronous>, transform_indices = @transform_27, window_bounds = array<i64: 3, 128, 128>}, {pipeline_mode = #tpu.pipeline_mode<synchronous>, transform_indices = @transform_28, window_bounds = array<i64: 3, 1, 128>}, {pipeline_mode = #tpu.pipeline_mode<synchronous>, transform_indices = @transform_29, window_bounds = array<i64: 3, 128, 128>}, {pipeline_mode = #tpu.pipeline_mode<synchronous>, transform_indices = @transform_30, window_bounds = array<i64: 3, 1, 128>}, {pipeline_mode = #tpu.pipeline_mode<synchronous>, transform_indices = @transform_31, window_bounds = array<i64: 3, 128, 128>}, {transform_indices = @transform_32, window_bounds = array<i64: 1, 8, 128>}]} {
    %c0 = arith.constant 0 : index
    %c0_0 = arith.constant 0 : index
    %c0_1 = arith.constant 0 : index
    %0 = vector.load %arg1[%c0, %c0_0, %c0_1] : memref<1x16x128xf32, #tpu.memory_space<vmem>>, vector<1x16x128xf32>
    %1 = vector.shape_cast %0 : vector<1x16x128xf32> to vector<16x128xf32>
    %c0_2 = arith.constant 0 : index
    %c0_3 = arith.constant 0 : index
    %c0_4 = arith.constant 0 : index
    %2 = vector.load %arg2[%c0_2, %c0_3, %c0_4] : memref<1x16x128xf32, #tpu.memory_space<vmem>>, vector<1x16x128xf32>
    %3 = vector.shape_cast %2 : vector<1x16x128xf32> to vector<16x128xf32>
    %c0_5 = arith.constant 0 : index
    %c0_6 = arith.constant 0 : index
    %c0_7 = arith.constant 0 : index
    %4 = vector.load %arg3[%c0_5, %c0_6, %c0_7] : memref<1x16x1xf32, #tpu.memory_space<vmem>>, vector<1x16x1xf32>
    %5 = vector.shape_cast %4 : vector<1x16x1xf32> to vector<16x1xf32>
    %6 = tpu.iota {dimensions = array<i32: 0>} : vector<16x16xi32>
    %7 = tpu.iota {dimensions = array<i32: 1>} : vector<16x16xi32>
    %c0_8 = arith.constant 0 : index
    %c0_9 = arith.constant 0 : index
    %8 = vector.load %arg4[%c0_8, %c0_9] : memref<128x128xbf16, #tpu.memory_space<vmem>>, vector<128x128xbf16>
    %9 = arith.truncf %1 : vector<16x128xf32> to vector<16x128xbf16>
    %cst = arith.constant dense<0.000000e+00> : vector<16x128xf32>
    %10 = tpu.matmul %9, %8, %cst {dimension_numbers = #tpu.dot_dimension_numbers<[1], [0], [0], [1], [0, 0, 1, 1], [], []>} : vector<16x128xbf16>, vector<128x128xbf16>, vector<16x128xf32> -> vector<16x128xf32>
    %c0_10 = arith.constant 0 : index
    %c0_11 = arith.constant 0 : index
    %11 = vector.load %arg5[%c0_10, %c0_11] : memref<1x128xf32, #tpu.memory_space<vmem>>, vector<1x128xf32>
    %12 = vector.broadcast %11 : vector<1x128xf32> to vector<16x128xf32>
    %13 = arith.addf %10, %12 : vector<16x128xf32>
    %c1_i32 = arith.constant 1 : i32
    %14 = vector.broadcast %c1_i32 : i32 to vector<16x16xi32>
    %15 = arith.addi %7, %14 : vector<16x16xi32>
    %16 = arith.cmpi eq, %6, %15 : vector<16x16xi32>
    %17 = arith.extui %16 : vector<16x16xi1> to vector<16x16xi32>
    %18 = arith.sitofp %17 : vector<16x16xi32> to vector<16x16xf32>
    %cst_12 = arith.constant dense<0.000000e+00> : vector<16x128xf32>
    %19 = tpu.matmul %18, %13, %cst_12 {dimension_numbers = #tpu.dot_dimension_numbers<[1], [0], [0], [1], [0, 0, 1, 1], [], []>} : vector<16x16xf32>, vector<16x128xf32>, vector<16x128xf32> -> vector<16x128xf32>
    %20 = tpu.iota {dimensions = array<i32: 0>} : vector<16x128xi32>
    %c0_i32 = arith.constant 0 : i32
    %21 = vector.broadcast %c0_i32 : i32 to vector<16x128xi32>
    %22 = arith.cmpi eq, %20, %21 : vector<16x128xi32>
    %c0_13 = arith.constant 0 : index
    %c0_14 = arith.constant 0 : index
    %23 = vector.load %arg6[%c0_13, %c0_14] : memref<1x128xf32, #tpu.memory_space<vmem>>, vector<1x128xf32>
    %24 = vector.shape_cast %23 : vector<1x128xf32> to vector<1x128xf32>
    %25 = vector.broadcast %24 : vector<1x128xf32> to vector<16x128xf32>
    %26 = arith.select %22, %25, %19 : vector<16x128xi1>, vector<16x128xf32>
    %c0_15 = arith.constant 0 : index
    %c0_16 = arith.constant 0 : index
    %27 = vector.load %arg7[%c0_15, %c0_16] : memref<16x128xf32, #tpu.memory_space<vmem>>, vector<16x128xf32>
    %28 = arith.addf %26, %27 : vector<16x128xf32>
    %29 = arith.cmpi sge, %6, %7 : vector<16x16xi32>
    %c0_17 = arith.constant 0 : index
    %c0_18 = arith.constant 0 : index
    %c0_19 = arith.constant 0 : index
    %30 = vector.load %arg8[%c0_17, %c0_18, %c0_19] : memref<2x1x128xf32, #tpu.memory_space<vmem>>, vector<1x1x128xf32>
    %31 = vector.shape_cast %30 : vector<1x1x128xf32> to vector<1x128xf32>
    %c0_20 = arith.constant 0 : index
    %c0_21 = arith.constant 0 : index
    %c0_22 = arith.constant 0 : index
    %32 = vector.load %arg9[%c0_20, %c0_21, %c0_22] : memref<2x1x128xf32, #tpu.memory_space<vmem>>, vector<1x1x128xf32>
    %33 = vector.shape_cast %32 : vector<1x1x128xf32> to vector<1x128xf32>
    %cst_23 = arith.constant dense<0.000000e+00> : vector<16xf32>
    %34 = vector.multi_reduction <add>, %28, %cst_23 [1] : vector<16x128xf32> to vector<16xf32>
    %35 = vector.shape_cast %34 : vector<16xf32> to vector<16x1xf32>
    %cst_24 = arith.constant 1.280000e+02 : f32
    %36 = vector.broadcast %cst_24 : f32 to vector<16x1xf32>
    %37 = arith.divf %35, %36 : vector<16x1xf32>
    %38 = vector.broadcast %37 : vector<16x1xf32> to vector<16x128xf32>
    %39 = arith.subf %28, %38 : vector<16x128xf32>
    %40 = arith.mulf %39, %39 : vector<16x128xf32>
    %cst_25 = arith.constant dense<0.000000e+00> : vector<16xf32>
    %41 = vector.multi_reduction <add>, %40, %cst_25 [1] : vector<16x128xf32> to vector<16xf32>
    %42 = vector.shape_cast %41 : vector<16xf32> to vector<16x1xf32>
    %cst_26 = arith.constant 1.280000e+02 : f32
    %43 = vector.broadcast %cst_26 : f32 to vector<16x1xf32>
    %44 = arith.divf %42, %43 : vector<16x1xf32>
    %45 = vector.broadcast %37 : vector<16x1xf32> to vector<16x128xf32>
    %46 = arith.subf %28, %45 : vector<16x128xf32>
    %cst_27 = arith.constant 9.99999974E-6 : f32
    %47 = vector.broadcast %cst_27 : f32 to vector<16x1xf32>
    %48 = arith.addf %44, %47 : vector<16x1xf32>
    %49 = math.rsqrt %48 : vector<16x1xf32>
    %50 = vector.broadcast %49 : vector<16x1xf32> to vector<16x128xf32>
    %51 = arith.mulf %46, %50 : vector<16x128xf32>
    %52 = vector.broadcast %31 : vector<1x128xf32> to vector<16x128xf32>
    %53 = arith.mulf %51, %52 : vector<16x128xf32>
    %54 = vector.broadcast %33 : vector<1x128xf32> to vector<16x128xf32>
    %55 = arith.addf %53, %54 : vector<16x128xf32>
    %56 = arith.truncf %55 : vector<16x128xf32> to vector<16x128xbf16>
    %c0_28 = arith.constant 0 : index
    %c0_29 = arith.constant 0 : index
    %c0_30 = arith.constant 0 : index
    %57 = vector.load %arg10[%c0_28, %c0_29, %c0_30] : memref<2x128x128xbf16, #tpu.memory_space<vmem>>, vector<1x128x128xbf16>
    %58 = vector.shape_cast %57 : vector<1x128x128xbf16> to vector<128x128xbf16>
    %cst_31 = arith.constant dense<0.000000e+00> : vector<16x128xf32>
    %59 = tpu.matmul %56, %58, %cst_31 {dimension_numbers = #tpu.dot_dimension_numbers<[1], [0], [0], [1], [0, 0, 1, 1], [], []>} : vector<16x128xbf16>, vector<128x128xbf16>, vector<16x128xf32> -> vector<16x128xf32>
    %c0_32 = arith.constant 0 : index
    %c0_33 = arith.constant 0 : index
    %c0_34 = arith.constant 0 : index
    %60 = vector.load %arg11[%c0_32, %c0_33, %c0_34] : memref<2x128x128xbf16, #tpu.memory_space<vmem>>, vector<1x128x128xbf16>
    %61 = vector.shape_cast %60 : vector<1x128x128xbf16> to vector<128x128xbf16>
    %cst_35 = arith.constant dense<0.000000e+00> : vector<16x128xf32>
    %62 = tpu.matmul %56, %61, %cst_35 {dimension_numbers = #tpu.dot_dimension_numbers<[1], [0], [0], [1], [0, 0, 1, 1], [], []>} : vector<16x128xbf16>, vector<128x128xbf16>, vector<16x128xf32> -> vector<16x128xf32>
    %c0_36 = arith.constant 0 : index
    %c0_37 = arith.constant 0 : index
    %c0_38 = arith.constant 0 : index
    %63 = vector.load %arg12[%c0_36, %c0_37, %c0_38] : memref<2x128x128xbf16, #tpu.memory_space<vmem>>, vector<1x128x128xbf16>
    %64 = vector.shape_cast %63 : vector<1x128x128xbf16> to vector<128x128xbf16>
    %cst_39 = arith.constant dense<0.000000e+00> : vector<16x128xf32>
    %65 = tpu.matmul %56, %64, %cst_39 {dimension_numbers = #tpu.dot_dimension_numbers<[1], [0], [0], [1], [0, 0, 1, 1], [], []>} : vector<16x128xbf16>, vector<128x128xbf16>, vector<16x128xf32> -> vector<16x128xf32>
    %66 = vector.extract_strided_slice %59 {offsets = [0, 0], sizes = [16, 64], strides = [1, 1]} : vector<16x128xf32> to vector<16x64xf32>
    %67 = arith.truncf %66 : vector<16x64xf32> to vector<16x64xbf16>
    %68 = vector.extract_strided_slice %62 {offsets = [0, 0], sizes = [16, 64], strides = [1, 1]} : vector<16x128xf32> to vector<16x64xf32>
    %69 = arith.truncf %68 : vector<16x64xf32> to vector<16x64xbf16>
    %70 = vector.extract_strided_slice %65 {offsets = [0, 0], sizes = [16, 64], strides = [1, 1]} : vector<16x128xf32> to vector<16x64xf32>
    %71 = arith.truncf %70 : vector<16x64xf32> to vector<16x64xbf16>
    %cst_40 = arith.constant dense<0.000000e+00> : vector<16x16xf32>
    %72 = tpu.matmul %67, %69, %cst_40 {dimension_numbers = #tpu.dot_dimension_numbers<[1], [1], [0], [0], [0, 0, 1, 0], [], []>} : vector<16x64xbf16>, vector<16x64xbf16>, vector<16x16xf32> -> vector<16x16xf32>
    %cst_41 = arith.constant 1.250000e-01 : f32
    %73 = vector.broadcast %cst_41 : f32 to vector<16x16xf32>
    %74 = arith.mulf %72, %73 : vector<16x16xf32>
    %cst_42 = arith.constant -1.000000e+30 : f32
    %75 = vector.broadcast %cst_42 : f32 to vector<16x16xf32>
    %76 = arith.select %29, %74, %75 : vector<16x16xi1>, vector<16x16xf32>
    %cst_43 = arith.constant dense<0xFF800000> : vector<16xf32>
    %77 = vector.multi_reduction <maximumf>, %76, %cst_43 [1] : vector<16x16xf32> to vector<16xf32>
    %78 = vector.shape_cast %77 : vector<16xf32> to vector<16x1xf32>
    %79 = vector.broadcast %78 : vector<16x1xf32> to vector<16x16xf32>
    %80 = arith.subf %76, %79 : vector<16x16xf32>
    %81 = math.exp %80 : vector<16x16xf32>
    %cst_44 = arith.constant dense<0.000000e+00> : vector<16xf32>
    %82 = vector.multi_reduction <add>, %81, %cst_44 [1] : vector<16x16xf32> to vector<16xf32>
    %83 = vector.shape_cast %82 : vector<16xf32> to vector<16x1xf32>
    %84 = tpu.reciprocal %83 {approx = true} : vector<16x1xf32> -> vector<16x1xf32>
    %85 = vector.broadcast %84 : vector<16x1xf32> to vector<16x16xf32>
    %86 = arith.mulf %81, %85 : vector<16x16xf32>
    %87 = arith.truncf %86 : vector<16x16xf32> to vector<16x16xbf16>
    %cst_45 = arith.constant dense<0.000000e+00> : vector<16x64xf32>
    %88 = tpu.matmul %87, %71, %cst_45 {dimension_numbers = #tpu.dot_dimension_numbers<[1], [0], [0], [1], [0, 0, 1, 1], [], []>} : vector<16x16xbf16>, vector<16x64xbf16>, vector<16x64xf32> -> vector<16x64xf32>
    %89 = vector.extract_strided_slice %59 {offsets = [0, 64], sizes = [16, 64], strides = [1, 1]} : vector<16x128xf32> to vector<16x64xf32>
    %90 = arith.truncf %89 : vector<16x64xf32> to vector<16x64xbf16>
    %91 = vector.extract_strided_slice %62 {offsets = [0, 64], sizes = [16, 64], strides = [1, 1]} : vector<16x128xf32> to vector<16x64xf32>
    %92 = arith.truncf %91 : vector<16x64xf32> to vector<16x64xbf16>
    %93 = vector.extract_strided_slice %65 {offsets = [0, 64], sizes = [16, 64], strides = [1, 1]} : vector<16x128xf32> to vector<16x64xf32>
    %94 = arith.truncf %93 : vector<16x64xf32> to vector<16x64xbf16>
    %cst_46 = arith.constant dense<0.000000e+00> : vector<16x16xf32>
    %95 = tpu.matmul %90, %92, %cst_46 {dimension_numbers = #tpu.dot_dimension_numbers<[1], [1], [0], [0], [0, 0, 1, 0], [], []>} : vector<16x64xbf16>, vector<16x64xbf16>, vector<16x16xf32> -> vector<16x16xf32>
    %cst_47 = arith.constant 1.250000e-01 : f32
    %96 = vector.broadcast %cst_47 : f32 to vector<16x16xf32>
    %97 = arith.mulf %95, %96 : vector<16x16xf32>
    %cst_48 = arith.constant -1.000000e+30 : f32
    %98 = vector.broadcast %cst_48 : f32 to vector<16x16xf32>
    %99 = arith.select %29, %97, %98 : vector<16x16xi1>, vector<16x16xf32>
    %cst_49 = arith.constant dense<0xFF800000> : vector<16xf32>
    %100 = vector.multi_reduction <maximumf>, %99, %cst_49 [1] : vector<16x16xf32> to vector<16xf32>
    %101 = vector.shape_cast %100 : vector<16xf32> to vector<16x1xf32>
    %102 = vector.broadcast %101 : vector<16x1xf32> to vector<16x16xf32>
    %103 = arith.subf %99, %102 : vector<16x16xf32>
    %104 = math.exp %103 : vector<16x16xf32>
    %cst_50 = arith.constant dense<0.000000e+00> : vector<16xf32>
    %105 = vector.multi_reduction <add>, %104, %cst_50 [1] : vector<16x16xf32> to vector<16xf32>
    %106 = vector.shape_cast %105 : vector<16xf32> to vector<16x1xf32>
    %107 = tpu.reciprocal %106 {approx = true} : vector<16x1xf32> -> vector<16x1xf32>
    %108 = vector.broadcast %107 : vector<16x1xf32> to vector<16x16xf32>
    %109 = arith.mulf %104, %108 : vector<16x16xf32>
    %110 = arith.truncf %109 : vector<16x16xf32> to vector<16x16xbf16>
    %cst_51 = arith.constant dense<0.000000e+00> : vector<16x64xf32>
    %111 = tpu.matmul %110, %94, %cst_51 {dimension_numbers = #tpu.dot_dimension_numbers<[1], [0], [0], [1], [0, 0, 1, 1], [], []>} : vector<16x16xbf16>, vector<16x64xbf16>, vector<16x64xf32> -> vector<16x64xf32>
    %112 = tpu.concatenate %88, %111 in 1 : vector<16x64xf32>, vector<16x64xf32> -> vector<16x128xf32>
    %c0_52 = arith.constant 0 : index
    %c0_53 = arith.constant 0 : index
    %c0_54 = arith.constant 0 : index
    %113 = vector.load %arg13[%c0_52, %c0_53, %c0_54] : memref<2x128x128xbf16, #tpu.memory_space<vmem>>, vector<1x128x128xbf16>
    %114 = vector.shape_cast %113 : vector<1x128x128xbf16> to vector<128x128xbf16>
    %115 = arith.truncf %112 : vector<16x128xf32> to vector<16x128xbf16>
    %cst_55 = arith.constant dense<0.000000e+00> : vector<16x128xf32>
    %116 = tpu.matmul %115, %114, %cst_55 {dimension_numbers = #tpu.dot_dimension_numbers<[1], [0], [0], [1], [0, 0, 1, 1], [], []>} : vector<16x128xbf16>, vector<128x128xbf16>, vector<16x128xf32> -> vector<16x128xf32>
    %117 = arith.addf %28, %116 : vector<16x128xf32>
    %c0_56 = arith.constant 0 : index
    %c0_57 = arith.constant 0 : index
    %c0_58 = arith.constant 0 : index
    %118 = vector.load %arg14[%c0_56, %c0_57, %c0_58] : memref<2x1x128xf32, #tpu.memory_space<vmem>>, vector<1x1x128xf32>
    %119 = vector.shape_cast %118 : vector<1x1x128xf32> to vector<1x128xf32>
    %c0_59 = arith.constant 0 : index
    %c0_60 = arith.constant 0 : index
    %c0_61 = arith.constant 0 : index
    %120 = vector.load %arg15[%c0_59, %c0_60, %c0_61] : memref<2x1x128xf32, #tpu.memory_space<vmem>>, vector<1x1x128xf32>
    %121 = vector.shape_cast %120 : vector<1x1x128xf32> to vector<1x128xf32>
    %cst_62 = arith.constant dense<0.000000e+00> : vector<16xf32>
    %122 = vector.multi_reduction <add>, %117, %cst_62 [1] : vector<16x128xf32> to vector<16xf32>
    %123 = vector.shape_cast %122 : vector<16xf32> to vector<16x1xf32>
    %cst_63 = arith.constant 1.280000e+02 : f32
    %124 = vector.broadcast %cst_63 : f32 to vector<16x1xf32>
    %125 = arith.divf %123, %124 : vector<16x1xf32>
    %126 = vector.broadcast %125 : vector<16x1xf32> to vector<16x128xf32>
    %127 = arith.subf %117, %126 : vector<16x128xf32>
    %128 = arith.mulf %127, %127 : vector<16x128xf32>
    %cst_64 = arith.constant dense<0.000000e+00> : vector<16xf32>
    %129 = vector.multi_reduction <add>, %128, %cst_64 [1] : vector<16x128xf32> to vector<16xf32>
    %130 = vector.shape_cast %129 : vector<16xf32> to vector<16x1xf32>
    %cst_65 = arith.constant 1.280000e+02 : f32
    %131 = vector.broadcast %cst_65 : f32 to vector<16x1xf32>
    %132 = arith.divf %130, %131 : vector<16x1xf32>
    %133 = vector.broadcast %125 : vector<16x1xf32> to vector<16x128xf32>
    %134 = arith.subf %117, %133 : vector<16x128xf32>
    %cst_66 = arith.constant 9.99999974E-6 : f32
    %135 = vector.broadcast %cst_66 : f32 to vector<16x1xf32>
    %136 = arith.addf %132, %135 : vector<16x1xf32>
    %137 = math.rsqrt %136 : vector<16x1xf32>
    %138 = vector.broadcast %137 : vector<16x1xf32> to vector<16x128xf32>
    %139 = arith.mulf %134, %138 : vector<16x128xf32>
    %140 = vector.broadcast %119 : vector<1x128xf32> to vector<16x128xf32>
    %141 = arith.mulf %139, %140 : vector<16x128xf32>
    %142 = vector.broadcast %121 : vector<1x128xf32> to vector<16x128xf32>
    %143 = arith.addf %141, %142 : vector<16x128xf32>
    %c0_67 = arith.constant 0 : index
    %c0_68 = arith.constant 0 : index
    %c0_69 = arith.constant 0 : index
    %144 = vector.load %arg16[%c0_67, %c0_68, %c0_69] : memref<2x128x512xbf16, #tpu.memory_space<vmem>>, vector<1x128x512xbf16>
    %145 = vector.shape_cast %144 : vector<1x128x512xbf16> to vector<128x512xbf16>
    %146 = arith.truncf %143 : vector<16x128xf32> to vector<16x128xbf16>
    %cst_70 = arith.constant dense<0.000000e+00> : vector<16x512xf32>
    %147 = tpu.matmul %146, %145, %cst_70 {dimension_numbers = #tpu.dot_dimension_numbers<[1], [0], [0], [1], [0, 0, 1, 1], [], []>} : vector<16x128xbf16>, vector<128x512xbf16>, vector<16x512xf32> -> vector<16x512xf32>
    %c0_71 = arith.constant 0 : index
    %c0_72 = arith.constant 0 : index
    %c0_73 = arith.constant 0 : index
    %148 = vector.load %arg17[%c0_71, %c0_72, %c0_73] : memref<2x1x512xf32, #tpu.memory_space<vmem>>, vector<1x1x512xf32>
    %149 = vector.shape_cast %148 : vector<1x1x512xf32> to vector<1x512xf32>
    %150 = vector.broadcast %149 : vector<1x512xf32> to vector<16x512xf32>
    %151 = arith.addf %147, %150 : vector<16x512xf32>
    %152 = arith.mulf %151, %151 : vector<16x512xf32>
    %153 = arith.mulf %151, %152 : vector<16x512xf32>
    %cst_74 = arith.constant 4.471500e-02 : f32
    %154 = vector.broadcast %cst_74 : f32 to vector<16x512xf32>
    %155 = arith.mulf %154, %153 : vector<16x512xf32>
    %156 = arith.addf %151, %155 : vector<16x512xf32>
    %cst_75 = arith.constant 0.797884583 : f32
    %157 = vector.broadcast %cst_75 : f32 to vector<16x512xf32>
    %158 = arith.mulf %157, %156 : vector<16x512xf32>
    %159 = math.tanh %158 : vector<16x512xf32>
    %cst_76 = arith.constant 1.000000e+00 : f32
    %160 = vector.broadcast %cst_76 : f32 to vector<16x512xf32>
    %161 = arith.addf %160, %159 : vector<16x512xf32>
    %cst_77 = arith.constant 5.000000e-01 : f32
    %162 = vector.broadcast %cst_77 : f32 to vector<16x512xf32>
    %163 = arith.mulf %162, %161 : vector<16x512xf32>
    %164 = arith.mulf %151, %163 : vector<16x512xf32>
    %c0_78 = arith.constant 0 : index
    %c0_79 = arith.constant 0 : index
    %c0_80 = arith.constant 0 : index
    %165 = vector.load %arg18[%c0_78, %c0_79, %c0_80] : memref<2x512x128xbf16, #tpu.memory_space<vmem>>, vector<1x512x128xbf16>
    %166 = vector.shape_cast %165 : vector<1x512x128xbf16> to vector<512x128xbf16>
    %167 = arith.truncf %164 : vector<16x512xf32> to vector<16x512xbf16>
    %cst_81 = arith.constant dense<0.000000e+00> : vector<16x128xf32>
    %168 = tpu.matmul %167, %166, %cst_81 {dimension_numbers = #tpu.dot_dimension_numbers<[1], [0], [0], [1], [0, 0, 1, 1], [], []>} : vector<16x512xbf16>, vector<512x128xbf16>, vector<16x128xf32> -> vector<16x128xf32>
    %169 = arith.addf %117, %168 : vector<16x128xf32>
    %c0_82 = arith.constant 0 : index
    %c0_83 = arith.constant 0 : index
    %c0_84 = arith.constant 0 : index
    %170 = vector.load %arg19[%c0_82, %c0_83, %c0_84] : memref<2x1x128xf32, #tpu.memory_space<vmem>>, vector<1x1x128xf32>
    %171 = vector.shape_cast %170 : vector<1x1x128xf32> to vector<1x128xf32>
    %172 = vector.broadcast %171 : vector<1x128xf32> to vector<16x128xf32>
    %173 = arith.addf %169, %172 : vector<16x128xf32>
    %c1 = arith.constant 1 : index
    %c0_85 = arith.constant 0 : index
    %c0_86 = arith.constant 0 : index
    %174 = vector.load %arg8[%c1, %c0_85, %c0_86] : memref<2x1x128xf32, #tpu.memory_space<vmem>>, vector<1x1x128xf32>
    %175 = vector.shape_cast %174 : vector<1x1x128xf32> to vector<1x128xf32>
    %c1_87 = arith.constant 1 : index
    %c0_88 = arith.constant 0 : index
    %c0_89 = arith.constant 0 : index
    %176 = vector.load %arg9[%c1_87, %c0_88, %c0_89] : memref<2x1x128xf32, #tpu.memory_space<vmem>>, vector<1x1x128xf32>
    %177 = vector.shape_cast %176 : vector<1x1x128xf32> to vector<1x128xf32>
    %cst_90 = arith.constant dense<0.000000e+00> : vector<16xf32>
    %178 = vector.multi_reduction <add>, %173, %cst_90 [1] : vector<16x128xf32> to vector<16xf32>
    %179 = vector.shape_cast %178 : vector<16xf32> to vector<16x1xf32>
    %cst_91 = arith.constant 1.280000e+02 : f32
    %180 = vector.broadcast %cst_91 : f32 to vector<16x1xf32>
    %181 = arith.divf %179, %180 : vector<16x1xf32>
    %182 = vector.broadcast %181 : vector<16x1xf32> to vector<16x128xf32>
    %183 = arith.subf %173, %182 : vector<16x128xf32>
    %184 = arith.mulf %183, %183 : vector<16x128xf32>
    %cst_92 = arith.constant dense<0.000000e+00> : vector<16xf32>
    %185 = vector.multi_reduction <add>, %184, %cst_92 [1] : vector<16x128xf32> to vector<16xf32>
    %186 = vector.shape_cast %185 : vector<16xf32> to vector<16x1xf32>
    %cst_93 = arith.constant 1.280000e+02 : f32
    %187 = vector.broadcast %cst_93 : f32 to vector<16x1xf32>
    %188 = arith.divf %186, %187 : vector<16x1xf32>
    %189 = vector.broadcast %181 : vector<16x1xf32> to vector<16x128xf32>
    %190 = arith.subf %173, %189 : vector<16x128xf32>
    %cst_94 = arith.constant 9.99999974E-6 : f32
    %191 = vector.broadcast %cst_94 : f32 to vector<16x1xf32>
    %192 = arith.addf %188, %191 : vector<16x1xf32>
    %193 = math.rsqrt %192 : vector<16x1xf32>
    %194 = vector.broadcast %193 : vector<16x1xf32> to vector<16x128xf32>
    %195 = arith.mulf %190, %194 : vector<16x128xf32>
    %196 = vector.broadcast %175 : vector<1x128xf32> to vector<16x128xf32>
    %197 = arith.mulf %195, %196 : vector<16x128xf32>
    %198 = vector.broadcast %177 : vector<1x128xf32> to vector<16x128xf32>
    %199 = arith.addf %197, %198 : vector<16x128xf32>
    %200 = arith.truncf %199 : vector<16x128xf32> to vector<16x128xbf16>
    %c1_95 = arith.constant 1 : index
    %c0_96 = arith.constant 0 : index
    %c0_97 = arith.constant 0 : index
    %201 = vector.load %arg10[%c1_95, %c0_96, %c0_97] : memref<2x128x128xbf16, #tpu.memory_space<vmem>>, vector<1x128x128xbf16>
    %202 = vector.shape_cast %201 : vector<1x128x128xbf16> to vector<128x128xbf16>
    %cst_98 = arith.constant dense<0.000000e+00> : vector<16x128xf32>
    %203 = tpu.matmul %200, %202, %cst_98 {dimension_numbers = #tpu.dot_dimension_numbers<[1], [0], [0], [1], [0, 0, 1, 1], [], []>} : vector<16x128xbf16>, vector<128x128xbf16>, vector<16x128xf32> -> vector<16x128xf32>
    %c1_99 = arith.constant 1 : index
    %c0_100 = arith.constant 0 : index
    %c0_101 = arith.constant 0 : index
    %204 = vector.load %arg11[%c1_99, %c0_100, %c0_101] : memref<2x128x128xbf16, #tpu.memory_space<vmem>>, vector<1x128x128xbf16>
    %205 = vector.shape_cast %204 : vector<1x128x128xbf16> to vector<128x128xbf16>
    %cst_102 = arith.constant dense<0.000000e+00> : vector<16x128xf32>
    %206 = tpu.matmul %200, %205, %cst_102 {dimension_numbers = #tpu.dot_dimension_numbers<[1], [0], [0], [1], [0, 0, 1, 1], [], []>} : vector<16x128xbf16>, vector<128x128xbf16>, vector<16x128xf32> -> vector<16x128xf32>
    %c1_103 = arith.constant 1 : index
    %c0_104 = arith.constant 0 : index
    %c0_105 = arith.constant 0 : index
    %207 = vector.load %arg12[%c1_103, %c0_104, %c0_105] : memref<2x128x128xbf16, #tpu.memory_space<vmem>>, vector<1x128x128xbf16>
    %208 = vector.shape_cast %207 : vector<1x128x128xbf16> to vector<128x128xbf16>
    %cst_106 = arith.constant dense<0.000000e+00> : vector<16x128xf32>
    %209 = tpu.matmul %200, %208, %cst_106 {dimension_numbers = #tpu.dot_dimension_numbers<[1], [0], [0], [1], [0, 0, 1, 1], [], []>} : vector<16x128xbf16>, vector<128x128xbf16>, vector<16x128xf32> -> vector<16x128xf32>
    %210 = vector.extract_strided_slice %203 {offsets = [0, 0], sizes = [16, 64], strides = [1, 1]} : vector<16x128xf32> to vector<16x64xf32>
    %211 = arith.truncf %210 : vector<16x64xf32> to vector<16x64xbf16>
    %212 = vector.extract_strided_slice %206 {offsets = [0, 0], sizes = [16, 64], strides = [1, 1]} : vector<16x128xf32> to vector<16x64xf32>
    %213 = arith.truncf %212 : vector<16x64xf32> to vector<16x64xbf16>
    %214 = vector.extract_strided_slice %209 {offsets = [0, 0], sizes = [16, 64], strides = [1, 1]} : vector<16x128xf32> to vector<16x64xf32>
    %215 = arith.truncf %214 : vector<16x64xf32> to vector<16x64xbf16>
    %cst_107 = arith.constant dense<0.000000e+00> : vector<16x16xf32>
    %216 = tpu.matmul %211, %213, %cst_107 {dimension_numbers = #tpu.dot_dimension_numbers<[1], [1], [0], [0], [0, 0, 1, 0], [], []>} : vector<16x64xbf16>, vector<16x64xbf16>, vector<16x16xf32> -> vector<16x16xf32>
    %cst_108 = arith.constant 1.250000e-01 : f32
    %217 = vector.broadcast %cst_108 : f32 to vector<16x16xf32>
    %218 = arith.mulf %216, %217 : vector<16x16xf32>
    %cst_109 = arith.constant -1.000000e+30 : f32
    %219 = vector.broadcast %cst_109 : f32 to vector<16x16xf32>
    %220 = arith.select %29, %218, %219 : vector<16x16xi1>, vector<16x16xf32>
    %cst_110 = arith.constant dense<0xFF800000> : vector<16xf32>
    %221 = vector.multi_reduction <maximumf>, %220, %cst_110 [1] : vector<16x16xf32> to vector<16xf32>
    %222 = vector.shape_cast %221 : vector<16xf32> to vector<16x1xf32>
    %223 = vector.broadcast %222 : vector<16x1xf32> to vector<16x16xf32>
    %224 = arith.subf %220, %223 : vector<16x16xf32>
    %225 = math.exp %224 : vector<16x16xf32>
    %cst_111 = arith.constant dense<0.000000e+00> : vector<16xf32>
    %226 = vector.multi_reduction <add>, %225, %cst_111 [1] : vector<16x16xf32> to vector<16xf32>
    %227 = vector.shape_cast %226 : vector<16xf32> to vector<16x1xf32>
    %228 = tpu.reciprocal %227 {approx = true} : vector<16x1xf32> -> vector<16x1xf32>
    %229 = vector.broadcast %228 : vector<16x1xf32> to vector<16x16xf32>
    %230 = arith.mulf %225, %229 : vector<16x16xf32>
    %231 = arith.truncf %230 : vector<16x16xf32> to vector<16x16xbf16>
    %cst_112 = arith.constant dense<0.000000e+00> : vector<16x64xf32>
    %232 = tpu.matmul %231, %215, %cst_112 {dimension_numbers = #tpu.dot_dimension_numbers<[1], [0], [0], [1], [0, 0, 1, 1], [], []>} : vector<16x16xbf16>, vector<16x64xbf16>, vector<16x64xf32> -> vector<16x64xf32>
    %233 = vector.extract_strided_slice %203 {offsets = [0, 64], sizes = [16, 64], strides = [1, 1]} : vector<16x128xf32> to vector<16x64xf32>
    %234 = arith.truncf %233 : vector<16x64xf32> to vector<16x64xbf16>
    %235 = vector.extract_strided_slice %206 {offsets = [0, 64], sizes = [16, 64], strides = [1, 1]} : vector<16x128xf32> to vector<16x64xf32>
    %236 = arith.truncf %235 : vector<16x64xf32> to vector<16x64xbf16>
    %237 = vector.extract_strided_slice %209 {offsets = [0, 64], sizes = [16, 64], strides = [1, 1]} : vector<16x128xf32> to vector<16x64xf32>
    %238 = arith.truncf %237 : vector<16x64xf32> to vector<16x64xbf16>
    %cst_113 = arith.constant dense<0.000000e+00> : vector<16x16xf32>
    %239 = tpu.matmul %234, %236, %cst_113 {dimension_numbers = #tpu.dot_dimension_numbers<[1], [1], [0], [0], [0, 0, 1, 0], [], []>} : vector<16x64xbf16>, vector<16x64xbf16>, vector<16x16xf32> -> vector<16x16xf32>
    %cst_114 = arith.constant 1.250000e-01 : f32
    %240 = vector.broadcast %cst_114 : f32 to vector<16x16xf32>
    %241 = arith.mulf %239, %240 : vector<16x16xf32>
    %cst_115 = arith.constant -1.000000e+30 : f32
    %242 = vector.broadcast %cst_115 : f32 to vector<16x16xf32>
    %243 = arith.select %29, %241, %242 : vector<16x16xi1>, vector<16x16xf32>
    %cst_116 = arith.constant dense<0xFF800000> : vector<16xf32>
    %244 = vector.multi_reduction <maximumf>, %243, %cst_116 [1] : vector<16x16xf32> to vector<16xf32>
    %245 = vector.shape_cast %244 : vector<16xf32> to vector<16x1xf32>
    %246 = vector.broadcast %245 : vector<16x1xf32> to vector<16x16xf32>
    %247 = arith.subf %243, %246 : vector<16x16xf32>
    %248 = math.exp %247 : vector<16x16xf32>
    %cst_117 = arith.constant dense<0.000000e+00> : vector<16xf32>
    %249 = vector.multi_reduction <add>, %248, %cst_117 [1] : vector<16x16xf32> to vector<16xf32>
    %250 = vector.shape_cast %249 : vector<16xf32> to vector<16x1xf32>
    %251 = tpu.reciprocal %250 {approx = true} : vector<16x1xf32> -> vector<16x1xf32>
    %252 = vector.broadcast %251 : vector<16x1xf32> to vector<16x16xf32>
    %253 = arith.mulf %248, %252 : vector<16x16xf32>
    %254 = arith.truncf %253 : vector<16x16xf32> to vector<16x16xbf16>
    %cst_118 = arith.constant dense<0.000000e+00> : vector<16x64xf32>
    %255 = tpu.matmul %254, %238, %cst_118 {dimension_numbers = #tpu.dot_dimension_numbers<[1], [0], [0], [1], [0, 0, 1, 1], [], []>} : vector<16x16xbf16>, vector<16x64xbf16>, vector<16x64xf32> -> vector<16x64xf32>
    %256 = tpu.concatenate %232, %255 in 1 : vector<16x64xf32>, vector<16x64xf32> -> vector<16x128xf32>
    %c1_119 = arith.constant 1 : index
    %c0_120 = arith.constant 0 : index
    %c0_121 = arith.constant 0 : index
    %257 = vector.load %arg13[%c1_119, %c0_120, %c0_121] : memref<2x128x128xbf16, #tpu.memory_space<vmem>>, vector<1x128x128xbf16>
    %258 = vector.shape_cast %257 : vector<1x128x128xbf16> to vector<128x128xbf16>
    %259 = arith.truncf %256 : vector<16x128xf32> to vector<16x128xbf16>
    %cst_122 = arith.constant dense<0.000000e+00> : vector<16x128xf32>
    %260 = tpu.matmul %259, %258, %cst_122 {dimension_numbers = #tpu.dot_dimension_numbers<[1], [0], [0], [1], [0, 0, 1, 1], [], []>} : vector<16x128xbf16>, vector<128x128xbf16>, vector<16x128xf32> -> vector<16x128xf32>
    %261 = arith.addf %173, %260 : vector<16x128xf32>
    %c1_123 = arith.constant 1 : index
    %c0_124 = arith.constant 0 : index
    %c0_125 = arith.constant 0 : index
    %262 = vector.load %arg14[%c1_123, %c0_124, %c0_125] : memref<2x1x128xf32, #tpu.memory_space<vmem>>, vector<1x1x128xf32>
    %263 = vector.shape_cast %262 : vector<1x1x128xf32> to vector<1x128xf32>
    %c1_126 = arith.constant 1 : index
    %c0_127 = arith.constant 0 : index
    %c0_128 = arith.constant 0 : index
    %264 = vector.load %arg15[%c1_126, %c0_127, %c0_128] : memref<2x1x128xf32, #tpu.memory_space<vmem>>, vector<1x1x128xf32>
    %265 = vector.shape_cast %264 : vector<1x1x128xf32> to vector<1x128xf32>
    %cst_129 = arith.constant dense<0.000000e+00> : vector<16xf32>
    %266 = vector.multi_reduction <add>, %261, %cst_129 [1] : vector<16x128xf32> to vector<16xf32>
    %267 = vector.shape_cast %266 : vector<16xf32> to vector<16x1xf32>
    %cst_130 = arith.constant 1.280000e+02 : f32
    %268 = vector.broadcast %cst_130 : f32 to vector<16x1xf32>
    %269 = arith.divf %267, %268 : vector<16x1xf32>
    %270 = vector.broadcast %269 : vector<16x1xf32> to vector<16x128xf32>
    %271 = arith.subf %261, %270 : vector<16x128xf32>
    %272 = arith.mulf %271, %271 : vector<16x128xf32>
    %cst_131 = arith.constant dense<0.000000e+00> : vector<16xf32>
    %273 = vector.multi_reduction <add>, %272, %cst_131 [1] : vector<16x128xf32> to vector<16xf32>
    %274 = vector.shape_cast %273 : vector<16xf32> to vector<16x1xf32>
    %cst_132 = arith.constant 1.280000e+02 : f32
    %275 = vector.broadcast %cst_132 : f32 to vector<16x1xf32>
    %276 = arith.divf %274, %275 : vector<16x1xf32>
    %277 = vector.broadcast %269 : vector<16x1xf32> to vector<16x128xf32>
    %278 = arith.subf %261, %277 : vector<16x128xf32>
    %cst_133 = arith.constant 9.99999974E-6 : f32
    %279 = vector.broadcast %cst_133 : f32 to vector<16x1xf32>
    %280 = arith.addf %276, %279 : vector<16x1xf32>
    %281 = math.rsqrt %280 : vector<16x1xf32>
    %282 = vector.broadcast %281 : vector<16x1xf32> to vector<16x128xf32>
    %283 = arith.mulf %278, %282 : vector<16x128xf32>
    %284 = vector.broadcast %263 : vector<1x128xf32> to vector<16x128xf32>
    %285 = arith.mulf %283, %284 : vector<16x128xf32>
    %286 = vector.broadcast %265 : vector<1x128xf32> to vector<16x128xf32>
    %287 = arith.addf %285, %286 : vector<16x128xf32>
    %c1_134 = arith.constant 1 : index
    %c0_135 = arith.constant 0 : index
    %c0_136 = arith.constant 0 : index
    %288 = vector.load %arg16[%c1_134, %c0_135, %c0_136] : memref<2x128x512xbf16, #tpu.memory_space<vmem>>, vector<1x128x512xbf16>
    %289 = vector.shape_cast %288 : vector<1x128x512xbf16> to vector<128x512xbf16>
    %290 = arith.truncf %287 : vector<16x128xf32> to vector<16x128xbf16>
    %cst_137 = arith.constant dense<0.000000e+00> : vector<16x512xf32>
    %291 = tpu.matmul %290, %289, %cst_137 {dimension_numbers = #tpu.dot_dimension_numbers<[1], [0], [0], [1], [0, 0, 1, 1], [], []>} : vector<16x128xbf16>, vector<128x512xbf16>, vector<16x512xf32> -> vector<16x512xf32>
    %c1_138 = arith.constant 1 : index
    %c0_139 = arith.constant 0 : index
    %c0_140 = arith.constant 0 : index
    %292 = vector.load %arg17[%c1_138, %c0_139, %c0_140] : memref<2x1x512xf32, #tpu.memory_space<vmem>>, vector<1x1x512xf32>
    %293 = vector.shape_cast %292 : vector<1x1x512xf32> to vector<1x512xf32>
    %294 = vector.broadcast %293 : vector<1x512xf32> to vector<16x512xf32>
    %295 = arith.addf %291, %294 : vector<16x512xf32>
    %296 = arith.mulf %295, %295 : vector<16x512xf32>
    %297 = arith.mulf %295, %296 : vector<16x512xf32>
    %cst_141 = arith.constant 4.471500e-02 : f32
    %298 = vector.broadcast %cst_141 : f32 to vector<16x512xf32>
    %299 = arith.mulf %298, %297 : vector<16x512xf32>
    %300 = arith.addf %295, %299 : vector<16x512xf32>
    %cst_142 = arith.constant 0.797884583 : f32
    %301 = vector.broadcast %cst_142 : f32 to vector<16x512xf32>
    %302 = arith.mulf %301, %300 : vector<16x512xf32>
    %303 = math.tanh %302 : vector<16x512xf32>
    %cst_143 = arith.constant 1.000000e+00 : f32
    %304 = vector.broadcast %cst_143 : f32 to vector<16x512xf32>
    %305 = arith.addf %304, %303 : vector<16x512xf32>
    %cst_144 = arith.constant 5.000000e-01 : f32
    %306 = vector.broadcast %cst_144 : f32 to vector<16x512xf32>
    %307 = arith.mulf %306, %305 : vector<16x512xf32>
    %308 = arith.mulf %295, %307 : vector<16x512xf32>
    %c1_145 = arith.constant 1 : index
    %c0_146 = arith.constant 0 : index
    %c0_147 = arith.constant 0 : index
    %309 = vector.load %arg18[%c1_145, %c0_146, %c0_147] : memref<2x512x128xbf16, #tpu.memory_space<vmem>>, vector<1x512x128xbf16>
    %310 = vector.shape_cast %309 : vector<1x512x128xbf16> to vector<512x128xbf16>
    %311 = arith.truncf %308 : vector<16x512xf32> to vector<16x512xbf16>
    %cst_148 = arith.constant dense<0.000000e+00> : vector<16x128xf32>
    %312 = tpu.matmul %311, %310, %cst_148 {dimension_numbers = #tpu.dot_dimension_numbers<[1], [0], [0], [1], [0, 0, 1, 1], [], []>} : vector<16x512xbf16>, vector<512x128xbf16>, vector<16x128xf32> -> vector<16x128xf32>
    %313 = arith.addf %261, %312 : vector<16x128xf32>
    %c1_149 = arith.constant 1 : index
    %c0_150 = arith.constant 0 : index
    %c0_151 = arith.constant 0 : index
    %314 = vector.load %arg19[%c1_149, %c0_150, %c0_151] : memref<2x1x128xf32, #tpu.memory_space<vmem>>, vector<1x1x128xf32>
    %315 = vector.shape_cast %314 : vector<1x1x128xf32> to vector<1x128xf32>
    %316 = vector.broadcast %315 : vector<1x128xf32> to vector<16x128xf32>
    %317 = arith.addf %313, %316 : vector<16x128xf32>
    %c0_152 = arith.constant 0 : index
    %c0_153 = arith.constant 0 : index
    %318 = vector.load %arg20[%c0_152, %c0_153] : memref<1x128xf32, #tpu.memory_space<vmem>>, vector<1x128xf32>
    %c0_154 = arith.constant 0 : index
    %c0_155 = arith.constant 0 : index
    %319 = vector.load %arg21[%c0_154, %c0_155] : memref<1x128xf32, #tpu.memory_space<vmem>>, vector<1x128xf32>
    %cst_156 = arith.constant dense<0.000000e+00> : vector<16xf32>
    %320 = vector.multi_reduction <add>, %317, %cst_156 [1] : vector<16x128xf32> to vector<16xf32>
    %321 = vector.shape_cast %320 : vector<16xf32> to vector<16x1xf32>
    %cst_157 = arith.constant 1.280000e+02 : f32
    %322 = vector.broadcast %cst_157 : f32 to vector<16x1xf32>
    %323 = arith.divf %321, %322 : vector<16x1xf32>
    %324 = vector.broadcast %323 : vector<16x1xf32> to vector<16x128xf32>
    %325 = arith.subf %317, %324 : vector<16x128xf32>
    %326 = arith.mulf %325, %325 : vector<16x128xf32>
    %cst_158 = arith.constant dense<0.000000e+00> : vector<16xf32>
    %327 = vector.multi_reduction <add>, %326, %cst_158 [1] : vector<16x128xf32> to vector<16xf32>
    %328 = vector.shape_cast %327 : vector<16xf32> to vector<16x1xf32>
    %cst_159 = arith.constant 1.280000e+02 : f32
    %329 = vector.broadcast %cst_159 : f32 to vector<16x1xf32>
    %330 = arith.divf %328, %329 : vector<16x1xf32>
    %331 = vector.broadcast %323 : vector<16x1xf32> to vector<16x128xf32>
    %332 = arith.subf %317, %331 : vector<16x128xf32>
    %cst_160 = arith.constant 9.99999974E-6 : f32
    %333 = vector.broadcast %cst_160 : f32 to vector<16x1xf32>
    %334 = arith.addf %330, %333 : vector<16x1xf32>
    %335 = math.rsqrt %334 : vector<16x1xf32>
    %336 = vector.broadcast %335 : vector<16x1xf32> to vector<16x128xf32>
    %337 = arith.mulf %332, %336 : vector<16x128xf32>
    %338 = vector.broadcast %318 : vector<1x128xf32> to vector<16x128xf32>
    %339 = arith.mulf %337, %338 : vector<16x128xf32>
    %340 = vector.broadcast %319 : vector<1x128xf32> to vector<16x128xf32>
    %341 = arith.addf %339, %340 : vector<16x128xf32>
    %342 = arith.mulf %5, %5 : vector<16x1xf32>
    %cst_161 = arith.constant 2.500000e-01 : f32
    %343 = vector.broadcast %cst_161 : f32 to vector<16x1xf32>
    %344 = arith.addf %342, %343 : vector<16x1xf32>
    %345 = math.rsqrt %344 : vector<16x1xf32>
    %346 = arith.mulf %345, %345 : vector<16x1xf32>
    %cst_162 = arith.constant 2.500000e-01 : f32
    %347 = vector.broadcast %cst_162 : f32 to vector<16x1xf32>
    %348 = arith.mulf %347, %346 : vector<16x1xf32>
    %cst_163 = arith.constant 5.000000e-01 : f32
    %349 = vector.broadcast %cst_163 : f32 to vector<16x1xf32>
    %350 = arith.mulf %5, %349 : vector<16x1xf32>
    %351 = arith.mulf %350, %345 : vector<16x1xf32>
    %cst_164 = arith.constant 9.99999968E-21 : f32
    %352 = vector.broadcast %cst_164 : f32 to vector<16x1xf32>
    %353 = arith.maximumf %5, %352 : vector<16x1xf32>
    %354 = math.log %353 : vector<16x1xf32>
    %cst_165 = arith.constant 2.500000e-01 : f32
    %355 = vector.broadcast %cst_165 : f32 to vector<16x1xf32>
    %356 = arith.mulf %354, %355 : vector<16x1xf32>
    %c0_166 = arith.constant 0 : index
    %c0_167 = arith.constant 0 : index
    %357 = vector.load %arg22[%c0_166, %c0_167] : memref<1x64xf32, #tpu.memory_space<vmem>>, vector<1x64xf32>
    %358 = vector.broadcast %356 : vector<16x1xf32> to vector<16x64xf32>
    %359 = vector.broadcast %357 : vector<1x64xf32> to vector<16x64xf32>
    %360 = arith.mulf %358, %359 : vector<16x64xf32>
    %cst_168 = arith.constant 6.28318548 : f32
    %361 = vector.broadcast %cst_168 : f32 to vector<16x64xf32>
    %362 = arith.mulf %360, %361 : vector<16x64xf32>
    %c0_169 = arith.constant 0 : index
    %c0_170 = arith.constant 0 : index
    %363 = vector.load %arg23[%c0_169, %c0_170] : memref<1x128xf32, #tpu.memory_space<vmem>>, vector<1x128xf32>
    %364 = vector.broadcast %356 : vector<16x1xf32> to vector<16x128xf32>
    %365 = vector.broadcast %363 : vector<1x128xf32> to vector<16x128xf32>
    %366 = arith.mulf %364, %365 : vector<16x128xf32>
    %367 = math.sin %362 : vector<16x64xf32>
    %c0_171 = arith.constant 0 : index
    %c0_172 = arith.constant 0 : index
    %368 = vector.load %arg24[%c0_171, %c0_172] : memref<64x128xbf16, #tpu.memory_space<vmem>>, vector<64x128xbf16>
    %369 = arith.truncf %367 : vector<16x64xf32> to vector<16x64xbf16>
    %cst_173 = arith.constant dense<0.000000e+00> : vector<16x128xf32>
    %370 = tpu.matmul %369, %368, %cst_173 {dimension_numbers = #tpu.dot_dimension_numbers<[1], [0], [0], [1], [0, 0, 1, 1], [], []>} : vector<16x64xbf16>, vector<64x128xbf16>, vector<16x128xf32> -> vector<16x128xf32>
    %371 = arith.addf %366, %370 : vector<16x128xf32>
    %372 = math.cos %362 : vector<16x64xf32>
    %c0_174 = arith.constant 0 : index
    %c0_175 = arith.constant 0 : index
    %373 = vector.load %arg25[%c0_174, %c0_175] : memref<64x128xbf16, #tpu.memory_space<vmem>>, vector<64x128xbf16>
    %374 = arith.truncf %372 : vector<16x64xf32> to vector<16x64xbf16>
    %cst_176 = arith.constant dense<0.000000e+00> : vector<16x128xf32>
    %375 = tpu.matmul %374, %373, %cst_176 {dimension_numbers = #tpu.dot_dimension_numbers<[1], [0], [0], [1], [0, 0, 1, 1], [], []>} : vector<16x64xbf16>, vector<64x128xbf16>, vector<16x128xf32> -> vector<16x128xf32>
    %376 = arith.addf %371, %375 : vector<16x128xf32>
    %c0_177 = arith.constant 0 : index
    %c0_178 = arith.constant 0 : index
    %377 = vector.load %arg26[%c0_177, %c0_178] : memref<1x128xf32, #tpu.memory_space<vmem>>, vector<1x128xf32>
    %378 = vector.broadcast %377 : vector<1x128xf32> to vector<16x128xf32>
    %379 = arith.addf %376, %378 : vector<16x128xf32>
    %380 = arith.addf %379, %341 : vector<16x128xf32>
    %381 = arith.negf %380 : vector<16x128xf32>
    %382 = math.exp %381 : vector<16x128xf32>
    %cst_179 = arith.constant 1.000000e+00 : f32
    %383 = vector.broadcast %cst_179 : f32 to vector<16x128xf32>
    %384 = arith.addf %383, %382 : vector<16x128xf32>
    %385 = arith.divf %383, %384 : vector<16x128xf32>
    %386 = arith.mulf %380, %385 : vector<16x128xf32>
    %387 = arith.truncf %386 : vector<16x128xf32> to vector<16x128xbf16>
    %388 = vector.broadcast %5 : vector<16x1xf32> to vector<16x128xf32>
    %389 = arith.mulf %388, %3 : vector<16x128xf32>
    %390 = arith.addf %1, %389 : vector<16x128xf32>
    %391 = vector.broadcast %345 : vector<16x1xf32> to vector<16x128xf32>
    %392 = arith.mulf %391, %390 : vector<16x128xf32>
    %c0_180 = arith.constant 0 : index
    %c0_181 = arith.constant 0 : index
    %c0_182 = arith.constant 0 : index
    %393 = vector.load %arg27[%c0_180, %c0_181, %c0_182] : memref<3x128x128xbf16, #tpu.memory_space<vmem>>, vector<1x128x128xbf16>
    %394 = vector.shape_cast %393 : vector<1x128x128xbf16> to vector<128x128xbf16>
    %cst_183 = arith.constant dense<0.000000e+00> : vector<16x128xf32>
    %395 = tpu.matmul %387, %394, %cst_183 {dimension_numbers = #tpu.dot_dimension_numbers<[1], [0], [0], [1], [0, 0, 1, 1], [], []>} : vector<16x128xbf16>, vector<128x128xbf16>, vector<16x128xf32> -> vector<16x128xf32>
    %cst_184 = arith.constant dense<0.000000e+00> : vector<16xf32>
    %396 = vector.multi_reduction <add>, %392, %cst_184 [1] : vector<16x128xf32> to vector<16xf32>
    %397 = vector.shape_cast %396 : vector<16xf32> to vector<16x1xf32>
    %cst_185 = arith.constant 1.280000e+02 : f32
    %398 = vector.broadcast %cst_185 : f32 to vector<16x1xf32>
    %399 = arith.divf %397, %398 : vector<16x1xf32>
    %400 = vector.broadcast %399 : vector<16x1xf32> to vector<16x128xf32>
    %401 = arith.subf %392, %400 : vector<16x128xf32>
    %402 = arith.mulf %401, %401 : vector<16x128xf32>
    %cst_186 = arith.constant dense<0.000000e+00> : vector<16xf32>
    %403 = vector.multi_reduction <add>, %402, %cst_186 [1] : vector<16x128xf32> to vector<16xf32>
    %404 = vector.shape_cast %403 : vector<16xf32> to vector<16x1xf32>
    %cst_187 = arith.constant 1.280000e+02 : f32
    %405 = vector.broadcast %cst_187 : f32 to vector<16x1xf32>
    %406 = arith.divf %404, %405 : vector<16x1xf32>
    %407 = vector.broadcast %399 : vector<16x1xf32> to vector<16x128xf32>
    %408 = arith.subf %392, %407 : vector<16x128xf32>
    %cst_188 = arith.constant 9.99999974E-6 : f32
    %409 = vector.broadcast %cst_188 : f32 to vector<16x1xf32>
    %410 = arith.addf %406, %409 : vector<16x1xf32>
    %411 = math.rsqrt %410 : vector<16x1xf32>
    %412 = vector.broadcast %411 : vector<16x1xf32> to vector<16x128xf32>
    %413 = arith.mulf %408, %412 : vector<16x128xf32>
    %cst_189 = arith.constant 1.000000e+00 : f32
    %414 = vector.broadcast %cst_189 : f32 to vector<16x128xf32>
    %415 = arith.addf %395, %414 : vector<16x128xf32>
    %416 = arith.mulf %413, %415 : vector<16x128xf32>
    %c0_190 = arith.constant 0 : index
    %c0_191 = arith.constant 0 : index
    %c0_192 = arith.constant 0 : index
    %417 = vector.load %arg28[%c0_190, %c0_191, %c0_192] : memref<3x128x128xbf16, #tpu.memory_space<vmem>>, vector<1x128x128xbf16>
    %418 = vector.shape_cast %417 : vector<1x128x128xbf16> to vector<128x128xbf16>
    %419 = arith.truncf %416 : vector<16x128xf32> to vector<16x128xbf16>
    %cst_193 = arith.constant dense<0.000000e+00> : vector<16x128xf32>
    %420 = tpu.matmul %419, %418, %cst_193 {dimension_numbers = #tpu.dot_dimension_numbers<[1], [0], [0], [1], [0, 0, 1, 1], [], []>} : vector<16x128xbf16>, vector<128x128xbf16>, vector<16x128xf32> -> vector<16x128xf32>
    %c0_194 = arith.constant 0 : index
    %c0_195 = arith.constant 0 : index
    %c0_196 = arith.constant 0 : index
    %421 = vector.load %arg29[%c0_194, %c0_195, %c0_196] : memref<3x1x128xf32, #tpu.memory_space<vmem>>, vector<1x1x128xf32>
    %422 = vector.shape_cast %421 : vector<1x1x128xf32> to vector<1x128xf32>
    %423 = vector.broadcast %422 : vector<1x128xf32> to vector<16x128xf32>
    %424 = arith.addf %420, %423 : vector<16x128xf32>
    %425 = arith.negf %424 : vector<16x128xf32>
    %426 = math.exp %425 : vector<16x128xf32>
    %cst_197 = arith.constant 1.000000e+00 : f32
    %427 = vector.broadcast %cst_197 : f32 to vector<16x128xf32>
    %428 = arith.addf %427, %426 : vector<16x128xf32>
    %429 = arith.divf %427, %428 : vector<16x128xf32>
    %430 = arith.mulf %424, %429 : vector<16x128xf32>
    %c0_198 = arith.constant 0 : index
    %c0_199 = arith.constant 0 : index
    %c0_200 = arith.constant 0 : index
    %431 = vector.load %arg30[%c0_198, %c0_199, %c0_200] : memref<3x128x128xbf16, #tpu.memory_space<vmem>>, vector<1x128x128xbf16>
    %432 = vector.shape_cast %431 : vector<1x128x128xbf16> to vector<128x128xbf16>
    %433 = arith.truncf %430 : vector<16x128xf32> to vector<16x128xbf16>
    %cst_201 = arith.constant dense<0.000000e+00> : vector<16x128xf32>
    %434 = tpu.matmul %433, %432, %cst_201 {dimension_numbers = #tpu.dot_dimension_numbers<[1], [0], [0], [1], [0, 0, 1, 1], [], []>} : vector<16x128xbf16>, vector<128x128xbf16>, vector<16x128xf32> -> vector<16x128xf32>
    %c0_202 = arith.constant 0 : index
    %c0_203 = arith.constant 0 : index
    %c0_204 = arith.constant 0 : index
    %435 = vector.load %arg31[%c0_202, %c0_203, %c0_204] : memref<3x1x128xf32, #tpu.memory_space<vmem>>, vector<1x1x128xf32>
    %436 = vector.shape_cast %435 : vector<1x1x128xf32> to vector<1x128xf32>
    %437 = vector.broadcast %436 : vector<1x128xf32> to vector<16x128xf32>
    %438 = arith.addf %434, %437 : vector<16x128xf32>
    %c0_205 = arith.constant 0 : index
    %c0_206 = arith.constant 0 : index
    %c0_207 = arith.constant 0 : index
    %439 = vector.load %arg32[%c0_205, %c0_206, %c0_207] : memref<3x128x128xbf16, #tpu.memory_space<vmem>>, vector<1x128x128xbf16>
    %440 = vector.shape_cast %439 : vector<1x128x128xbf16> to vector<128x128xbf16>
    %cst_208 = arith.constant dense<0.000000e+00> : vector<16x128xf32>
    %441 = tpu.matmul %387, %440, %cst_208 {dimension_numbers = #tpu.dot_dimension_numbers<[1], [0], [0], [1], [0, 0, 1, 1], [], []>} : vector<16x128xbf16>, vector<128x128xbf16>, vector<16x128xf32> -> vector<16x128xf32>
    %cst_209 = arith.constant 1.000000e+00 : f32
    %442 = vector.broadcast %cst_209 : f32 to vector<16x128xf32>
    %443 = arith.addf %441, %442 : vector<16x128xf32>
    %444 = arith.mulf %438, %443 : vector<16x128xf32>
    %445 = arith.addf %444, %392 : vector<16x128xf32>
    %c1_210 = arith.constant 1 : index
    %c0_211 = arith.constant 0 : index
    %c0_212 = arith.constant 0 : index
    %446 = vector.load %arg27[%c1_210, %c0_211, %c0_212] : memref<3x128x128xbf16, #tpu.memory_space<vmem>>, vector<1x128x128xbf16>
    %447 = vector.shape_cast %446 : vector<1x128x128xbf16> to vector<128x128xbf16>
    %cst_213 = arith.constant dense<0.000000e+00> : vector<16x128xf32>
    %448 = tpu.matmul %387, %447, %cst_213 {dimension_numbers = #tpu.dot_dimension_numbers<[1], [0], [0], [1], [0, 0, 1, 1], [], []>} : vector<16x128xbf16>, vector<128x128xbf16>, vector<16x128xf32> -> vector<16x128xf32>
    %cst_214 = arith.constant dense<0.000000e+00> : vector<16xf32>
    %449 = vector.multi_reduction <add>, %445, %cst_214 [1] : vector<16x128xf32> to vector<16xf32>
    %450 = vector.shape_cast %449 : vector<16xf32> to vector<16x1xf32>
    %cst_215 = arith.constant 1.280000e+02 : f32
    %451 = vector.broadcast %cst_215 : f32 to vector<16x1xf32>
    %452 = arith.divf %450, %451 : vector<16x1xf32>
    %453 = vector.broadcast %452 : vector<16x1xf32> to vector<16x128xf32>
    %454 = arith.subf %445, %453 : vector<16x128xf32>
    %455 = arith.mulf %454, %454 : vector<16x128xf32>
    %cst_216 = arith.constant dense<0.000000e+00> : vector<16xf32>
    %456 = vector.multi_reduction <add>, %455, %cst_216 [1] : vector<16x128xf32> to vector<16xf32>
    %457 = vector.shape_cast %456 : vector<16xf32> to vector<16x1xf32>
    %cst_217 = arith.constant 1.280000e+02 : f32
    %458 = vector.broadcast %cst_217 : f32 to vector<16x1xf32>
    %459 = arith.divf %457, %458 : vector<16x1xf32>
    %460 = vector.broadcast %452 : vector<16x1xf32> to vector<16x128xf32>
    %461 = arith.subf %445, %460 : vector<16x128xf32>
    %cst_218 = arith.constant 9.99999974E-6 : f32
    %462 = vector.broadcast %cst_218 : f32 to vector<16x1xf32>
    %463 = arith.addf %459, %462 : vector<16x1xf32>
    %464 = math.rsqrt %463 : vector<16x1xf32>
    %465 = vector.broadcast %464 : vector<16x1xf32> to vector<16x128xf32>
    %466 = arith.mulf %461, %465 : vector<16x128xf32>
    %cst_219 = arith.constant 1.000000e+00 : f32
    %467 = vector.broadcast %cst_219 : f32 to vector<16x128xf32>
    %468 = arith.addf %448, %467 : vector<16x128xf32>
    %469 = arith.mulf %466, %468 : vector<16x128xf32>
    %c1_220 = arith.constant 1 : index
    %c0_221 = arith.constant 0 : index
    %c0_222 = arith.constant 0 : index
    %470 = vector.load %arg28[%c1_220, %c0_221, %c0_222] : memref<3x128x128xbf16, #tpu.memory_space<vmem>>, vector<1x128x128xbf16>
    %471 = vector.shape_cast %470 : vector<1x128x128xbf16> to vector<128x128xbf16>
    %472 = arith.truncf %469 : vector<16x128xf32> to vector<16x128xbf16>
    %cst_223 = arith.constant dense<0.000000e+00> : vector<16x128xf32>
    %473 = tpu.matmul %472, %471, %cst_223 {dimension_numbers = #tpu.dot_dimension_numbers<[1], [0], [0], [1], [0, 0, 1, 1], [], []>} : vector<16x128xbf16>, vector<128x128xbf16>, vector<16x128xf32> -> vector<16x128xf32>
    %c1_224 = arith.constant 1 : index
    %c0_225 = arith.constant 0 : index
    %c0_226 = arith.constant 0 : index
    %474 = vector.load %arg29[%c1_224, %c0_225, %c0_226] : memref<3x1x128xf32, #tpu.memory_space<vmem>>, vector<1x1x128xf32>
    %475 = vector.shape_cast %474 : vector<1x1x128xf32> to vector<1x128xf32>
    %476 = vector.broadcast %475 : vector<1x128xf32> to vector<16x128xf32>
    %477 = arith.addf %473, %476 : vector<16x128xf32>
    %478 = arith.negf %477 : vector<16x128xf32>
    %479 = math.exp %478 : vector<16x128xf32>
    %cst_227 = arith.constant 1.000000e+00 : f32
    %480 = vector.broadcast %cst_227 : f32 to vector<16x128xf32>
    %481 = arith.addf %480, %479 : vector<16x128xf32>
    %482 = arith.divf %480, %481 : vector<16x128xf32>
    %483 = arith.mulf %477, %482 : vector<16x128xf32>
    %c1_228 = arith.constant 1 : index
    %c0_229 = arith.constant 0 : index
    %c0_230 = arith.constant 0 : index
    %484 = vector.load %arg30[%c1_228, %c0_229, %c0_230] : memref<3x128x128xbf16, #tpu.memory_space<vmem>>, vector<1x128x128xbf16>
    %485 = vector.shape_cast %484 : vector<1x128x128xbf16> to vector<128x128xbf16>
    %486 = arith.truncf %483 : vector<16x128xf32> to vector<16x128xbf16>
    %cst_231 = arith.constant dense<0.000000e+00> : vector<16x128xf32>
    %487 = tpu.matmul %486, %485, %cst_231 {dimension_numbers = #tpu.dot_dimension_numbers<[1], [0], [0], [1], [0, 0, 1, 1], [], []>} : vector<16x128xbf16>, vector<128x128xbf16>, vector<16x128xf32> -> vector<16x128xf32>
    %c1_232 = arith.constant 1 : index
    %c0_233 = arith.constant 0 : index
    %c0_234 = arith.constant 0 : index
    %488 = vector.load %arg31[%c1_232, %c0_233, %c0_234] : memref<3x1x128xf32, #tpu.memory_space<vmem>>, vector<1x1x128xf32>
    %489 = vector.shape_cast %488 : vector<1x1x128xf32> to vector<1x128xf32>
    %490 = vector.broadcast %489 : vector<1x128xf32> to vector<16x128xf32>
    %491 = arith.addf %487, %490 : vector<16x128xf32>
    %c1_235 = arith.constant 1 : index
    %c0_236 = arith.constant 0 : index
    %c0_237 = arith.constant 0 : index
    %492 = vector.load %arg32[%c1_235, %c0_236, %c0_237] : memref<3x128x128xbf16, #tpu.memory_space<vmem>>, vector<1x128x128xbf16>
    %493 = vector.shape_cast %492 : vector<1x128x128xbf16> to vector<128x128xbf16>
    %cst_238 = arith.constant dense<0.000000e+00> : vector<16x128xf32>
    %494 = tpu.matmul %387, %493, %cst_238 {dimension_numbers = #tpu.dot_dimension_numbers<[1], [0], [0], [1], [0, 0, 1, 1], [], []>} : vector<16x128xbf16>, vector<128x128xbf16>, vector<16x128xf32> -> vector<16x128xf32>
    %cst_239 = arith.constant 1.000000e+00 : f32
    %495 = vector.broadcast %cst_239 : f32 to vector<16x128xf32>
    %496 = arith.addf %494, %495 : vector<16x128xf32>
    %497 = arith.mulf %491, %496 : vector<16x128xf32>
    %498 = arith.addf %497, %445 : vector<16x128xf32>
    %c2 = arith.constant 2 : index
    %c0_240 = arith.constant 0 : index
    %c0_241 = arith.constant 0 : index
    %499 = vector.load %arg27[%c2, %c0_240, %c0_241] : memref<3x128x128xbf16, #tpu.memory_space<vmem>>, vector<1x128x128xbf16>
    %500 = vector.shape_cast %499 : vector<1x128x128xbf16> to vector<128x128xbf16>
    %cst_242 = arith.constant dense<0.000000e+00> : vector<16x128xf32>
    %501 = tpu.matmul %387, %500, %cst_242 {dimension_numbers = #tpu.dot_dimension_numbers<[1], [0], [0], [1], [0, 0, 1, 1], [], []>} : vector<16x128xbf16>, vector<128x128xbf16>, vector<16x128xf32> -> vector<16x128xf32>
    %cst_243 = arith.constant dense<0.000000e+00> : vector<16xf32>
    %502 = vector.multi_reduction <add>, %498, %cst_243 [1] : vector<16x128xf32> to vector<16xf32>
    %503 = vector.shape_cast %502 : vector<16xf32> to vector<16x1xf32>
    %cst_244 = arith.constant 1.280000e+02 : f32
    %504 = vector.broadcast %cst_244 : f32 to vector<16x1xf32>
    %505 = arith.divf %503, %504 : vector<16x1xf32>
    %506 = vector.broadcast %505 : vector<16x1xf32> to vector<16x128xf32>
    %507 = arith.subf %498, %506 : vector<16x128xf32>
    %508 = arith.mulf %507, %507 : vector<16x128xf32>
    %cst_245 = arith.constant dense<0.000000e+00> : vector<16xf32>
    %509 = vector.multi_reduction <add>, %508, %cst_245 [1] : vector<16x128xf32> to vector<16xf32>
    %510 = vector.shape_cast %509 : vector<16xf32> to vector<16x1xf32>
    %cst_246 = arith.constant 1.280000e+02 : f32
    %511 = vector.broadcast %cst_246 : f32 to vector<16x1xf32>
    %512 = arith.divf %510, %511 : vector<16x1xf32>
    %513 = vector.broadcast %505 : vector<16x1xf32> to vector<16x128xf32>
    %514 = arith.subf %498, %513 : vector<16x128xf32>
    %cst_247 = arith.constant 9.99999974E-6 : f32
    %515 = vector.broadcast %cst_247 : f32 to vector<16x1xf32>
    %516 = arith.addf %512, %515 : vector<16x1xf32>
    %517 = math.rsqrt %516 : vector<16x1xf32>
    %518 = vector.broadcast %517 : vector<16x1xf32> to vector<16x128xf32>
    %519 = arith.mulf %514, %518 : vector<16x128xf32>
    %cst_248 = arith.constant 1.000000e+00 : f32
    %520 = vector.broadcast %cst_248 : f32 to vector<16x128xf32>
    %521 = arith.addf %501, %520 : vector<16x128xf32>
    %522 = arith.mulf %519, %521 : vector<16x128xf32>
    %c2_249 = arith.constant 2 : index
    %c0_250 = arith.constant 0 : index
    %c0_251 = arith.constant 0 : index
    %523 = vector.load %arg28[%c2_249, %c0_250, %c0_251] : memref<3x128x128xbf16, #tpu.memory_space<vmem>>, vector<1x128x128xbf16>
    %524 = vector.shape_cast %523 : vector<1x128x128xbf16> to vector<128x128xbf16>
    %525 = arith.truncf %522 : vector<16x128xf32> to vector<16x128xbf16>
    %cst_252 = arith.constant dense<0.000000e+00> : vector<16x128xf32>
    %526 = tpu.matmul %525, %524, %cst_252 {dimension_numbers = #tpu.dot_dimension_numbers<[1], [0], [0], [1], [0, 0, 1, 1], [], []>} : vector<16x128xbf16>, vector<128x128xbf16>, vector<16x128xf32> -> vector<16x128xf32>
    %c2_253 = arith.constant 2 : index
    %c0_254 = arith.constant 0 : index
    %c0_255 = arith.constant 0 : index
    %527 = vector.load %arg29[%c2_253, %c0_254, %c0_255] : memref<3x1x128xf32, #tpu.memory_space<vmem>>, vector<1x1x128xf32>
    %528 = vector.shape_cast %527 : vector<1x1x128xf32> to vector<1x128xf32>
    %529 = vector.broadcast %528 : vector<1x128xf32> to vector<16x128xf32>
    %530 = arith.addf %526, %529 : vector<16x128xf32>
    %531 = arith.negf %530 : vector<16x128xf32>
    %532 = math.exp %531 : vector<16x128xf32>
    %cst_256 = arith.constant 1.000000e+00 : f32
    %533 = vector.broadcast %cst_256 : f32 to vector<16x128xf32>
    %534 = arith.addf %533, %532 : vector<16x128xf32>
    %535 = arith.divf %533, %534 : vector<16x128xf32>
    %536 = arith.mulf %530, %535 : vector<16x128xf32>
    %c2_257 = arith.constant 2 : index
    %c0_258 = arith.constant 0 : index
    %c0_259 = arith.constant 0 : index
    %537 = vector.load %arg30[%c2_257, %c0_258, %c0_259] : memref<3x128x128xbf16, #tpu.memory_space<vmem>>, vector<1x128x128xbf16>
    %538 = vector.shape_cast %537 : vector<1x128x128xbf16> to vector<128x128xbf16>
    %539 = arith.truncf %536 : vector<16x128xf32> to vector<16x128xbf16>
    %cst_260 = arith.constant dense<0.000000e+00> : vector<16x128xf32>
    %540 = tpu.matmul %539, %538, %cst_260 {dimension_numbers = #tpu.dot_dimension_numbers<[1], [0], [0], [1], [0, 0, 1, 1], [], []>} : vector<16x128xbf16>, vector<128x128xbf16>, vector<16x128xf32> -> vector<16x128xf32>
    %c2_261 = arith.constant 2 : index
    %c0_262 = arith.constant 0 : index
    %c0_263 = arith.constant 0 : index
    %541 = vector.load %arg31[%c2_261, %c0_262, %c0_263] : memref<3x1x128xf32, #tpu.memory_space<vmem>>, vector<1x1x128xf32>
    %542 = vector.shape_cast %541 : vector<1x1x128xf32> to vector<1x128xf32>
    %543 = vector.broadcast %542 : vector<1x128xf32> to vector<16x128xf32>
    %544 = arith.addf %540, %543 : vector<16x128xf32>
    %c2_264 = arith.constant 2 : index
    %c0_265 = arith.constant 0 : index
    %c0_266 = arith.constant 0 : index
    %545 = vector.load %arg32[%c2_264, %c0_265, %c0_266] : memref<3x128x128xbf16, #tpu.memory_space<vmem>>, vector<1x128x128xbf16>
    %546 = vector.shape_cast %545 : vector<1x128x128xbf16> to vector<128x128xbf16>
    %cst_267 = arith.constant dense<0.000000e+00> : vector<16x128xf32>
    %547 = tpu.matmul %387, %546, %cst_267 {dimension_numbers = #tpu.dot_dimension_numbers<[1], [0], [0], [1], [0, 0, 1, 1], [], []>} : vector<16x128xbf16>, vector<128x128xbf16>, vector<16x128xf32> -> vector<16x128xf32>
    %cst_268 = arith.constant 1.000000e+00 : f32
    %548 = vector.broadcast %cst_268 : f32 to vector<16x128xf32>
    %549 = arith.addf %547, %548 : vector<16x128xf32>
    %550 = arith.mulf %544, %549 : vector<16x128xf32>
    %551 = arith.addf %550, %498 : vector<16x128xf32>
    %552 = vector.broadcast %348 : vector<16x1xf32> to vector<16x128xf32>
    %553 = arith.mulf %552, %390 : vector<16x128xf32>
    %554 = vector.broadcast %351 : vector<16x1xf32> to vector<16x128xf32>
    %555 = arith.mulf %554, %551 : vector<16x128xf32>
    %556 = arith.addf %553, %555 : vector<16x128xf32>
    %cst_269 = arith.constant -1.000000e+00 : f32
    %cst_270 = arith.constant 1.000000e+00 : f32
    %557 = vector.broadcast %cst_269 : f32 to vector<16x128xf32>
    %558 = arith.maximumf %557, %556 : vector<16x128xf32>
    %559 = vector.broadcast %cst_270 : f32 to vector<16x128xf32>
    %560 = arith.minimumf %559, %558 : vector<16x128xf32>
    %561 = arith.subf %560, %1 : vector<16x128xf32>
    %562 = arith.mulf %561, %561 : vector<16x128xf32>
    %cst_271 = arith.constant dense<0.000000e+00> : vector<16xf32>
    %563 = vector.multi_reduction <add>, %562, %cst_271 [1] : vector<16x128xf32> to vector<16xf32>
    %564 = vector.shape_cast %563 : vector<16xf32> to vector<16x1xf32>
    %cst_272 = arith.constant 1.280000e+02 : f32
    %565 = vector.broadcast %cst_272 : f32 to vector<16x1xf32>
    %566 = arith.divf %564, %565 : vector<16x1xf32>
    %cst_273 = arith.constant 2.500000e-01 : f32
    %567 = vector.broadcast %cst_273 : f32 to vector<16x1xf32>
    %568 = arith.addf %342, %567 : vector<16x1xf32>
    %cst_274 = arith.constant 5.000000e-01 : f32
    %569 = vector.broadcast %cst_274 : f32 to vector<16x1xf32>
    %570 = arith.mulf %5, %569 : vector<16x1xf32>
    %571 = arith.mulf %570, %570 : vector<16x1xf32>
    %572 = tpu.reciprocal %571 {approx = true} : vector<16x1xf32> -> vector<16x1xf32>
    %573 = arith.mulf %568, %572 : vector<16x1xf32>
    %574 = arith.mulf %566, %573 : vector<16x1xf32>
    %575 = vector.shape_cast %574 : vector<16x1xf32> to vector<1x16x1xf32>
    %cst_275 = arith.constant dense<0.000000e+00> : vector<1xf32>
    %576 = vector.multi_reduction <add>, %575, %cst_275 [1, 2] : vector<1x16x1xf32> to vector<1xf32>
    %577 = vector.shape_cast %576 : vector<1xf32> to vector<1x1x1xf32>
    %578 = vector.extract %577[0, 0, 0] : f32 from vector<1x1x1xf32>
    %579 = vector.broadcast %578 : f32 to vector<1x8x128xf32>
    %c0_276 = arith.constant 0 : index
    %c0_277 = arith.constant 0 : index
    %c0_278 = arith.constant 0 : index
    %580 = vector.load %arg33[%c0_276, %c0_277, %c0_278] : memref<1x8x128xf32, #tpu.memory_space<vmem>>, vector<1x8x128xf32>
    tpu.vector_store %arg33[%c0_276, %c0_277, %c0_278], %579 {strides = array<i32>} : memref<1x8x128xf32, #tpu.memory_space<vmem>>, vector<1x8x128xf32>,
    return
  }
  func.func @transform_0(%arg0: i32) -> (i32, i32, i32) {
    %c0_i32 = arith.constant 0 : i32
    %c0_i32_0 = arith.constant 0 : i32
    %c0_i32_1 = arith.constant 0 : i32
    return %arg0, %c0_i32, %c0_i32_0 : i32, i32, i32
  }
  func.func @transform_1(%arg0: i32) -> (i32, i32, i32) {
    %c0_i32 = arith.constant 0 : i32
    %c0_i32_0 = arith.constant 0 : i32
    %c0_i32_1 = arith.constant 0 : i32
    return %arg0, %c0_i32, %c0_i32_0 : i32, i32, i32
  }
  func.func @transform_2(%arg0: i32) -> (i32, i32, i32) {
    %c0_i32 = arith.constant 0 : i32
    %c0_i32_0 = arith.constant 0 : i32
    %c0_i32_1 = arith.constant 0 : i32
    return %arg0, %c0_i32, %c0_i32_0 : i32, i32, i32
  }
  func.func @transform_3(%arg0: i32) -> (i32, i32) {
    %c0_i32 = arith.constant 0 : i32
    %c0_i32_0 = arith.constant 0 : i32
    %c0_i32_1 = arith.constant 0 : i32
    return %c0_i32, %c0_i32_0 : i32, i32
  }
  func.func @transform_4(%arg0: i32) -> (i32, i32) {
    %c0_i32 = arith.constant 0 : i32
    %c0_i32_0 = arith.constant 0 : i32
    %c0_i32_1 = arith.constant 0 : i32
    return %c0_i32, %c0_i32_0 : i32, i32
  }
  func.func @transform_5(%arg0: i32) -> (i32, i32) {
    %c0_i32 = arith.constant 0 : i32
    %c0_i32_0 = arith.constant 0 : i32
    %c0_i32_1 = arith.constant 0 : i32
    return %c0_i32, %c0_i32_0 : i32, i32
  }
  func.func @transform_6(%arg0: i32) -> (i32, i32) {
    %c0_i32 = arith.constant 0 : i32
    %c0_i32_0 = arith.constant 0 : i32
    %c0_i32_1 = arith.constant 0 : i32
    return %c0_i32, %c0_i32_0 : i32, i32
  }
  func.func @transform_7(%arg0: i32) -> (i32, i32, i32) {
    %c0_i32 = arith.constant 0 : i32
    %c0_i32_0 = arith.constant 0 : i32
    %c0_i32_1 = arith.constant 0 : i32
    %c0_i32_2 = arith.constant 0 : i32
    return %c0_i32, %c0_i32_0, %c0_i32_1 : i32, i32, i32
  }
  func.func @transform_8(%arg0: i32) -> (i32, i32, i32) {
    %c0_i32 = arith.constant 0 : i32
    %c0_i32_0 = arith.constant 0 : i32
    %c0_i32_1 = arith.constant 0 : i32
    %c0_i32_2 = arith.constant 0 : i32
    return %c0_i32, %c0_i32_0, %c0_i32_1 : i32, i32, i32
  }
  func.func @transform_9(%arg0: i32) -> (i32, i32, i32) {
    %c0_i32 = arith.constant 0 : i32
    %c0_i32_0 = arith.constant 0 : i32
    %c0_i32_1 = arith.constant 0 : i32
    %c0_i32_2 = arith.constant 0 : i32
    return %c0_i32, %c0_i32_0, %c0_i32_1 : i32, i32, i32
  }
  func.func @transform_10(%arg0: i32) -> (i32, i32, i32) {
    %c0_i32 = arith.constant 0 : i32
    %c0_i32_0 = arith.constant 0 : i32
    %c0_i32_1 = arith.constant 0 : i32
    %c0_i32_2 = arith.constant 0 : i32
    return %c0_i32, %c0_i32_0, %c0_i32_1 : i32, i32, i32
  }
  func.func @transform_11(%arg0: i32) -> (i32, i32, i32) {
    %c0_i32 = arith.constant 0 : i32
    %c0_i32_0 = arith.constant 0 : i32
    %c0_i32_1 = arith.constant 0 : i32
    %c0_i32_2 = arith.constant 0 : i32
    return %c0_i32, %c0_i32_0, %c0_i32_1 : i32, i32, i32
  }
  func.func @transform_12(%arg0: i32) -> (i32, i32, i32) {
    %c0_i32 = arith.constant 0 : i32
    %c0_i32_0 = arith.constant 0 : i32
    %c0_i32_1 = arith.constant 0 : i32
    %c0_i32_2 = arith.constant 0 : i32
    return %c0_i32, %c0_i32_0, %c0_i32_1 : i32, i32, i32
  }
  func.func @transform_13(%arg0: i32) -> (i32, i32, i32) {
    %c0_i32 = arith.constant 0 : i32
    %c0_i32_0 = arith.constant 0 : i32
    %c0_i32_1 = arith.constant 0 : i32
    %c0_i32_2 = arith.constant 0 : i32
    return %c0_i32, %c0_i32_0, %c0_i32_1 : i32, i32, i32
  }
  func.func @transform_14(%arg0: i32) -> (i32, i32, i32) {
    %c0_i32 = arith.constant 0 : i32
    %c0_i32_0 = arith.constant 0 : i32
    %c0_i32_1 = arith.constant 0 : i32
    %c0_i32_2 = arith.constant 0 : i32
    return %c0_i32, %c0_i32_0, %c0_i32_1 : i32, i32, i32
  }
  func.func @transform_15(%arg0: i32) -> (i32, i32, i32) {
    %c0_i32 = arith.constant 0 : i32
    %c0_i32_0 = arith.constant 0 : i32
    %c0_i32_1 = arith.constant 0 : i32
    %c0_i32_2 = arith.constant 0 : i32
    return %c0_i32, %c0_i32_0, %c0_i32_1 : i32, i32, i32
  }
  func.func @transform_16(%arg0: i32) -> (i32, i32, i32) {
    %c0_i32 = arith.constant 0 : i32
    %c0_i32_0 = arith.constant 0 : i32
    %c0_i32_1 = arith.constant 0 : i32
    %c0_i32_2 = arith.constant 0 : i32
    return %c0_i32, %c0_i32_0, %c0_i32_1 : i32, i32, i32
  }
  func.func @transform_17(%arg0: i32) -> (i32, i32, i32) {
    %c0_i32 = arith.constant 0 : i32
    %c0_i32_0 = arith.constant 0 : i32
    %c0_i32_1 = arith.constant 0 : i32
    %c0_i32_2 = arith.constant 0 : i32
    return %c0_i32, %c0_i32_0, %c0_i32_1 : i32, i32, i32
  }
  func.func @transform_18(%arg0: i32) -> (i32, i32, i32) {
    %c0_i32 = arith.constant 0 : i32
    %c0_i32_0 = arith.constant 0 : i32
    %c0_i32_1 = arith.constant 0 : i32
    %c0_i32_2 = arith.constant 0 : i32
    return %c0_i32, %c0_i32_0, %c0_i32_1 : i32, i32, i32
  }
  func.func @transform_19(%arg0: i32) -> (i32, i32) {
    %c0_i32 = arith.constant 0 : i32
    %c0_i32_0 = arith.constant 0 : i32
    %c0_i32_1 = arith.constant 0 : i32
    return %c0_i32, %c0_i32_0 : i32, i32
  }
  func.func @transform_20(%arg0: i32) -> (i32, i32) {
    %c0_i32 = arith.constant 0 : i32
    %c0_i32_0 = arith.constant 0 : i32
    %c0_i32_1 = arith.constant 0 : i32
    return %c0_i32, %c0_i32_0 : i32, i32
  }
  func.func @transform_21(%arg0: i32) -> (i32, i32) {
    %c0_i32 = arith.constant 0 : i32
    %c0_i32_0 = arith.constant 0 : i32
    %c0_i32_1 = arith.constant 0 : i32
    return %c0_i32, %c0_i32_0 : i32, i32
  }
  func.func @transform_22(%arg0: i32) -> (i32, i32) {
    %c0_i32 = arith.constant 0 : i32
    %c0_i32_0 = arith.constant 0 : i32
    %c0_i32_1 = arith.constant 0 : i32
    return %c0_i32, %c0_i32_0 : i32, i32
  }
  func.func @transform_23(%arg0: i32) -> (i32, i32) {
    %c0_i32 = arith.constant 0 : i32
    %c0_i32_0 = arith.constant 0 : i32
    %c0_i32_1 = arith.constant 0 : i32
    return %c0_i32, %c0_i32_0 : i32, i32
  }
  func.func @transform_24(%arg0: i32) -> (i32, i32) {
    %c0_i32 = arith.constant 0 : i32
    %c0_i32_0 = arith.constant 0 : i32
    %c0_i32_1 = arith.constant 0 : i32
    return %c0_i32, %c0_i32_0 : i32, i32
  }
  func.func @transform_25(%arg0: i32) -> (i32, i32) {
    %c0_i32 = arith.constant 0 : i32
    %c0_i32_0 = arith.constant 0 : i32
    %c0_i32_1 = arith.constant 0 : i32
    return %c0_i32, %c0_i32_0 : i32, i32
  }
  func.func @transform_26(%arg0: i32) -> (i32, i32, i32) {
    %c0_i32 = arith.constant 0 : i32
    %c0_i32_0 = arith.constant 0 : i32
    %c0_i32_1 = arith.constant 0 : i32
    %c0_i32_2 = arith.constant 0 : i32
    return %c0_i32, %c0_i32_0, %c0_i32_1 : i32, i32, i32
  }
  func.func @transform_27(%arg0: i32) -> (i32, i32, i32) {
    %c0_i32 = arith.constant 0 : i32
    %c0_i32_0 = arith.constant 0 : i32
    %c0_i32_1 = arith.constant 0 : i32
    %c0_i32_2 = arith.constant 0 : i32
    return %c0_i32, %c0_i32_0, %c0_i32_1 : i32, i32, i32
  }
  func.func @transform_28(%arg0: i32) -> (i32, i32, i32) {
    %c0_i32 = arith.constant 0 : i32
    %c0_i32_0 = arith.constant 0 : i32
    %c0_i32_1 = arith.constant 0 : i32
    %c0_i32_2 = arith.constant 0 : i32
    return %c0_i32, %c0_i32_0, %c0_i32_1 : i32, i32, i32
  }
  func.func @transform_29(%arg0: i32) -> (i32, i32, i32) {
    %c0_i32 = arith.constant 0 : i32
    %c0_i32_0 = arith.constant 0 : i32
    %c0_i32_1 = arith.constant 0 : i32
    %c0_i32_2 = arith.constant 0 : i32
    return %c0_i32, %c0_i32_0, %c0_i32_1 : i32, i32, i32
  }
  func.func @transform_30(%arg0: i32) -> (i32, i32, i32) {
    %c0_i32 = arith.constant 0 : i32
    %c0_i32_0 = arith.constant 0 : i32
    %c0_i32_1 = arith.constant 0 : i32
    %c0_i32_2 = arith.constant 0 : i32
    return %c0_i32, %c0_i32_0, %c0_i32_1 : i32, i32, i32
  }
  func.func @transform_31(%arg0: i32) -> (i32, i32, i32) {
    %c0_i32 = arith.constant 0 : i32
    %c0_i32_0 = arith.constant 0 : i32
    %c0_i32_1 = arith.constant 0 : i32
    %c0_i32_2 = arith.constant 0 : i32
    return %c0_i32, %c0_i32_0, %c0_i32_1 : i32, i32, i32
  }
  func.func @transform_32(%arg0: i32) -> (i32, i32, i32) {
    %c0_i32 = arith.constant 0 : i32
    %c0_i32_0 = arith.constant 0 : i32
    %c0_i32_1 = arith.constant 0 : i32
    return %arg0, %c0_i32, %c0_i32_0 : i32, i32, i32
  }
}

</mosaic_0001>

<llo_original>
// kernel: image_ar_diffusion_forward.3
$region0: #{image_ar_diffusion_forward.3}
  #allocation0 [shape = 'u32[]', space=smem, size = 0x4, offset = 0x4, fixed_abs, tag = 'smem constant byte address 0x4 - core index']
  #allocation1 [shape = 'u32[144,128]{1,0:T(1,128)}', space=vmem, size = 0x12000, scoped, tag = 'internal scratch']
  %s0 = inlined_call_operand.smem [shape: u32[33], index: -1, kind: input, shape index: {}]
  %s1 = sld [smem:[%s0]]
  %s2 = scalar_lea.smem %s0, 1
  %s3 = sld [smem:[%s2]]
  %s4 = scalar_lea.smem %s0, 2
  %s5 = sld [smem:[%s4]]
  %s6 = scalar_lea.smem %s0, 3
  %s7 = sld [smem:[%s6]]
  %s8 = scalar_lea.smem %s0, 4
  %s9 = sld [smem:[%s8]]
  %s10 = scalar_lea.smem %s0, 5
  %s11 = sld [smem:[%s10]]
  %s12 = scalar_lea.smem %s0, 6
  %s13 = sld [smem:[%s12]]
  %s14 = scalar_lea.smem %s0, 7
  %s15 = sld [smem:[%s14]]
  %s16 = scalar_lea.smem %s0, 8
  %s17 = sld [smem:[%s16]]
  %s18 = scalar_lea.smem %s0, 9
  %s19 = sld [smem:[%s18]]
  %s20 = scalar_lea.smem %s0, 10
  %s21 = sld [smem:[%s20]]
  %s22 = scalar_lea.smem %s0, 11
  %s23 = sld [smem:[%s22]]
  %s24 = scalar_lea.smem %s0, 12
  %s25 = sld [smem:[%s24]]
  %s26 = scalar_lea.smem %s0, 13
  %s27 = sld [smem:[%s26]]
  %s28 = scalar_lea.smem %s0, 14
  %s29 = sld [smem:[%s28]]
  %s30 = scalar_lea.smem %s0, 15
  %s31 = sld [smem:[%s30]]
  %s32 = scalar_lea.smem %s0, 16
  %s33 = sld [smem:[%s32]]
  %s34 = scalar_lea.smem %s0, 17
  %s35 = sld [smem:[%s34]]
  %s36 = scalar_lea.smem %s0, 18
  %s37 = sld [smem:[%s36]]
  %s38 = scalar_lea.smem %s0, 19
  %s39 = sld [smem:[%s38]]
  %s40 = scalar_lea.smem %s0, 20
  %s41 = sld [smem:[%s40]]
  %s42 = scalar_lea.smem %s0, 21
  %s43 = sld [smem:[%s42]]
  %s44 = scalar_lea.smem %s0, 22
  %s45 = sld [smem:[%s44]]
  %s46 = scalar_lea.smem %s0, 23
  %s47 = sld [smem:[%s46]]
  %s48 = scalar_lea.smem %s0, 24
  %s49 = sld [smem:[%s48]]
  %s50 = scalar_lea.smem %s0, 25
  %s51 = sld [smem:[%s50]]
  %s52 = scalar_lea.smem %s0, 26
  %s53 = sld [smem:[%s52]]
  %s54 = scalar_lea.smem %s0, 27
  %s55 = sld [smem:[%s54]]
  %s56 = scalar_lea.smem %s0, 28
  %s57 = sld [smem:[%s56]]
  %s58 = scalar_lea.smem %s0, 29
  %s59 = sld [smem:[%s58]]
  %s60 = scalar_lea.smem %s0, 30
  %s61 = sld [smem:[%s60]]
  %s62 = scalar_lea.smem %s0, 31
  %s63 = sld [smem:[%s62]]
  %s64 = scalar_lea.smem %s0, 32
  %s65 = sld [smem:[%s64]]
  %s66 = sld [smem:[#allocation0]]
  $region161: #{image_ar_diffusion_forward.3} parent=0
    _
  %s68 = ssub.s32 1, %s66
  %s69 = scalar_select 0, %s68, %s66
  loop: start=0, step=1, limit=4
  $region2: #{image_ar_diffusion_forward.3} parent=0 // loop_pre_header
    _
  $region3: #{image_ar_diffusion_forward.3} parent=0 // loop_header
    %s71 = sphi 0, %s75
    %p72 = scmp.ge.s32.totalorder %s71, 4
    %s81 = sphi 0, %s83
    %s84 = sphi 0, %s81
    %s85 = sphi 0, %s84
    %s101 = sphi 0, %s85
    %s107 = sphi 0, %s109
    %s110 = sphi 0, %s107
    %s111 = sphi 0, %s110
    %s127 = sphi 0, %s111
    %s133 = sphi 0, %s135
    %s136 = sphi 0, %s133
    %s137 = sphi 0, %s136
    %s153 = sphi 0, %s137
    %s157 = sphi 0, %s157
    %s159 = sphi 0, %s157
    %s160 = sphi 0, %s159
    %s174 = sphi 0, %s160
    %s178 = sphi 0, %s178
    %s180 = sphi 0, %s178
    %s181 = sphi 0, %s180
    %s195 = sphi 0, %s181
    %s199 = sphi 0, %s199
    %s201 = sphi 0, %s199
    %s202 = sphi 0, %s201
    %s216 = sphi 0, %s202
    %s220 = sphi 0, %s220
    %s222 = sphi 0, %s220
    %s223 = sphi 0, %s222
    %s237 = sphi 0, %s223
    %s241 = sphi 0, %s241
    %s243 = sphi 0, %s241
    %s244 = sphi 0, %s243
    %s258 = sphi 0, %s244
    %s262 = sphi 0, %s262
    %s264 = sphi 0, %s262
    %s265 = sphi 0, %s264
    %s279 = sphi 0, %s265
    %s283 = sphi 0, %s283
    %s285 = sphi 0, %s283
    %s286 = sphi 0, %s285
    %s300 = sphi 0, %s286
    %s304 = sphi 0, %s304
    %s306 = sphi 0, %s304
    %s307 = sphi 0, %s306
    %s321 = sphi 0, %s307
    %s325 = sphi 0, %s325
    %s327 = sphi 0, %s325
    %s328 = sphi 0, %s327
    %s342 = sphi 0, %s328
    %s346 = sphi 0, %s346
    %s348 = sphi 0, %s346
    %s349 = sphi 0, %s348
    %s363 = sphi 0, %s349
    %s367 = sphi 0, %s367
    %s369 = sphi 0, %s367
    %s370 = sphi 0, %s369
    %s384 = sphi 0, %s370
    %s388 = sphi 0, %s388
    %s390 = sphi 0, %s388
    %s391 = sphi 0, %s390
    %s405 = sphi 0, %s391
    %s409 = sphi 0, %s409
    %s411 = sphi 0, %s409
    %s412 = sphi 0, %s411
    %s426 = sphi 0, %s412
    %s430 = sphi 0, %s430
    %s432 = sphi 0, %s430
    %s433 = sphi 0, %s432
    %s447 = sphi 0, %s433
    %s451 = sphi 0, %s451
    %s453 = sphi 0, %s451
    %s454 = sphi 0, %s453
    %s468 = sphi 0, %s454
    %s472 = sphi 0, %s472
    %s474 = sphi 0, %s472
    %s475 = sphi 0, %s474
    %s489 = sphi 0, %s475
    %s493 = sphi 0, %s493
    %s495 = sphi 0, %s493
    %s496 = sphi 0, %s495
    %s510 = sphi 0, %s496
    %s514 = sphi 0, %s514
    %s516 = sphi 0, %s514
    %s517 = sphi 0, %s516
    %s531 = sphi 0, %s517
    %s535 = sphi 0, %s535
    %s537 = sphi 0, %s535
    %s538 = sphi 0, %s537
    %s552 = sphi 0, %s538
    %s556 = sphi 0, %s556
    %s558 = sphi 0, %s556
    %s559 = sphi 0, %s558
    %s573 = sphi 0, %s559
    %s577 = sphi 0, %s577
    %s579 = sphi 0, %s577
    %s580 = sphi 0, %s579
    %s594 = sphi 0, %s580
    %s598 = sphi 0, %s598
    %s600 = sphi 0, %s598
    %s601 = sphi 0, %s600
    %s615 = sphi 0, %s601
    %s619 = sphi 0, %s619
    %s621 = sphi 0, %s619
    %s622 = sphi 0, %s621
    %s636 = sphi 0, %s622
    %s640 = sphi 0, %s640
    %s642 = sphi 0, %s640
    %s643 = sphi 0, %s642
    %s657 = sphi 0, %s643
    %s661 = sphi 0, %s661
    %s663 = sphi 0, %s661
    %s664 = sphi 0, %s663
    %s678 = sphi 0, %s664
    %s682 = sphi 0, %s682
    %s684 = sphi 0, %s682
    %s685 = sphi 0, %s684
    %s699 = sphi 0, %s685
    %s703 = sphi 0, %s703
    %s705 = sphi 0, %s703
    %s706 = sphi 0, %s705
    %s720 = sphi 0, %s706
    %s724 = sphi 0, %s724
    %s726 = sphi 0, %s724
    %s727 = sphi 0, %s726
    %s741 = sphi 0, %s727
    %s745 = sphi 0, %s745
    %s747 = sphi 0, %s745
    %s748 = sphi 0, %s747
    %s762 = sphi 0, %s748
    %s768 = sphi 0, %s770
    %s771 = sphi 0, %s768
    %s772 = sphi 0, %s771
    %s788 = sphi 0, %s772
  $region4: #{image_ar_diffusion_forward.3} parent=0 // loop_header_branch
    %74 = sbr.rel (%p72) target = $region8
  $region5: #{image_ar_diffusion_forward.3} parent=0 // loop_body
    %s76 = ssub.s32 %s71, 1
    %s77 = ssub.s32 %s71, 2
    %s78 = sadd.s32 %s71, 1
    %s79 = ssub.s32 %s71, %s78
    %p80 = scmp.eq.s32.totalorder %s79, 0
    %s82 = sadd.s32 %s81, 1
    %s83 = scalar_select %p80, %s81, %s82
    %p86 = pneg %p80
    %p87 = scmp.eq.s32.totalorder %s71, 1
    %p88 = por %p86, %p87
    %p89 = scmp.ne.s32.totalorder %s81, %s84
    %p90 = scmp.eq.s32.totalorder %s71, 0
    %p91 = por %p89, %p90
    %p92 = scmp.ne.s32.totalorder %s81, %s84
    %p93 = scmp.eq.s32.totalorder %s76, 1
    %p94 = por %p92, %p93
    %p95 = scmp.ne.s32.totalorder %s84, %s85
    %p96 = scmp.eq.s32.totalorder %s76, 0
    %p97 = por %p95, %p96
    %p98 = scmp.ne.s32.totalorder %s84, %s85
    %p99 = scmp.eq.s32.totalorder %s77, 1
    %p100 = por %p98, %p99
    %p102 = scmp.ne.s32.totalorder %s85, %s101
    %p103 = scmp.eq.s32.totalorder %s77, 0
    %p104 = por %p102, %p103
    %s105 = ssub.s32 %s71, %s78
    %p106 = scmp.eq.s32.totalorder %s105, 0
    %s108 = sadd.s32 %s107, 1
    %s109 = scalar_select %p106, %s107, %s108
    %p112 = pneg %p106
    %p113 = scmp.eq.s32.totalorder %s71, 1
    %p114 = por %p112, %p113
    %p115 = scmp.ne.s32.totalorder %s107, %s110
    %p116 = scmp.eq.s32.totalorder %s71, 0
    %p117 = por %p115, %p116
    %p118 = scmp.ne.s32.totalorder %s107, %s110
    %p119 = scmp.eq.s32.totalorder %s76, 1
    %p120 = por %p118, %p119
    %p121 = scmp.ne.s32.totalorder %s110, %s111
    %p122 = scmp.eq.s32.totalorder %s76, 0
    %p123 = por %p121, %p122
    %p124 = scmp.ne.s32.totalorder %s110, %s111
    %p125 = scmp.eq.s32.totalorder %s77, 1
    %p126 = por %p124, %p125
    %p128 = scmp.ne.s32.totalorder %s111, %s127
    %p129 = scmp.eq.s32.totalorder %s77, 0
    %p130 = por %p128, %p129
    %s131 = ssub.s32 %s71, %s78
    %p132 = scmp.eq.s32.totalorder %s131, 0
    %s134 = sadd.s32 %s133, 1
    %s135 = scalar_select %p132, %s133, %s134
    %p138 = pneg %p132
    %p139 = scmp.eq.s32.totalorder %s71, 1
    %p140 = por %p138, %p139
    %p141 = scmp.ne.s32.totalorder %s133, %s136
    %p142 = scmp.eq.s32.totalorder %s71, 0
    %p143 = por %p141, %p142
    %p144 = scmp.ne.s32.totalorder %s133, %s136
    %p145 = scmp.eq.s32.totalorder %s76, 1
    %p146 = por %p144, %p145
    %p147 = scmp.ne.s32.totalorder %s136, %s137
    %p148 = scmp.eq.s32.totalorder %s76, 0
    %p149 = por %p147, %p148
    %p150 = scmp.ne.s32.totalorder %s136, %s137
    %p151 = scmp.eq.s32.totalorder %s77, 1
    %p152 = por %p150, %p151
    %p154 = scmp.ne.s32.totalorder %s137, %s153
    %p155 = scmp.eq.s32.totalorder %s77, 0
    %p156 = por %p154, %p155
    %s158 = sadd.s32 %s157, 1
    %p161 = scmp.eq.s32.totalorder %s71, 1
    %p162 = scmp.ne.s32.totalorder %s157, %s159
    %p163 = scmp.eq.s32.totalorder %s71, 0
    %p164 = por %p162, %p163
    %p165 = scmp.ne.s32.totalorder %s157, %s159
    %p166 = scmp.eq.s32.totalorder %s76, 1
    %p167 = por %p165, %p166
    %p168 = scmp.ne.s32.totalorder %s159, %s160
    %p169 = scmp.eq.s32.totalorder %s76, 0
    %p170 = por %p168, %p169
    %p171 = scmp.ne.s32.totalorder %s159, %s160
    %p172 = scmp.eq.s32.totalorder %s77, 1
    %p173 = por %p171, %p172
    %p175 = scmp.ne.s32.totalorder %s160, %s174
    %p176 = scmp.eq.s32.totalorder %s77, 0
    %p177 = por %p175, %p176
    %s179 = sadd.s32 %s178, 1
    %p182 = scmp.eq.s32.totalorder %s71, 1
    %p183 = scmp.ne.s32.totalorder %s178, %s180
    %p184 = scmp.eq.s32.totalorder %s71, 0
    %p185 = por %p183, %p184
    %p186 = scmp.ne.s32.totalorder %s178, %s180
    %p187 = scmp.eq.s32.totalorder %s76, 1
    %p188 = por %p186, %p187
    %p189 = scmp.ne.s32.totalorder %s180, %s181
    %p190 = scmp.eq.s32.totalorder %s76, 0
    %p191 = por %p189, %p190
    %p192 = scmp.ne.s32.totalorder %s180, %s181
    %p193 = scmp.eq.s32.totalorder %s77, 1
    %p194 = por %p192, %p193
    %p196 = scmp.ne.s32.totalorder %s181, %s195
    %p197 = scmp.eq.s32.totalorder %s77, 0
    %p198 = por %p196, %p197
    %s200 = sadd.s32 %s199, 1
    %p203 = scmp.eq.s32.totalorder %s71, 1
    %p204 = scmp.ne.s32.totalorder %s199, %s201
    %p205 = scmp.eq.s32.totalorder %s71, 0
    %p206 = por %p204, %p205
    %p207 = scmp.ne.s32.totalorder %s199, %s201
    %p208 = scmp.eq.s32.totalorder %s76, 1
    %p209 = por %p207, %p208
    %p210 = scmp.ne.s32.totalorder %s201, %s202
    %p211 = scmp.eq.s32.totalorder %s76, 0
    %p212 = por %p210, %p211
    %p213 = scmp.ne.s32.totalorder %s201, %s202
    %p214 = scmp.eq.s32.totalorder %s77, 1
    %p215 = por %p213, %p214
    %p217 = scmp.ne.s32.totalorder %s202, %s216
    %p218 = scmp.eq.s32.totalorder %s77, 0
    %p219 = por %p217, %p218
    %s221 = sadd.s32 %s220, 1
    %p224 = scmp.eq.s32.totalorder %s71, 1
    %p225 = scmp.ne.s32.totalorder %s220, %s222
    %p226 = scmp.eq.s32.totalorder %s71, 0
    %p227 = por %p225, %p226
    %p228 = scmp.ne.s32.totalorder %s220, %s222
    %p229 = scmp.eq.s32.totalorder %s76, 1
    %p230 = por %p228, %p229
    %p231 = scmp.ne.s32.totalorder %s222, %s223
    %p232 = scmp.eq.s32.totalorder %s76, 0
    %p233 = por %p231, %p232
    %p234 = scmp.ne.s32.totalorder %s222, %s223
    %p235 = scmp.eq.s32.totalorder %s77, 1
    %p236 = por %p234, %p235
    %p238 = scmp.ne.s32.totalorder %s223, %s237
    %p239 = scmp.eq.s32.totalorder %s77, 0
    %p240 = por %p238, %p239
    %s242 = sadd.s32 %s241, 1
    %p245 = scmp.eq.s32.totalorder %s71, 1
    %p246 = scmp.ne.s32.totalorder %s241, %s243
    %p247 = scmp.eq.s32.totalorder %s71, 0
    %p248 = por %p246, %p247
    %p249 = scmp.ne.s32.totalorder %s241, %s243
    %p250 = scmp.eq.s32.totalorder %s76, 1
    %p251 = por %p249, %p250
    %p252 = scmp.ne.s32.totalorder %s243, %s244
    %p253 = scmp.eq.s32.totalorder %s76, 0
    %p254 = por %p252, %p253
    %p255 = scmp.ne.s32.totalorder %s243, %s244
    %p256 = scmp.eq.s32.totalorder %s77, 1
    %p257 = por %p255, %p256
    %p259 = scmp.ne.s32.totalorder %s244, %s258
    %p260 = scmp.eq.s32.totalorder %s77, 0
    %p261 = por %p259, %p260
    %s263 = sadd.s32 %s262, 1
    %p266 = scmp.eq.s32.totalorder %s71, 1
    %p267 = scmp.ne.s32.totalorder %s262, %s264
    %p268 = scmp.eq.s32.totalorder %s71, 0
    %p269 = por %p267, %p268
    %p270 = scmp.ne.s32.totalorder %s262, %s264
    %p271 = scmp.eq.s32.totalorder %s76, 1
    %p272 = por %p270, %p271
    %p273 = scmp.ne.s32.totalorder %s264, %s265
    %p274 = scmp.eq.s32.totalorder %s76, 0
    %p275 = por %p273, %p274
    %p276 = scmp.ne.s32.totalorder %s264, %s265
    %p277 = scmp.eq.s32.totalorder %s77, 1
    %p278 = por %p276, %p277
    %p280 = scmp.ne.s32.totalorder %s265, %s279
    %p281 = scmp.eq.s32.totalorder %s77, 0
    %p282 = por %p280, %p281
    %s284 = sadd.s32 %s283, 1
    %p287 = scmp.eq.s32.totalorder %s71, 1
    %p288 = scmp.ne.s32.totalorder %s283, %s285
    %p289 = scmp.eq.s32.totalorder %s71, 0
    %p290 = por %p288, %p289
    %p291 = scmp.ne.s32.totalorder %s283, %s285
    %p292 = scmp.eq.s32.totalorder %s76, 1
    %p293 = por %p291, %p292
    %p294 = scmp.ne.s32.totalorder %s285, %s286
    %p295 = scmp.eq.s32.totalorder %s76, 0
    %p296 = por %p294, %p295
    %p297 = scmp.ne.s32.totalorder %s285, %s286
    %p298 = scmp.eq.s32.totalorder %s77, 1
    %p299 = por %p297, %p298
    %p301 = scmp.ne.s32.totalorder %s286, %s300
    %p302 = scmp.eq.s32.totalorder %s77, 0
    %p303 = por %p301, %p302
    %s305 = sadd.s32 %s304, 1
    %p308 = scmp.eq.s32.totalorder %s71, 1
    %p309 = scmp.ne.s32.totalorder %s304, %s306
    %p310 = scmp.eq.s32.totalorder %s71, 0
    %p311 = por %p309, %p310
    %p312 = scmp.ne.s32.totalorder %s304, %s306
    %p313 = scmp.eq.s32.totalorder %s76, 1
    %p314 = por %p312, %p313
    %p315 = scmp.ne.s32.totalorder %s306, %s307
    %p316 = scmp.eq.s32.totalorder %s76, 0
    %p317 = por %p315, %p316
    %p318 = scmp.ne.s32.totalorder %s306, %s307
    %p319 = scmp.eq.s32.totalorder %s77, 1
    %p320 = por %p318, %p319
    %p322 = scmp.ne.s32.totalorder %s307, %s321
    %p323 = scmp.eq.s32.totalorder %s77, 0
    %p324 = por %p322, %p323
    %s326 = sadd.s32 %s325, 1
    %p329 = scmp.eq.s32.totalorder %s71, 1
    %p330 = scmp.ne.s32.totalorder %s325, %s327
    %p331 = scmp.eq.s32.totalorder %s71, 0
    %p332 = por %p330, %p331
    %p333 = scmp.ne.s32.totalorder %s325, %s327
    %p334 = scmp.eq.s32.totalorder %s76, 1
    %p335 = por %p333, %p334
    %p336 = scmp.ne.s32.totalorder %s327, %s328
    %p337 = scmp.eq.s32.totalorder %s76, 0
    %p338 = por %p336, %p337
    %p339 = scmp.ne.s32.totalorder %s327, %s328
    %p340 = scmp.eq.s32.totalorder %s77, 1
    %p341 = por %p339, %p340
    %p343 = scmp.ne.s32.totalorder %s328, %s342
    %p344 = scmp.eq.s32.totalorder %s77, 0
    %p345 = por %p343, %p344
    %s347 = sadd.s32 %s346, 1
    %p350 = scmp.eq.s32.totalorder %s71, 1
    %p351 = scmp.ne.s32.totalorder %s346, %s348
    %p352 = scmp.eq.s32.totalorder %s71, 0
    %p353 = por %p351, %p352
    %p354 = scmp.ne.s32.totalorder %s346, %s348
    %p355 = scmp.eq.s32.totalorder %s76, 1
    %p356 = por %p354, %p355
    %p357 = scmp.ne.s32.totalorder %s348, %s349
    %p358 = scmp.eq.s32.totalorder %s76, 0
    %p359 = por %p357, %p358
    %p360 = scmp.ne.s32.totalorder %s348, %s349
    %p361 = scmp.eq.s32.totalorder %s77, 1
    %p362 = por %p360, %p361
    %p364 = scmp.ne.s32.totalorder %s349, %s363
    %p365 = scmp.eq.s32.totalorder %s77, 0
    %p366 = por %p364, %p365
    %s368 = sadd.s32 %s367, 1
    %p371 = scmp.eq.s32.totalorder %s71, 1
    %p372 = scmp.ne.s32.totalorder %s367, %s369
    %p373 = scmp.eq.s32.totalorder %s71, 0
    %p374 = por %p372, %p373
    %p375 = scmp.ne.s32.totalorder %s367, %s369
    %p376 = scmp.eq.s32.totalorder %s76, 1
    %p377 = por %p375, %p376
    %p378 = scmp.ne.s32.totalorder %s369, %s370
    %p379 = scmp.eq.s32.totalorder %s76, 0
    %p380 = por %p378, %p379
    %p381 = scmp.ne.s32.totalorder %s369, %s370
    %p382 = scmp.eq.s32.totalorder %s77, 1
    %p383 = por %p381, %p382
    %p385 = scmp.ne.s32.totalorder %s370, %s384
    %p386 = scmp.eq.s32.totalorder %s77, 0
    %p387 = por %p385, %p386
    %s389 = sadd.s32 %s388, 1
    %p392 = scmp.eq.s32.totalorder %s71, 1
    %p393 = scmp.ne.s32.totalorder %s388, %s390
    %p394 = scmp.eq.s32.totalorder %s71, 0
    %p395 = por %p393, %p394
    %p396 = scmp.ne.s32.totalorder %s388, %s390
    %p397 = scmp.eq.s32.totalorder %s76, 1
    %p398 = por %p396, %p397
    %p399 = scmp.ne.s32.totalorder %s390, %s391
    %p400 = scmp.eq.s32.totalorder %s76, 0
    %p401 = por %p399, %p400
    %p402 = scmp.ne.s32.totalorder %s390, %s391
    %p403 = scmp.eq.s32.totalorder %s77, 1
    %p404 = por %p402, %p403
    %p406 = scmp.ne.s32.totalorder %s391, %s405
    %p407 = scmp.eq.s32.totalorder %s77, 0
    %p408 = por %p406, %p407
    %s410 = sadd.s32 %s409, 1
    %p413 = scmp.eq.s32.totalorder %s71, 1
    %p414 = scmp.ne.s32.totalorder %s409, %s411
    %p415 = scmp.eq.s32.totalorder %s71, 0
    %p416 = por %p414, %p415
    %p417 = scmp.ne.s32.totalorder %s409, %s411
    %p418 = scmp.eq.s32.totalorder %s76, 1
    %p419 = por %p417, %p418
    %p420 = scmp.ne.s32.totalorder %s411, %s412
    %p421 = scmp.eq.s32.totalorder %s76, 0
    %p422 = por %p420, %p421
    %p423 = scmp.ne.s32.totalorder %s411, %s412
    %p424 = scmp.eq.s32.totalorder %s77, 1
    %p425 = por %p423, %p424
    %p427 = scmp.ne.s32.totalorder %s412, %s426
    %p428 = scmp.eq.s32.totalorder %s77, 0
    %p429 = por %p427, %p428
    %s431 = sadd.s32 %s430, 1
    %p434 = scmp.eq.s32.totalorder %s71, 1
    %p435 = scmp.ne.s32.totalorder %s430, %s432
    %p436 = scmp.eq.s32.totalorder %s71, 0
    %p437 = por %p435, %p436
    %p438 = scmp.ne.s32.totalorder %s430, %s432
    %p439 = scmp.eq.s32.totalorder %s76, 1
    %p440 = por %p438, %p439
    %p441 = scmp.ne.s32.totalorder %s432, %s433
    %p442 = scmp.eq.s32.totalorder %s76, 0
    %p443 = por %p441, %p442
    %p444 = scmp.ne.s32.totalorder %s432, %s433
    %p445 = scmp.eq.s32.totalorder %s77, 1
    %p446 = por %p444, %p445
    %p448 = scmp.ne.s32.totalorder %s433, %s447
    %p449 = scmp.eq.s32.totalorder %s77, 0
    %p450 = por %p448, %p449
    %s452 = sadd.s32 %s451, 1
    %p455 = scmp.eq.s32.totalorder %s71, 1
    %p456 = scmp.ne.s32.totalorder %s451, %s453
    %p457 = scmp.eq.s32.totalorder %s71, 0
    %p458 = por %p456, %p457
    %p459 = scmp.ne.s32.totalorder %s451, %s453
    %p460 = scmp.eq.s32.totalorder %s76, 1
    %p461 = por %p459, %p460
    %p462 = scmp.ne.s32.totalorder %s453, %s454
    %p463 = scmp.eq.s32.totalorder %s76, 0
    %p464 = por %p462, %p463
    %p465 = scmp.ne.s32.totalorder %s453, %s454
    %p466 = scmp.eq.s32.totalorder %s77, 1
    %p467 = por %p465, %p466
    %p469 = scmp.ne.s32.totalorder %s454, %s468
    %p470 = scmp.eq.s32.totalorder %s77, 0
    %p471 = por %p469, %p470
    %s473 = sadd.s32 %s472, 1
    %p476 = scmp.eq.s32.totalorder %s71, 1
    %p477 = scmp.ne.s32.totalorder %s472, %s474
    %p478 = scmp.eq.s32.totalorder %s71, 0
    %p479 = por %p477, %p478
    %p480 = scmp.ne.s32.totalorder %s472, %s474
    %p481 = scmp.eq.s32.totalorder %s76, 1
    %p482 = por %p480, %p481
    %p483 = scmp.ne.s32.totalorder %s474, %s475
    %p484 = scmp.eq.s32.totalorder %s76, 0
    %p485 = por %p483, %p484
    %p486 = scmp.ne.s32.totalorder %s474, %s475
    %p487 = scmp.eq.s32.totalorder %s77, 1
    %p488 = por %p486, %p487
    %p490 = scmp.ne.s32.totalorder %s475, %s489
    %p491 = scmp.eq.s32.totalorder %s77, 0
    %p492 = por %p490, %p491
    %s494 = sadd.s32 %s493, 1
    %p497 = scmp.eq.s32.totalorder %s71, 1
    %p498 = scmp.ne.s32.totalorder %s493, %s495
    %p499 = scmp.eq.s32.totalorder %s71, 0
    %p500 = por %p498, %p499
    %p501 = scmp.ne.s32.totalorder %s493, %s495
    %p502 = scmp.eq.s32.totalorder %s76, 1
    %p503 = por %p501, %p502
    %p504 = scmp.ne.s32.totalorder %s495, %s496
    %p505 = scmp.eq.s32.totalorder %s76, 0
    %p506 = por %p504, %p505
    %p507 = scmp.ne.s32.totalorder %s495, %s496
    %p508 = scmp.eq.s32.totalorder %s77, 1
    %p509 = por %p507, %p508
    %p511 = scmp.ne.s32.totalorder %s496, %s510
    %p512 = scmp.eq.s32.totalorder %s77, 0
    %p513 = por %p511, %p512
    %s515 = sadd.s32 %s514, 1
    %p518 = scmp.eq.s32.totalorder %s71, 1
    %p519 = scmp.ne.s32.totalorder %s514, %s516
    %p520 = scmp.eq.s32.totalorder %s71, 0
    %p521 = por %p519, %p520
    %p522 = scmp.ne.s32.totalorder %s514, %s516
    %p523 = scmp.eq.s32.totalorder %s76, 1
    %p524 = por %p522, %p523
    %p525 = scmp.ne.s32.totalorder %s516, %s517
    %p526 = scmp.eq.s32.totalorder %s76, 0
    %p527 = por %p525, %p526
    %p528 = scmp.ne.s32.totalorder %s516, %s517
    %p529 = scmp.eq.s32.totalorder %s77, 1
    %p530 = por %p528, %p529
    %p532 = scmp.ne.s32.totalorder %s517, %s531
    %p533 = scmp.eq.s32.totalorder %s77, 0
    %p534 = por %p532, %p533
    %s536 = sadd.s32 %s535, 1
    %p539 = scmp.eq.s32.totalorder %s71, 1
    %p540 = scmp.ne.s32.totalorder %s535, %s537
    %p541 = scmp.eq.s32.totalorder %s71, 0
    %p542 = por %p540, %p541
    %p543 = scmp.ne.s32.totalorder %s535, %s537
    %p544 = scmp.eq.s32.totalorder %s76, 1
    %p545 = por %p543, %p544
    %p546 = scmp.ne.s32.totalorder %s537, %s538
    %p547 = scmp.eq.s32.totalorder %s76, 0
    %p548 = por %p546, %p547
    %p549 = scmp.ne.s32.totalorder %s537, %s538
    %p550 = scmp.eq.s32.totalorder %s77, 1
    %p551 = por %p549, %p550
    %p553 = scmp.ne.s32.totalorder %s538, %s552
    %p554 = scmp.eq.s32.totalorder %s77, 0
    %p555 = por %p553, %p554
    %s557 = sadd.s32 %s556, 1
    %p560 = scmp.eq.s32.totalorder %s71, 1
    %p561 = scmp.ne.s32.totalorder %s556, %s558
    %p562 = scmp.eq.s32.totalorder %s71, 0
    %p563 = por %p561, %p562
    %p564 = scmp.ne.s32.totalorder %s556, %s558
    %p565 = scmp.eq.s32.totalorder %s76, 1
    %p566 = por %p564, %p565
    %p567 = scmp.ne.s32.totalorder %s558, %s559
    %p568 = scmp.eq.s32.totalorder %s76, 0
    %p569 = por %p567, %p568
    %p570 = scmp.ne.s32.totalorder %s558, %s559
    %p571 = scmp.eq.s32.totalorder %s77, 1
    %p572 = por %p570, %p571
    %p574 = scmp.ne.s32.totalorder %s559, %s573
    %p575 = scmp.eq.s32.totalorder %s77, 0
    %p576 = por %p574, %p575
    %s578 = sadd.s32 %s577, 1
    %p581 = scmp.eq.s32.totalorder %s71, 1
    %p582 = scmp.ne.s32.totalorder %s577, %s579
    %p583 = scmp.eq.s32.totalorder %s71, 0
    %p584 = por %p582, %p583
    %p585 = scmp.ne.s32.totalorder %s577, %s579
    %p586 = scmp.eq.s32.totalorder %s76, 1
    %p587 = por %p585, %p586
    %p588 = scmp.ne.s32.totalorder %s579, %s580
    %p589 = scmp.eq.s32.totalorder %s76, 0
    %p590 = por %p588, %p589
    %p591 = scmp.ne.s32.totalorder %s579, %s580
    %p592 = scmp.eq.s32.totalorder %s77, 1
    %p593 = por %p591, %p592
    %p595 = scmp.ne.s32.totalorder %s580, %s594
    %p596 = scmp.eq.s32.totalorder %s77, 0
    %p597 = por %p595, %p596
    %s599 = sadd.s32 %s598, 1
    %p602 = scmp.eq.s32.totalorder %s71, 1
    %p603 = scmp.ne.s32.totalorder %s598, %s600
    %p604 = scmp.eq.s32.totalorder %s71, 0
    %p605 = por %p603, %p604
    %p606 = scmp.ne.s32.totalorder %s598, %s600
    %p607 = scmp.eq.s32.totalorder %s76, 1
    %p608 = por %p606, %p607
    %p609 = scmp.ne.s32.totalorder %s600, %s601
    %p610 = scmp.eq.s32.totalorder %s76, 0
    %p611 = por %p609, %p610
    %p612 = scmp.ne.s32.totalorder %s600, %s601
    %p613 = scmp.eq.s32.totalorder %s77, 1
    %p614 = por %p612, %p613
    %p616 = scmp.ne.s32.totalorder %s601, %s615
    %p617 = scmp.eq.s32.totalorder %s77, 0
    %p618 = por %p616, %p617
    %s620 = sadd.s32 %s619, 1
    %p623 = scmp.eq.s32.totalorder %s71, 1
    %p624 = scmp.ne.s32.totalorder %s619, %s621
    %p625 = scmp.eq.s32.totalorder %s71, 0
    %p626 = por %p624, %p625
    %p627 = scmp.ne.s32.totalorder %s619, %s621
    %p628 = scmp.eq.s32.totalorder %s76, 1
    %p629 = por %p627, %p628
    %p630 = scmp.ne.s32.totalorder %s621, %s622
    %p631 = scmp.eq.s32.totalorder %s76, 0
    %p632 = por %p630, %p631
    %p633 = scmp.ne.s32.totalorder %s621, %s622
    %p634 = scmp.eq.s32.totalorder %s77, 1
    %p635 = por %p633, %p634
    %p637 = scmp.ne.s32.totalorder %s622, %s636
    %p638 = scmp.eq.s32.totalorder %s77, 0
    %p639 = por %p637, %p638
    %s641 = sadd.s32 %s640, 1
    %p644 = scmp.eq.s32.totalorder %s71, 1
    %p645 = scmp.ne.s32.totalorder %s640, %s642
    %p646 = scmp.eq.s32.totalorder %s71, 0
    %p647 = por %p645, %p646
    %p648 = scmp.ne.s32.totalorder %s640, %s642
    %p649 = scmp.eq.s32.totalorder %s76, 1
    %p650 = por %p648, %p649
    %p651 = scmp.ne.s32.totalorder %s642, %s643
    %p652 = scmp.eq.s32.totalorder %s76, 0
    %p653 = por %p651, %p652
    %p654 = scmp.ne.s32.totalorder %s642, %s643
    %p655 = scmp.eq.s32.totalorder %s77, 1
    %p656 = por %p654, %p655
    %p658 = scmp.ne.s32.totalorder %s643, %s657
    %p659 = scmp.eq.s32.totalorder %s77, 0
    %p660 = por %p658, %p659
    %s662 = sadd.s32 %s661, 1
    %p665 = scmp.eq.s32.totalorder %s71, 1
    %p666 = scmp.ne.s32.totalorder %s661, %s663
    %p667 = scmp.eq.s32.totalorder %s71, 0
    %p668 = por %p666, %p667
    %p669 = scmp.ne.s32.totalorder %s661, %s663
    %p670 = scmp.eq.s32.totalorder %s76, 1
    %p671 = por %p669, %p670
    %p672 = scmp.ne.s32.totalorder %s663, %s664
    %p673 = scmp.eq.s32.totalorder %s76, 0
    %p674 = por %p672, %p673
    %p675 = scmp.ne.s32.totalorder %s663, %s664
    %p676 = scmp.eq.s32.totalorder %s77, 1
    %p677 = por %p675, %p676
    %p679 = scmp.ne.s32.totalorder %s664, %s678
    %p680 = scmp.eq.s32.totalorder %s77, 0
    %p681 = por %p679, %p680
    %s683 = sadd.s32 %s682, 1
    %p686 = scmp.eq.s32.totalorder %s71, 1
    %p687 = scmp.ne.s32.totalorder %s682, %s684
    %p688 = scmp.eq.s32.totalorder %s71, 0
    %p689 = por %p687, %p688
    %p690 = scmp.ne.s32.totalorder %s682, %s684
    %p691 = scmp.eq.s32.totalorder %s76, 1
    %p692 = por %p690, %p691
    %p693 = scmp.ne.s32.totalorder %s684, %s685
    %p694 = scmp.eq.s32.totalorder %s76, 0
    %p695 = por %p693, %p694
    %p696 = scmp.ne.s32.totalorder %s684, %s685
    %p697 = scmp.eq.s32.totalorder %s77, 1
    %p698 = por %p696, %p697
    %p700 = scmp.ne.s32.totalorder %s685, %s699
    %p701 = scmp.eq.s32.totalorder %s77, 0
    %p702 = por %p700, %p701
    %s704 = sadd.s32 %s703, 1
    %p707 = scmp.eq.s32.totalorder %s71, 1
    %p708 = scmp.ne.s32.totalorder %s703, %s705
    %p709 = scmp.eq.s32.totalorder %s71, 0
    %p710 = por %p708, %p709
    %p711 = scmp.ne.s32.totalorder %s703, %s705
    %p712 = scmp.eq.s32.totalorder %s76, 1
    %p713 = por %p711, %p712
    %p714 = scmp.ne.s32.totalorder %s705, %s706
    %p715 = scmp.eq.s32.totalorder %s76, 0
    %p716 = por %p714, %p715
    %p717 = scmp.ne.s32.totalorder %s705, %s706
    %p718 = scmp.eq.s32.totalorder %s77, 1
    %p719 = por %p717, %p718
    %p721 = scmp.ne.s32.totalorder %s706, %s720
    %p722 = scmp.eq.s32.totalorder %s77, 0
    %p723 = por %p721, %p722
    %s725 = sadd.s32 %s724, 1
    %p728 = scmp.eq.s32.totalorder %s71, 1
    %p729 = scmp.ne.s32.totalorder %s724, %s726
    %p730 = scmp.eq.s32.totalorder %s71, 0
    %p731 = por %p729, %p730
    %p732 = scmp.ne.s32.totalorder %s724, %s726
    %p733 = scmp.eq.s32.totalorder %s76, 1
    %p734 = por %p732, %p733
    %p735 = scmp.ne.s32.totalorder %s726, %s727
    %p736 = scmp.eq.s32.totalorder %s76, 0
    %p737 = por %p735, %p736
    %p738 = scmp.ne.s32.totalorder %s726, %s727
    %p739 = scmp.eq.s32.totalorder %s77, 1
    %p740 = por %p738, %p739
    %p742 = scmp.ne.s32.totalorder %s727, %s741
    %p743 = scmp.eq.s32.totalorder %s77, 0
    %p744 = por %p742, %p743
    %s746 = sadd.s32 %s745, 1
    %p749 = scmp.eq.s32.totalorder %s71, 1
    %p750 = scmp.ne.s32.totalorder %s745, %s747
    %p751 = scmp.eq.s32.totalorder %s71, 0
    %p752 = por %p750, %p751
    %p753 = scmp.ne.s32.totalorder %s745, %s747
    %p754 = scmp.eq.s32.totalorder %s76, 1
    %p755 = por %p753, %p754
    %p756 = scmp.ne.s32.totalorder %s747, %s748
    %p757 = scmp.eq.s32.totalorder %s76, 0
    %p758 = por %p756, %p757
    %p759 = scmp.ne.s32.totalorder %s747, %s748
    %p760 = scmp.eq.s32.totalorder %s77, 1
    %p761 = por %p759, %p760
    %p763 = scmp.ne.s32.totalorder %s748, %s762
    %p764 = scmp.eq.s32.totalorder %s77, 0
    %p765 = por %p763, %p764
    %s766 = ssub.s32 %s71, %s78
    %p767 = scmp.eq.s32.totalorder %s766, 0
    %s769 = sadd.s32 %s768, 1
    %s770 = scalar_select %p767, %s768, %s769
    %p773 = pneg %p767
    %p774 = scmp.eq.s32.totalorder %s71, 1
    %p775 = por %p773, %p774
    %p776 = scmp.ne.s32.totalorder %s768, %s771
    %p777 = scmp.eq.s32.totalorder %s71, 0
    %p778 = por %p776, %p777
    %p779 = scmp.ne.s32.totalorder %s768, %s771
    %p780 = scmp.eq.s32.totalorder %s76, 1
    %p781 = por %p779, %p780
    %p782 = scmp.ne.s32.totalorder %s771, %s772
    %p783 = scmp.eq.s32.totalorder %s76, 0
    %p784 = por %p782, %p783
    %p785 = scmp.ne.s32.totalorder %s771, %s772
    %p786 = scmp.eq.s32.totalorder %s77, 1
    %p787 = por %p785, %p786
    %p789 = scmp.ne.s32.totalorder %s772, %s788
    %p790 = scmp.eq.s32.totalorder %s77, 0
    %p791 = por %p789, %p790
    %p792 = scmp.le.s32.totalorder 1, %s71
    %p793 = scmp.lt.s32.totalorder %s71, 3
    %p794 = pnand %p792, %p793
    %p795 = pneg %p794
    // Predicated region
    $region9: #{image_ar_diffusion_forward.3} parent=5 // pred_check
      _
    $region10: #{image_ar_diffusion_forward.3} parent=5 // pred_check_branch
      %797 = sbr.rel (%p794) target = $region12
    $region11: #{image_ar_diffusion_forward.3} parent=5 // pred_region
      %s798 = ssub.s32 %s71, 1
      // Predicated region
      $region13: #{image_ar_diffusion_forward.3} parent=11 // pred_check
        %p799 = pneg %p170
      $region14: #{image_ar_diffusion_forward.3} parent=11 // pred_check_branch
        %801 = sbr.rel (%p799) target = $region16
      $region15: #{image_ar_diffusion_forward.3} parent=11 // pred_region
        _
      $region16: #{image_ar_diffusion_forward.3} parent=11 // pred_fallthru
        _
      // Predicated region
      $region17: #{image_ar_diffusion_forward.3} parent=11 // pred_check
        %p802 = pneg %p191
      $region18: #{image_ar_diffusion_forward.3} parent=11 // pred_check_branch
        %804 = sbr.rel (%p802) target = $region20
      $region19: #{image_ar_diffusion_forward.3} parent=11 // pred_region
        _
      $region20: #{image_ar_diffusion_forward.3} parent=11 // pred_fallthru
        _
      // Predicated region
      $region21: #{image_ar_diffusion_forward.3} parent=11 // pred_check
        %p805 = pneg %p212
      $region22: #{image_ar_diffusion_forward.3} parent=11 // pred_check_branch
        %807 = sbr.rel (%p805) target = $region24
      $region23: #{image_ar_diffusion_forward.3} parent=11 // pred_region
        _
      $region24: #{image_ar_diffusion_forward.3} parent=11 // pred_fallthru
        _
      // Predicated region
      $region25: #{image_ar_diffusion_forward.3} parent=11 // pred_check
        %p808 = pneg %p233
      $region26: #{image_ar_diffusion_forward.3} parent=11 // pred_check_branch
        %810 = sbr.rel (%p808) target = $region28
      $region27: #{image_ar_diffusion_forward.3} parent=11 // pred_region
        _
      $region28: #{image_ar_diffusion_forward.3} parent=11 // pred_fallthru
        _
      // Predicated region
      $region29: #{image_ar_diffusion_forward.3} parent=11 // pred_check
        %p811 = pneg %p254
      $region30: #{image_ar_diffusion_forward.3} parent=11 // pred_check_branch
        %813 = sbr.rel (%p811) target = $region32
      $region31: #{image_ar_diffusion_forward.3} parent=11 // pred_region
        _
      $region32: #{image_ar_diffusion_forward.3} parent=11 // pred_fallthru
        _
      // Predicated region
      $region33: #{image_ar_diffusion_forward.3} parent=11 // pred_check
        %p814 = pneg %p275
      $region34: #{image_ar_diffusion_forward.3} parent=11 // pred_check_branch
        %816 = sbr.rel (%p814) target = $region36
      $region35: #{image_ar_diffusion_forward.3} parent=11 // pred_region
        _
      $region36: #{image_ar_diffusion_forward.3} parent=11 // pred_fallthru
        _
      // Predicated region
      $region37: #{image_ar_diffusion_forward.3} parent=11 // pred_check
        %p817 = pneg %p296
      $region38: #{image_ar_diffusion_forward.3} parent=11 // pred_check_branch
        %819 = sbr.rel (%p817) target = $region40
      $region39: #{image_ar_diffusion_forward.3} parent=11 // pred_region
        _
      $region40: #{image_ar_diffusion_forward.3} parent=11 // pred_fallthru
        _
      // Predicated region
      $region41: #{image_ar_diffusion_forward.3} parent=11 // pred_check
        %p820 = pneg %p317
      $region42: #{image_ar_diffusion_forward.3} parent=11 // pred_check_branch
        %822 = sbr.rel (%p820) target = $region44
      $region43: #{image_ar_diffusion_forward.3} parent=11 // pred_region
        _
      $region44: #{image_ar_diffusion_forward.3} parent=11 // pred_fallthru
        _
      // Predicated region
      $region45: #{image_ar_diffusion_forward.3} parent=11 // pred_check
        %p823 = pneg %p338
      $region46: #{image_ar_diffusion_forward.3} parent=11 // pred_check_branch
        %825 = sbr.rel (%p823) target = $region48
      $region47: #{image_ar_diffusion_forward.3} parent=11 // pred_region
        _
      $region48: #{image_ar_diffusion_forward.3} parent=11 // pred_fallthru
        _
      // Predicated region
      $region49: #{image_ar_diffusion_forward.3} parent=11 // pred_check
        %p826 = pneg %p359
      $region50: #{image_ar_diffusion_forward.3} parent=11 // pred_check_branch
        %828 = sbr.rel (%p826) target = $region52
      $region51: #{image_ar_diffusion_forward.3} parent=11 // pred_region
        _
      $region52: #{image_ar_diffusion_forward.3} parent=11 // pred_fallthru
        _
      // Predicated region
      $region53: #{image_ar_diffusion_forward.3} parent=11 // pred_check
        %p829 = pneg %p380
      $region54: #{image_ar_diffusion_forward.3} parent=11 // pred_check_branch
        %831 = sbr.rel (%p829) target = $region56
      $region55: #{image_ar_diffusion_forward.3} parent=11 // pred_region
        _
      $region56: #{image_ar_diffusion_forward.3} parent=11 // pred_fallthru
        _
      // Predicated region
      $region57: #{image_ar_diffusion_forward.3} parent=11 // pred_check
        %p832 = pneg %p401
      $region58: #{image_ar_diffusion_forward.3} parent=11 // pred_check_branch
        %834 = sbr.rel (%p832) target = $region60
      $region59: #{image_ar_diffusion_forward.3} parent=11 // pred_region
        _
      $region60: #{image_ar_diffusion_forward.3} parent=11 // pred_fallthru
        _
      // Predicated region
      $region61: #{image_ar_diffusion_forward.3} parent=11 // pred_check
        %p835 = pneg %p422
      $region62: #{image_ar_diffusion_forward.3} parent=11 // pred_check_branch
        %837 = sbr.rel (%p835) target = $region64
      $region63: #{image_ar_diffusion_forward.3} parent=11 // pred_region
        _
      $region64: #{image_ar_diffusion_forward.3} parent=11 // pred_fallthru
        _
      // Predicated region
      $region65: #{image_ar_diffusion_forward.3} parent=11 // pred_check
        %p838 = pneg %p443
      $region66: #{image_ar_diffusion_forward.3} parent=11 // pred_check_branch
        %840 = sbr.rel (%p838) target = $region68
      $region67: #{image_ar_diffusion_forward.3} parent=11 // pred_region
        _
      $region68: #{image_ar_diffusion_forward.3} parent=11 // pred_fallthru
        _
      // Predicated region
      $region69: #{image_ar_diffusion_forward.3} parent=11 // pred_check
        %p841 = pneg %p464
      $region70: #{image_ar_diffusion_forward.3} parent=11 // pred_check_branch
        %843 = sbr.rel (%p841) target = $region72
      $region71: #{image_ar_diffusion_forward.3} parent=11 // pred_region
        _
      $region72: #{image_ar_diffusion_forward.3} parent=11 // pred_fallthru
        _
      // Predicated region
      $region73: #{image_ar_diffusion_forward.3} parent=11 // pred_check
        %p844 = pneg %p485
      $region74: #{image_ar_diffusion_forward.3} parent=11 // pred_check_branch
        %846 = sbr.rel (%p844) target = $region76
      $region75: #{image_ar_diffusion_forward.3} parent=11 // pred_region
        _
      $region76: #{image_ar_diffusion_forward.3} parent=11 // pred_fallthru
        _
      // Predicated region
      $region77: #{image_ar_diffusion_forward.3} parent=11 // pred_check
        %p847 = pneg %p506
      $region78: #{image_ar_diffusion_forward.3} parent=11 // pred_check_branch
        %849 = sbr.rel (%p847) target = $region80
      $region79: #{image_ar_diffusion_forward.3} parent=11 // pred_region
        _
      $region80: #{image_ar_diffusion_forward.3} parent=11 // pred_fallthru
        _
      // Predicated region
      $region81: #{image_ar_diffusion_forward.3} parent=11 // pred_check
        %p850 = pneg %p527
      $region82: #{image_ar_diffusion_forward.3} parent=11 // pred_check_branch
        %852 = sbr.rel (%p850) target = $region84
      $region83: #{image_ar_diffusion_forward.3} parent=11 // pred_region
        _
      $region84: #{image_ar_diffusion_forward.3} parent=11 // pred_fallthru
        _
      // Predicated region
      $region85: #{image_ar_diffusion_forward.3} parent=11 // pred_check
        %p853 = pneg %p548
      $region86: #{image_ar_diffusion_forward.3} parent=11 // pred_check_branch
        %855 = sbr.rel (%p853) target = $region88
      $region87: #{image_ar_diffusion_forward.3} parent=11 // pred_region
        _
      $region88: #{image_ar_diffusion_forward.3} parent=11 // pred_fallthru
        _
      // Predicated region
      $region89: #{image_ar_diffusion_forward.3} parent=11 // pred_check
        %p856 = pneg %p569
      $region90: #{image_ar_diffusion_forward.3} parent=11 // pred_check_branch
        %858 = sbr.rel (%p856) target = $region92
      $region91: #{image_ar_diffusion_forward.3} parent=11 // pred_region
        _
      $region92: #{image_ar_diffusion_forward.3} parent=11 // pred_fallthru
        _
      // Predicated region
      $region93: #{image_ar_diffusion_forward.3} parent=11 // pred_check
        %p859 = pneg %p590
      $region94: #{image_ar_diffusion_forward.3} parent=11 // pred_check_branch
        %861 = sbr.rel (%p859) target = $region96
      $region95: #{image_ar_diffusion_forward.3} parent=11 // pred_region
        _
      $region96: #{image_ar_diffusion_forward.3} parent=11 // pred_fallthru
        _
      // Predicated region
      $region97: #{image_ar_diffusion_forward.3} parent=11 // pred_check
        %p862 = pneg %p611
      $region98: #{image_ar_diffusion_forward.3} parent=11 // pred_check_branch
        %864 = sbr.rel (%p862) target = $region100
      $region99: #{image_ar_diffusion_forward.3} parent=11 // pred_region
        _
      $region100: #{image_ar_diffusion_forward.3} parent=11 // pred_fallthru
        _
      // Predicated region
      $region101: #{image_ar_diffusion_forward.3} parent=11 // pred_check
        %p865 = pneg %p632
      $region102: #{image_ar_diffusion_forward.3} parent=11 // pred_check_branch
        %867 = sbr.rel (%p865) target = $region104
      $region103: #{image_ar_diffusion_forward.3} parent=11 // pred_region
        _
      $region104: #{image_ar_diffusion_forward.3} parent=11 // pred_fallthru
        _
      // Predicated region
      $region105: #{image_ar_diffusion_forward.3} parent=11 // pred_check
        %p868 = pneg %p653
      $region106: #{image_ar_diffusion_forward.3} parent=11 // pred_check_branch
        %870 = sbr.rel (%p868) target = $region108
      $region107: #{image_ar_diffusion_forward.3} parent=11 // pred_region
        _
      $region108: #{image_ar_diffusion_forward.3} parent=11 // pred_fallthru
        _
      // Predicated region
      $region109: #{image_ar_diffusion_forward.3} parent=11 // pred_check
        %p871 = pneg %p674
      $region110: #{image_ar_diffusion_forward.3} parent=11 // pred_check_branch
        %873 = sbr.rel (%p871) target = $region112
      $region111: #{image_ar_diffusion_forward.3} parent=11 // pred_region
        _
      $region112: #{image_ar_diffusion_forward.3} parent=11 // pred_fallthru
        _
      // Predicated region
      $region113: #{image_ar_diffusion_forward.3} parent=11 // pred_check
        %p874 = pneg %p695
      $region114: #{image_ar_diffusion_forward.3} parent=11 // pred_check_branch
        %876 = sbr.rel (%p874) target = $region116
      $region115: #{image_ar_diffusion_forward.3} parent=11 // pred_region
        _
      $region116: #{image_ar_diffusion_forward.3} parent=11 // pred_fallthru
        _
      // Predicated region
      $region117: #{image_ar_diffusion_forward.3} parent=11 // pred_check
        %p877 = pneg %p716
      $region118: #{image_ar_diffusion_forward.3} parent=11 // pred_check_branch
        %879 = sbr.rel (%p877) target = $region120
      $region119: #{image_ar_diffusion_forward.3} parent=11 // pred_region
        _
      $region120: #{image_ar_diffusion_forward.3} parent=11 // pred_fallthru
        _
      // Predicated region
      $region121: #{image_ar_diffusion_forward.3} parent=11 // pred_check
        %p880 = pneg %p737
      $region122: #{image_ar_diffusion_forward.3} parent=11 // pred_check_branch
        %882 = sbr.rel (%p880) target = $region124
      $region123: #{image_ar_diffusion_forward.3} parent=11 // pred_region
        _
      $region124: #{image_ar_diffusion_forward.3} parent=11 // pred_fallthru
        _
      // Predicated region
      $region125: #{image_ar_diffusion_forward.3} parent=11 // pred_check
        %p883 = pneg %p758
      $region126: #{image_ar_diffusion_forward.3} parent=11 // pred_check_branch
        %885 = sbr.rel (%p883) target = $region128
      $region127: #{image_ar_diffusion_forward.3} parent=11 // pred_region
        _
      $region128: #{image_ar_diffusion_forward.3} parent=11 // pred_fallthru
        _
    $region12: #{image_ar_diffusion_forward.3} parent=5 // pred_fallthru
      _
    %p886 = scmp.lt.s32.totalorder %s71, 2
    // Predicated region
    $region129: #{image_ar_diffusion_forward.3} parent=5 // pred_check
      %p887 = pneg %p886
    $region130: #{image_ar_diffusion_forward.3} parent=5 // pred_check_branch
      %889 = sbr.rel (%p887) target = $region132
    $region131: #{image_ar_diffusion_forward.3} parent=5 // pred_region
      // Predicated region
      $region133: #{image_ar_diffusion_forward.3} parent=131 // pred_check
        %p890 = pneg %p91
      $region134: #{image_ar_diffusion_forward.3} parent=131 // pred_check_branch
        %892 = sbr.rel (%p890) target = $region136
      $region135: #{image_ar_diffusion_forward.3} parent=131 // pred_region
        %p893 = scmp.lt.s32.totalorder %s71, 1
        %s894 = scalar_select %p893, %s71, 1
        %s895 = smul.addr %s894, 2
        %s896 = smul.addr %s895, 8
        %s897 = scalar_lea.vmem %s1, %s896
      $region136: #{image_ar_diffusion_forward.3} parent=131 // pred_fallthru
        _
      // Predicated region
      $region137: #{image_ar_diffusion_forward.3} parent=131 // pred_check
        %p898 = pneg %p117
      $region138: #{image_ar_diffusion_forward.3} parent=131 // pred_check_branch
        %900 = sbr.rel (%p898) target = $region140
      $region139: #{image_ar_diffusion_forward.3} parent=131 // pred_region
        %p901 = scmp.lt.s32.totalorder %s71, 1
        %s902 = scalar_select %p901, %s71, 1
        %s903 = smul.addr %s902, 2
        %s904 = smul.addr %s903, 8
        %s905 = scalar_lea.vmem %s3, %s904
      $region140: #{image_ar_diffusion_forward.3} parent=131 // pred_fallthru
        _
      // Predicated region
      $region141: #{image_ar_diffusion_forward.3} parent=131 // pred_check
        %p906 = pneg %p143
      $region142: #{image_ar_diffusion_forward.3} parent=131 // pred_check_branch
        %908 = sbr.rel (%p906) target = $region144
      $region143: #{image_ar_diffusion_forward.3} parent=131 // pred_region
        %p909 = scmp.lt.s32.totalorder %s71, 1
        %s910 = scalar_select %p909, %s71, 1
        %s911 = smul.addr %s910, 2
        %s912 = smul.addr %s911, 8
        %s913 = scalar_lea.vmem %s5, %s912
      $region144: #{image_ar_diffusion_forward.3} parent=131 // pred_fallthru
        _
    $region132: #{image_ar_diffusion_forward.3} parent=5 // pred_fallthru
      _
    %p914 = scmp.le.s32.totalorder 1, %s71
    %p915 = scmp.lt.s32.totalorder %s71, 3
    %p916 = pnand %p914, %p915
    %p917 = pneg %p916
    // Predicated region
    $region145: #{image_ar_diffusion_forward.3} parent=5 // pred_check
      _
    $region146: #{image_ar_diffusion_forward.3} parent=5 // pred_check_branch
      %919 = sbr.rel (%p916) target = $region148
    $region147: #{image_ar_diffusion_forward.3} parent=5 // pred_region
      %s920 = ssub.s32 %s71, 1
      %p921 = scmp.lt.s32.totalorder %s76, 1
      %s922 = scalar_select %p921, %s76, 1
      %s923 = smul.addr %s922, 2
      %s924 = smul.addr %s923, 8
      %s925 = scalar_lea.vmem %s1, %s924
      %p926 = pneg %p97
      %p927 = pneg %p94
      %p928 = scmp.lt.s32.totalorder %s76, 1
      %s929 = scalar_select %p928, %s76, 1
      %s930 = smul.addr %s929, 2
      %s931 = smul.addr %s930, 8
      %s932 = scalar_lea.vmem %s3, %s931
      %p933 = pneg %p123
      %p934 = pneg %p120
      %p935 = scmp.lt.s32.totalorder %s76, 1
      %s936 = scalar_select %p935, %s76, 1
      %s937 = smul.addr %s936, 2
      %s938 = smul.addr %s937, 8
      %s939 = scalar_lea.vmem %s5, %s938
      %p940 = pneg %p149
      %p941 = pneg %p146
      %p942 = pneg %p170
      %p943 = pneg %p167
      %p944 = pneg %p191
      %p945 = pneg %p188
      %p946 = pneg %p212
      %p947 = pneg %p209
      %p948 = pneg %p233
      %p949 = pneg %p230
      %p950 = pneg %p254
      %p951 = pneg %p251
      %p952 = pneg %p275
      %p953 = pneg %p272
      %p954 = pneg %p296
      %p955 = pneg %p293
      %p956 = pneg %p317
      %p957 = pneg %p314
      %p958 = pneg %p338
      %p959 = pneg %p335
      %p960 = pneg %p359
      %p961 = pneg %p356
      %p962 = pneg %p380
      %p963 = pneg %p377
      %p964 = pneg %p401
      %p965 = pneg %p398
      %p966 = pneg %p422
      %p967 = pneg %p419
      %p968 = pneg %p443
      %p969 = pneg %p440
      %p970 = pneg %p464
      %p971 = pneg %p461
      %p972 = pneg %p485
      %p973 = pneg %p482
      %p974 = pneg %p506
      %p975 = pneg %p503
      %p976 = pneg %p527
      %p977 = pneg %p524
      %p978 = pneg %p548
      %p979 = pneg %p545
      %p980 = pneg %p569
      %p981 = pneg %p566
      %p982 = pneg %p590
      %p983 = pneg %p587
      %p984 = pneg %p611
      %p985 = pneg %p608
      %p986 = pneg %p632
      %p987 = pneg %p629
      %p988 = pneg %p653
      %p989 = pneg %p650
      %p990 = pneg %p674
      %p991 = pneg %p671
      %p992 = pneg %p695
      %p993 = pneg %p692
      %p994 = pneg %p716
      %p995 = pneg %p713
      %p996 = pneg %p737
      %p997 = pneg %p734
      %p998 = pneg %p758
      %p999 = pneg %p755
      %p1000 = pneg %p784
      %p1001 = pneg %p781
      %p1002 = scmp.lt.s32.totalorder %s76, 1
      %s1003 = scalar_select %p1002, %s76, 1
      %s1004 = smul.addr %s1003, 8
      %s1005 = scalar_lea.vmem %s65, %s1004
      %p1006 = scmp.lt.s32.totalorder %s76, 1
      %s1007 = scalar_select %p1006, %s76, 1
      %s1008 = smul.addr %s1007, 2
      %s1009 = smul.addr %s1008, 8
      %s1010 = scalar_lea.vmem %s1, %s1009
      %p1011 = scmp.lt.s32.totalorder %s76, 1
      %s1012 = scalar_select %p1011, %s76, 1
      %s1013 = smul.addr %s1012, 2
      %s1014 = smul.addr %s1013, 8
      %s1015 = scalar_lea.vmem %s3, %s1014
      %p1016 = scmp.lt.s32.totalorder %s76, 1
      %s1017 = scalar_select %p1016, %s76, 1
      %s1018 = smul.addr %s1017, 2
      %s1019 = smul.addr %s1018, 8
      %s1020 = scalar_lea.vmem %s5, %s1019
      %p1021 = scmp.lt.s32.totalorder %s76, 1
      %s1022 = scalar_select %p1021, %s76, 1
      %s1023 = smul.addr %s1022, 8
      %s1024 = scalar_lea.vmem %s65, %s1023
      %v1026 = vld [vmem:[%s1010] sm:$0xff]
      %v1027 = vld [vmem:[%s1010 + $0x8] sm:$0xff]
      %v1028 = vld [vmem:[%s1015] sm:$0xff]
      %v1029 = vld [vmem:[%s1015 + $0x8] sm:$0xff]
      %v1030 = vld [vmem:[%s1020] sm:$0xff]
      %v1031 = vld [vmem:[%s1020 + $0x8] sm:$0xff]
      %v1032 = vlaneseq
      %v1033 = vshrl.u32 %v1032, 7
      %v1034 = vadd.s32 %v1033, 8
      %v1035 = vlaneseq
      %v1036 = vand.u32 %v1035, 127
      %v1037 = vld [vmem:[%s7] sm:$0xf]
      %v1038 = vld [vmem:[%s7 + $0x4] sm:$0xf]
      %v1039 = vld [vmem:[%s7 + $0x8] sm:$0xf]
      %v1040 = vld [vmem:[%s7 + $0xc] sm:$0xf]
      %v1041 = vld [vmem:[%s7 + $0x10] sm:$0xf]
      %v1042 = vld [vmem:[%s7 + $0x14] sm:$0xf]
      %v1043 = vld [vmem:[%s7 + $0x18] sm:$0xf]
      %v1044 = vld [vmem:[%s7 + $0x1c] sm:$0xf]
      %v1045 = vld [vmem:[%s7 + $0x20] sm:$0xf]
      %v1046 = vld [vmem:[%s7 + $0x24] sm:$0xf]
      %v1047 = vld [vmem:[%s7 + $0x28] sm:$0xf]
      %v1048 = vld [vmem:[%s7 + $0x2c] sm:$0xf]
      %v1049 = vld [vmem:[%s7 + $0x30] sm:$0xf]
      %v1050 = vld [vmem:[%s7 + $0x34] sm:$0xf]
      %v1051 = vld [vmem:[%s7 + $0x38] sm:$0xf]
      %v1052 = vld [vmem:[%s7 + $0x3c] sm:$0xf]
      %v1053 = vpack.c.bf16 %v1027, %v1026
      %v1054 = vld [vmem:[%s9] sm:$0x1]
      %v1056 = vlaneseq
      %v1057 = vshrl.u32 %v1056, 7
      %v1058 = vsub.s32 0, %v1057
      %v1059 = vrot.slane %v1054, %v1058
      %v1077 = vunpack.c.l.b16 %v1037
      %v1078 = vunpack.c.l.b16 %v1038
      %v1079 = vunpack.c.l.b16 %v1039
      %v1080 = vunpack.c.l.b16 %v1040
      %v1081 = vunpack.c.l.b16 %v1041
      %v1082 = vunpack.c.l.b16 %v1042
      %v1083 = vunpack.c.l.b16 %v1043
      %v1084 = vunpack.c.l.b16 %v1044
      %v1085 = vunpack.c.l.b16 %v1045
      %v1086 = vunpack.c.l.b16 %v1046
      %v1087 = vunpack.c.l.b16 %v1047
      %v1088 = vunpack.c.l.b16 %v1048
      %v1089 = vunpack.c.l.b16 %v1049
      %v1090 = vunpack.c.l.b16 %v1050
      %v1091 = vunpack.c.l.b16 %v1051
      %v1092 = vunpack.c.l.b16 %v1052
      %v1093 = vpack.c.b16 %v1078, %v1077
      %v1094 = vpack.c.b16 %v1080, %v1079
      %v1095 = vpack.c.b16 %v1082, %v1081
      %v1096 = vpack.c.b16 %v1084, %v1083
      %v1097 = vpack.c.b16 %v1086, %v1085
      %v1098 = vpack.c.b16 %v1088, %v1087
      %v1099 = vpack.c.b16 %v1090, %v1089
      %v1100 = vpack.c.b16 %v1092, %v1091
      %1109 = vmatprep.subr.bf16.mxu0 0
      %1110 = vmatpush1.bf16.msra.mxu0 %v1093
      %1111 = vmatprep.subr.bf16.mxu0 0
      %1112 = vmatpush1.bf16.msra.mxu0 %v1094
      %1113 = vmatprep.subr.bf16.mxu0 0
      %1114 = vmatpush1.bf16.msra.mxu0 %v1095
      %1115 = vmatprep.subr.bf16.mxu0 0
      %1116 = vmatpush1.bf16.msra.mxu0 %v1096
      %1117 = vmatprep.subr.bf16.mxu0 0
      %1118 = vmatpush1.bf16.msra.mxu0 %v1097
      %1119 = vmatprep.subr.bf16.mxu0 0
      %1120 = vmatpush1.bf16.msra.mxu0 %v1098
      %1121 = vmatprep.subr.bf16.mxu0 0
      %1122 = vmatpush1.bf16.msra.mxu0 %v1099
      %1123 = vmatprep.subr.bf16.mxu0 0
      %1124 = vmatpush1.bf16.msra.mxu0 %v1100
      %1125 = vmatprep.subr.bf16.mxu0 0
      %1126 = vmatpush1.bf16.msra.mxu0 0
      %1127 = vmatprep.subr.bf16.mxu0 0
      %1128 = vmatpush1.bf16.msra.mxu0 0
      %1129 = vmatprep.subr.bf16.mxu0 0
      %1130 = vmatpush1.bf16.msra.mxu0 0
      %1131 = vmatprep.subr.bf16.mxu0 0
      %1132 = vmatpush1.bf16.msra.mxu0 0
      %1133 = vmatprep.subr.bf16.mxu0 0
      %1134 = vmatpush1.bf16.msra.mxu0 0
      %1135 = vmatprep.subr.bf16.mxu0 0
      %1136 = vmatpush1.bf16.msra.mxu0 0
      %1137 = vmatprep.subr.bf16.mxu0 0
      %1138 = vmatpush1.bf16.msra.mxu0 0
      %1139 = vmatprep.subr.bf16.mxu0 0
      %1140 = vmatpush1.bf16.msra.mxu0 0
      %1141 = vmatprep.mubr.bf16.mxu0 0
      %1142 = vmatmul.mubr.bf16.gmra.mrb[0].mxu0 %v1053
      %v1143 = vpop.f32.mrb[0].mxu0
      %v1144 = vadd.f32 %v1059, %v1143
      %v1145 = vpop.f32.mrb[0].mxu0
      %v1146 = vpop.f32.mrb[0].mxu0
      %v1147 = vadd.f32 %v1059, %v1146
      %v1148 = vpop.f32.mrb[0].mxu0
      %1149 = vdwg.mxu0
      %v1150 = vadd.s32 %v1036, 1
      %vm1151 = vcmp.eq.s32.totalorder %v1033, %v1150
      %vm1152 = vcmp.eq.s32.totalorder %v1034, %v1150
      %v1153 = vsel %vm1151, 1, 0
      %v1154 = vsel %vm1152, 1, 0
      %v1155 = vcvt.s32.f32 %v1153
      %v1156 = vcvt.s32.f32 %v1154
      %vm1157 = vcmask 130048
      %v1159 = vsel %vm1157, %v1155, 0
      %v1162 = vsel %vm1157, %v1156, 0
      %1164 = vmatprep.subr.mxu0 0.0
      %1165 = vmatpush1.msra.mxu0 %v1144
      %1166 = vmatprep.subr.mxu0 0.0
      %1167 = vmatpush1.msra.mxu0 %v1147
      %1168 = vmatprep.subr.mxu0 0.0
      %1169 = vmatpush1.msra.mxu0 0.0
      %1170 = vmatprep.subr.mxu0 0.0
      %1171 = vmatpush1.msra.mxu0 0.0
      %1172 = vmatprep.subr.mxu0 0.0
      %1173 = vmatpush1.msra.mxu0 0.0
      %1174 = vmatprep.subr.mxu0 0.0
      %1175 = vmatpush1.msra.mxu0 0.0
      %1176 = vmatprep.subr.mxu0 0.0
      %1177 = vmatpush1.msra.mxu0 0.0
      %1178 = vmatprep.subr.mxu0 0.0
      %1179 = vmatpush1.msra.mxu0 0.0
      %1180 = vmatprep.subr.mxu0 0.0
      %1181 = vmatpush1.msra.mxu0 0.0
      %1182 = vmatprep.subr.mxu0 0.0
      %1183 = vmatpush1.msra.mxu0 0.0
      %1184 = vmatprep.subr.mxu0 0.0
      %1185 = vmatpush1.msra.mxu0 0.0
      %1186 = vmatprep.subr.mxu0 0.0
      %1187 = vmatpush1.msra.mxu0 0.0
      %1188 = vmatprep.subr.mxu0 0.0
      %1189 = vmatpush1.msra.mxu0 0.0
      %1190 = vmatprep.subr.mxu0 0.0
      %1191 = vmatpush1.msra.mxu0 0.0
      %1192 = vmatprep.subr.mxu0 0.0
      %1193 = vmatpush1.msra.mxu0 0.0
      %1194 = vmatprep.subr.mxu0 0.0
      %1195 = vmatpush1.msra.mxu0 0.0
      %1196 = vmatprep.subr.mxu0 0.0
      %1197 = vmatpush1.msra.mxu0 0.0
      %1198 = vmatprep.subr.mxu0 0.0
      %1199 = vmatpush1.msra.mxu0 0.0
      %1200 = vmatprep.subr.mxu0 0.0
      %1201 = vmatpush1.msra.mxu0 0.0
      %1202 = vmatprep.subr.mxu0 0.0
      %1203 = vmatpush1.msra.mxu0 0.0
      %1204 = vmatprep.subr.mxu0 0.0
      %1205 = vmatpush1.msra.mxu0 0.0
      %1206 = vmatprep.subr.mxu0 0.0
      %1207 = vmatpush1.msra.mxu0 0.0
      %1208 = vmatprep.subr.mxu0 0.0
      %1209 = vmatpush1.msra.mxu0 0.0
      %1210 = vmatprep.subr.mxu0 0.0
      %1211 = vmatpush1.msra.mxu0 0.0
      %1212 = vmatprep.subr.mxu0 0.0
      %1213 = vmatpush1.msra.mxu0 0.0
      %1214 = vmatprep.subr.mxu0 0.0
      %1215 = vmatpush1.msra.mxu0 0.0
      %1216 = vmatprep.subr.mxu0 0.0
      %1217 = vmatpush1.msra.mxu0 0.0
      %1218 = vmatprep.subr.mxu0 0.0
      %1219 = vmatpush1.msra.mxu0 0.0
      %1220 = vmatprep.subr.mxu0 0.0
      %1221 = vmatpush1.msra.mxu0 0.0
      %1222 = vmatprep.subr.mxu0 0.0
      %1223 = vmatpush1.msra.mxu0 0.0
      %1224 = vmatprep.subr.mxu0 0.0
      %1225 = vmatpush1.msra.mxu0 0.0
      %1226 = vmatprep.subr.mxu0 0.0
      %1227 = vmatpush1.msra.mxu0 0.0
      %1228 = vmatprep.mubr.f32.mxu0 0.0
      %1229 = vmatmul.mubr.f32.gmra.mrb[0].mxu0 %v1159
      %v1230 = vpop.f32.mrb[0].mxu0
      %v1231 = vadd.f32 0.0, %v1230
      %v1232 = vpop.f32.mrb[0].mxu0
      %1233 = vmatprep.mubr.f32.mxu0 0.0
      %1234 = vmatmul.mubr.f32.gmra.mrb[0].mxu0 %v1162
      %v1235 = vpop.f32.mrb[0].mxu0
      %v1236 = vadd.f32 0.0, %v1235
      %v1237 = vpop.f32.mrb[0].mxu0
      %1238 = vdwg.mxu0
      %vm1239 = vcmp.eq.s32.totalorder %v1033, 0
      %vm1240 = vcmp.eq.s32.totalorder %v1034, 0
      %v1241 = vld [vmem:[%s11] sm:$0x1]
      %v1243 = vlaneseq
      %v1244 = vshrl.u32 %v1243, 7
      %v1245 = vsub.s32 0, %v1244
      %v1246 = vrot.slane %v1241, %v1245
      %v1248 = vsel %vm1239, %v1246, %v1231
      %v1249 = vsel %vm1240, %v1246, %v1236
      %v1250 = vld [vmem:[%s13] sm:$0xff]
      %v1251 = vld [vmem:[%s13 + $0x8] sm:$0xff]
      %v1252 = vadd.f32 %v1248, %v1250
      %v1253 = vadd.f32 %v1249, %v1251
      %vm1254 = vcmp.ge.s32.totalorder %v1033, %v1036
      %vm1255 = vcmp.ge.s32.totalorder %v1034, %v1036
      %v1256 = vld [vmem:[%s15] sm:$0x1]
      %v1257 = vld [vmem:[%s17] sm:$0x1]
      %1258 = vadd.xlane.f32.xlu0 %v1252
      %v1259 = vpop.xlane.xlu0 %1258
      %1260 = vadd.xlane.f32.xlu0 %v1253
      %v1261 = vpop.xlane.xlu0 %1260
      %v1262 = vrcp.pop 128.0
      %v1263 = vmul.f32 %v1259, %v1262
      %v1264 = vmul.f32 %v1261, %v1262
      %v1265 = vsub.f32 %v1252, %v1263
      %v1266 = vsub.f32 %v1253, %v1264
      %v1267 = vmul.f32 %v1265, %v1265
      %v1268 = vmul.f32 %v1266, %v1266
      %1269 = vadd.xlane.f32.xlu0 %v1267
      %v1270 = vpop.xlane.xlu0 %1269
      %1271 = vadd.xlane.f32.xlu0 %v1268
      %v1272 = vpop.xlane.xlu0 %1271
      %v1273 = vmul.f32 %v1270, %v1262
      %v1274 = vmul.f32 %v1272, %v1262
      %v1275 = vadd.f32 %v1273, 1e-05
      %v1276 = vadd.f32 %v1274, 1e-05
      %v1277 = vrsqrt.pop %v1275
      %v1278 = vrsqrt.pop %v1276
      %v1279 = vmul.f32 %v1265, %v1277
      %v1280 = vmul.f32 %v1266, %v1278
      %v1282 = vlaneseq
      %v1283 = vshrl.u32 %v1282, 7
      %v1284 = vsub.s32 0, %v1283
      %v1285 = vrot.slane %v1256, %v1284
      %v1287 = vmul.f32 %v1279, %v1285
      %v1288 = vmul.f32 %v1280, %v1285
      %v1290 = vlaneseq
      %v1291 = vshrl.u32 %v1290, 7
      %v1292 = vsub.s32 0, %v1291
      %v1293 = vrot.slane %v1257, %v1292
      %v1295 = vadd.f32 %v1287, %v1293
      %v1296 = vadd.f32 %v1288, %v1293
      %v1297 = vpack.c.bf16 %v1296, %v1295
      %v1298 = vld [vmem:[%s19] sm:$0xf]
      %v1299 = vld [vmem:[%s19 + $0x4] sm:$0xf]
      %v1300 = vld [vmem:[%s19 + $0x8] sm:$0xf]
      %v1301 = vld [vmem:[%s19 + $0xc] sm:$0xf]
      %v1302 = vld [vmem:[%s19 + $0x10] sm:$0xf]
      %v1303 = vld [vmem:[%s19 + $0x14] sm:$0xf]
      %v1304 = vld [vmem:[%s19 + $0x18] sm:$0xf]
      %v1305 = vld [vmem:[%s19 + $0x1c] sm:$0xf]
      %v1306 = vld [vmem:[%s19 + $0x20] sm:$0xf]
      %v1307 = vld [vmem:[%s19 + $0x24] sm:$0xf]
      %v1308 = vld [vmem:[%s19 + $0x28] sm:$0xf]
      %v1309 = vld [vmem:[%s19 + $0x2c] sm:$0xf]
      %v1310 = vld [vmem:[%s19 + $0x30] sm:$0xf]
      %v1311 = vld [vmem:[%s19 + $0x34] sm:$0xf]
      %v1312 = vld [vmem:[%s19 + $0x38] sm:$0xf]
      %v1313 = vld [vmem:[%s19 + $0x3c] sm:$0xf]
      %v1330 = vunpack.c.l.b16 %v1298
      %v1331 = vunpack.c.l.b16 %v1299
      %v1332 = vunpack.c.l.b16 %v1300
      %v1333 = vunpack.c.l.b16 %v1301
      %v1334 = vunpack.c.l.b16 %v1302
      %v1335 = vunpack.c.l.b16 %v1303
      %v1336 = vunpack.c.l.b16 %v1304
      %v1337 = vunpack.c.l.b16 %v1305
      %v1338 = vunpack.c.l.b16 %v1306
      %v1339 = vunpack.c.l.b16 %v1307
      %v1340 = vunpack.c.l.b16 %v1308
      %v1341 = vunpack.c.l.b16 %v1309
      %v1342 = vunpack.c.l.b16 %v1310
      %v1343 = vunpack.c.l.b16 %v1311
      %v1344 = vunpack.c.l.b16 %v1312
      %v1345 = vunpack.c.l.b16 %v1313
      %v1346 = vpack.c.b16 %v1331, %v1330
      %v1347 = vpack.c.b16 %v1333, %v1332
      %v1348 = vpack.c.b16 %v1335, %v1334
      %v1349 = vpack.c.b16 %v1337, %v1336
      %v1350 = vpack.c.b16 %v1339, %v1338
      %v1351 = vpack.c.b16 %v1341, %v1340
      %v1352 = vpack.c.b16 %v1343, %v1342
      %v1353 = vpack.c.b16 %v1345, %v1344
      %1362 = vmatprep.subr.bf16.mxu0 0
      %1363 = vmatpush1.bf16.msra.mxu0 %v1346
      %1364 = vmatprep.subr.bf16.mxu0 0
      %1365 = vmatpush1.bf16.msra.mxu0 %v1347
      %1366 = vmatprep.subr.bf16.mxu0 0
      %1367 = vmatpush1.bf16.msra.mxu0 %v1348
      %1368 = vmatprep.subr.bf16.mxu0 0
      %1369 = vmatpush1.bf16.msra.mxu0 %v1349
      %1370 = vmatprep.subr.bf16.mxu0 0
      %1371 = vmatpush1.bf16.msra.mxu0 %v1350
      %1372 = vmatprep.subr.bf16.mxu0 0
      %1373 = vmatpush1.bf16.msra.mxu0 %v1351
      %1374 = vmatprep.subr.bf16.mxu0 0
      %1375 = vmatpush1.bf16.msra.mxu0 %v1352
      %1376 = vmatprep.subr.bf16.mxu0 0
      %1377 = vmatpush1.bf16.msra.mxu0 %v1353
      %1378 = vmatprep.subr.bf16.mxu0 0
      %1379 = vmatpush1.bf16.msra.mxu0 0
      %1380 = vmatprep.subr.bf16.mxu0 0
      %1381 = vmatpush1.bf16.msra.mxu0 0
      %1382 = vmatprep.subr.bf16.mxu0 0
      %1383 = vmatpush1.bf16.msra.mxu0 0
      %1384 = vmatprep.subr.bf16.mxu0 0
      %1385 = vmatpush1.bf16.msra.mxu0 0
      %1386 = vmatprep.subr.bf16.mxu0 0
      %1387 = vmatpush1.bf16.msra.mxu0 0
      %1388 = vmatprep.subr.bf16.mxu0 0
      %1389 = vmatpush1.bf16.msra.mxu0 0
      %1390 = vmatprep.subr.bf16.mxu0 0
      %1391 = vmatpush1.bf16.msra.mxu0 0
      %1392 = vmatprep.subr.bf16.mxu0 0
      %1393 = vmatpush1.bf16.msra.mxu0 0
      %1394 = vmatprep.mubr.bf16.mxu0 0
      %1395 = vmatmul.mubr.bf16.gmra.mrb[0].mxu0 %v1297
      %v1396 = vpop.f32.mrb[0].mxu0
      %v1397 = vadd.f32 0.0, %v1396
      %v1398 = vpop.f32.mrb[0].mxu0
      %v1399 = vpop.f32.mrb[0].mxu0
      %v1400 = vadd.f32 0.0, %v1399
      %v1401 = vpop.f32.mrb[0].mxu0
      %1402 = vdwg.mxu0
      %v1403 = vld [vmem:[%s21] sm:$0xf]
      %v1404 = vld [vmem:[%s21 + $0x4] sm:$0xf]
      %v1405 = vld [vmem:[%s21 + $0x8] sm:$0xf]
      %v1406 = vld [vmem:[%s21 + $0xc] sm:$0xf]
      %v1407 = vld [vmem:[%s21 + $0x10] sm:$0xf]
      %v1408 = vld [vmem:[%s21 + $0x14] sm:$0xf]
      %v1409 = vld [vmem:[%s21 + $0x18] sm:$0xf]
      %v1410 = vld [vmem:[%s21 + $0x1c] sm:$0xf]
      %v1411 = vld [vmem:[%s21 + $0x20] sm:$0xf]
      %v1412 = vld [vmem:[%s21 + $0x24] sm:$0xf]
      %v1413 = vld [vmem:[%s21 + $0x28] sm:$0xf]
      %v1414 = vld [vmem:[%s21 + $0x2c] sm:$0xf]
      %v1415 = vld [vmem:[%s21 + $0x30] sm:$0xf]
      %v1416 = vld [vmem:[%s21 + $0x34] sm:$0xf]
      %v1417 = vld [vmem:[%s21 + $0x38] sm:$0xf]
      %v1418 = vld [vmem:[%s21 + $0x3c] sm:$0xf]
      %v1435 = vunpack.c.l.b16 %v1403
      %v1436 = vunpack.c.l.b16 %v1404
      %v1437 = vunpack.c.l.b16 %v1405
      %v1438 = vunpack.c.l.b16 %v1406
      %v1439 = vunpack.c.l.b16 %v1407
      %v1440 = vunpack.c.l.b16 %v1408
      %v1441 = vunpack.c.l.b16 %v1409
      %v1442 = vunpack.c.l.b16 %v1410
      %v1443 = vunpack.c.l.b16 %v1411
      %v1444 = vunpack.c.l.b16 %v1412
      %v1445 = vunpack.c.l.b16 %v1413
      %v1446 = vunpack.c.l.b16 %v1414
      %v1447 = vunpack.c.l.b16 %v1415
      %v1448 = vunpack.c.l.b16 %v1416
      %v1449 = vunpack.c.l.b16 %v1417
      %v1450 = vunpack.c.l.b16 %v1418
      %v1451 = vpack.c.b16 %v1436, %v1435
      %v1452 = vpack.c.b16 %v1438, %v1437
      %v1453 = vpack.c.b16 %v1440, %v1439
      %v1454 = vpack.c.b16 %v1442, %v1441
      %v1455 = vpack.c.b16 %v1444, %v1443
      %v1456 = vpack.c.b16 %v1446, %v1445
      %v1457 = vpack.c.b16 %v1448, %v1447
      %v1458 = vpack.c.b16 %v1450, %v1449
      %1467 = vmatprep.subr.bf16.mxu0 0
      %1468 = vmatpush1.bf16.msra.mxu0 %v1451
      %1469 = vmatprep.subr.bf16.mxu0 0
      %1470 = vmatpush1.bf16.msra.mxu0 %v1452
      %1471 = vmatprep.subr.bf16.mxu0 0
      %1472 = vmatpush1.bf16.msra.mxu0 %v1453
      %1473 = vmatprep.subr.bf16.mxu0 0
      %1474 = vmatpush1.bf16.msra.mxu0 %v1454
      %1475 = vmatprep.subr.bf16.mxu0 0
      %1476 = vmatpush1.bf16.msra.mxu0 %v1455
      %1477 = vmatprep.subr.bf16.mxu0 0
      %1478 = vmatpush1.bf16.msra.mxu0 %v1456
      %1479 = vmatprep.subr.bf16.mxu0 0
      %1480 = vmatpush1.bf16.msra.mxu0 %v1457
      %1481 = vmatprep.subr.bf16.mxu0 0
      %1482 = vmatpush1.bf16.msra.mxu0 %v1458
      %1483 = vmatprep.subr.bf16.mxu0 0
      %1484 = vmatpush1.bf16.msra.mxu0 0
      %1485 = vmatprep.subr.bf16.mxu0 0
      %1486 = vmatpush1.bf16.msra.mxu0 0
      %1487 = vmatprep.subr.bf16.mxu0 0
      %1488 = vmatpush1.bf16.msra.mxu0 0
      %1489 = vmatprep.subr.bf16.mxu0 0
      %1490 = vmatpush1.bf16.msra.mxu0 0
      %1491 = vmatprep.subr.bf16.mxu0 0
      %1492 = vmatpush1.bf16.msra.mxu0 0
      %1493 = vmatprep.subr.bf16.mxu0 0
      %1494 = vmatpush1.bf16.msra.mxu0 0
      %1495 = vmatprep.subr.bf16.mxu0 0
      %1496 = vmatpush1.bf16.msra.mxu0 0
      %1497 = vmatprep.subr.bf16.mxu0 0
      %1498 = vmatpush1.bf16.msra.mxu0 0
      %1499 = vmatprep.mubr.bf16.mxu0 0
      %1500 = vmatmul.mubr.bf16.gmra.mrb[0].mxu0 %v1297
      %v1501 = vpop.f32.mrb[0].mxu0
      %v1502 = vadd.f32 0.0, %v1501
      %v1503 = vpop.f32.mrb[0].mxu0
      %v1504 = vpop.f32.mrb[0].mxu0
      %v1505 = vadd.f32 0.0, %v1504
      %v1506 = vpop.f32.mrb[0].mxu0
      %1507 = vdwg.mxu0
      %v1508 = vld [vmem:[%s23] sm:$0xf]
      %v1509 = vld [vmem:[%s23 + $0x4] sm:$0xf]
      %v1510 = vld [vmem:[%s23 + $0x8] sm:$0xf]
      %v1511 = vld [vmem:[%s23 + $0xc] sm:$0xf]
      %v1512 = vld [vmem:[%s23 + $0x10] sm:$0xf]
      %v1513 = vld [vmem:[%s23 + $0x14] sm:$0xf]
      %v1514 = vld [vmem:[%s23 + $0x18] sm:$0xf]
      %v1515 = vld [vmem:[%s23 + $0x1c] sm:$0xf]
      %v1516 = vld [vmem:[%s23 + $0x20] sm:$0xf]
      %v1517 = vld [vmem:[%s23 + $0x24] sm:$0xf]
      %v1518 = vld [vmem:[%s23 + $0x28] sm:$0xf]
      %v1519 = vld [vmem:[%s23 + $0x2c] sm:$0xf]
      %v1520 = vld [vmem:[%s23 + $0x30] sm:$0xf]
      %v1521 = vld [vmem:[%s23 + $0x34] sm:$0xf]
      %v1522 = vld [vmem:[%s23 + $0x38] sm:$0xf]
      %v1523 = vld [vmem:[%s23 + $0x3c] sm:$0xf]
      %v1540 = vunpack.c.l.b16 %v1508
      %v1541 = vunpack.c.l.b16 %v1509
      %v1542 = vunpack.c.l.b16 %v1510
      %v1543 = vunpack.c.l.b16 %v1511
      %v1544 = vunpack.c.l.b16 %v1512
      %v1545 = vunpack.c.l.b16 %v1513
      %v1546 = vunpack.c.l.b16 %v1514
      %v1547 = vunpack.c.l.b16 %v1515
      %v1548 = vunpack.c.l.b16 %v1516
      %v1549 = vunpack.c.l.b16 %v1517
      %v1550 = vunpack.c.l.b16 %v1518
      %v1551 = vunpack.c.l.b16 %v1519
      %v1552 = vunpack.c.l.b16 %v1520
      %v1553 = vunpack.c.l.b16 %v1521
      %v1554 = vunpack.c.l.b16 %v1522
      %v1555 = vunpack.c.l.b16 %v1523
      %v1556 = vpack.c.b16 %v1541, %v1540
      %v1557 = vpack.c.b16 %v1543, %v1542
      %v1558 = vpack.c.b16 %v1545, %v1544
      %v1559 = vpack.c.b16 %v1547, %v1546
      %v1560 = vpack.c.b16 %v1549, %v1548
      %v1561 = vpack.c.b16 %v1551, %v1550
      %v1562 = vpack.c.b16 %v1553, %v1552
      %v1563 = vpack.c.b16 %v1555, %v1554
      %1572 = vmatprep.subr.bf16.mxu0 0
      %1573 = vmatpush1.bf16.msra.mxu0 %v1556
      %1574 = vmatprep.subr.bf16.mxu0 0
      %1575 = vmatpush1.bf16.msra.mxu0 %v1557
      %1576 = vmatprep.subr.bf16.mxu0 0
      %1577 = vmatpush1.bf16.msra.mxu0 %v1558
      %1578 = vmatprep.subr.bf16.mxu0 0
      %1579 = vmatpush1.bf16.msra.mxu0 %v1559
      %1580 = vmatprep.subr.bf16.mxu0 0
      %1581 = vmatpush1.bf16.msra.mxu0 %v1560
      %1582 = vmatprep.subr.bf16.mxu0 0
      %1583 = vmatpush1.bf16.msra.mxu0 %v1561
      %1584 = vmatprep.subr.bf16.mxu0 0
      %1585 = vmatpush1.bf16.msra.mxu0 %v1562
      %1586 = vmatprep.subr.bf16.mxu0 0
      %1587 = vmatpush1.bf16.msra.mxu0 %v1563
      %1588 = vmatprep.subr.bf16.mxu0 0
      %1589 = vmatpush1.bf16.msra.mxu0 0
      %1590 = vmatprep.subr.bf16.mxu0 0
      %1591 = vmatpush1.bf16.msra.mxu0 0
      %1592 = vmatprep.subr.bf16.mxu0 0
      %1593 = vmatpush1.bf16.msra.mxu0 0
      %1594 = vmatprep.subr.bf16.mxu0 0
      %1595 = vmatpush1.bf16.msra.mxu0 0
      %1596 = vmatprep.subr.bf16.mxu0 0
      %1597 = vmatpush1.bf16.msra.mxu0 0
      %1598 = vmatprep.subr.bf16.mxu0 0
      %1599 = vmatpush1.bf16.msra.mxu0 0
      %1600 = vmatprep.subr.bf16.mxu0 0
      %1601 = vmatpush1.bf16.msra.mxu0 0
      %1602 = vmatprep.subr.bf16.mxu0 0
      %1603 = vmatpush1.bf16.msra.mxu0 0
      %1604 = vmatprep.mubr.bf16.mxu0 0
      %1605 = vmatmul.mubr.bf16.gmra.mrb[0].mxu0 %v1297
      %v1606 = vpop.f32.mrb[0].mxu0
      %v1607 = vadd.f32 0.0, %v1606
      %v1608 = vpop.f32.mrb[0].mxu0
      %v1609 = vpop.f32.mrb[0].mxu0
      %v1610 = vadd.f32 0.0, %v1609
      %v1611 = vpop.f32.mrb[0].mxu0
      %1612 = vdwg.mxu0
      %v1613 = vpack.c.bf16 %v1400, %v1397
      %v1614 = vpack.c.bf16 %v1505, %v1502
      %v1615 = vpack.c.bf16 %v1610, %v1607
      %vm1616 = vcmask 523264
      %v1618 = vsel %vm1616, %v1613, 0
      %v1621 = vsel %vm1616, %v1614, 0
      %1623 = vmatprep.subr.bf16.mxu0 0
      %1624 = vmatpush1.bf16.xpose.msra.mxu0 %v1621
      %1625 = vmatprep.subr.bf16.mxu0 0
      %1626 = vmatpush1.bf16.xpose.msra.mxu0 0
      %1627 = vmatprep.subr.bf16.mxu0 0
      %1628 = vmatpush1.bf16.xpose.msra.mxu0 0
      %1629 = vmatprep.subr.bf16.mxu0 0
      %1630 = vmatpush1.bf16.xpose.msra.mxu0 0
      %1631 = vmatprep.subr.bf16.mxu0 0
      %1632 = vmatpush1.bf16.xpose.msra.mxu0 0
      %1633 = vmatprep.subr.bf16.mxu0 0
      %1634 = vmatpush1.bf16.xpose.msra.mxu0 0
      %1635 = vmatprep.subr.bf16.mxu0 0
      %1636 = vmatpush1.bf16.xpose.msra.mxu0 0
      %1637 = vmatprep.subr.bf16.mxu0 0
      %1638 = vmatpush1.bf16.xpose.msra.mxu0 0
      %1639 = vmatprep.subr.bf16.mxu0 0
      %1640 = vmatpush1.bf16.xpose.msra.mxu0 0
      %1641 = vmatprep.subr.bf16.mxu0 0
      %1642 = vmatpush1.bf16.xpose.msra.mxu0 0
      %1643 = vmatprep.subr.bf16.mxu0 0
      %1644 = vmatpush1.bf16.xpose.msra.mxu0 0
      %1645 = vmatprep.subr.bf16.mxu0 0
      %1646 = vmatpush1.bf16.xpose.msra.mxu0 0
      %1647 = vmatprep.subr.bf16.mxu0 0
      %1648 = vmatpush1.bf16.xpose.msra.mxu0 0
      %1649 = vmatprep.subr.bf16.mxu0 0
      %1650 = vmatpush1.bf16.xpose.msra.mxu0 0
      %1651 = vmatprep.subr.bf16.mxu0 0
      %1652 = vmatpush1.bf16.xpose.msra.mxu0 0
      %1653 = vmatprep.subr.bf16.mxu0 0
      %1654 = vmatpush1.bf16.xpose.msra.mxu0 0
      %1655 = vmatprep.mubr.bf16.mxu0 0
      %1656 = vmatmul.mubr.bf16.gmra.mrb[0].mxu0 %v1618
      %v1657 = vpop.f32.mrb[0].mxu0
      %v1658 = vadd.f32 0.0, %v1657
      %v1659 = vpop.f32.mrb[0].mxu0
      %v1660 = vpop.f32.mrb[0].mxu0
      %v1661 = vadd.f32 0.0, %v1660
      %v1662 = vpop.f32.mrb[0].mxu0
      %1663 = vdwg.mxu0
      %v1664 = vmul.f32 %v1658, 0.125
      %v1665 = vmul.f32 %v1661, 0.125
      %v1666 = vsel %vm1254, %v1664, -1e+30
      %v1667 = vsel %vm1255, %v1665, -1e+30
      %v1668 = vsel %vm1157, %v1666, -inf
      %1669 = vmax.xlane.f32.xlu0 %v1668
      %v1670 = vpop.xlane.xlu0 %1669
      %v1671 = vsel %vm1157, %v1667, -inf
      %1672 = vmax.xlane.f32.xlu0 %v1671
      %v1673 = vpop.xlane.xlu0 %1672
      %v1674 = vsub.f32 %v1666, %v1670
      %v1675 = vsub.f32 %v1667, %v1673
      %v1676 = vmul.f32 %v1674, 1.442695
      %v1677 = vpow.pop %v1676
      %v1678 = vmul.f32 %v1675, 1.442695
      %v1679 = vpow.pop %v1678
      %v1680 = vsel %vm1157, %v1677, 0.0
      %1681 = vadd.xlane.f32.xlu0 %v1680
      %v1682 = vpop.xlane.xlu0 %1681
      %v1683 = vsel %vm1157, %v1679, 0.0
      %1684 = vadd.xlane.f32.xlu0 %v1683
      %v1685 = vpop.xlane.xlu0 %1684
      %v1686 = vrcp.pop %v1682
      %v1687 = vrcp.pop %v1685
      %v1688 = vmul.f32 %v1677, %v1686
      %v1689 = vmul.f32 %v1679, %v1687
      %v1690 = vpack.c.bf16 %v1689, %v1688
      %v1692 = vsel %vm1157, %v1690, 0
      %1694 = vmatprep.subr.bf16.mxu0 0
      %1695 = vmatpush1.bf16.msra.mxu0 %v1615
      %1696 = vmatprep.subr.bf16.mxu0 0
      %1697 = vmatpush1.bf16.msra.mxu0 0
      %1698 = vmatprep.subr.bf16.mxu0 0
      %1699 = vmatpush1.bf16.msra.mxu0 0
      %1700 = vmatprep.subr.bf16.mxu0 0
      %1701 = vmatpush1.bf16.msra.mxu0 0
      %1702 = vmatprep.subr.bf16.mxu0 0
      %1703 = vmatpush1.bf16.msra.mxu0 0
      %1704 = vmatprep.subr.bf16.mxu0 0
      %1705 = vmatpush1.bf16.msra.mxu0 0
      %1706 = vmatprep.subr.bf16.mxu0 0
      %1707 = vmatpush1.bf16.msra.mxu0 0
      %1708 = vmatprep.subr.bf16.mxu0 0
      %1709 = vmatpush1.bf16.msra.mxu0 0
      %1710 = vmatprep.subr.bf16.mxu0 0
      %1711 = vmatpush1.bf16.msra.mxu0 0
      %1712 = vmatprep.subr.bf16.mxu0 0
      %1713 = vmatpush1.bf16.msra.mxu0 0
      %1714 = vmatprep.subr.bf16.mxu0 0
      %1715 = vmatpush1.bf16.msra.mxu0 0
      %1716 = vmatprep.subr.bf16.mxu0 0
      %1717 = vmatpush1.bf16.msra.mxu0 0
      %1718 = vmatprep.subr.bf16.mxu0 0
      %1719 = vmatpush1.bf16.msra.mxu0 0
      %1720 = vmatprep.subr.bf16.mxu0 0
      %1721 = vmatpush1.bf16.msra.mxu0 0
      %1722 = vmatprep.subr.bf16.mxu0 0
      %1723 = vmatpush1.bf16.msra.mxu0 0
      %1724 = vmatprep.subr.bf16.mxu0 0
      %1725 = vmatpush1.bf16.msra.mxu0 0
      %1726 = vmatprep.mubr.bf16.mxu0 0
      %1727 = vmatmul.mubr.bf16.gmra.mrb[0].mxu0 %v1692
      %v1728 = vpop.f32.mrb[0].mxu0
      %v1729 = vadd.f32 0.0, %v1728
      %v1730 = vpop.f32.mrb[0].mxu0
      %v1731 = vpop.f32.mrb[0].mxu0
      %v1732 = vadd.f32 0.0, %v1731
      %v1733 = vpop.f32.mrb[0].mxu0
      %1734 = vdwg.mxu0
      %1736 = vrot.lane.b32.xlu0 %v1613, 64
      %v1737 = vpop.permute.xlu0 %1736
      %1739 = vrot.lane.b32.xlu0 %v1614, 64
      %v1740 = vpop.permute.xlu0 %1739
      %v1742 = vsel %vm1616, %v1737, 0
      %v1745 = vsel %vm1616, %v1740, 0
      %1747 = vmatprep.subr.bf16.mxu0 0
      %1748 = vmatpush1.bf16.xpose.msra.mxu0 %v1745
      %1749 = vmatprep.subr.bf16.mxu0 0
      %1750 = vmatpush1.bf16.xpose.msra.mxu0 0
      %1751 = vmatprep.subr.bf16.mxu0 0
      %1752 = vmatpush1.bf16.xpose.msra.mxu0 0
      %1753 = vmatprep.subr.bf16.mxu0 0
      %1754 = vmatpush1.bf16.xpose.msra.mxu0 0
      %1755 = vmatprep.subr.bf16.mxu0 0
      %1756 = vmatpush1.bf16.xpose.msra.mxu0 0
      %1757 = vmatprep.subr.bf16.mxu0 0
      %1758 = vmatpush1.bf16.xpose.msra.mxu0 0
      %1759 = vmatprep.subr.bf16.mxu0 0
      %1760 = vmatpush1.bf16.xpose.msra.mxu0 0
      %1761 = vmatprep.subr.bf16.mxu0 0
      %1762 = vmatpush1.bf16.xpose.msra.mxu0 0
      %1763 = vmatprep.subr.bf16.mxu0 0
      %1764 = vmatpush1.bf16.xpose.msra.mxu0 0
      %1765 = vmatprep.subr.bf16.mxu0 0
      %1766 = vmatpush1.bf16.xpose.msra.mxu0 0
      %1767 = vmatprep.subr.bf16.mxu0 0
      %1768 = vmatpush1.bf16.xpose.msra.mxu0 0
      %1769 = vmatprep.subr.bf16.mxu0 0
      %1770 = vmatpush1.bf16.xpose.msra.mxu0 0
      %1771 = vmatprep.subr.bf16.mxu0 0
      %1772 = vmatpush1.bf16.xpose.msra.mxu0 0
      %1773 = vmatprep.subr.bf16.mxu0 0
      %1774 = vmatpush1.bf16.xpose.msra.mxu0 0
      %1775 = vmatprep.subr.bf16.mxu0 0
      %1776 = vmatpush1.bf16.xpose.msra.mxu0 0
      %1777 = vmatprep.subr.bf16.mxu0 0
      %1778 = vmatpush1.bf16.xpose.msra.mxu0 0
      %1779 = vmatprep.mubr.bf16.mxu0 0
      %1780 = vmatmul.mubr.bf16.gmra.mrb[0].mxu0 %v1742
      %v1781 = vpop.f32.mrb[0].mxu0
      %v1782 = vadd.f32 0.0, %v1781
      %v1783 = vpop.f32.mrb[0].mxu0
      %v1784 = vpop.f32.mrb[0].mxu0
      %v1785 = vadd.f32 0.0, %v1784
      %v1786 = vpop.f32.mrb[0].mxu0
      %1787 = vdwg.mxu0
      %v1788 = vmul.f32 %v1782, 0.125
      %v1789 = vmul.f32 %v1785, 0.125
      %v1790 = vsel %vm1254, %v1788, -1e+30
      %v1791 = vsel %vm1255, %v1789, -1e+30
      %v1792 = vsel %vm1157, %v1790, -inf
      %1793 = vmax.xlane.f32.xlu0 %v1792
      %v1794 = vpop.xlane.xlu0 %1793
      %v1795 = vsel %vm1157, %v1791, -inf
      %1796 = vmax.xlane.f32.xlu0 %v1795
      %v1797 = vpop.xlane.xlu0 %1796
      %v1798 = vsub.f32 %v1790, %v1794
      %v1799 = vsub.f32 %v1791, %v1797
      %v1800 = vmul.f32 %v1798, 1.442695
      %v1801 = vpow.pop %v1800
      %v1802 = vmul.f32 %v1799, 1.442695
      %v1803 = vpow.pop %v1802
      %v1804 = vsel %vm1157, %v1801, 0.0
      %1805 = vadd.xlane.f32.xlu0 %v1804
      %v1806 = vpop.xlane.xlu0 %1805
      %v1807 = vsel %vm1157, %v1803, 0.0
      %1808 = vadd.xlane.f32.xlu0 %v1807
      %v1809 = vpop.xlane.xlu0 %1808
      %v1810 = vrcp.pop %v1806
      %v1811 = vrcp.pop %v1809
      %v1812 = vmul.f32 %v1801, %v1810
      %v1813 = vmul.f32 %v1803, %v1811
      %v1814 = vpack.c.bf16 %v1813, %v1812
      %1816 = vrot.lane.b32.xlu0 %v1615, 64
      %v1817 = vpop.permute.xlu0 %1816
      %v1820 = vsel %vm1157, %v1814, 0
      %1822 = vmatprep.subr.bf16.mxu0 0
      %1823 = vmatpush1.bf16.msra.mxu0 %v1817
      %1824 = vmatprep.subr.bf16.mxu0 0
      %1825 = vmatpush1.bf16.msra.mxu0 0
      %1826 = vmatprep.subr.bf16.mxu0 0
      %1827 = vmatpush1.bf16.msra.mxu0 0
      %1828 = vmatprep.subr.bf16.mxu0 0
      %1829 = vmatpush1.bf16.msra.mxu0 0
      %1830 = vmatprep.subr.bf16.mxu0 0
      %1831 = vmatpush1.bf16.msra.mxu0 0
      %1832 = vmatprep.subr.bf16.mxu0 0
      %1833 = vmatpush1.bf16.msra.mxu0 0
      %1834 = vmatprep.subr.bf16.mxu0 0
      %1835 = vmatpush1.bf16.msra.mxu0 0
      %1836 = vmatprep.subr.bf16.mxu0 0
      %1837 = vmatpush1.bf16.msra.mxu0 0
      %1838 = vmatprep.subr.bf16.mxu0 0
      %1839 = vmatpush1.bf16.msra.mxu0 0
      %1840 = vmatprep.subr.bf16.mxu0 0
      %1841 = vmatpush1.bf16.msra.mxu0 0
      %1842 = vmatprep.subr.bf16.mxu0 0
      %1843 = vmatpush1.bf16.msra.mxu0 0
      %1844 = vmatprep.subr.bf16.mxu0 0
      %1845 = vmatpush1.bf16.msra.mxu0 0
      %1846 = vmatprep.subr.bf16.mxu0 0
      %1847 = vmatpush1.bf16.msra.mxu0 0
      %1848 = vmatprep.subr.bf16.mxu0 0
      %1849 = vmatpush1.bf16.msra.mxu0 0
      %1850 = vmatprep.subr.bf16.mxu0 0
      %1851 = vmatpush1.bf16.msra.mxu0 0
      %1852 = vmatprep.subr.bf16.mxu0 0
      %1853 = vmatpush1.bf16.msra.mxu0 0
      %1854 = vmatprep.mubr.bf16.mxu0 0
      %1855 = vmatmul.mubr.bf16.gmra.mrb[0].mxu0 %v1820
      %v1856 = vpop.f32.mrb[0].mxu0
      %v1857 = vadd.f32 0.0, %v1856
      %v1858 = vpop.f32.mrb[0].mxu0
      %v1859 = vpop.f32.mrb[0].mxu0
      %v1860 = vadd.f32 0.0, %v1859
      %v1861 = vpop.f32.mrb[0].mxu0
      %1862 = vdwg.mxu0
      %1865 = vrot.lane.b32.xlu0 %v1857, 64
      %v1866 = vpop.permute.xlu0 %1865
      %1867 = vrot.lane.b32.xlu0 %v1860, 64
      %v1868 = vpop.permute.xlu0 %1867
      %v1871 = vsel %vm1616, %v1729, %v1866
      %v1872 = vsel %vm1616, %v1732, %v1868
      %v1873 = vld [vmem:[%s25] sm:$0xf]
      %v1874 = vld [vmem:[%s25 + $0x4] sm:$0xf]
      %v1875 = vld [vmem:[%s25 + $0x8] sm:$0xf]
      %v1876 = vld [vmem:[%s25 + $0xc] sm:$0xf]
      %v1877 = vld [vmem:[%s25 + $0x10] sm:$0xf]
      %v1878 = vld [vmem:[%s25 + $0x14] sm:$0xf]
      %v1879 = vld [vmem:[%s25 + $0x18] sm:$0xf]
      %v1880 = vld [vmem:[%s25 + $0x1c] sm:$0xf]
      %v1881 = vld [vmem:[%s25 + $0x20] sm:$0xf]
      %v1882 = vld [vmem:[%s25 + $0x24] sm:$0xf]
      %v1883 = vld [vmem:[%s25 + $0x28] sm:$0xf]
      %v1884 = vld [vmem:[%s25 + $0x2c] sm:$0xf]
      %v1885 = vld [vmem:[%s25 + $0x30] sm:$0xf]
      %v1886 = vld [vmem:[%s25 + $0x34] sm:$0xf]
      %v1887 = vld [vmem:[%s25 + $0x38] sm:$0xf]
      %v1888 = vld [vmem:[%s25 + $0x3c] sm:$0xf]
      %v1889 = vpack.c.bf16 %v1872, %v1871
      %v1906 = vunpack.c.l.b16 %v1873
      %v1907 = vunpack.c.l.b16 %v1874
      %v1908 = vunpack.c.l.b16 %v1875
      %v1909 = vunpack.c.l.b16 %v1876
      %v1910 = vunpack.c.l.b16 %v1877
      %v1911 = vunpack.c.l.b16 %v1878
      %v1912 = vunpack.c.l.b16 %v1879
      %v1913 = vunpack.c.l.b16 %v1880
      %v1914 = vunpack.c.l.b16 %v1881
      %v1915 = vunpack.c.l.b16 %v1882
      %v1916 = vunpack.c.l.b16 %v1883
      %v1917 = vunpack.c.l.b16 %v1884
      %v1918 = vunpack.c.l.b16 %v1885
      %v1919 = vunpack.c.l.b16 %v1886
      %v1920 = vunpack.c.l.b16 %v1887
      %v1921 = vunpack.c.l.b16 %v1888
      %v1922 = vpack.c.b16 %v1907, %v1906
      %v1923 = vpack.c.b16 %v1909, %v1908
      %v1924 = vpack.c.b16 %v1911, %v1910
      %v1925 = vpack.c.b16 %v1913, %v1912
      %v1926 = vpack.c.b16 %v1915, %v1914
      %v1927 = vpack.c.b16 %v1917, %v1916
      %v1928 = vpack.c.b16 %v1919, %v1918
      %v1929 = vpack.c.b16 %v1921, %v1920
      %1938 = vmatprep.subr.bf16.mxu0 0
      %1939 = vmatpush1.bf16.msra.mxu0 %v1922
      %1940 = vmatprep.subr.bf16.mxu0 0
      %1941 = vmatpush1.bf16.msra.mxu0 %v1923
      %1942 = vmatprep.subr.bf16.mxu0 0
      %1943 = vmatpush1.bf16.msra.mxu0 %v1924
      %1944 = vmatprep.subr.bf16.mxu0 0
      %1945 = vmatpush1.bf16.msra.mxu0 %v1925
      %1946 = vmatprep.subr.bf16.mxu0 0
      %1947 = vmatpush1.bf16.msra.mxu0 %v1926
      %1948 = vmatprep.subr.bf16.mxu0 0
      %1949 = vmatpush1.bf16.msra.mxu0 %v1927
      %1950 = vmatprep.subr.bf16.mxu0 0
      %1951 = vmatpush1.bf16.msra.mxu0 %v1928
      %1952 = vmatprep.subr.bf16.mxu0 0
      %1953 = vmatpush1.bf16.msra.mxu0 %v1929
      %1954 = vmatprep.subr.bf16.mxu0 0
      %1955 = vmatpush1.bf16.msra.mxu0 0
      %1956 = vmatprep.subr.bf16.mxu0 0
      %1957 = vmatpush1.bf16.msra.mxu0 0
      %1958 = vmatprep.subr.bf16.mxu0 0
      %1959 = vmatpush1.bf16.msra.mxu0 0
      %1960 = vmatprep.subr.bf16.mxu0 0
      %1961 = vmatpush1.bf16.msra.mxu0 0
      %1962 = vmatprep.subr.bf16.mxu0 0
      %1963 = vmatpush1.bf16.msra.mxu0 0
      %1964 = vmatprep.subr.bf16.mxu0 0
      %1965 = vmatpush1.bf16.msra.mxu0 0
      %1966 = vmatprep.subr.bf16.mxu0 0
      %1967 = vmatpush1.bf16.msra.mxu0 0
      %1968 = vmatprep.subr.bf16.mxu0 0
      %1969 = vmatpush1.bf16.msra.mxu0 0
      %1970 = vmatprep.mubr.bf16.mxu0 0
      %1971 = vmatmul.mubr.bf16.gmra.mrb[0].mxu0 %v1889
      %v1972 = vpop.f32.mrb[0].mxu0
      %v1973 = vadd.f32 0.0, %v1972
      %v1974 = vpop.f32.mrb[0].mxu0
      %v1975 = vpop.f32.mrb[0].mxu0
      %v1976 = vadd.f32 0.0, %v1975
      %v1977 = vpop.f32.mrb[0].mxu0
      %1978 = vdwg.mxu0
      %v1979 = vadd.f32 %v1252, %v1973
      %v1980 = vadd.f32 %v1253, %v1976
      %v1981 = vld [vmem:[%s27] sm:$0x1]
      %v1982 = vld [vmem:[%s29] sm:$0x1]
      %1983 = vadd.xlane.f32.xlu0 %v1979
      %v1984 = vpop.xlane.xlu0 %1983
      %1985 = vadd.xlane.f32.xlu0 %v1980
      %v1986 = vpop.xlane.xlu0 %1985
      %v1987 = vmul.f32 %v1984, %v1262
      %v1988 = vmul.f32 %v1986, %v1262
      %v1989 = vsub.f32 %v1979, %v1987
      %v1990 = vsub.f32 %v1980, %v1988
      %v1991 = vmul.f32 %v1989, %v1989
      %v1992 = vmul.f32 %v1990, %v1990
      %1993 = vadd.xlane.f32.xlu0 %v1991
      %v1994 = vpop.xlane.xlu0 %1993
      %1995 = vadd.xlane.f32.xlu0 %v1992
      %v1996 = vpop.xlane.xlu0 %1995
      %v1997 = vmul.f32 %v1994, %v1262
      %v1998 = vmul.f32 %v1996, %v1262
      %v1999 = vadd.f32 %v1997, 1e-05
      %v2000 = vadd.f32 %v1998, 1e-05
      %v2001 = vrsqrt.pop %v1999
      %v2002 = vrsqrt.pop %v2000
      %v2003 = vmul.f32 %v1989, %v2001
      %v2004 = vmul.f32 %v1990, %v2002
      %v2006 = vlaneseq
      %v2007 = vshrl.u32 %v2006, 7
      %v2008 = vsub.s32 0, %v2007
      %v2009 = vrot.slane %v1981, %v2008
      %v2011 = vmul.f32 %v2003, %v2009
      %v2012 = vmul.f32 %v2004, %v2009
      %v2014 = vlaneseq
      %v2015 = vshrl.u32 %v2014, 7
      %v2016 = vsub.s32 0, %v2015
      %v2017 = vrot.slane %v1982, %v2016
      %v2019 = vadd.f32 %v2011, %v2017
      %v2020 = vadd.f32 %v2012, %v2017
      %v2021 = vld [vmem:[%s31] sm:$0xff]
      %v2022 = vld [vmem:[%s31 + $0x8] sm:$0xff]
      %v2023 = vld [vmem:[%s31 + $0x10] sm:$0xff]
      %v2024 = vld [vmem:[%s31 + $0x18] sm:$0xff]
      %v2025 = vld [vmem:[%s31 + $0x20] sm:$0xff]
      %v2026 = vld [vmem:[%s31 + $0x28] sm:$0xff]
      %v2027 = vld [vmem:[%s31 + $0x30] sm:$0xff]
      %v2028 = vld [vmem:[%s31 + $0x38] sm:$0xff]
      %v2029 = vld [vmem:[%s31 + $0x40] sm:$0xff]
      %v2030 = vld [vmem:[%s31 + $0x48] sm:$0xff]
      %v2031 = vld [vmem:[%s31 + $0x50] sm:$0xff]
      %v2032 = vld [vmem:[%s31 + $0x58] sm:$0xff]
      %v2033 = vld [vmem:[%s31 + $0x60] sm:$0xff]
      %v2034 = vld [vmem:[%s31 + $0x68] sm:$0xff]
      %v2035 = vld [vmem:[%s31 + $0x70] sm:$0xff]
      %v2036 = vld [vmem:[%s31 + $0x78] sm:$0xff]
      %v2037 = vld [vmem:[%s31 + $0x80] sm:$0xff]
      %v2038 = vld [vmem:[%s31 + $0x88] sm:$0xff]
      %v2039 = vld [vmem:[%s31 + $0x90] sm:$0xff]
      %v2040 = vld [vmem:[%s31 + $0x98] sm:$0xff]
      %v2041 = vld [vmem:[%s31 + $0xa0] sm:$0xff]
      %v2042 = vld [vmem:[%s31 + $0xa8] sm:$0xff]
      %v2043 = vld [vmem:[%s31 + $0xb0] sm:$0xff]
      %v2044 = vld [vmem:[%s31 + $0xb8] sm:$0xff]
      %v2045 = vld [vmem:[%s31 + $0xc0] sm:$0xff]
      %v2046 = vld [vmem:[%s31 + $0xc8] sm:$0xff]
      %v2047 = vld [vmem:[%s31 + $0xd0] sm:$0xff]
      %v2048 = vld [vmem:[%s31 + $0xd8] sm:$0xff]
      %v2049 = vld [vmem:[%s31 + $0xe0] sm:$0xff]
      %v2050 = vld [vmem:[%s31 + $0xe8] sm:$0xff]
      %v2051 = vld [vmem:[%s31 + $0xf0] sm:$0xff]
      %v2052 = vld [vmem:[%s31 + $0xf8] sm:$0xff]
      %v2053 = vpack.c.bf16 %v2020, %v2019
      %v2054 = vld [vmem:[%s33] sm:$0xf]
      %v2056 = vlaneseq
      %v2057 = vshrl.u32 %v2056, 7
      %v2058 = vsub.s32 0, %v2057
      %v2059 = vrot.slane %v2054, %v2058
      %v2060 = vlaneseq
      %v2061 = vshrl.u32 %v2060, 7
      %v2062 = vsub.s32 1, %v2061
      %v2063 = vrot.slane %v2054, %v2062
      %v2064 = vlaneseq
      %v2065 = vshrl.u32 %v2064, 7
      %v2066 = vsub.s32 2, %v2065
      %v2067 = vrot.slane %v2054, %v2066
      %v2068 = vlaneseq
      %v2069 = vshrl.u32 %v2068, 7
      %v2070 = vsub.s32 3, %v2069
      %v2071 = vrot.slane %v2054, %v2070
      %v2108 = vunpack.c.l.b16 %v2021
      %v2109 = vunpack.c.h.b16 %v2021
      %v2110 = vunpack.c.l.b16 %v2022
      %v2111 = vunpack.c.h.b16 %v2022
      %v2112 = vunpack.c.l.b16 %v2023
      %v2113 = vunpack.c.h.b16 %v2023
      %v2114 = vunpack.c.l.b16 %v2024
      %v2115 = vunpack.c.h.b16 %v2024
      %v2116 = vunpack.c.l.b16 %v2025
      %v2117 = vunpack.c.h.b16 %v2025
      %v2118 = vunpack.c.l.b16 %v2026
      %v2119 = vunpack.c.h.b16 %v2026
      %v2120 = vunpack.c.l.b16 %v2027
      %v2121 = vunpack.c.h.b16 %v2027
      %v2122 = vunpack.c.l.b16 %v2028
      %v2123 = vunpack.c.h.b16 %v2028
      %v2124 = vunpack.c.l.b16 %v2029
      %v2125 = vunpack.c.h.b16 %v2029
      %v2126 = vunpack.c.l.b16 %v2030
      %v2127 = vunpack.c.h.b16 %v2030
      %v2128 = vunpack.c.l.b16 %v2031
      %v2129 = vunpack.c.h.b16 %v2031
      %v2130 = vunpack.c.l.b16 %v2032
      %v2131 = vunpack.c.h.b16 %v2032
      %v2132 = vunpack.c.l.b16 %v2033
      %v2133 = vunpack.c.h.b16 %v2033
      %v2134 = vunpack.c.l.b16 %v2034
      %v2135 = vunpack.c.h.b16 %v2034
      %v2136 = vunpack.c.l.b16 %v2035
      %v2137 = vunpack.c.h.b16 %v2035
      %v2138 = vunpack.c.l.b16 %v2036
      %v2139 = vunpack.c.h.b16 %v2036
      %v2140 = vunpack.c.l.b16 %v2037
      %v2141 = vunpack.c.h.b16 %v2037
      %v2142 = vunpack.c.l.b16 %v2038
      %v2143 = vunpack.c.h.b16 %v2038
      %v2144 = vunpack.c.l.b16 %v2039
      %v2145 = vunpack.c.h.b16 %v2039
      %v2146 = vunpack.c.l.b16 %v2040
      %v2147 = vunpack.c.h.b16 %v2040
      %v2148 = vunpack.c.l.b16 %v2041
      %v2149 = vunpack.c.h.b16 %v2041
      %v2150 = vunpack.c.l.b16 %v2042
      %v2151 = vunpack.c.h.b16 %v2042
      %v2152 = vunpack.c.l.b16 %v2043
      %v2153 = vunpack.c.h.b16 %v2043
      %v2154 = vunpack.c.l.b16 %v2044
      %v2155 = vunpack.c.h.b16 %v2044
      %v2156 = vunpack.c.l.b16 %v2045
      %v2157 = vunpack.c.h.b16 %v2045
      %v2158 = vunpack.c.l.b16 %v2046
      %v2159 = vunpack.c.h.b16 %v2046
      %v2160 = vunpack.c.l.b16 %v2047
      %v2161 = vunpack.c.h.b16 %v2047
      %v2162 = vunpack.c.l.b16 %v2048
      %v2163 = vunpack.c.h.b16 %v2048
      %v2164 = vunpack.c.l.b16 %v2049
      %v2165 = vunpack.c.h.b16 %v2049
      %v2166 = vunpack.c.l.b16 %v2050
      %v2167 = vunpack.c.h.b16 %v2050
      %v2168 = vunpack.c.l.b16 %v2051
      %v2169 = vunpack.c.h.b16 %v2051
      %v2170 = vunpack.c.l.b16 %v2052
      %v2171 = vunpack.c.h.b16 %v2052
      %v2172 = vpack.c.b16 %v2112, %v2108
      %v2173 = vpack.c.b16 %v2113, %v2109
      %v2174 = vpack.c.b16 %v2114, %v2110
      %v2175 = vpack.c.b16 %v2115, %v2111
      %v2176 = vpack.c.b16 %v2120, %v2116
      %v2177 = vpack.c.b16 %v2121, %v2117
      %v2178 = vpack.c.b16 %v2122, %v2118
      %v2179 = vpack.c.b16 %v2123, %v2119
      %v2180 = vpack.c.b16 %v2128, %v2124
      %v2181 = vpack.c.b16 %v2129, %v2125
      %v2182 = vpack.c.b16 %v2130, %v2126
      %v2183 = vpack.c.b16 %v2131, %v2127
      %v2184 = vpack.c.b16 %v2136, %v2132
      %v2185 = vpack.c.b16 %v2137, %v2133
      %v2186 = vpack.c.b16 %v2138, %v2134
      %v2187 = vpack.c.b16 %v2139, %v2135
      %v2188 = vpack.c.b16 %v2144, %v2140
      %v2189 = vpack.c.b16 %v2145, %v2141
      %v2190 = vpack.c.b16 %v2146, %v2142
      %v2191 = vpack.c.b16 %v2147, %v2143
      %v2192 = vpack.c.b16 %v2152, %v2148
      %v2193 = vpack.c.b16 %v2153, %v2149
      %v2194 = vpack.c.b16 %v2154, %v2150
      %v2195 = vpack.c.b16 %v2155, %v2151
      %v2196 = vpack.c.b16 %v2160, %v2156
      %v2197 = vpack.c.b16 %v2161, %v2157
      %v2198 = vpack.c.b16 %v2162, %v2158
      %v2199 = vpack.c.b16 %v2163, %v2159
      %v2200 = vpack.c.b16 %v2168, %v2164
      %v2201 = vpack.c.b16 %v2169, %v2165
      %v2202 = vpack.c.b16 %v2170, %v2166
      %v2203 = vpack.c.b16 %v2171, %v2167
      %2236 = vmatprep.subr.bf16.mxu0 %v2173
      %2237 = vmatpush1.bf16.msra.mxu0 %v2172
      %2238 = vmatprep.subr.bf16.mxu0 %v2177
      %2239 = vmatpush1.bf16.msra.mxu0 %v2176
      %2240 = vmatprep.subr.bf16.mxu0 %v2181
      %2241 = vmatpush1.bf16.msra.mxu0 %v2180
      %2242 = vmatprep.subr.bf16.mxu0 %v2185
      %2243 = vmatpush1.bf16.msra.mxu0 %v2184
      %2244 = vmatprep.subr.bf16.mxu0 %v2189
      %2245 = vmatpush1.bf16.msra.mxu0 %v2188
      %2246 = vmatprep.subr.bf16.mxu0 %v2193
      %2247 = vmatpush1.bf16.msra.mxu0 %v2192
      %2248 = vmatprep.subr.bf16.mxu0 %v2197
      %2249 = vmatpush1.bf16.msra.mxu0 %v2196
      %2250 = vmatprep.subr.bf16.mxu0 %v2201
      %2251 = vmatpush1.bf16.msra.mxu0 %v2200
      %2252 = vmatprep.subr.bf16.mxu0 0
      %2253 = vmatpush1.bf16.msra.mxu0 0
      %2254 = vmatprep.subr.bf16.mxu0 0
      %2255 = vmatpush1.bf16.msra.mxu0 0
      %2256 = vmatprep.subr.bf16.mxu0 0
      %2257 = vmatpush1.bf16.msra.mxu0 0
      %2258 = vmatprep.subr.bf16.mxu0 0
      %2259 = vmatpush1.bf16.msra.mxu0 0
      %2260 = vmatprep.subr.bf16.mxu0 0
      %2261 = vmatpush1.bf16.msra.mxu0 0
      %2262 = vmatprep.subr.bf16.mxu0 0
      %2263 = vmatpush1.bf16.msra.mxu0 0
      %2264 = vmatprep.subr.bf16.mxu0 0
      %2265 = vmatpush1.bf16.msra.mxu0 0
      %2266 = vmatprep.subr.bf16.mxu0 0
      %2267 = vmatpush1.bf16.msra.mxu0 0
      %2268 = vmatprep.mubr.bf16.mxu0 0
      %2269 = vmatmul.mubr.bf16.gmra.mrb[0].mxu0 %v2053
      %v2270 = vpop.f32.mrb[0].mxu0
      %v2271 = vadd.f32 %v2059, %v2270
      %v2272 = vpop.f32.mrb[0].mxu0
      %v2273 = vadd.f32 %v2063, %v2272
      %v2274 = vpop.f32.mrb[0].mxu0
      %v2275 = vadd.f32 %v2059, %v2274
      %v2276 = vpop.f32.mrb[0].mxu0
      %v2277 = vadd.f32 %v2063, %v2276
      %2278 = vdwg.mxu0
      %2279 = vmatprep.subr.bf16.mxu0 %v2175
      %2280 = vmatpush1.bf16.msra.mxu0 %v2174
      %2281 = vmatprep.subr.bf16.mxu0 %v2179
      %2282 = vmatpush1.bf16.msra.mxu0 %v2178
      %2283 = vmatprep.subr.bf16.mxu0 %v2183
      %2284 = vmatpush1.bf16.msra.mxu0 %v2182
      %2285 = vmatprep.subr.bf16.mxu0 %v2187
      %2286 = vmatpush1.bf16.msra.mxu0 %v2186
      %2287 = vmatprep.subr.bf16.mxu0 %v2191
      %2288 = vmatpush1.bf16.msra.mxu0 %v2190
      %2289 = vmatprep.subr.bf16.mxu0 %v2195
      %2290 = vmatpush1.bf16.msra.mxu0 %v2194
      %2291 = vmatprep.subr.bf16.mxu0 %v2199
      %2292 = vmatpush1.bf16.msra.mxu0 %v2198
      %2293 = vmatprep.subr.bf16.mxu0 %v2203
      %2294 = vmatpush1.bf16.msra.mxu0 %v2202
      %2295 = vmatprep.subr.bf16.mxu0 0
      %2296 = vmatpush1.bf16.msra.mxu0 0
      %2297 = vmatprep.subr.bf16.mxu0 0
      %2298 = vmatpush1.bf16.msra.mxu0 0
      %2299 = vmatprep.subr.bf16.mxu0 0
      %2300 = vmatpush1.bf16.msra.mxu0 0
      %2301 = vmatprep.subr.bf16.mxu0 0
      %2302 = vmatpush1.bf16.msra.mxu0 0
      %2303 = vmatprep.subr.bf16.mxu0 0
      %2304 = vmatpush1.bf16.msra.mxu0 0
      %2305 = vmatprep.subr.bf16.mxu0 0
      %2306 = vmatpush1.bf16.msra.mxu0 0
      %2307 = vmatprep.subr.bf16.mxu0 0
      %2308 = vmatpush1.bf16.msra.mxu0 0
      %2309 = vmatprep.subr.bf16.mxu0 0
      %2310 = vmatpush1.bf16.msra.mxu0 0
      %2311 = vmatprep.mubr.bf16.mxu0 0
      %2312 = vmatmul.mubr.bf16.gmra.mrb[0].mxu0 %v2053
      %v2313 = vpop.f32.mrb[0].mxu0
      %v2314 = vadd.f32 %v2067, %v2313
      %v2315 = vpop.f32.mrb[0].mxu0
      %v2316 = vadd.f32 %v2071, %v2315
      %v2317 = vpop.f32.mrb[0].mxu0
      %v2318 = vadd.f32 %v2067, %v2317
      %v2319 = vpop.f32.mrb[0].mxu0
      %v2320 = vadd.f32 %v2071, %v2319
      %2321 = vdwg.mxu0
      %v2322 = vmul.f32 %v2271, %v2271
      %v2323 = vmul.f32 %v2273, %v2273
      %v2324 = vmul.f32 %v2314, %v2314
      %v2325 = vmul.f32 %v2316, %v2316
      %v2326 = vmul.f32 %v2275, %v2275
      %v2327 = vmul.f32 %v2277, %v2277
      %v2328 = vmul.f32 %v2318, %v2318
      %v2329 = vmul.f32 %v2320, %v2320
      %v2330 = vmul.f32 %v2271, %v2322
      %v2331 = vmul.f32 %v2273, %v2323
      %v2332 = vmul.f32 %v2314, %v2324
      %v2333 = vmul.f32 %v2316, %v2325
      %v2334 = vmul.f32 %v2275, %v2326
      %v2335 = vmul.f32 %v2277, %v2327
      %v2336 = vmul.f32 %v2318, %v2328
      %v2337 = vmul.f32 %v2320, %v2329
      %v2338 = vmul.f32 %v2330, 0.044715
      %v2339 = vmul.f32 %v2331, 0.044715
      %v2340 = vmul.f32 %v2332, 0.044715
      %v2341 = vmul.f32 %v2333, 0.044715
      %v2342 = vmul.f32 %v2334, 0.044715
      %v2343 = vmul.f32 %v2335, 0.044715
      %v2344 = vmul.f32 %v2336, 0.044715
      %v2345 = vmul.f32 %v2337, 0.044715
      %v2346 = vadd.f32 %v2271, %v2338
      %v2347 = vadd.f32 %v2273, %v2339
      %v2348 = vadd.f32 %v2314, %v2340
      %v2349 = vadd.f32 %v2316, %v2341
      %v2350 = vadd.f32 %v2275, %v2342
      %v2351 = vadd.f32 %v2277, %v2343
      %v2352 = vadd.f32 %v2318, %v2344
      %v2353 = vadd.f32 %v2320, %v2345
      %v2354 = vmul.f32 %v2346, 0.7978846
      %v2355 = vmul.f32 %v2347, 0.7978846
      %v2356 = vmul.f32 %v2348, 0.7978846
      %v2357 = vmul.f32 %v2349, 0.7978846
      %v2358 = vmul.f32 %v2350, 0.7978846
      %v2359 = vmul.f32 %v2351, 0.7978846
      %v2360 = vmul.f32 %v2352, 0.7978846
      %v2361 = vmul.f32 %v2353, 0.7978846
      %v2362 = vtanh.pop %v2354
      %v2363 = vtanh.pop %v2355
      %v2364 = vtanh.pop %v2356
      %v2365 = vtanh.pop %v2357
      %v2366 = vtanh.pop %v2358
      %v2367 = vtanh.pop %v2359
      %v2368 = vtanh.pop %v2360
      %v2369 = vtanh.pop %v2361
      %v2370 = vadd.f32 %v2362, 1.0
      %v2371 = vadd.f32 %v2363, 1.0
      %v2372 = vadd.f32 %v2364, 1.0
      %v2373 = vadd.f32 %v2365, 1.0
      %v2374 = vadd.f32 %v2366, 1.0
      %v2375 = vadd.f32 %v2367, 1.0
      %v2376 = vadd.f32 %v2368, 1.0
      %v2377 = vadd.f32 %v2369, 1.0
      %v2378 = vmul.f32 %v2370, 0.5
      %v2379 = vmul.f32 %v2371, 0.5
      %v2380 = vmul.f32 %v2372, 0.5
      %v2381 = vmul.f32 %v2373, 0.5
      %v2382 = vmul.f32 %v2374, 0.5
      %v2383 = vmul.f32 %v2375, 0.5
      %v2384 = vmul.f32 %v2376, 0.5
      %v2385 = vmul.f32 %v2377, 0.5
      %v2386 = vmul.f32 %v2271, %v2378
      %v2387 = vmul.f32 %v2273, %v2379
      %v2388 = vmul.f32 %v2314, %v2380
      %v2389 = vmul.f32 %v2316, %v2381
      %v2390 = vmul.f32 %v2275, %v2382
      %v2391 = vmul.f32 %v2277, %v2383
      %v2392 = vmul.f32 %v2318, %v2384
      %v2393 = vmul.f32 %v2320, %v2385
      %v2394 = vld [vmem:[%s35] sm:$0xf]
      %v2395 = vld [vmem:[%s35 + $0x4] sm:$0xf]
      %v2396 = vld [vmem:[%s35 + $0x8] sm:$0xf]
      %v2397 = vld [vmem:[%s35 + $0xc] sm:$0xf]
      %v2398 = vld [vmem:[%s35 + $0x10] sm:$0xf]
      %v2399 = vld [vmem:[%s35 + $0x14] sm:$0xf]
      %v2400 = vld [vmem:[%s35 + $0x18] sm:$0xf]
      %v2401 = vld [vmem:[%s35 + $0x1c] sm:$0xf]
      %v2402 = vld [vmem:[%s35 + $0x20] sm:$0xf]
      %v2403 = vld [vmem:[%s35 + $0x24] sm:$0xf]
      %v2404 = vld [vmem:[%s35 + $0x28] sm:$0xf]
      %v2405 = vld [vmem:[%s35 + $0x2c] sm:$0xf]
      %v2406 = vld [vmem:[%s35 + $0x30] sm:$0xf]
      %v2407 = vld [vmem:[%s35 + $0x34] sm:$0xf]
      %v2408 = vld [vmem:[%s35 + $0x38] sm:$0xf]
      %v2409 = vld [vmem:[%s35 + $0x3c] sm:$0xf]
      %v2410 = vld [vmem:[%s35 + $0x40] sm:$0xf]
      %v2411 = vld [vmem:[%s35 + $0x44] sm:$0xf]
      %v2412 = vld [vmem:[%s35 + $0x48] sm:$0xf]
      %v2413 = vld [vmem:[%s35 + $0x4c] sm:$0xf]
      %v2414 = vld [vmem:[%s35 + $0x50] sm:$0xf]
      %v2415 = vld [vmem:[%s35 + $0x54] sm:$0xf]
      %v2416 = vld [vmem:[%s35 + $0x58] sm:$0xf]
      %v2417 = vld [vmem:[%s35 + $0x5c] sm:$0xf]
      %v2418 = vld [vmem:[%s35 + $0x60] sm:$0xf]
      %v2419 = vld [vmem:[%s35 + $0x64] sm:$0xf]
      %v2420 = vld [vmem:[%s35 + $0x68] sm:$0xf]
      %v2421 = vld [vmem:[%s35 + $0x6c] sm:$0xf]
      %v2422 = vld [vmem:[%s35 + $0x70] sm:$0xf]
      %v2423 = vld [vmem:[%s35 + $0x74] sm:$0xf]
      %v2424 = vld [vmem:[%s35 + $0x78] sm:$0xf]
      %v2425 = vld [vmem:[%s35 + $0x7c] sm:$0xf]
      %v2426 = vld [vmem:[%s35 + $0x80] sm:$0xf]
      %v2427 = vld [vmem:[%s35 + $0x84] sm:$0xf]
      %v2428 = vld [vmem:[%s35 + $0x88] sm:$0xf]
      %v2429 = vld [vmem:[%s35 + $0x8c] sm:$0xf]
      %v2430 = vld [vmem:[%s35 + $0x90] sm:$0xf]
      %v2431 = vld [vmem:[%s35 + $0x94] sm:$0xf]
      %v2432 = vld [vmem:[%s35 + $0x98] sm:$0xf]
      %v2433 = vld [vmem:[%s35 + $0x9c] sm:$0xf]
      %v2434 = vld [vmem:[%s35 + $0xa0] sm:$0xf]
      %v2435 = vld [vmem:[%s35 + $0xa4] sm:$0xf]
      %v2436 = vld [vmem:[%s35 + $0xa8] sm:$0xf]
      %v2437 = vld [vmem:[%s35 + $0xac] sm:$0xf]
      %v2438 = vld [vmem:[%s35 + $0xb0] sm:$0xf]
      %v2439 = vld [vmem:[%s35 + $0xb4] sm:$0xf]
      %v2440 = vld [vmem:[%s35 + $0xb8] sm:$0xf]
      %v2441 = vld [vmem:[%s35 + $0xbc] sm:$0xf]
      %v2442 = vld [vmem:[%s35 + $0xc0] sm:$0xf]
      %v2443 = vld [vmem:[%s35 + $0xc4] sm:$0xf]
      %v2444 = vld [vmem:[%s35 + $0xc8] sm:$0xf]
      %v2445 = vld [vmem:[%s35 + $0xcc] sm:$0xf]
      %v2446 = vld [vmem:[%s35 + $0xd0] sm:$0xf]
      %v2447 = vld [vmem:[%s35 + $0xd4] sm:$0xf]
      %v2448 = vld [vmem:[%s35 + $0xd8] sm:$0xf]
      %v2449 = vld [vmem:[%s35 + $0xdc] sm:$0xf]
      %v2450 = vld [vmem:[%s35 + $0xe0] sm:$0xf]
      %v2451 = vld [vmem:[%s35 + $0xe4] sm:$0xf]
      %v2452 = vld [vmem:[%s35 + $0xe8] sm:$0xf]
      %v2453 = vld [vmem:[%s35 + $0xec] sm:$0xf]
      %v2454 = vld [vmem:[%s35 + $0xf0] sm:$0xf]
      %v2455 = vld [vmem:[%s35 + $0xf4] sm:$0xf]
      %v2456 = vld [vmem:[%s35 + $0xf8] sm:$0xf]
      %v2457 = vld [vmem:[%s35 + $0xfc] sm:$0xf]
      %v2458 = vpack.c.bf16 %v2390, %v2386
      %v2459 = vpack.c.bf16 %v2391, %v2387
      %v2460 = vpack.c.bf16 %v2392, %v2388
      %v2461 = vpack.c.bf16 %v2393, %v2389
      %v2526 = vunpack.c.l.b16 %v2394
      %v2527 = vunpack.c.l.b16 %v2395
      %v2528 = vunpack.c.l.b16 %v2396
      %v2529 = vunpack.c.l.b16 %v2397
      %v2530 = vunpack.c.l.b16 %v2398
      %v2531 = vunpack.c.l.b16 %v2399
      %v2532 = vunpack.c.l.b16 %v2400
      %v2533 = vunpack.c.l.b16 %v2401
      %v2534 = vunpack.c.l.b16 %v2402
      %v2535 = vunpack.c.l.b16 %v2403
      %v2536 = vunpack.c.l.b16 %v2404
      %v2537 = vunpack.c.l.b16 %v2405
      %v2538 = vunpack.c.l.b16 %v2406
      %v2539 = vunpack.c.l.b16 %v2407
      %v2540 = vunpack.c.l.b16 %v2408
      %v2541 = vunpack.c.l.b16 %v2409
      %v2542 = vunpack.c.l.b16 %v2410
      %v2543 = vunpack.c.l.b16 %v2411
      %v2544 = vunpack.c.l.b16 %v2412
      %v2545 = vunpack.c.l.b16 %v2413
      %v2546 = vunpack.c.l.b16 %v2414
      %v2547 = vunpack.c.l.b16 %v2415
      %v2548 = vunpack.c.l.b16 %v2416
      %v2549 = vunpack.c.l.b16 %v2417
      %v2550 = vunpack.c.l.b16 %v2418
      %v2551 = vunpack.c.l.b16 %v2419
      %v2552 = vunpack.c.l.b16 %v2420
      %v2553 = vunpack.c.l.b16 %v2421
      %v2554 = vunpack.c.l.b16 %v2422
      %v2555 = vunpack.c.l.b16 %v2423
      %v2556 = vunpack.c.l.b16 %v2424
      %v2557 = vunpack.c.l.b16 %v2425
      %v2558 = vunpack.c.l.b16 %v2426
      %v2559 = vunpack.c.l.b16 %v2427
      %v2560 = vunpack.c.l.b16 %v2428
      %v2561 = vunpack.c.l.b16 %v2429
      %v2562 = vunpack.c.l.b16 %v2430
      %v2563 = vunpack.c.l.b16 %v2431
      %v2564 = vunpack.c.l.b16 %v2432
      %v2565 = vunpack.c.l.b16 %v2433
      %v2566 = vunpack.c.l.b16 %v2434
      %v2567 = vunpack.c.l.b16 %v2435
      %v2568 = vunpack.c.l.b16 %v2436
      %v2569 = vunpack.c.l.b16 %v2437
      %v2570 = vunpack.c.l.b16 %v2438
      %v2571 = vunpack.c.l.b16 %v2439
      %v2572 = vunpack.c.l.b16 %v2440
      %v2573 = vunpack.c.l.b16 %v2441
      %v2574 = vunpack.c.l.b16 %v2442
      %v2575 = vunpack.c.l.b16 %v2443
      %v2576 = vunpack.c.l.b16 %v2444
      %v2577 = vunpack.c.l.b16 %v2445
      %v2578 = vunpack.c.l.b16 %v2446
      %v2579 = vunpack.c.l.b16 %v2447
      %v2580 = vunpack.c.l.b16 %v2448
      %v2581 = vunpack.c.l.b16 %v2449
      %v2582 = vunpack.c.l.b16 %v2450
      %v2583 = vunpack.c.l.b16 %v2451
      %v2584 = vunpack.c.l.b16 %v2452
      %v2585 = vunpack.c.l.b16 %v2453
      %v2586 = vunpack.c.l.b16 %v2454
      %v2587 = vunpack.c.l.b16 %v2455
      %v2588 = vunpack.c.l.b16 %v2456
      %v2589 = vunpack.c.l.b16 %v2457
      %v2590 = vpack.c.b16 %v2527, %v2526
      %v2591 = vpack.c.b16 %v2529, %v2528
      %v2592 = vpack.c.b16 %v2531, %v2530
      %v2593 = vpack.c.b16 %v2533, %v2532
      %v2594 = vpack.c.b16 %v2535, %v2534
      %v2595 = vpack.c.b16 %v2537, %v2536
      %v2596 = vpack.c.b16 %v2539, %v2538
      %v2597 = vpack.c.b16 %v2541, %v2540
      %v2598 = vpack.c.b16 %v2543, %v2542
      %v2599 = vpack.c.b16 %v2545, %v2544
      %v2600 = vpack.c.b16 %v2547, %v2546
      %v2601 = vpack.c.b16 %v2549, %v2548
      %v2602 = vpack.c.b16 %v2551, %v2550
      %v2603 = vpack.c.b16 %v2553, %v2552
      %v2604 = vpack.c.b16 %v2555, %v2554
      %v2605 = vpack.c.b16 %v2557, %v2556
      %v2606 = vpack.c.b16 %v2559, %v2558
      %v2607 = vpack.c.b16 %v2561, %v2560
      %v2608 = vpack.c.b16 %v2563, %v2562
      %v2609 = vpack.c.b16 %v2565, %v2564
      %v2610 = vpack.c.b16 %v2567, %v2566
      %v2611 = vpack.c.b16 %v2569, %v2568
      %v2612 = vpack.c.b16 %v2571, %v2570
      %v2613 = vpack.c.b16 %v2573, %v2572
      %v2614 = vpack.c.b16 %v2575, %v2574
      %v2615 = vpack.c.b16 %v2577, %v2576
      %v2616 = vpack.c.b16 %v2579, %v2578
      %v2617 = vpack.c.b16 %v2581, %v2580
      %v2618 = vpack.c.b16 %v2583, %v2582
      %v2619 = vpack.c.b16 %v2585, %v2584
      %v2620 = vpack.c.b16 %v2587, %v2586
      %v2621 = vpack.c.b16 %v2589, %v2588
      %2654 = vmatprep.subr.bf16.mxu0 0
      %2655 = vmatpush1.bf16.msra.mxu0 %v2590
      %2656 = vmatprep.subr.bf16.mxu0 0
      %2657 = vmatpush1.bf16.msra.mxu0 %v2591
      %2658 = vmatprep.subr.bf16.mxu0 0
      %2659 = vmatpush1.bf16.msra.mxu0 %v2592
      %2660 = vmatprep.subr.bf16.mxu0 0
      %2661 = vmatpush1.bf16.msra.mxu0 %v2593
      %2662 = vmatprep.subr.bf16.mxu0 0
      %2663 = vmatpush1.bf16.msra.mxu0 %v2594
      %2664 = vmatprep.subr.bf16.mxu0 0
      %2665 = vmatpush1.bf16.msra.mxu0 %v2595
      %2666 = vmatprep.subr.bf16.mxu0 0
      %2667 = vmatpush1.bf16.msra.mxu0 %v2596
      %2668 = vmatprep.subr.bf16.mxu0 0
      %2669 = vmatpush1.bf16.msra.mxu0 %v2597
      %2670 = vmatprep.subr.bf16.mxu0 0
      %2671 = vmatpush1.bf16.msra.mxu0 %v2598
      %2672 = vmatprep.subr.bf16.mxu0 0
      %2673 = vmatpush1.bf16.msra.mxu0 %v2599
      %2674 = vmatprep.subr.bf16.mxu0 0
      %2675 = vmatpush1.bf16.msra.mxu0 %v2600
      %2676 = vmatprep.subr.bf16.mxu0 0
      %2677 = vmatpush1.bf16.msra.mxu0 %v2601
      %2678 = vmatprep.subr.bf16.mxu0 0
      %2679 = vmatpush1.bf16.msra.mxu0 %v2602
      %2680 = vmatprep.subr.bf16.mxu0 0
      %2681 = vmatpush1.bf16.msra.mxu0 %v2603
      %2682 = vmatprep.subr.bf16.mxu0 0
      %2683 = vmatpush1.bf16.msra.mxu0 %v2604
      %2684 = vmatprep.subr.bf16.mxu0 0
      %2685 = vmatpush1.bf16.msra.mxu0 %v2605
      %2686 = vmatprep.mubr.bf16.mxu0 %v2459
      %2687 = vmatmul.mubr.bf16.gmra.mrb[0].mxu0 %v2458
      %v2688 = vpop.f32.mrb[0].mxu0
      %v2689 = vadd.f32 0.0, %v2688
      %v2690 = vpop.f32.mrb[0].mxu0
      %v2691 = vpop.f32.mrb[0].mxu0
      %v2692 = vadd.f32 0.0, %v2691
      %v2693 = vpop.f32.mrb[0].mxu0
      %2694 = vdwg.mxu0
      %2695 = vmatprep.subr.bf16.mxu0 0
      %2696 = vmatpush1.bf16.msra.mxu0 %v2606
      %2697 = vmatprep.subr.bf16.mxu0 0
      %2698 = vmatpush1.bf16.msra.mxu0 %v2607
      %2699 = vmatprep.subr.bf16.mxu0 0
      %2700 = vmatpush1.bf16.msra.mxu0 %v2608
      %2701 = vmatprep.subr.bf16.mxu0 0
      %2702 = vmatpush1.bf16.msra.mxu0 %v2609
      %2703 = vmatprep.subr.bf16.mxu0 0
      %2704 = vmatpush1.bf16.msra.mxu0 %v2610
      %2705 = vmatprep.subr.bf16.mxu0 0
      %2706 = vmatpush1.bf16.msra.mxu0 %v2611
      %2707 = vmatprep.subr.bf16.mxu0 0
      %2708 = vmatpush1.bf16.msra.mxu0 %v2612
      %2709 = vmatprep.subr.bf16.mxu0 0
      %2710 = vmatpush1.bf16.msra.mxu0 %v2613
      %2711 = vmatprep.subr.bf16.mxu0 0
      %2712 = vmatpush1.bf16.msra.mxu0 %v2614
      %2713 = vmatprep.subr.bf16.mxu0 0
      %2714 = vmatpush1.bf16.msra.mxu0 %v2615
      %2715 = vmatprep.subr.bf16.mxu0 0
      %2716 = vmatpush1.bf16.msra.mxu0 %v2616
      %2717 = vmatprep.subr.bf16.mxu0 0
      %2718 = vmatpush1.bf16.msra.mxu0 %v2617
      %2719 = vmatprep.subr.bf16.mxu0 0
      %2720 = vmatpush1.bf16.msra.mxu0 %v2618
      %2721 = vmatprep.subr.bf16.mxu0 0
      %2722 = vmatpush1.bf16.msra.mxu0 %v2619
      %2723 = vmatprep.subr.bf16.mxu0 0
      %2724 = vmatpush1.bf16.msra.mxu0 %v2620
      %2725 = vmatprep.subr.bf16.mxu0 0
      %2726 = vmatpush1.bf16.msra.mxu0 %v2621
      %2727 = vmatprep.mubr.bf16.mxu0 %v2461
      %2728 = vmatmul.mubr.bf16.gmra.mrb[0].mxu0 %v2460
      %v2729 = vpop.f32.mrb[0].mxu0
      %v2730 = vadd.f32 %v2689, %v2729
      %v2731 = vpop.f32.mrb[0].mxu0
      %v2732 = vpop.f32.mrb[0].mxu0
      %v2733 = vadd.f32 %v2692, %v2732
      %v2734 = vpop.f32.mrb[0].mxu0
      %2735 = vdwg.mxu0
      %v2736 = vadd.f32 %v1979, %v2730
      %v2737 = vadd.f32 %v1980, %v2733
      %v2738 = vld [vmem:[%s37] sm:$0x1]
      %v2740 = vlaneseq
      %v2741 = vshrl.u32 %v2740, 7
      %v2742 = vsub.s32 0, %v2741
      %v2743 = vrot.slane %v2738, %v2742
      %v2745 = vadd.f32 %v2736, %v2743
      %v2746 = vadd.f32 %v2737, %v2743
      %s2747 = scalar_lea.vmem %s15, 1
      %v2748 = vld [vmem:[%s2747] sm:$0x1]
      %s2749 = scalar_lea.vmem %s17, 1
      %v2750 = vld [vmem:[%s2749] sm:$0x1]
      %2751 = vadd.xlane.f32.xlu0 %v2745
      %v2752 = vpop.xlane.xlu0 %2751
      %2753 = vadd.xlane.f32.xlu0 %v2746
      %v2754 = vpop.xlane.xlu0 %2753
      %v2755 = vmul.f32 %v2752, %v1262
      %v2756 = vmul.f32 %v2754, %v1262
      %v2757 = vsub.f32 %v2745, %v2755
      %v2758 = vsub.f32 %v2746, %v2756
      %v2759 = vmul.f32 %v2757, %v2757
      %v2760 = vmul.f32 %v2758, %v2758
      %2761 = vadd.xlane.f32.xlu0 %v2759
      %v2762 = vpop.xlane.xlu0 %2761
      %2763 = vadd.xlane.f32.xlu0 %v2760
      %v2764 = vpop.xlane.xlu0 %2763
      %v2765 = vmul.f32 %v2762, %v1262
      %v2766 = vmul.f32 %v2764, %v1262
      %v2767 = vadd.f32 %v2765, 1e-05
      %v2768 = vadd.f32 %v2766, 1e-05
      %v2769 = vrsqrt.pop %v2767
      %v2770 = vrsqrt.pop %v2768
      %v2771 = vmul.f32 %v2757, %v2769
      %v2772 = vmul.f32 %v2758, %v2770
      %v2774 = vlaneseq
      %v2775 = vshrl.u32 %v2774, 7
      %v2776 = vsub.s32 0, %v2775
      %v2777 = vrot.slane %v2748, %v2776
      %v2779 = vmul.f32 %v2771, %v2777
      %v2780 = vmul.f32 %v2772, %v2777
      %v2782 = vlaneseq
      %v2783 = vshrl.u32 %v2782, 7
      %v2784 = vsub.s32 0, %v2783
      %v2785 = vrot.slane %v2750, %v2784
      %v2787 = vadd.f32 %v2779, %v2785
      %v2788 = vadd.f32 %v2780, %v2785
      %v2789 = vpack.c.bf16 %v2788, %v2787
      %s2790 = scalar_lea.vmem %s19, 64
      %v2791 = vld [vmem:[%s2790] sm:$0xf]
      %v2792 = vld [vmem:[%s2790 + $0x4] sm:$0xf]
      %v2793 = vld [vmem:[%s2790 + $0x8] sm:$0xf]
      %v2794 = vld [vmem:[%s2790 + $0xc] sm:$0xf]
      %v2795 = vld [vmem:[%s2790 + $0x10] sm:$0xf]
      %v2796 = vld [vmem:[%s2790 + $0x14] sm:$0xf]
      %v2797 = vld [vmem:[%s2790 + $0x18] sm:$0xf]
      %v2798 = vld [vmem:[%s2790 + $0x1c] sm:$0xf]
      %v2799 = vld [vmem:[%s2790 + $0x20] sm:$0xf]
      %v2800 = vld [vmem:[%s2790 + $0x24] sm:$0xf]
      %v2801 = vld [vmem:[%s2790 + $0x28] sm:$0xf]
      %v2802 = vld [vmem:[%s2790 + $0x2c] sm:$0xf]
      %v2803 = vld [vmem:[%s2790 + $0x30] sm:$0xf]
      %v2804 = vld [vmem:[%s2790 + $0x34] sm:$0xf]
      %v2805 = vld [vmem:[%s2790 + $0x38] sm:$0xf]
      %v2806 = vld [vmem:[%s2790 + $0x3c] sm:$0xf]
      %v2823 = vunpack.c.l.b16 %v2791
      %v2824 = vunpack.c.l.b16 %v2792
      %v2825 = vunpack.c.l.b16 %v2793
      %v2826 = vunpack.c.l.b16 %v2794
      %v2827 = vunpack.c.l.b16 %v2795
      %v2828 = vunpack.c.l.b16 %v2796
      %v2829 = vunpack.c.l.b16 %v2797
      %v2830 = vunpack.c.l.b16 %v2798
      %v2831 = vunpack.c.l.b16 %v2799
      %v2832 = vunpack.c.l.b16 %v2800
      %v2833 = vunpack.c.l.b16 %v2801
      %v2834 = vunpack.c.l.b16 %v2802
      %v2835 = vunpack.c.l.b16 %v2803
      %v2836 = vunpack.c.l.b16 %v2804
      %v2837 = vunpack.c.l.b16 %v2805
      %v2838 = vunpack.c.l.b16 %v2806
      %v2839 = vpack.c.b16 %v2824, %v2823
      %v2840 = vpack.c.b16 %v2826, %v2825
      %v2841 = vpack.c.b16 %v2828, %v2827
      %v2842 = vpack.c.b16 %v2830, %v2829
      %v2843 = vpack.c.b16 %v2832, %v2831
      %v2844 = vpack.c.b16 %v2834, %v2833
      %v2845 = vpack.c.b16 %v2836, %v2835
      %v2846 = vpack.c.b16 %v2838, %v2837
      %2855 = vmatprep.subr.bf16.mxu0 0
      %2856 = vmatpush1.bf16.msra.mxu0 %v2839
      %2857 = vmatprep.subr.bf16.mxu0 0
      %2858 = vmatpush1.bf16.msra.mxu0 %v2840
      %2859 = vmatprep.subr.bf16.mxu0 0
      %2860 = vmatpush1.bf16.msra.mxu0 %v2841
      %2861 = vmatprep.subr.bf16.mxu0 0
      %2862 = vmatpush1.bf16.msra.mxu0 %v2842
      %2863 = vmatprep.subr.bf16.mxu0 0
      %2864 = vmatpush1.bf16.msra.mxu0 %v2843
      %2865 = vmatprep.subr.bf16.mxu0 0
      %2866 = vmatpush1.bf16.msra.mxu0 %v2844
      %2867 = vmatprep.subr.bf16.mxu0 0
      %2868 = vmatpush1.bf16.msra.mxu0 %v2845
      %2869 = vmatprep.subr.bf16.mxu0 0
      %2870 = vmatpush1.bf16.msra.mxu0 %v2846
      %2871 = vmatprep.subr.bf16.mxu0 0
      %2872 = vmatpush1.bf16.msra.mxu0 0
      %2873 = vmatprep.subr.bf16.mxu0 0
      %2874 = vmatpush1.bf16.msra.mxu0 0
      %2875 = vmatprep.subr.bf16.mxu0 0
      %2876 = vmatpush1.bf16.msra.mxu0 0
      %2877 = vmatprep.subr.bf16.mxu0 0
      %2878 = vmatpush1.bf16.msra.mxu0 0
      %2879 = vmatprep.subr.bf16.mxu0 0
      %2880 = vmatpush1.bf16.msra.mxu0 0
      %2881 = vmatprep.subr.bf16.mxu0 0
      %2882 = vmatpush1.bf16.msra.mxu0 0
      %2883 = vmatprep.subr.bf16.mxu0 0
      %2884 = vmatpush1.bf16.msra.mxu0 0
      %2885 = vmatprep.subr.bf16.mxu0 0
      %2886 = vmatpush1.bf16.msra.mxu0 0
      %2887 = vmatprep.mubr.bf16.mxu0 0
      %2888 = vmatmul.mubr.bf16.gmra.mrb[0].mxu0 %v2789
      %v2889 = vpop.f32.mrb[0].mxu0
      %v2890 = vadd.f32 0.0, %v2889
      %v2891 = vpop.f32.mrb[0].mxu0
      %v2892 = vpop.f32.mrb[0].mxu0
      %v2893 = vadd.f32 0.0, %v2892
      %v2894 = vpop.f32.mrb[0].mxu0
      %2895 = vdwg.mxu0
      %s2896 = scalar_lea.vmem %s21, 64
      %v2897 = vld [vmem:[%s2896] sm:$0xf]
      %v2898 = vld [vmem:[%s2896 + $0x4] sm:$0xf]
      %v2899 = vld [vmem:[%s2896 + $0x8] sm:$0xf]
      %v2900 = vld [vmem:[%s2896 + $0xc] sm:$0xf]
      %v2901 = vld [vmem:[%s2896 + $0x10] sm:$0xf]
      %v2902 = vld [vmem:[%s2896 + $0x14] sm:$0xf]
      %v2903 = vld [vmem:[%s2896 + $0x18] sm:$0xf]
      %v2904 = vld [vmem:[%s2896 + $0x1c] sm:$0xf]
      %v2905 = vld [vmem:[%s2896 + $0x20] sm:$0xf]
      %v2906 = vld [vmem:[%s2896 + $0x24] sm:$0xf]
      %v2907 = vld [vmem:[%s2896 + $0x28] sm:$0xf]
      %v2908 = vld [vmem:[%s2896 + $0x2c] sm:$0xf]
      %v2909 = vld [vmem:[%s2896 + $0x30] sm:$0xf]
      %v2910 = vld [vmem:[%s2896 + $0x34] sm:$0xf]
      %v2911 = vld [vmem:[%s2896 + $0x38] sm:$0xf]
      %v2912 = vld [vmem:[%s2896 + $0x3c] sm:$0xf]
      %v2929 = vunpack.c.l.b16 %v2897
      %v2930 = vunpack.c.l.b16 %v2898
      %v2931 = vunpack.c.l.b16 %v2899
      %v2932 = vunpack.c.l.b16 %v2900
      %v2933 = vunpack.c.l.b16 %v2901
      %v2934 = vunpack.c.l.b16 %v2902
      %v2935 = vunpack.c.l.b16 %v2903
      %v2936 = vunpack.c.l.b16 %v2904
      %v2937 = vunpack.c.l.b16 %v2905
      %v2938 = vunpack.c.l.b16 %v2906
      %v2939 = vunpack.c.l.b16 %v2907
      %v2940 = vunpack.c.l.b16 %v2908
      %v2941 = vunpack.c.l.b16 %v2909
      %v2942 = vunpack.c.l.b16 %v2910
      %v2943 = vunpack.c.l.b16 %v2911
      %v2944 = vunpack.c.l.b16 %v2912
      %v2945 = vpack.c.b16 %v2930, %v2929
      %v2946 = vpack.c.b16 %v2932, %v2931
      %v2947 = vpack.c.b16 %v2934, %v2933
      %v2948 = vpack.c.b16 %v2936, %v2935
      %v2949 = vpack.c.b16 %v2938, %v2937
      %v2950 = vpack.c.b16 %v2940, %v2939
      %v2951 = vpack.c.b16 %v2942, %v2941
      %v2952 = vpack.c.b16 %v2944, %v2943
      %2961 = vmatprep.subr.bf16.mxu0 0
      %2962 = vmatpush1.bf16.msra.mxu0 %v2945
      %2963 = vmatprep.subr.bf16.mxu0 0
      %2964 = vmatpush1.bf16.msra.mxu0 %v2946
      %2965 = vmatprep.subr.bf16.mxu0 0
      %2966 = vmatpush1.bf16.msra.mxu0 %v2947
      %2967 = vmatprep.subr.bf16.mxu0 0
      %2968 = vmatpush1.bf16.msra.mxu0 %v2948
      %2969 = vmatprep.subr.bf16.mxu0 0
      %2970 = vmatpush1.bf16.msra.mxu0 %v2949
      %2971 = vmatprep.subr.bf16.mxu0 0
      %2972 = vmatpush1.bf16.msra.mxu0 %v2950
      %2973 = vmatprep.subr.bf16.mxu0 0
      %2974 = vmatpush1.bf16.msra.mxu0 %v2951
      %2975 = vmatprep.subr.bf16.mxu0 0
      %2976 = vmatpush1.bf16.msra.mxu0 %v2952
      %2977 = vmatprep.subr.bf16.mxu0 0
      %2978 = vmatpush1.bf16.msra.mxu0 0
      %2979 = vmatprep.subr.bf16.mxu0 0
      %2980 = vmatpush1.bf16.msra.mxu0 0
      %2981 = vmatprep.subr.bf16.mxu0 0
      %2982 = vmatpush1.bf16.msra.mxu0 0
      %2983 = vmatprep.subr.bf16.mxu0 0
      %2984 = vmatpush1.bf16.msra.mxu0 0
      %2985 = vmatprep.subr.bf16.mxu0 0
      %2986 = vmatpush1.bf16.msra.mxu0 0
      %2987 = vmatprep.subr.bf16.mxu0 0
      %2988 = vmatpush1.bf16.msra.mxu0 0
      %2989 = vmatprep.subr.bf16.mxu0 0
      %2990 = vmatpush1.bf16.msra.mxu0 0
      %2991 = vmatprep.subr.bf16.mxu0 0
      %2992 = vmatpush1.bf16.msra.mxu0 0
      %2993 = vmatprep.mubr.bf16.mxu0 0
      %2994 = vmatmul.mubr.bf16.gmra.mrb[0].mxu0 %v2789
      %v2995 = vpop.f32.mrb[0].mxu0
      %v2996 = vadd.f32 0.0, %v2995
      %v2997 = vpop.f32.mrb[0].mxu0
      %v2998 = vpop.f32.mrb[0].mxu0
      %v2999 = vadd.f32 0.0, %v2998
      %v3000 = vpop.f32.mrb[0].mxu0
      %3001 = vdwg.mxu0
      %s3002 = scalar_lea.vmem %s23, 64
      %v3003 = vld [vmem:[%s3002] sm:$0xf]
      %v3004 = vld [vmem:[%s3002 + $0x4] sm:$0xf]
      %v3005 = vld [vmem:[%s3002 + $0x8] sm:$0xf]
      %v3006 = vld [vmem:[%s3002 + $0xc] sm:$0xf]
      %v3007 = vld [vmem:[%s3002 + $0x10] sm:$0xf]
      %v3008 = vld [vmem:[%s3002 + $0x14] sm:$0xf]
      %v3009 = vld [vmem:[%s3002 + $0x18] sm:$0xf]
      %v3010 = vld [vmem:[%s3002 + $0x1c] sm:$0xf]
      %v3011 = vld [vmem:[%s3002 + $0x20] sm:$0xf]
      %v3012 = vld [vmem:[%s3002 + $0x24] sm:$0xf]
      %v3013 = vld [vmem:[%s3002 + $0x28] sm:$0xf]
      %v3014 = vld [vmem:[%s3002 + $0x2c] sm:$0xf]
      %v3015 = vld [vmem:[%s3002 + $0x30] sm:$0xf]
      %v3016 = vld [vmem:[%s3002 + $0x34] sm:$0xf]
      %v3017 = vld [vmem:[%s3002 + $0x38] sm:$0xf]
      %v3018 = vld [vmem:[%s3002 + $0x3c] sm:$0xf]
      %v3035 = vunpack.c.l.b16 %v3003
      %v3036 = vunpack.c.l.b16 %v3004
      %v3037 = vunpack.c.l.b16 %v3005
      %v3038 = vunpack.c.l.b16 %v3006
      %v3039 = vunpack.c.l.b16 %v3007
      %v3040 = vunpack.c.l.b16 %v3008
      %v3041 = vunpack.c.l.b16 %v3009
      %v3042 = vunpack.c.l.b16 %v3010
      %v3043 = vunpack.c.l.b16 %v3011
      %v3044 = vunpack.c.l.b16 %v3012
      %v3045 = vunpack.c.l.b16 %v3013
      %v3046 = vunpack.c.l.b16 %v3014
      %v3047 = vunpack.c.l.b16 %v3015
      %v3048 = vunpack.c.l.b16 %v3016
      %v3049 = vunpack.c.l.b16 %v3017
      %v3050 = vunpack.c.l.b16 %v3018
      %v3051 = vpack.c.b16 %v3036, %v3035
      %v3052 = vpack.c.b16 %v3038, %v3037
      %v3053 = vpack.c.b16 %v3040, %v3039
      %v3054 = vpack.c.b16 %v3042, %v3041
      %v3055 = vpack.c.b16 %v3044, %v3043
      %v3056 = vpack.c.b16 %v3046, %v3045
      %v3057 = vpack.c.b16 %v3048, %v3047
      %v3058 = vpack.c.b16 %v3050, %v3049
      %3067 = vmatprep.subr.bf16.mxu0 0
      %3068 = vmatpush1.bf16.msra.mxu0 %v3051
      %3069 = vmatprep.subr.bf16.mxu0 0
      %3070 = vmatpush1.bf16.msra.mxu0 %v3052
      %3071 = vmatprep.subr.bf16.mxu0 0
      %3072 = vmatpush1.bf16.msra.mxu0 %v3053
      %3073 = vmatprep.subr.bf16.mxu0 0
      %3074 = vmatpush1.bf16.msra.mxu0 %v3054
      %3075 = vmatprep.subr.bf16.mxu0 0
      %3076 = vmatpush1.bf16.msra.mxu0 %v3055
      %3077 = vmatprep.subr.bf16.mxu0 0
      %3078 = vmatpush1.bf16.msra.mxu0 %v3056
      %3079 = vmatprep.subr.bf16.mxu0 0
      %3080 = vmatpush1.bf16.msra.mxu0 %v3057
      %3081 = vmatprep.subr.bf16.mxu0 0
      %3082 = vmatpush1.bf16.msra.mxu0 %v3058
      %3083 = vmatprep.subr.bf16.mxu0 0
      %3084 = vmatpush1.bf16.msra.mxu0 0
      %3085 = vmatprep.subr.bf16.mxu0 0
      %3086 = vmatpush1.bf16.msra.mxu0 0
      %3087 = vmatprep.subr.bf16.mxu0 0
      %3088 = vmatpush1.bf16.msra.mxu0 0
      %3089 = vmatprep.subr.bf16.mxu0 0
      %3090 = vmatpush1.bf16.msra.mxu0 0
      %3091 = vmatprep.subr.bf16.mxu0 0
      %3092 = vmatpush1.bf16.msra.mxu0 0
      %3093 = vmatprep.subr.bf16.mxu0 0
      %3094 = vmatpush1.bf16.msra.mxu0 0
      %3095 = vmatprep.subr.bf16.mxu0 0
      %3096 = vmatpush1.bf16.msra.mxu0 0
      %3097 = vmatprep.subr.bf16.mxu0 0
      %3098 = vmatpush1.bf16.msra.mxu0 0
      %3099 = vmatprep.mubr.bf16.mxu0 0
      %3100 = vmatmul.mubr.bf16.gmra.mrb[0].mxu0 %v2789
      %v3101 = vpop.f32.mrb[0].mxu0
      %v3102 = vadd.f32 0.0, %v3101
      %v3103 = vpop.f32.mrb[0].mxu0
      %v3104 = vpop.f32.mrb[0].mxu0
      %v3105 = vadd.f32 0.0, %v3104
      %v3106 = vpop.f32.mrb[0].mxu0
      %3107 = vdwg.mxu0
      %v3108 = vpack.c.bf16 %v2893, %v2890
      %v3109 = vpack.c.bf16 %v2999, %v2996
      %v3110 = vpack.c.bf16 %v3105, %v3102
      %v3112 = vsel %vm1616, %v3108, 0
      %v3115 = vsel %vm1616, %v3109, 0
      %3117 = vmatprep.subr.bf16.mxu0 0
      %3118 = vmatpush1.bf16.xpose.msra.mxu0 %v3115
      %3119 = vmatprep.subr.bf16.mxu0 0
      %3120 = vmatpush1.bf16.xpose.msra.mxu0 0
      %3121 = vmatprep.subr.bf16.mxu0 0
      %3122 = vmatpush1.bf16.xpose.msra.mxu0 0
      %3123 = vmatprep.subr.bf16.mxu0 0
      %3124 = vmatpush1.bf16.xpose.msra.mxu0 0
      %3125 = vmatprep.subr.bf16.mxu0 0
      %3126 = vmatpush1.bf16.xpose.msra.mxu0 0
      %3127 = vmatprep.subr.bf16.mxu0 0
      %3128 = vmatpush1.bf16.xpose.msra.mxu0 0
      %3129 = vmatprep.subr.bf16.mxu0 0
      %3130 = vmatpush1.bf16.xpose.msra.mxu0 0
      %3131 = vmatprep.subr.bf16.mxu0 0
      %3132 = vmatpush1.bf16.xpose.msra.mxu0 0
      %3133 = vmatprep.subr.bf16.mxu0 0
      %3134 = vmatpush1.bf16.xpose.msra.mxu0 0
      %3135 = vmatprep.subr.bf16.mxu0 0
      %3136 = vmatpush1.bf16.xpose.msra.mxu0 0
      %3137 = vmatprep.subr.bf16.mxu0 0
      %3138 = vmatpush1.bf16.xpose.msra.mxu0 0
      %3139 = vmatprep.subr.bf16.mxu0 0
      %3140 = vmatpush1.bf16.xpose.msra.mxu0 0
      %3141 = vmatprep.subr.bf16.mxu0 0
      %3142 = vmatpush1.bf16.xpose.msra.mxu0 0
      %3143 = vmatprep.subr.bf16.mxu0 0
      %3144 = vmatpush1.bf16.xpose.msra.mxu0 0
      %3145 = vmatprep.subr.bf16.mxu0 0
      %3146 = vmatpush1.bf16.xpose.msra.mxu0 0
      %3147 = vmatprep.subr.bf16.mxu0 0
      %3148 = vmatpush1.bf16.xpose.msra.mxu0 0
      %3149 = vmatprep.mubr.bf16.mxu0 0
      %3150 = vmatmul.mubr.bf16.gmra.mrb[0].mxu0 %v3112
      %v3151 = vpop.f32.mrb[0].mxu0
      %v3152 = vadd.f32 0.0, %v3151
      %v3153 = vpop.f32.mrb[0].mxu0
      %v3154 = vpop.f32.mrb[0].mxu0
      %v3155 = vadd.f32 0.0, %v3154
      %v3156 = vpop.f32.mrb[0].mxu0
      %3157 = vdwg.mxu0
      %v3158 = vmul.f32 %v3152, 0.125
      %v3159 = vmul.f32 %v3155, 0.125
      %v3160 = vsel %vm1254, %v3158, -1e+30
      %v3161 = vsel %vm1255, %v3159, -1e+30
      %v3162 = vsel %vm1157, %v3160, -inf
      %3163 = vmax.xlane.f32.xlu0 %v3162
      %v3164 = vpop.xlane.xlu0 %3163
      %v3165 = vsel %vm1157, %v3161, -inf
      %3166 = vmax.xlane.f32.xlu0 %v3165
      %v3167 = vpop.xlane.xlu0 %3166
      %v3168 = vsub.f32 %v3160, %v3164
      %v3169 = vsub.f32 %v3161, %v3167
      %v3170 = vmul.f32 %v3168, 1.442695
      %v3171 = vpow.pop %v3170
      %v3172 = vmul.f32 %v3169, 1.442695
      %v3173 = vpow.pop %v3172
      %v3174 = vsel %vm1157, %v3171, 0.0
      %3175 = vadd.xlane.f32.xlu0 %v3174
      %v3176 = vpop.xlane.xlu0 %3175
      %v3177 = vsel %vm1157, %v3173, 0.0
      %3178 = vadd.xlane.f32.xlu0 %v3177
      %v3179 = vpop.xlane.xlu0 %3178
      %v3180 = vrcp.pop %v3176
      %v3181 = vrcp.pop %v3179
      %v3182 = vmul.f32 %v3171, %v3180
      %v3183 = vmul.f32 %v3173, %v3181
      %v3184 = vpack.c.bf16 %v3183, %v3182
      %v3186 = vsel %vm1157, %v3184, 0
      %3188 = vmatprep.subr.bf16.mxu0 0
      %3189 = vmatpush1.bf16.msra.mxu0 %v3110
      %3190 = vmatprep.subr.bf16.mxu0 0
      %3191 = vmatpush1.bf16.msra.mxu0 0
      %3192 = vmatprep.subr.bf16.mxu0 0
      %3193 = vmatpush1.bf16.msra.mxu0 0
      %3194 = vmatprep.subr.bf16.mxu0 0
      %3195 = vmatpush1.bf16.msra.mxu0 0
      %3196 = vmatprep.subr.bf16.mxu0 0
      %3197 = vmatpush1.bf16.msra.mxu0 0
      %3198 = vmatprep.subr.bf16.mxu0 0
      %3199 = vmatpush1.bf16.msra.mxu0 0
      %3200 = vmatprep.subr.bf16.mxu0 0
      %3201 = vmatpush1.bf16.msra.mxu0 0
      %3202 = vmatprep.subr.bf16.mxu0 0
      %3203 = vmatpush1.bf16.msra.mxu0 0
      %3204 = vmatprep.subr.bf16.mxu0 0
      %3205 = vmatpush1.bf16.msra.mxu0 0
      %3206 = vmatprep.subr.bf16.mxu0 0
      %3207 = vmatpush1.bf16.msra.mxu0 0
      %3208 = vmatprep.subr.bf16.mxu0 0
      %3209 = vmatpush1.bf16.msra.mxu0 0
      %3210 = vmatprep.subr.bf16.mxu0 0
      %3211 = vmatpush1.bf16.msra.mxu0 0
      %3212 = vmatprep.subr.bf16.mxu0 0
      %3213 = vmatpush1.bf16.msra.mxu0 0
      %3214 = vmatprep.subr.bf16.mxu0 0
      %3215 = vmatpush1.bf16.msra.mxu0 0
      %3216 = vmatprep.subr.bf16.mxu0 0
      %3217 = vmatpush1.bf16.msra.mxu0 0
      %3218 = vmatprep.subr.bf16.mxu0 0
      %3219 = vmatpush1.bf16.msra.mxu0 0
      %3220 = vmatprep.mubr.bf16.mxu0 0
      %3221 = vmatmul.mubr.bf16.gmra.mrb[0].mxu0 %v3186
      %v3222 = vpop.f32.mrb[0].mxu0
      %v3223 = vadd.f32 0.0, %v3222
      %v3224 = vpop.f32.mrb[0].mxu0
      %v3225 = vpop.f32.mrb[0].mxu0
      %v3226 = vadd.f32 0.0, %v3225
      %v3227 = vpop.f32.mrb[0].mxu0
      %3228 = vdwg.mxu0
      %3230 = vrot.lane.b32.xlu0 %v3108, 64
      %v3231 = vpop.permute.xlu0 %3230
      %3233 = vrot.lane.b32.xlu0 %v3109, 64
      %v3234 = vpop.permute.xlu0 %3233
      %v3236 = vsel %vm1616, %v3231, 0
      %v3239 = vsel %vm1616, %v3234, 0
      %3241 = vmatprep.subr.bf16.mxu0 0
      %3242 = vmatpush1.bf16.xpose.msra.mxu0 %v3239
      %3243 = vmatprep.subr.bf16.mxu0 0
      %3244 = vmatpush1.bf16.xpose.msra.mxu0 0
      %3245 = vmatprep.subr.bf16.mxu0 0
      %3246 = vmatpush1.bf16.xpose.msra.mxu0 0
      %3247 = vmatprep.subr.bf16.mxu0 0
      %3248 = vmatpush1.bf16.xpose.msra.mxu0 0
      %3249 = vmatprep.subr.bf16.mxu0 0
      %3250 = vmatpush1.bf16.xpose.msra.mxu0 0
      %3251 = vmatprep.subr.bf16.mxu0 0
      %3252 = vmatpush1.bf16.xpose.msra.mxu0 0
      %3253 = vmatprep.subr.bf16.mxu0 0
      %3254 = vmatpush1.bf16.xpose.msra.mxu0 0
      %3255 = vmatprep.subr.bf16.mxu0 0
      %3256 = vmatpush1.bf16.xpose.msra.mxu0 0
      %3257 = vmatprep.subr.bf16.mxu0 0
      %3258 = vmatpush1.bf16.xpose.msra.mxu0 0
      %3259 = vmatprep.subr.bf16.mxu0 0
      %3260 = vmatpush1.bf16.xpose.msra.mxu0 0
      %3261 = vmatprep.subr.bf16.mxu0 0
      %3262 = vmatpush1.bf16.xpose.msra.mxu0 0
      %3263 = vmatprep.subr.bf16.mxu0 0
      %3264 = vmatpush1.bf16.xpose.msra.mxu0 0
      %3265 = vmatprep.subr.bf16.mxu0 0
      %3266 = vmatpush1.bf16.xpose.msra.mxu0 0
      %3267 = vmatprep.subr.bf16.mxu0 0
      %3268 = vmatpush1.bf16.xpose.msra.mxu0 0
      %3269 = vmatprep.subr.bf16.mxu0 0
      %3270 = vmatpush1.bf16.xpose.msra.mxu0 0
      %3271 = vmatprep.subr.bf16.mxu0 0
      %3272 = vmatpush1.bf16.xpose.msra.mxu0 0
      %3273 = vmatprep.mubr.bf16.mxu0 0
      %3274 = vmatmul.mubr.bf16.gmra.mrb[0].mxu0 %v3236
      %v3275 = vpop.f32.mrb[0].mxu0
      %v3276 = vadd.f32 0.0, %v3275
      %v3277 = vpop.f32.mrb[0].mxu0
      %v3278 = vpop.f32.mrb[0].mxu0
      %v3279 = vadd.f32 0.0, %v3278
      %v3280 = vpop.f32.mrb[0].mxu0
      %3281 = vdwg.mxu0
      %v3282 = vmul.f32 %v3276, 0.125
      %v3283 = vmul.f32 %v3279, 0.125
      %v3284 = vsel %vm1254, %v3282, -1e+30
      %v3285 = vsel %vm1255, %v3283, -1e+30
      %v3286 = vsel %vm1157, %v3284, -inf
      %3287 = vmax.xlane.f32.xlu0 %v3286
      %v3288 = vpop.xlane.xlu0 %3287
      %v3289 = vsel %vm1157, %v3285, -inf
      %3290 = vmax.xlane.f32.xlu0 %v3289
      %v3291 = vpop.xlane.xlu0 %3290
      %v3292 = vsub.f32 %v3284, %v3288
      %v3293 = vsub.f32 %v3285, %v3291
      %v3294 = vmul.f32 %v3292, 1.442695
      %v3295 = vpow.pop %v3294
      %v3296 = vmul.f32 %v3293, 1.442695
      %v3297 = vpow.pop %v3296
      %v3298 = vsel %vm1157, %v3295, 0.0
      %3299 = vadd.xlane.f32.xlu0 %v3298
      %v3300 = vpop.xlane.xlu0 %3299
      %v3301 = vsel %vm1157, %v3297, 0.0
      %3302 = vadd.xlane.f32.xlu0 %v3301
      %v3303 = vpop.xlane.xlu0 %3302
      %v3304 = vrcp.pop %v3300
      %v3305 = vrcp.pop %v3303
      %v3306 = vmul.f32 %v3295, %v3304
      %v3307 = vmul.f32 %v3297, %v3305
      %v3308 = vpack.c.bf16 %v3307, %v3306
      %3310 = vrot.lane.b32.xlu0 %v3110, 64
      %v3311 = vpop.permute.xlu0 %3310
      %v3314 = vsel %vm1157, %v3308, 0
      %3316 = vmatprep.subr.bf16.mxu0 0
      %3317 = vmatpush1.bf16.msra.mxu0 %v3311
      %3318 = vmatprep.subr.bf16.mxu0 0
      %3319 = vmatpush1.bf16.msra.mxu0 0
      %3320 = vmatprep.subr.bf16.mxu0 0
      %3321 = vmatpush1.bf16.msra.mxu0 0
      %3322 = vmatprep.subr.bf16.mxu0 0
      %3323 = vmatpush1.bf16.msra.mxu0 0
      %3324 = vmatprep.subr.bf16.mxu0 0
      %3325 = vmatpush1.bf16.msra.mxu0 0
      %3326 = vmatprep.subr.bf16.mxu0 0
      %3327 = vmatpush1.bf16.msra.mxu0 0
      %3328 = vmatprep.subr.bf16.mxu0 0
      %3329 = vmatpush1.bf16.msra.mxu0 0
      %3330 = vmatprep.subr.bf16.mxu0 0
      %3331 = vmatpush1.bf16.msra.mxu0 0
      %3332 = vmatprep.subr.bf16.mxu0 0
      %3333 = vmatpush1.bf16.msra.mxu0 0
      %3334 = vmatprep.subr.bf16.mxu0 0
      %3335 = vmatpush1.bf16.msra.mxu0 0
      %3336 = vmatprep.subr.bf16.mxu0 0
      %3337 = vmatpush1.bf16.msra.mxu0 0
      %3338 = vmatprep.subr.bf16.mxu0 0
      %3339 = vmatpush1.bf16.msra.mxu0 0
      %3340 = vmatprep.subr.bf16.mxu0 0
      %3341 = vmatpush1.bf16.msra.mxu0 0
      %3342 = vmatprep.subr.bf16.mxu0 0
      %3343 = vmatpush1.bf16.msra.mxu0 0
      %3344 = vmatprep.subr.bf16.mxu0 0
      %3345 = vmatpush1.bf16.msra.mxu0 0
      %3346 = vmatprep.subr.bf16.mxu0 0
      %3347 = vmatpush1.bf16.msra.mxu0 0
      %3348 = vmatprep.mubr.bf16.mxu0 0
      %3349 = vmatmul.mubr.bf16.gmra.mrb[0].mxu0 %v3314
      %v3350 = vpop.f32.mrb[0].mxu0
      %v3351 = vadd.f32 0.0, %v3350
      %v3352 = vpop.f32.mrb[0].mxu0
      %v3353 = vpop.f32.mrb[0].mxu0
      %v3354 = vadd.f32 0.0, %v3353
      %v3355 = vpop.f32.mrb[0].mxu0
      %3356 = vdwg.mxu0
      %3359 = vrot.lane.b32.xlu0 %v3351, 64
      %v3360 = vpop.permute.xlu0 %3359
      %3361 = vrot.lane.b32.xlu0 %v3354, 64
      %v3362 = vpop.permute.xlu0 %3361
      %v3365 = vsel %vm1616, %v3223, %v3360
      %v3366 = vsel %vm1616, %v3226, %v3362
      %s3367 = scalar_lea.vmem %s25, 64
      %v3368 = vld [vmem:[%s3367] sm:$0xf]
      %v3369 = vld [vmem:[%s3367 + $0x4] sm:$0xf]
      %v3370 = vld [vmem:[%s3367 + $0x8] sm:$0xf]
      %v3371 = vld [vmem:[%s3367 + $0xc] sm:$0xf]
      %v3372 = vld [vmem:[%s3367 + $0x10] sm:$0xf]
      %v3373 = vld [vmem:[%s3367 + $0x14] sm:$0xf]
      %v3374 = vld [vmem:[%s3367 + $0x18] sm:$0xf]
      %v3375 = vld [vmem:[%s3367 + $0x1c] sm:$0xf]
      %v3376 = vld [vmem:[%s3367 + $0x20] sm:$0xf]
      %v3377 = vld [vmem:[%s3367 + $0x24] sm:$0xf]
      %v3378 = vld [vmem:[%s3367 + $0x28] sm:$0xf]
      %v3379 = vld [vmem:[%s3367 + $0x2c] sm:$0xf]
      %v3380 = vld [vmem:[%s3367 + $0x30] sm:$0xf]
      %v3381 = vld [vmem:[%s3367 + $0x34] sm:$0xf]
      %v3382 = vld [vmem:[%s3367 + $0x38] sm:$0xf]
      %v3383 = vld [vmem:[%s3367 + $0x3c] sm:$0xf]
      %v3384 = vpack.c.bf16 %v3366, %v3365
      %v3401 = vunpack.c.l.b16 %v3368
      %v3402 = vunpack.c.l.b16 %v3369
      %v3403 = vunpack.c.l.b16 %v3370
      %v3404 = vunpack.c.l.b16 %v3371
      %v3405 = vunpack.c.l.b16 %v3372
      %v3406 = vunpack.c.l.b16 %v3373
      %v3407 = vunpack.c.l.b16 %v3374
      %v3408 = vunpack.c.l.b16 %v3375
      %v3409 = vunpack.c.l.b16 %v3376
      %v3410 = vunpack.c.l.b16 %v3377
      %v3411 = vunpack.c.l.b16 %v3378
      %v3412 = vunpack.c.l.b16 %v3379
      %v3413 = vunpack.c.l.b16 %v3380
      %v3414 = vunpack.c.l.b16 %v3381
      %v3415 = vunpack.c.l.b16 %v3382
      %v3416 = vunpack.c.l.b16 %v3383
      %v3417 = vpack.c.b16 %v3402, %v3401
      %v3418 = vpack.c.b16 %v3404, %v3403
      %v3419 = vpack.c.b16 %v3406, %v3405
      %v3420 = vpack.c.b16 %v3408, %v3407
      %v3421 = vpack.c.b16 %v3410, %v3409
      %v3422 = vpack.c.b16 %v3412, %v3411
      %v3423 = vpack.c.b16 %v3414, %v3413
      %v3424 = vpack.c.b16 %v3416, %v3415
      %3433 = vmatprep.subr.bf16.mxu0 0
      %3434 = vmatpush1.bf16.msra.mxu0 %v3417
      %3435 = vmatprep.subr.bf16.mxu0 0
      %3436 = vmatpush1.bf16.msra.mxu0 %v3418
      %3437 = vmatprep.subr.bf16.mxu0 0
      %3438 = vmatpush1.bf16.msra.mxu0 %v3419
      %3439 = vmatprep.subr.bf16.mxu0 0
      %3440 = vmatpush1.bf16.msra.mxu0 %v3420
      %3441 = vmatprep.subr.bf16.mxu0 0
      %3442 = vmatpush1.bf16.msra.mxu0 %v3421
      %3443 = vmatprep.subr.bf16.mxu0 0
      %3444 = vmatpush1.bf16.msra.mxu0 %v3422
      %3445 = vmatprep.subr.bf16.mxu0 0
      %3446 = vmatpush1.bf16.msra.mxu0 %v3423
      %3447 = vmatprep.subr.bf16.mxu0 0
      %3448 = vmatpush1.bf16.msra.mxu0 %v3424
      %3449 = vmatprep.subr.bf16.mxu0 0
      %3450 = vmatpush1.bf16.msra.mxu0 0
      %3451 = vmatprep.subr.bf16.mxu0 0
      %3452 = vmatpush1.bf16.msra.mxu0 0
      %3453 = vmatprep.subr.bf16.mxu0 0
      %3454 = vmatpush1.bf16.msra.mxu0 0
      %3455 = vmatprep.subr.bf16.mxu0 0
      %3456 = vmatpush1.bf16.msra.mxu0 0
      %3457 = vmatprep.subr.bf16.mxu0 0
      %3458 = vmatpush1.bf16.msra.mxu0 0
      %3459 = vmatprep.subr.bf16.mxu0 0
      %3460 = vmatpush1.bf16.msra.mxu0 0
      %3461 = vmatprep.subr.bf16.mxu0 0
      %3462 = vmatpush1.bf16.msra.mxu0 0
      %3463 = vmatprep.subr.bf16.mxu0 0
      %3464 = vmatpush1.bf16.msra.mxu0 0
      %3465 = vmatprep.mubr.bf16.mxu0 0
      %3466 = vmatmul.mubr.bf16.gmra.mrb[0].mxu0 %v3384
      %v3467 = vpop.f32.mrb[0].mxu0
      %v3468 = vadd.f32 0.0, %v3467
      %v3469 = vpop.f32.mrb[0].mxu0
      %v3470 = vpop.f32.mrb[0].mxu0
      %v3471 = vadd.f32 0.0, %v3470
      %v3472 = vpop.f32.mrb[0].mxu0
      %3473 = vdwg.mxu0
      %v3474 = vadd.f32 %v2745, %v3468
      %v3475 = vadd.f32 %v2746, %v3471
      %s3476 = scalar_lea.vmem %s27, 1
      %v3477 = vld [vmem:[%s3476] sm:$0x1]
      %s3478 = scalar_lea.vmem %s29, 1
      %v3479 = vld [vmem:[%s3478] sm:$0x1]
      %3480 = vadd.xlane.f32.xlu0 %v3474
      %v3481 = vpop.xlane.xlu0 %3480
      %3482 = vadd.xlane.f32.xlu0 %v3475
      %v3483 = vpop.xlane.xlu0 %3482
      %v3484 = vmul.f32 %v3481, %v1262
      %v3485 = vmul.f32 %v3483, %v1262
      %v3486 = vsub.f32 %v3474, %v3484
      %v3487 = vsub.f32 %v3475, %v3485
      %v3488 = vmul.f32 %v3486, %v3486
      %v3489 = vmul.f32 %v3487, %v3487
      %3490 = vadd.xlane.f32.xlu0 %v3488
      %v3491 = vpop.xlane.xlu0 %3490
      %3492 = vadd.xlane.f32.xlu0 %v3489
      %v3493 = vpop.xlane.xlu0 %3492
      %v3494 = vmul.f32 %v3491, %v1262
      %v3495 = vmul.f32 %v3493, %v1262
      %v3496 = vadd.f32 %v3494, 1e-05
      %v3497 = vadd.f32 %v3495, 1e-05
      %v3498 = vrsqrt.pop %v3496
      %v3499 = vrsqrt.pop %v3497
      %v3500 = vmul.f32 %v3486, %v3498
      %v3501 = vmul.f32 %v3487, %v3499
      %v3503 = vlaneseq
      %v3504 = vshrl.u32 %v3503, 7
      %v3505 = vsub.s32 0, %v3504
      %v3506 = vrot.slane %v3477, %v3505
      %v3508 = vmul.f32 %v3500, %v3506
      %v3509 = vmul.f32 %v3501, %v3506
      %v3511 = vlaneseq
      %v3512 = vshrl.u32 %v3511, 7
      %v3513 = vsub.s32 0, %v3512
      %v3514 = vrot.slane %v3479, %v3513
      %v3516 = vadd.f32 %v3508, %v3514
      %v3517 = vadd.f32 %v3509, %v3514
      %s3518 = scalar_lea.vmem %s31, 256
      %v3519 = vld [vmem:[%s3518] sm:$0xff]
      %v3520 = vld [vmem:[%s3518 + $0x8] sm:$0xff]
      %v3521 = vld [vmem:[%s3518 + $0x10] sm:$0xff]
      %v3522 = vld [vmem:[%s3518 + $0x18] sm:$0xff]
      %v3523 = vld [vmem:[%s3518 + $0x20] sm:$0xff]
      %v3524 = vld [vmem:[%s3518 + $0x28] sm:$0xff]
      %v3525 = vld [vmem:[%s3518 + $0x30] sm:$0xff]
      %v3526 = vld [vmem:[%s3518 + $0x38] sm:$0xff]
      %v3527 = vld [vmem:[%s3518 + $0x40] sm:$0xff]
      %v3528 = vld [vmem:[%s3518 + $0x48] sm:$0xff]
      %v3529 = vld [vmem:[%s3518 + $0x50] sm:$0xff]
      %v3530 = vld [vmem:[%s3518 + $0x58] sm:$0xff]
      %v3531 = vld [vmem:[%s3518 + $0x60] sm:$0xff]
      %v3532 = vld [vmem:[%s3518 + $0x68] sm:$0xff]
      %v3533 = vld [vmem:[%s3518 + $0x70] sm:$0xff]
      %v3534 = vld [vmem:[%s3518 + $0x78] sm:$0xff]
      %v3535 = vld [vmem:[%s3518 + $0x80] sm:$0xff]
      %v3536 = vld [vmem:[%s3518 + $0x88] sm:$0xff]
      %v3537 = vld [vmem:[%s3518 + $0x90] sm:$0xff]
      %v3538 = vld [vmem:[%s3518 + $0x98] sm:$0xff]
      %v3539 = vld [vmem:[%s3518 + $0xa0] sm:$0xff]
      %v3540 = vld [vmem:[%s3518 + $0xa8] sm:$0xff]
      %v3541 = vld [vmem:[%s3518 + $0xb0] sm:$0xff]
      %v3542 = vld [vmem:[%s3518 + $0xb8] sm:$0xff]
      %v3543 = vld [vmem:[%s3518 + $0xc0] sm:$0xff]
      %v3544 = vld [vmem:[%s3518 + $0xc8] sm:$0xff]
      %v3545 = vld [vmem:[%s3518 + $0xd0] sm:$0xff]
      %v3546 = vld [vmem:[%s3518 + $0xd8] sm:$0xff]
      %v3547 = vld [vmem:[%s3518 + $0xe0] sm:$0xff]
      %v3548 = vld [vmem:[%s3518 + $0xe8] sm:$0xff]
      %v3549 = vld [vmem:[%s3518 + $0xf0] sm:$0xff]
      %v3550 = vld [vmem:[%s3518 + $0xf8] sm:$0xff]
      %v3551 = vpack.c.bf16 %v3517, %v3516
      %s3552 = scalar_lea.vmem %s33, 4
      %v3553 = vld [vmem:[%s3552] sm:$0xf]
      %v3555 = vlaneseq
      %v3556 = vshrl.u32 %v3555, 7
      %v3557 = vsub.s32 0, %v3556
      %v3558 = vrot.slane %v3553, %v3557
      %v3559 = vlaneseq
      %v3560 = vshrl.u32 %v3559, 7
      %v3561 = vsub.s32 1, %v3560
      %v3562 = vrot.slane %v3553, %v3561
      %v3563 = vlaneseq
      %v3564 = vshrl.u32 %v3563, 7
      %v3565 = vsub.s32 2, %v3564
      %v3566 = vrot.slane %v3553, %v3565
      %v3567 = vlaneseq
      %v3568 = vshrl.u32 %v3567, 7
      %v3569 = vsub.s32 3, %v3568
      %v3570 = vrot.slane %v3553, %v3569
      %v3607 = vunpack.c.l.b16 %v3519
      %v3608 = vunpack.c.h.b16 %v3519
      %v3609 = vunpack.c.l.b16 %v3520
      %v3610 = vunpack.c.h.b16 %v3520
      %v3611 = vunpack.c.l.b16 %v3521
      %v3612 = vunpack.c.h.b16 %v3521
      %v3613 = vunpack.c.l.b16 %v3522
      %v3614 = vunpack.c.h.b16 %v3522
      %v3615 = vunpack.c.l.b16 %v3523
      %v3616 = vunpack.c.h.b16 %v3523
      %v3617 = vunpack.c.l.b16 %v3524
      %v3618 = vunpack.c.h.b16 %v3524
      %v3619 = vunpack.c.l.b16 %v3525
      %v3620 = vunpack.c.h.b16 %v3525
      %v3621 = vunpack.c.l.b16 %v3526
      %v3622 = vunpack.c.h.b16 %v3526
      %v3623 = vunpack.c.l.b16 %v3527
      %v3624 = vunpack.c.h.b16 %v3527
      %v3625 = vunpack.c.l.b16 %v3528
      %v3626 = vunpack.c.h.b16 %v3528
      %v3627 = vunpack.c.l.b16 %v3529
      %v3628 = vunpack.c.h.b16 %v3529
      %v3629 = vunpack.c.l.b16 %v3530
      %v3630 = vunpack.c.h.b16 %v3530
      %v3631 = vunpack.c.l.b16 %v3531
      %v3632 = vunpack.c.h.b16 %v3531
      %v3633 = vunpack.c.l.b16 %v3532
      %v3634 = vunpack.c.h.b16 %v3532
      %v3635 = vunpack.c.l.b16 %v3533
      %v3636 = vunpack.c.h.b16 %v3533
      %v3637 = vunpack.c.l.b16 %v3534
      %v3638 = vunpack.c.h.b16 %v3534
      %v3639 = vunpack.c.l.b16 %v3535
      %v3640 = vunpack.c.h.b16 %v3535
      %v3641 = vunpack.c.l.b16 %v3536
      %v3642 = vunpack.c.h.b16 %v3536
      %v3643 = vunpack.c.l.b16 %v3537
      %v3644 = vunpack.c.h.b16 %v3537
      %v3645 = vunpack.c.l.b16 %v3538
      %v3646 = vunpack.c.h.b16 %v3538
      %v3647 = vunpack.c.l.b16 %v3539
      %v3648 = vunpack.c.h.b16 %v3539
      %v3649 = vunpack.c.l.b16 %v3540
      %v3650 = vunpack.c.h.b16 %v3540
      %v3651 = vunpack.c.l.b16 %v3541
      %v3652 = vunpack.c.h.b16 %v3541
      %v3653 = vunpack.c.l.b16 %v3542
      %v3654 = vunpack.c.h.b16 %v3542
      %v3655 = vunpack.c.l.b16 %v3543
      %v3656 = vunpack.c.h.b16 %v3543
      %v3657 = vunpack.c.l.b16 %v3544
      %v3658 = vunpack.c.h.b16 %v3544
      %v3659 = vunpack.c.l.b16 %v3545
      %v3660 = vunpack.c.h.b16 %v3545
      %v3661 = vunpack.c.l.b16 %v3546
      %v3662 = vunpack.c.h.b16 %v3546
      %v3663 = vunpack.c.l.b16 %v3547
      %v3664 = vunpack.c.h.b16 %v3547
      %v3665 = vunpack.c.l.b16 %v3548
      %v3666 = vunpack.c.h.b16 %v3548
      %v3667 = vunpack.c.l.b16 %v3549
      %v3668 = vunpack.c.h.b16 %v3549
      %v3669 = vunpack.c.l.b16 %v3550
      %v3670 = vunpack.c.h.b16 %v3550
      %v3671 = vpack.c.b16 %v3611, %v3607
      %v3672 = vpack.c.b16 %v3612, %v3608
      %v3673 = vpack.c.b16 %v3613, %v3609
      %v3674 = vpack.c.b16 %v3614, %v3610
      %v3675 = vpack.c.b16 %v3619, %v3615
      %v3676 = vpack.c.b16 %v3620, %v3616
      %v3677 = vpack.c.b16 %v3621, %v3617
      %v3678 = vpack.c.b16 %v3622, %v3618
      %v3679 = vpack.c.b16 %v3627, %v3623
      %v3680 = vpack.c.b16 %v3628, %v3624
      %v3681 = vpack.c.b16 %v3629, %v3625
      %v3682 = vpack.c.b16 %v3630, %v3626
      %v3683 = vpack.c.b16 %v3635, %v3631
      %v3684 = vpack.c.b16 %v3636, %v3632
      %v3685 = vpack.c.b16 %v3637, %v3633
      %v3686 = vpack.c.b16 %v3638, %v3634
      %v3687 = vpack.c.b16 %v3643, %v3639
      %v3688 = vpack.c.b16 %v3644, %v3640
      %v3689 = vpack.c.b16 %v3645, %v3641
      %v3690 = vpack.c.b16 %v3646, %v3642
      %v3691 = vpack.c.b16 %v3651, %v3647
      %v3692 = vpack.c.b16 %v3652, %v3648
      %v3693 = vpack.c.b16 %v3653, %v3649
      %v3694 = vpack.c.b16 %v3654, %v3650
      %v3695 = vpack.c.b16 %v3659, %v3655
      %v3696 = vpack.c.b16 %v3660, %v3656
      %v3697 = vpack.c.b16 %v3661, %v3657
      %v3698 = vpack.c.b16 %v3662, %v3658
      %v3699 = vpack.c.b16 %v3667, %v3663
      %v3700 = vpack.c.b16 %v3668, %v3664
      %v3701 = vpack.c.b16 %v3669, %v3665
      %v3702 = vpack.c.b16 %v3670, %v3666
      %3735 = vmatprep.subr.bf16.mxu0 %v3672
      %3736 = vmatpush1.bf16.msra.mxu0 %v3671
      %3737 = vmatprep.subr.bf16.mxu0 %v3676
      %3738 = vmatpush1.bf16.msra.mxu0 %v3675
      %3739 = vmatprep.subr.bf16.mxu0 %v3680
      %3740 = vmatpush1.bf16.msra.mxu0 %v3679
      %3741 = vmatprep.subr.bf16.mxu0 %v3684
      %3742 = vmatpush1.bf16.msra.mxu0 %v3683
      %3743 = vmatprep.subr.bf16.mxu0 %v3688
      %3744 = vmatpush1.bf16.msra.mxu0 %v3687
      %3745 = vmatprep.subr.bf16.mxu0 %v3692
      %3746 = vmatpush1.bf16.msra.mxu0 %v3691
      %3747 = vmatprep.subr.bf16.mxu0 %v3696
      %3748 = vmatpush1.bf16.msra.mxu0 %v3695
      %3749 = vmatprep.subr.bf16.mxu0 %v3700
      %3750 = vmatpush1.bf16.msra.mxu0 %v3699
      %3751 = vmatprep.subr.bf16.mxu0 0
      %3752 = vmatpush1.bf16.msra.mxu0 0
      %3753 = vmatprep.subr.bf16.mxu0 0
      %3754 = vmatpush1.bf16.msra.mxu0 0
      %3755 = vmatprep.subr.bf16.mxu0 0
      %3756 = vmatpush1.bf16.msra.mxu0 0
      %3757 = vmatprep.subr.bf16.mxu0 0
      %3758 = vmatpush1.bf16.msra.mxu0 0
      %3759 = vmatprep.subr.bf16.mxu0 0
      %3760 = vmatpush1.bf16.msra.mxu0 0
      %3761 = vmatprep.subr.bf16.mxu0 0
      %3762 = vmatpush1.bf16.msra.mxu0 0
      %3763 = vmatprep.subr.bf16.mxu0 0
      %3764 = vmatpush1.bf16.msra.mxu0 0
      %3765 = vmatprep.subr.bf16.mxu0 0
      %3766 = vmatpush1.bf16.msra.mxu0 0
      %3767 = vmatprep.mubr.bf16.mxu0 0
      %3768 = vmatmul.mubr.bf16.gmra.mrb[0].mxu0 %v3551
      %v3769 = vpop.f32.mrb[0].mxu0
      %v3770 = vadd.f32 %v3558, %v3769
      %v3771 = vpop.f32.mrb[0].mxu0
      %v3772 = vadd.f32 %v3562, %v3771
      %v3773 = vpop.f32.mrb[0].mxu0
      %v3774 = vadd.f32 %v3558, %v3773
      %v3775 = vpop.f32.mrb[0].mxu0
      %v3776 = vadd.f32 %v3562, %v3775
      %3777 = vdwg.mxu0
      %3778 = vmatprep.subr.bf16.mxu0 %v3674
      %3779 = vmatpush1.bf16.msra.mxu0 %v3673
      %3780 = vmatprep.subr.bf16.mxu0 %v3678
      %3781 = vmatpush1.bf16.msra.mxu0 %v3677
      %3782 = vmatprep.subr.bf16.mxu0 %v3682
      %3783 = vmatpush1.bf16.msra.mxu0 %v3681
      %3784 = vmatprep.subr.bf16.mxu0 %v3686
      %3785 = vmatpush1.bf16.msra.mxu0 %v3685
      %3786 = vmatprep.subr.bf16.mxu0 %v3690
      %3787 = vmatpush1.bf16.msra.mxu0 %v3689
      %3788 = vmatprep.subr.bf16.mxu0 %v3694
      %3789 = vmatpush1.bf16.msra.mxu0 %v3693
      %3790 = vmatprep.subr.bf16.mxu0 %v3698
      %3791 = vmatpush1.bf16.msra.mxu0 %v3697
      %3792 = vmatprep.subr.bf16.mxu0 %v3702
      %3793 = vmatpush1.bf16.msra.mxu0 %v3701
      %3794 = vmatprep.subr.bf16.mxu0 0
      %3795 = vmatpush1.bf16.msra.mxu0 0
      %3796 = vmatprep.subr.bf16.mxu0 0
      %3797 = vmatpush1.bf16.msra.mxu0 0
      %3798 = vmatprep.subr.bf16.mxu0 0
      %3799 = vmatpush1.bf16.msra.mxu0 0
      %3800 = vmatprep.subr.bf16.mxu0 0
      %3801 = vmatpush1.bf16.msra.mxu0 0
      %3802 = vmatprep.subr.bf16.mxu0 0
      %3803 = vmatpush1.bf16.msra.mxu0 0
      %3804 = vmatprep.subr.bf16.mxu0 0
      %3805 = vmatpush1.bf16.msra.mxu0 0
      %3806 = vmatprep.subr.bf16.mxu0 0
      %3807 = vmatpush1.bf16.msra.mxu0 0
      %3808 = vmatprep.subr.bf16.mxu0 0
      %3809 = vmatpush1.bf16.msra.mxu0 0
      %3810 = vmatprep.mubr.bf16.mxu0 0
      %3811 = vmatmul.mubr.bf16.gmra.mrb[0].mxu0 %v3551
      %v3812 = vpop.f32.mrb[0].mxu0
      %v3813 = vadd.f32 %v3566, %v3812
      %v3814 = vpop.f32.mrb[0].mxu0
      %v3815 = vadd.f32 %v3570, %v3814
      %v3816 = vpop.f32.mrb[0].mxu0
      %v3817 = vadd.f32 %v3566, %v3816
      %v3818 = vpop.f32.mrb[0].mxu0
      %v3819 = vadd.f32 %v3570, %v3818
      %3820 = vdwg.mxu0
      %v3821 = vmul.f32 %v3770, %v3770
      %v3822 = vmul.f32 %v3772, %v3772
      %v3823 = vmul.f32 %v3813, %v3813
      %v3824 = vmul.f32 %v3815, %v3815
      %v3825 = vmul.f32 %v3774, %v3774
      %v3826 = vmul.f32 %v3776, %v3776
      %v3827 = vmul.f32 %v3817, %v3817
      %v3828 = vmul.f32 %v3819, %v3819
      %v3829 = vmul.f32 %v3770, %v3821
      %v3830 = vmul.f32 %v3772, %v3822
      %v3831 = vmul.f32 %v3813, %v3823
      %v3832 = vmul.f32 %v3815, %v3824
      %v3833 = vmul.f32 %v3774, %v3825
      %v3834 = vmul.f32 %v3776, %v3826
      %v3835 = vmul.f32 %v3817, %v3827
      %v3836 = vmul.f32 %v3819, %v3828
      %v3837 = vmul.f32 %v3829, 0.044715
      %v3838 = vmul.f32 %v3830, 0.044715
      %v3839 = vmul.f32 %v3831, 0.044715
      %v3840 = vmul.f32 %v3832, 0.044715
      %v3841 = vmul.f32 %v3833, 0.044715
      %v3842 = vmul.f32 %v3834, 0.044715
      %v3843 = vmul.f32 %v3835, 0.044715
      %v3844 = vmul.f32 %v3836, 0.044715
      %v3845 = vadd.f32 %v3770, %v3837
      %v3846 = vadd.f32 %v3772, %v3838
      %v3847 = vadd.f32 %v3813, %v3839
      %v3848 = vadd.f32 %v3815, %v3840
      %v3849 = vadd.f32 %v3774, %v3841
      %v3850 = vadd.f32 %v3776, %v3842
      %v3851 = vadd.f32 %v3817, %v3843
      %v3852 = vadd.f32 %v3819, %v3844
      %v3853 = vmul.f32 %v3845, 0.7978846
      %v3854 = vmul.f32 %v3846, 0.7978846
      %v3855 = vmul.f32 %v3847, 0.7978846
      %v3856 = vmul.f32 %v3848, 0.7978846
      %v3857 = vmul.f32 %v3849, 0.7978846
      %v3858 = vmul.f32 %v3850, 0.7978846
      %v3859 = vmul.f32 %v3851, 0.7978846
      %v3860 = vmul.f32 %v3852, 0.7978846
      %v3861 = vtanh.pop %v3853
      %v3862 = vtanh.pop %v3854
      %v3863 = vtanh.pop %v3855
      %v3864 = vtanh.pop %v3856
      %v3865 = vtanh.pop %v3857
      %v3866 = vtanh.pop %v3858
      %v3867 = vtanh.pop %v3859
      %v3868 = vtanh.pop %v3860
      %v3869 = vadd.f32 %v3861, 1.0
      %v3870 = vadd.f32 %v3862, 1.0
      %v3871 = vadd.f32 %v3863, 1.0
      %v3872 = vadd.f32 %v3864, 1.0
      %v3873 = vadd.f32 %v3865, 1.0
      %v3874 = vadd.f32 %v3866, 1.0
      %v3875 = vadd.f32 %v3867, 1.0
      %v3876 = vadd.f32 %v3868, 1.0
      %v3877 = vmul.f32 %v3869, 0.5
      %v3878 = vmul.f32 %v3870, 0.5
      %v3879 = vmul.f32 %v3871, 0.5
      %v3880 = vmul.f32 %v3872, 0.5
      %v3881 = vmul.f32 %v3873, 0.5
      %v3882 = vmul.f32 %v3874, 0.5
      %v3883 = vmul.f32 %v3875, 0.5
      %v3884 = vmul.f32 %v3876, 0.5
      %v3885 = vmul.f32 %v3770, %v3877
      %v3886 = vmul.f32 %v3772, %v3878
      %v3887 = vmul.f32 %v3813, %v3879
      %v3888 = vmul.f32 %v3815, %v3880
      %v3889 = vmul.f32 %v3774, %v3881
      %v3890 = vmul.f32 %v3776, %v3882
      %v3891 = vmul.f32 %v3817, %v3883
      %v3892 = vmul.f32 %v3819, %v3884
      %s3893 = scalar_lea.vmem %s35, 256
      %v3894 = vld [vmem:[%s3893] sm:$0xf]
      %v3895 = vld [vmem:[%s3893 + $0x4] sm:$0xf]
      %v3896 = vld [vmem:[%s3893 + $0x8] sm:$0xf]
      %v3897 = vld [vmem:[%s3893 + $0xc] sm:$0xf]
      %v3898 = vld [vmem:[%s3893 + $0x10] sm:$0xf]
      %v3899 = vld [vmem:[%s3893 + $0x14] sm:$0xf]
      %v3900 = vld [vmem:[%s3893 + $0x18] sm:$0xf]
      %v3901 = vld [vmem:[%s3893 + $0x1c] sm:$0xf]
      %v3902 = vld [vmem:[%s3893 + $0x20] sm:$0xf]
      %v3903 = vld [vmem:[%s3893 + $0x24] sm:$0xf]
      %v3904 = vld [vmem:[%s3893 + $0x28] sm:$0xf]
      %v3905 = vld [vmem:[%s3893 + $0x2c] sm:$0xf]
      %v3906 = vld [vmem:[%s3893 + $0x30] sm:$0xf]
      %v3907 = vld [vmem:[%s3893 + $0x34] sm:$0xf]
      %v3908 = vld [vmem:[%s3893 + $0x38] sm:$0xf]
      %v3909 = vld [vmem:[%s3893 + $0x3c] sm:$0xf]
      %v3910 = vld [vmem:[%s3893 + $0x40] sm:$0xf]
      %v3911 = vld [vmem:[%s3893 + $0x44] sm:$0xf]
      %v3912 = vld [vmem:[%s3893 + $0x48] sm:$0xf]
      %v3913 = vld [vmem:[%s3893 + $0x4c] sm:$0xf]
      %v3914 = vld [vmem:[%s3893 + $0x50] sm:$0xf]
      %v3915 = vld [vmem:[%s3893 + $0x54] sm:$0xf]
      %v3916 = vld [vmem:[%s3893 + $0x58] sm:$0xf]
      %v3917 = vld [vmem:[%s3893 + $0x5c] sm:$0xf]
      %v3918 = vld [vmem:[%s3893 + $0x60] sm:$0xf]
      %v3919 = vld [vmem:[%s3893 + $0x64] sm:$0xf]
      %v3920 = vld [vmem:[%s3893 + $0x68] sm:$0xf]
      %v3921 = vld [vmem:[%s3893 + $0x6c] sm:$0xf]
      %v3922 = vld [vmem:[%s3893 + $0x70] sm:$0xf]
      %v3923 = vld [vmem:[%s3893 + $0x74] sm:$0xf]
      %v3924 = vld [vmem:[%s3893 + $0x78] sm:$0xf]
      %v3925 = vld [vmem:[%s3893 + $0x7c] sm:$0xf]
      %v3926 = vld [vmem:[%s3893 + $0x80] sm:$0xf]
      %v3927 = vld [vmem:[%s3893 + $0x84] sm:$0xf]
      %v3928 = vld [vmem:[%s3893 + $0x88] sm:$0xf]
      %v3929 = vld [vmem:[%s3893 + $0x8c] sm:$0xf]
      %v3930 = vld [vmem:[%s3893 + $0x90] sm:$0xf]
      %v3931 = vld [vmem:[%s3893 + $0x94] sm:$0xf]
      %v3932 = vld [vmem:[%s3893 + $0x98] sm:$0xf]
      %v3933 = vld [vmem:[%s3893 + $0x9c] sm:$0xf]
      %v3934 = vld [vmem:[%s3893 + $0xa0] sm:$0xf]
      %v3935 = vld [vmem:[%s3893 + $0xa4] sm:$0xf]
      %v3936 = vld [vmem:[%s3893 + $0xa8] sm:$0xf]
      %v3937 = vld [vmem:[%s3893 + $0xac] sm:$0xf]
      %v3938 = vld [vmem:[%s3893 + $0xb0] sm:$0xf]
      %v3939 = vld [vmem:[%s3893 + $0xb4] sm:$0xf]
      %v3940 = vld [vmem:[%s3893 + $0xb8] sm:$0xf]
      %v3941 = vld [vmem:[%s3893 + $0xbc] sm:$0xf]
      %v3942 = vld [vmem:[%s3893 + $0xc0] sm:$0xf]
      %v3943 = vld [vmem:[%s3893 + $0xc4] sm:$0xf]
      %v3944 = vld [vmem:[%s3893 + $0xc8] sm:$0xf]
      %v3945 = vld [vmem:[%s3893 + $0xcc] sm:$0xf]
      %v3946 = vld [vmem:[%s3893 + $0xd0] sm:$0xf]
      %v3947 = vld [vmem:[%s3893 + $0xd4] sm:$0xf]
      %v3948 = vld [vmem:[%s3893 + $0xd8] sm:$0xf]
      %v3949 = vld [vmem:[%s3893 + $0xdc] sm:$0xf]
      %v3950 = vld [vmem:[%s3893 + $0xe0] sm:$0xf]
      %v3951 = vld [vmem:[%s3893 + $0xe4] sm:$0xf]
      %v3952 = vld [vmem:[%s3893 + $0xe8] sm:$0xf]
      %v3953 = vld [vmem:[%s3893 + $0xec] sm:$0xf]
      %v3954 = vld [vmem:[%s3893 + $0xf0] sm:$0xf]
      %v3955 = vld [vmem:[%s3893 + $0xf4] sm:$0xf]
      %v3956 = vld [vmem:[%s3893 + $0xf8] sm:$0xf]
      %v3957 = vld [vmem:[%s3893 + $0xfc] sm:$0xf]
      %v3958 = vpack.c.bf16 %v3889, %v3885
      %v3959 = vpack.c.bf16 %v3890, %v3886
      %v3960 = vpack.c.bf16 %v3891, %v3887
      %v3961 = vpack.c.bf16 %v3892, %v3888
      %v4026 = vunpack.c.l.b16 %v3894
      %v4027 = vunpack.c.l.b16 %v3895
      %v4028 = vunpack.c.l.b16 %v3896
      %v4029 = vunpack.c.l.b16 %v3897
      %v4030 = vunpack.c.l.b16 %v3898
      %v4031 = vunpack.c.l.b16 %v3899
      %v4032 = vunpack.c.l.b16 %v3900
      %v4033 = vunpack.c.l.b16 %v3901
      %v4034 = vunpack.c.l.b16 %v3902
      %v4035 = vunpack.c.l.b16 %v3903
      %v4036 = vunpack.c.l.b16 %v3904
      %v4037 = vunpack.c.l.b16 %v3905
      %v4038 = vunpack.c.l.b16 %v3906
      %v4039 = vunpack.c.l.b16 %v3907
      %v4040 = vunpack.c.l.b16 %v3908
      %v4041 = vunpack.c.l.b16 %v3909
      %v4042 = vunpack.c.l.b16 %v3910
      %v4043 = vunpack.c.l.b16 %v3911
      %v4044 = vunpack.c.l.b16 %v3912
      %v4045 = vunpack.c.l.b16 %v3913
      %v4046 = vunpack.c.l.b16 %v3914
      %v4047 = vunpack.c.l.b16 %v3915
      %v4048 = vunpack.c.l.b16 %v3916
      %v4049 = vunpack.c.l.b16 %v3917
      %v4050 = vunpack.c.l.b16 %v3918
      %v4051 = vunpack.c.l.b16 %v3919
      %v4052 = vunpack.c.l.b16 %v3920
      %v4053 = vunpack.c.l.b16 %v3921
      %v4054 = vunpack.c.l.b16 %v3922
      %v4055 = vunpack.c.l.b16 %v3923
      %v4056 = vunpack.c.l.b16 %v3924
      %v4057 = vunpack.c.l.b16 %v3925
      %v4058 = vunpack.c.l.b16 %v3926
      %v4059 = vunpack.c.l.b16 %v3927
      %v4060 = vunpack.c.l.b16 %v3928
      %v4061 = vunpack.c.l.b16 %v3929
      %v4062 = vunpack.c.l.b16 %v3930
      %v4063 = vunpack.c.l.b16 %v3931
      %v4064 = vunpack.c.l.b16 %v3932
      %v4065 = vunpack.c.l.b16 %v3933
      %v4066 = vunpack.c.l.b16 %v3934
      %v4067 = vunpack.c.l.b16 %v3935
      %v4068 = vunpack.c.l.b16 %v3936
      %v4069 = vunpack.c.l.b16 %v3937
      %v4070 = vunpack.c.l.b16 %v3938
      %v4071 = vunpack.c.l.b16 %v3939
      %v4072 = vunpack.c.l.b16 %v3940
      %v4073 = vunpack.c.l.b16 %v3941
      %v4074 = vunpack.c.l.b16 %v3942
      %v4075 = vunpack.c.l.b16 %v3943
      %v4076 = vunpack.c.l.b16 %v3944
      %v4077 = vunpack.c.l.b16 %v3945
      %v4078 = vunpack.c.l.b16 %v3946
      %v4079 = vunpack.c.l.b16 %v3947
      %v4080 = vunpack.c.l.b16 %v3948
      %v4081 = vunpack.c.l.b16 %v3949
      %v4082 = vunpack.c.l.b16 %v3950
      %v4083 = vunpack.c.l.b16 %v3951
      %v4084 = vunpack.c.l.b16 %v3952
      %v4085 = vunpack.c.l.b16 %v3953
      %v4086 = vunpack.c.l.b16 %v3954
      %v4087 = vunpack.c.l.b16 %v3955
      %v4088 = vunpack.c.l.b16 %v3956
      %v4089 = vunpack.c.l.b16 %v3957
      %v4090 = vpack.c.b16 %v4027, %v4026
      %v4091 = vpack.c.b16 %v4029, %v4028
      %v4092 = vpack.c.b16 %v4031, %v4030
      %v4093 = vpack.c.b16 %v4033, %v4032
      %v4094 = vpack.c.b16 %v4035, %v4034
      %v4095 = vpack.c.b16 %v4037, %v4036
      %v4096 = vpack.c.b16 %v4039, %v4038
      %v4097 = vpack.c.b16 %v4041, %v4040
      %v4098 = vpack.c.b16 %v4043, %v4042
      %v4099 = vpack.c.b16 %v4045, %v4044
      %v4100 = vpack.c.b16 %v4047, %v4046
      %v4101 = vpack.c.b16 %v4049, %v4048
      %v4102 = vpack.c.b16 %v4051, %v4050
      %v4103 = vpack.c.b16 %v4053, %v4052
      %v4104 = vpack.c.b16 %v4055, %v4054
      %v4105 = vpack.c.b16 %v4057, %v4056
      %v4106 = vpack.c.b16 %v4059, %v4058
      %v4107 = vpack.c.b16 %v4061, %v4060
      %v4108 = vpack.c.b16 %v4063, %v4062
      %v4109 = vpack.c.b16 %v4065, %v4064
      %v4110 = vpack.c.b16 %v4067, %v4066
      %v4111 = vpack.c.b16 %v4069, %v4068
      %v4112 = vpack.c.b16 %v4071, %v4070
      %v4113 = vpack.c.b16 %v4073, %v4072
      %v4114 = vpack.c.b16 %v4075, %v4074
      %v4115 = vpack.c.b16 %v4077, %v4076
      %v4116 = vpack.c.b16 %v4079, %v4078
      %v4117 = vpack.c.b16 %v4081, %v4080
      %v4118 = vpack.c.b16 %v4083, %v4082
      %v4119 = vpack.c.b16 %v4085, %v4084
      %v4120 = vpack.c.b16 %v4087, %v4086
      %v4121 = vpack.c.b16 %v4089, %v4088
      %4154 = vmatprep.subr.bf16.mxu0 0
      %4155 = vmatpush1.bf16.msra.mxu0 %v4090
      %4156 = vmatprep.subr.bf16.mxu0 0
      %4157 = vmatpush1.bf16.msra.mxu0 %v4091
      %4158 = vmatprep.subr.bf16.mxu0 0
      %4159 = vmatpush1.bf16.msra.mxu0 %v4092
      %4160 = vmatprep.subr.bf16.mxu0 0
      %4161 = vmatpush1.bf16.msra.mxu0 %v4093
      %4162 = vmatprep.subr.bf16.mxu0 0
      %4163 = vmatpush1.bf16.msra.mxu0 %v4094
      %4164 = vmatprep.subr.bf16.mxu0 0
      %4165 = vmatpush1.bf16.msra.mxu0 %v4095
      %4166 = vmatprep.subr.bf16.mxu0 0
      %4167 = vmatpush1.bf16.msra.mxu0 %v4096
      %4168 = vmatprep.subr.bf16.mxu0 0
      %4169 = vmatpush1.bf16.msra.mxu0 %v4097
      %4170 = vmatprep.subr.bf16.mxu0 0
      %4171 = vmatpush1.bf16.msra.mxu0 %v4098
      %4172 = vmatprep.subr.bf16.mxu0 0
      %4173 = vmatpush1.bf16.msra.mxu0 %v4099
      %4174 = vmatprep.subr.bf16.mxu0 0
      %4175 = vmatpush1.bf16.msra.mxu0 %v4100
      %4176 = vmatprep.subr.bf16.mxu0 0
      %4177 = vmatpush1.bf16.msra.mxu0 %v4101
      %4178 = vmatprep.subr.bf16.mxu0 0
      %4179 = vmatpush1.bf16.msra.mxu0 %v4102
      %4180 = vmatprep.subr.bf16.mxu0 0
      %4181 = vmatpush1.bf16.msra.mxu0 %v4103
      %4182 = vmatprep.subr.bf16.mxu0 0
      %4183 = vmatpush1.bf16.msra.mxu0 %v4104
      %4184 = vmatprep.subr.bf16.mxu0 0
      %4185 = vmatpush1.bf16.msra.mxu0 %v4105
      %4186 = vmatprep.mubr.bf16.mxu0 %v3959
      %4187 = vmatmul.mubr.bf16.gmra.mrb[0].mxu0 %v3958
      %v4188 = vpop.f32.mrb[0].mxu0
      %v4189 = vadd.f32 0.0, %v4188
      %v4190 = vpop.f32.mrb[0].mxu0
      %v4191 = vpop.f32.mrb[0].mxu0
      %v4192 = vadd.f32 0.0, %v4191
      %v4193 = vpop.f32.mrb[0].mxu0
      %4194 = vdwg.mxu0
      %4195 = vmatprep.subr.bf16.mxu0 0
      %4196 = vmatpush1.bf16.msra.mxu0 %v4106
      %4197 = vmatprep.subr.bf16.mxu0 0
      %4198 = vmatpush1.bf16.msra.mxu0 %v4107
      %4199 = vmatprep.subr.bf16.mxu0 0
      %4200 = vmatpush1.bf16.msra.mxu0 %v4108
      %4201 = vmatprep.subr.bf16.mxu0 0
      %4202 = vmatpush1.bf16.msra.mxu0 %v4109
      %4203 = vmatprep.subr.bf16.mxu0 0
      %4204 = vmatpush1.bf16.msra.mxu0 %v4110
      %4205 = vmatprep.subr.bf16.mxu0 0
      %4206 = vmatpush1.bf16.msra.mxu0 %v4111
      %4207 = vmatprep.subr.bf16.mxu0 0
      %4208 = vmatpush1.bf16.msra.mxu0 %v4112
      %4209 = vmatprep.subr.bf16.mxu0 0
      %4210 = vmatpush1.bf16.msra.mxu0 %v4113
      %4211 = vmatprep.subr.bf16.mxu0 0
      %4212 = vmatpush1.bf16.msra.mxu0 %v4114
      %4213 = vmatprep.subr.bf16.mxu0 0
      %4214 = vmatpush1.bf16.msra.mxu0 %v4115
      %4215 = vmatprep.subr.bf16.mxu0 0
      %4216 = vmatpush1.bf16.msra.mxu0 %v4116
      %4217 = vmatprep.subr.bf16.mxu0 0
      %4218 = vmatpush1.bf16.msra.mxu0 %v4117
      %4219 = vmatprep.subr.bf16.mxu0 0
      %4220 = vmatpush1.bf16.msra.mxu0 %v4118
      %4221 = vmatprep.subr.bf16.mxu0 0
      %4222 = vmatpush1.bf16.msra.mxu0 %v4119
      %4223 = vmatprep.subr.bf16.mxu0 0
      %4224 = vmatpush1.bf16.msra.mxu0 %v4120
      %4225 = vmatprep.subr.bf16.mxu0 0
      %4226 = vmatpush1.bf16.msra.mxu0 %v4121
      %4227 = vmatprep.mubr.bf16.mxu0 %v3961
      %4228 = vmatmul.mubr.bf16.gmra.mrb[0].mxu0 %v3960
      %v4229 = vpop.f32.mrb[0].mxu0
      %v4230 = vadd.f32 %v4189, %v4229
      %v4231 = vpop.f32.mrb[0].mxu0
      %v4232 = vpop.f32.mrb[0].mxu0
      %v4233 = vadd.f32 %v4192, %v4232
      %v4234 = vpop.f32.mrb[0].mxu0
      %4235 = vdwg.mxu0
      %v4236 = vadd.f32 %v3474, %v4230
      %v4237 = vadd.f32 %v3475, %v4233
      %s4238 = scalar_lea.vmem %s37, 1
      %v4239 = vld [vmem:[%s4238] sm:$0x1]
      %v4241 = vlaneseq
      %v4242 = vshrl.u32 %v4241, 7
      %v4243 = vsub.s32 0, %v4242
      %v4244 = vrot.slane %v4239, %v4243
      %v4246 = vadd.f32 %v4236, %v4244
      %v4247 = vadd.f32 %v4237, %v4244
      %v4248 = vld [vmem:[%s39] sm:$0x1]
      %v4249 = vld [vmem:[%s41] sm:$0x1]
      %4250 = vadd.xlane.f32.xlu0 %v4246
      %v4251 = vpop.xlane.xlu0 %4250
      %4252 = vadd.xlane.f32.xlu0 %v4247
      %v4253 = vpop.xlane.xlu0 %4252
      %v4254 = vmul.f32 %v4251, %v1262
      %v4255 = vmul.f32 %v4253, %v1262
      %v4256 = vsub.f32 %v4246, %v4254
      %v4257 = vsub.f32 %v4247, %v4255
      %v4258 = vmul.f32 %v4256, %v4256
      %v4259 = vmul.f32 %v4257, %v4257
      %4260 = vadd.xlane.f32.xlu0 %v4258
      %v4261 = vpop.xlane.xlu0 %4260
      %4262 = vadd.xlane.f32.xlu0 %v4259
      %v4263 = vpop.xlane.xlu0 %4262
      %v4264 = vmul.f32 %v4261, %v1262
      %v4265 = vmul.f32 %v4263, %v1262
      %v4266 = vadd.f32 %v4264, 1e-05
      %v4267 = vadd.f32 %v4265, 1e-05
      %v4268 = vrsqrt.pop %v4266
      %v4269 = vrsqrt.pop %v4267
      %v4270 = vmul.f32 %v4256, %v4268
      %v4271 = vmul.f32 %v4257, %v4269
      %v4273 = vlaneseq
      %v4274 = vshrl.u32 %v4273, 7
      %v4275 = vsub.s32 0, %v4274
      %v4276 = vrot.slane %v4248, %v4275
      %v4278 = vmul.f32 %v4270, %v4276
      %v4279 = vmul.f32 %v4271, %v4276
      %v4281 = vlaneseq
      %v4282 = vshrl.u32 %v4281, 7
      %v4283 = vsub.s32 0, %v4282
      %v4284 = vrot.slane %v4249, %v4283
      %v4286 = vadd.f32 %v4278, %v4284
      %v4287 = vadd.f32 %v4279, %v4284
      %v4288 = vmul.f32 %v1030, %v1030
      %v4289 = vmul.f32 %v1031, %v1031
      %v4290 = vadd.f32 %v4288, 0.25
      %v4291 = vadd.f32 %v4289, 0.25
      %v4292 = vrsqrt.pop %v4290
      %v4293 = vrsqrt.pop %v4291
      %v4294 = vmul.f32 %v4292, %v4292
      %v4295 = vmul.f32 %v4293, %v4293
      %v4296 = vmul.f32 %v4294, 0.25
      %v4297 = vmul.f32 %v4295, 0.25
      %v4298 = vmul.f32 %v1030, 0.5
      %v4299 = vmul.f32 %v1031, 0.5
      %v4300 = vmul.f32 %v4298, %v4292
      %v4301 = vmul.f32 %v4299, %v4293
      %v4302 = vmax.f32 %v1030, 1e-20
      %v4303 = vmax.f32 %v1031, 1e-20
      %v4304 = vlog2.pop %v4302
      %v4305 = vmul.f32 %v4304, 0.6931472
      %v4306 = vlog2.pop %v4303
      %v4307 = vmul.f32 %v4306, 0.6931472
      %v4308 = vmul.f32 %v4305, 0.25
      %v4309 = vmul.f32 %v4307, 0.25
      %v4310 = vld [vmem:[%s43] sm:$0x1]
      %4312 = vset.pattern.permute.xlu0 0
      %4313 = vperm.xlu0 %4312, %v4308
      %v4314 = vpop.permute.xlu0 %4313
      %4317 = vset.pattern.permute.xlu0 0
      %4318 = vperm.xlu0 %4317, %v4309
      %v4319 = vpop.permute.xlu0 %4318
      %v4322 = vlaneseq
      %v4323 = vshrl.u32 %v4322, 7
      %v4324 = vsub.s32 0, %v4323
      %v4325 = vrot.slane %v4310, %v4324
      %v4327 = vmul.f32 %v4314, %v4325
      %v4328 = vmul.f32 %v4319, %v4325
      %v4329 = vmul.f32 %v4327, 6.2831855
      %v4330 = vmul.f32 %v4328, 6.2831855
      %v4331 = vld [vmem:[%s45] sm:$0x1]
      %v4333 = vlaneseq
      %v4334 = vshrl.u32 %v4333, 7
      %v4335 = vsub.s32 0, %v4334
      %v4336 = vrot.slane %v4331, %v4335
      %v4338 = vmul.f32 %v4314, %v4336
      %v4339 = vmul.f32 %v4319, %v4336
      %v4340 = vand.u32 2147483647, %v4329
      %vm4341 = vcmp.le.f32.partialorder %v4340, 0.7853982
      %vm4342 = vcmp.lt.s32.totalorder %v4329, 0
      %v4343 = vand.u32 %v4329, 2139095040
      %v4344 = vshrl.u32 %v4343, 23
      %v4345 = vsub.s32 %v4344, 127
      %v4346 = vand.u32 2147483647, %v4329
      %v4347 = vand.u32 %v4346, 8388607
      %v4348 = vor.u32 %v4347, 8388608
      %v4349 = vsub.s32 0, %v4348
      %v4350 = vadd.s32 %v4345, 1
      %vm4351 = vcmp.gt.s32.totalorder %v4350, 0
      %v4352 = vsel %vm4351, %v4350, 0
      %v4353 = vshrl.u32 %v4352, 5
      %v4354 = vand.u32 %v4352, 31
      %v4355 = vsub.s32 32, %v4354
      %v4356 = vshrl.u32 683565275, %v4355
      %v4357 = vshll.u32 683565275, %v4354
      %v4358 = vshrl.u32 2475754826, %v4355
      %v4359 = vor.u32 %v4357, %v4358
      %v4360 = vshll.u32 2475754826, %v4354
      %v4361 = vshrl.u32 2131351028, %v4355
      %v4362 = vor.u32 %v4360, %v4361
      %v4363 = vshll.u32 2131351028, %v4354
      %v4364 = vshrl.u32 2102212464, %v4355
      %v4365 = vor.u32 %v4363, %v4364
      %v4366 = vshll.u32 2102212464, %v4354
      %v4367 = vshrl.u32 920167782, %v4355
      %v4368 = vor.u32 %v4366, %v4367
      %v4369 = vshll.u32 920167782, %v4354
      %v4370 = vshrl.u32 1326507024, %v4355
      %v4371 = vor.u32 %v4369, %v4370
      %vm4372 = vcmp.lt.s32.totalorder %v4353, 1
      %vm4373 = vcmp.lt.s32.totalorder %v4353, 2
      %vm4374 = vcmp.lt.s32.totalorder %v4353, 3
      %vm4375 = vcmp.lt.s32.totalorder %v4353, 4
      %v4376 = vsel %vm4372, %v4356, %v4359
      %v4377 = vsel %vm4375, %v4365, 2102212464
      %v4378 = vsel %vm4374, %v4362, %v4377
      %v4379 = vsel %vm4373, %v4376, %v4378
      %v4380 = vsel %vm4372, %v4359, %v4362
      %v4381 = vsel %vm4375, %v4368, 920167782
      %v4382 = vsel %vm4374, %v4365, %v4381
      %v4383 = vsel %vm4373, %v4380, %v4382
      %v4384 = vsel %vm4372, %v4362, %v4365
      %v4385 = vsel %vm4375, %v4371, 1326507024
      %v4386 = vsel %vm4374, %v4368, %v4385
      %v4387 = vsel %vm4373, %v4384, %v4386
      %v4388 = vshll.u32 %v4348, 8
      %v4389 = vmul.u32.u64.compose %v4388, %v4387
      %v4390 = vextract.low.u32 %v4389
      %v4391 = vextract.high.u32 %v4389
      %v4392 = vmul.u32.u64.compose %v4388, %v4383
      %v4393 = vextract.low.u32 %v4392
      %v4394 = vextract.high.u32 %v4392
      %v4395 = vmul.u32 %v4388, %v4379
      %v4396 = vadd.s32 %v4391, %v4393
      %vm4397 = vc.u32 %v4391, %v4393
      %v4398 = vadd.s32 %v4394, 1
      %v4399 = vsel %vm4397, %v4398, %v4394
      %v4400 = vadd.s32 %v4395, %v4399
      %v4401 = vadd.s32 %v4400, 536870912
      %v4402 = vshrl.u32 %v4401, 30
      %v4403 = vshll.u32 %v4402, 30
      %v4404 = vsub.s32 %v4400, %v4403
      %vm4405 = vcmp.lt.s32.totalorder %v4404, 0
      %v4406 = vsub.s32 0, %v4404
      %v4407 = vsel %vm4405, %v4406, %v4404
      %v4408 = vclz %v4407
      %v4409 = vsub.s32 %v4408, 2
      %vm4410 = vcmp.gt.s32.totalorder 0, %v4409
      %v4411 = vsel %vm4410, 0, %v4409
      %v4412 = vsub.s32 32, %v4411
      %v4413 = vshll.u32 %v4404, %v4411
      %v4414 = vshrl.u32 %v4396, %v4412
      %v4415 = vor.u32 %v4413, %v4414
      %v4416 = vsub.s32 4294967266, %v4411
      %v4417 = vadd.s32 %v4416, 127
      %v4418 = vshll.u32 %v4417, 23
      %v4419 = vor.u32 4788187, %v4418
      %v4420 = vand.u32 2147483647, %v4419
      %v4422 = vcvt.s32.f32 %v4415
      %v4423 = vmul.f32 %v4422, %v4420
      %v4424 = vxor.u32 %v4423, 2147483648
      %v4425 = vsel %vm4342, %v4424, %v4423
      %v4426 = vsub.s32 4, %v4402
      %v4427 = vsel %vm4342, %v4426, %v4402
      %v4428 = vsel %vm4341, %v4329, %v4425
      %v4429 = vsel %vm4341, 0, %v4427
      %v4430 = vcosq.f32.pop %v4428
      %v4431 = vsinq.f32.pop %v4428
      %vm4432 = vweird.f32 %v4329
      %v4433 = vadd.s32 %v4429, 3
      %v4434 = vand.u32 %v4433, 3
      %vm4435 = vcmp.lt.s32.totalorder %v4434, 2
      %vm4436 = vcmp.eq.s32.totalorder %v4434, 0
      %v4437 = vxor.u32 %v4431, 2147483648
      %v4438 = vsel %vm4436, %v4430, %v4437
      %vm4439 = vcmp.eq.s32.totalorder %v4434, 2
      %v4440 = vxor.u32 %v4430, 2147483648
      %v4441 = vsel %vm4439, %v4440, %v4431
      %v4442 = vsel %vm4435, %v4438, %v4441
      %v4443 = vsel %vm4432, nan, %v4442
      %v4444 = vand.u32 2147483647, %v4330
      %vm4445 = vcmp.le.f32.partialorder %v4444, 0.7853982
      %vm4446 = vcmp.lt.s32.totalorder %v4330, 0
      %v4447 = vand.u32 %v4330, 2139095040
      %v4448 = vshrl.u32 %v4447, 23
      %v4449 = vsub.s32 %v4448, 127
      %v4450 = vand.u32 2147483647, %v4330
      %v4451 = vand.u32 %v4450, 8388607
      %v4452 = vor.u32 %v4451, 8388608
      %v4453 = vsub.s32 0, %v4452
      %v4454 = vadd.s32 %v4449, 1
      %vm4455 = vcmp.gt.s32.totalorder %v4454, 0
      %v4456 = vsel %vm4455, %v4454, 0
      %v4457 = vshrl.u32 %v4456, 5
      %v4458 = vand.u32 %v4456, 31
      %v4459 = vsub.s32 32, %v4458
      %v4460 = vshrl.u32 683565275, %v4459
      %v4461 = vshll.u32 683565275, %v4458
      %v4462 = vshrl.u32 2475754826, %v4459
      %v4463 = vor.u32 %v4461, %v4462
      %v4464 = vshll.u32 2475754826, %v4458
      %v4465 = vshrl.u32 2131351028, %v4459
      %v4466 = vor.u32 %v4464, %v4465
      %v4467 = vshll.u32 2131351028, %v4458
      %v4468 = vshrl.u32 2102212464, %v4459
      %v4469 = vor.u32 %v4467, %v4468
      %v4470 = vshll.u32 2102212464, %v4458
      %v4471 = vshrl.u32 920167782, %v4459
      %v4472 = vor.u32 %v4470, %v4471
      %v4473 = vshll.u32 920167782, %v4458
      %v4474 = vshrl.u32 1326507024, %v4459
      %v4475 = vor.u32 %v4473, %v4474
      %vm4476 = vcmp.lt.s32.totalorder %v4457, 1
      %vm4477 = vcmp.lt.s32.totalorder %v4457, 2
      %vm4478 = vcmp.lt.s32.totalorder %v4457, 3
      %vm4479 = vcmp.lt.s32.totalorder %v4457, 4
      %v4480 = vsel %vm4476, %v4460, %v4463
      %v4481 = vsel %vm4479, %v4469, 2102212464
      %v4482 = vsel %vm4478, %v4466, %v4481
      %v4483 = vsel %vm4477, %v4480, %v4482
      %v4484 = vsel %vm4476, %v4463, %v4466
      %v4485 = vsel %vm4479, %v4472, 920167782
      %v4486 = vsel %vm4478, %v4469, %v4485
      %v4487 = vsel %vm4477, %v4484, %v4486
      %v4488 = vsel %vm4476, %v4466, %v4469
      %v4489 = vsel %vm4479, %v4475, 1326507024
      %v4490 = vsel %vm4478, %v4472, %v4489
      %v4491 = vsel %vm4477, %v4488, %v4490
      %v4492 = vshll.u32 %v4452, 8
      %v4493 = vmul.u32.u64.compose %v4492, %v4491
      %v4494 = vextract.low.u32 %v4493
      %v4495 = vextract.high.u32 %v4493
      %v4496 = vmul.u32.u64.compose %v4492, %v4487
      %v4497 = vextract.low.u32 %v4496
      %v4498 = vextract.high.u32 %v4496
      %v4499 = vmul.u32 %v4492, %v4483
      %v4500 = vadd.s32 %v4495, %v4497
      %vm4501 = vc.u32 %v4495, %v4497
      %v4502 = vadd.s32 %v4498, 1
      %v4503 = vsel %vm4501, %v4502, %v4498
      %v4504 = vadd.s32 %v4499, %v4503
      %v4505 = vadd.s32 %v4504, 536870912
      %v4506 = vshrl.u32 %v4505, 30
      %v4507 = vshll.u32 %v4506, 30
      %v4508 = vsub.s32 %v4504, %v4507
      %vm4509 = vcmp.lt.s32.totalorder %v4508, 0
      %v4510 = vsub.s32 0, %v4508
      %v4511 = vsel %vm4509, %v4510, %v4508
      %v4512 = vclz %v4511
      %v4513 = vsub.s32 %v4512, 2
      %vm4514 = vcmp.gt.s32.totalorder 0, %v4513
      %v4515 = vsel %vm4514, 0, %v4513
      %v4516 = vsub.s32 32, %v4515
      %v4517 = vshll.u32 %v4508, %v4515
      %v4518 = vshrl.u32 %v4500, %v4516
      %v4519 = vor.u32 %v4517, %v4518
      %v4520 = vsub.s32 4294967266, %v4515
      %v4521 = vadd.s32 %v4520, 127
      %v4522 = vshll.u32 %v4521, 23
      %v4523 = vor.u32 4788187, %v4522
      %v4524 = vand.u32 2147483647, %v4523
      %v4526 = vcvt.s32.f32 %v4519
      %v4527 = vmul.f32 %v4526, %v4524
      %v4528 = vxor.u32 %v4527, 2147483648
      %v4529 = vsel %vm4446, %v4528, %v4527
      %v4530 = vsub.s32 4, %v4506
      %v4531 = vsel %vm4446, %v4530, %v4506
      %v4532 = vsel %vm4445, %v4330, %v4529
      %v4533 = vsel %vm4445, 0, %v4531
      %v4534 = vcosq.f32.pop %v4532
      %v4535 = vsinq.f32.pop %v4532
      %vm4536 = vweird.f32 %v4330
      %v4537 = vadd.s32 %v4533, 3
      %v4538 = vand.u32 %v4537, 3
      %vm4539 = vcmp.lt.s32.totalorder %v4538, 2
      %vm4540 = vcmp.eq.s32.totalorder %v4538, 0
      %v4541 = vxor.u32 %v4535, 2147483648
      %v4542 = vsel %vm4540, %v4534, %v4541
      %vm4543 = vcmp.eq.s32.totalorder %v4538, 2
      %v4544 = vxor.u32 %v4534, 2147483648
      %v4545 = vsel %vm4543, %v4544, %v4535
      %v4546 = vsel %vm4539, %v4542, %v4545
      %v4547 = vsel %vm4536, nan, %v4546
      %v4548 = vld [vmem:[%s47] sm:$0xf]
      %v4549 = vld [vmem:[%s47 + $0x4] sm:$0xf]
      %v4550 = vld [vmem:[%s47 + $0x8] sm:$0xf]
      %v4551 = vld [vmem:[%s47 + $0xc] sm:$0xf]
      %v4552 = vld [vmem:[%s47 + $0x10] sm:$0xf]
      %v4553 = vld [vmem:[%s47 + $0x14] sm:$0xf]
      %v4554 = vld [vmem:[%s47 + $0x18] sm:$0xf]
      %v4555 = vld [vmem:[%s47 + $0x1c] sm:$0xf]
      %v4556 = vpack.c.bf16 %v4547, %v4443
      %v4565 = vunpack.c.l.b16 %v4548
      %v4566 = vunpack.c.l.b16 %v4549
      %v4567 = vunpack.c.l.b16 %v4550
      %v4568 = vunpack.c.l.b16 %v4551
      %v4569 = vunpack.c.l.b16 %v4552
      %v4570 = vunpack.c.l.b16 %v4553
      %v4571 = vunpack.c.l.b16 %v4554
      %v4572 = vunpack.c.l.b16 %v4555
      %v4573 = vpack.c.b16 %v4566, %v4565
      %v4574 = vpack.c.b16 %v4568, %v4567
      %v4575 = vpack.c.b16 %v4570, %v4569
      %v4576 = vpack.c.b16 %v4572, %v4571
      %v4582 = vsel %vm1616, %v4556, 0
      %4584 = vmatprep.subr.bf16.mxu0 0
      %4585 = vmatpush1.bf16.msra.mxu0 %v4573
      %4586 = vmatprep.subr.bf16.mxu0 0
      %4587 = vmatpush1.bf16.msra.mxu0 %v4574
      %4588 = vmatprep.subr.bf16.mxu0 0
      %4589 = vmatpush1.bf16.msra.mxu0 %v4575
      %4590 = vmatprep.subr.bf16.mxu0 0
      %4591 = vmatpush1.bf16.msra.mxu0 %v4576
      %4592 = vmatprep.subr.bf16.mxu0 0
      %4593 = vmatpush1.bf16.msra.mxu0 0
      %4594 = vmatprep.subr.bf16.mxu0 0
      %4595 = vmatpush1.bf16.msra.mxu0 0
      %4596 = vmatprep.subr.bf16.mxu0 0
      %4597 = vmatpush1.bf16.msra.mxu0 0
      %4598 = vmatprep.subr.bf16.mxu0 0
      %4599 = vmatpush1.bf16.msra.mxu0 0
      %4600 = vmatprep.subr.bf16.mxu0 0
      %4601 = vmatpush1.bf16.msra.mxu0 0
      %4602 = vmatprep.subr.bf16.mxu0 0
      %4603 = vmatpush1.bf16.msra.mxu0 0
      %4604 = vmatprep.subr.bf16.mxu0 0
      %4605 = vmatpush1.bf16.msra.mxu0 0
      %4606 = vmatprep.subr.bf16.mxu0 0
      %4607 = vmatpush1.bf16.msra.mxu0 0
      %4608 = vmatprep.subr.bf16.mxu0 0
      %4609 = vmatpush1.bf16.msra.mxu0 0
      %4610 = vmatprep.subr.bf16.mxu0 0
      %4611 = vmatpush1.bf16.msra.mxu0 0
      %4612 = vmatprep.subr.bf16.mxu0 0
      %4613 = vmatpush1.bf16.msra.mxu0 0
      %4614 = vmatprep.subr.bf16.mxu0 0
      %4615 = vmatpush1.bf16.msra.mxu0 0
      %4616 = vmatprep.mubr.bf16.mxu0 0
      %4617 = vmatmul.mubr.bf16.gmra.mrb[0].mxu0 %v4582
      %v4618 = vpop.f32.mrb[0].mxu0
      %v4619 = vadd.f32 0.0, %v4618
      %v4620 = vpop.f32.mrb[0].mxu0
      %v4621 = vpop.f32.mrb[0].mxu0
      %v4622 = vadd.f32 0.0, %v4621
      %v4623 = vpop.f32.mrb[0].mxu0
      %4624 = vdwg.mxu0
      %v4625 = vadd.f32 %v4338, %v4619
      %v4626 = vadd.f32 %v4339, %v4622
      %v4627 = vand.u32 2147483647, %v4329
      %vm4628 = vcmp.le.f32.partialorder %v4627, 0.7853982
      %vm4629 = vcmp.lt.s32.totalorder %v4329, 0
      %v4630 = vand.u32 %v4329, 2139095040
      %v4631 = vshrl.u32 %v4630, 23
      %v4632 = vsub.s32 %v4631, 127
      %v4633 = vand.u32 2147483647, %v4329
      %v4634 = vand.u32 %v4633, 8388607
      %v4635 = vor.u32 %v4634, 8388608
      %v4636 = vsub.s32 0, %v4635
      %v4637 = vadd.s32 %v4632, 1
      %vm4638 = vcmp.gt.s32.totalorder %v4637, 0
      %v4639 = vsel %vm4638, %v4637, 0
      %v4640 = vshrl.u32 %v4639, 5
      %v4641 = vand.u32 %v4639, 31
      %v4642 = vsub.s32 32, %v4641
      %v4643 = vshrl.u32 683565275, %v4642
      %v4644 = vshll.u32 683565275, %v4641
      %v4645 = vshrl.u32 2475754826, %v4642
      %v4646 = vor.u32 %v4644, %v4645
      %v4647 = vshll.u32 2475754826, %v4641
      %v4648 = vshrl.u32 2131351028, %v4642
      %v4649 = vor.u32 %v4647, %v4648
      %v4650 = vshll.u32 2131351028, %v4641
      %v4651 = vshrl.u32 2102212464, %v4642
      %v4652 = vor.u32 %v4650, %v4651
      %v4653 = vshll.u32 2102212464, %v4641
      %v4654 = vshrl.u32 920167782, %v4642
      %v4655 = vor.u32 %v4653, %v4654
      %v4656 = vshll.u32 920167782, %v4641
      %v4657 = vshrl.u32 1326507024, %v4642
      %v4658 = vor.u32 %v4656, %v4657
      %vm4659 = vcmp.lt.s32.totalorder %v4640, 1
      %vm4660 = vcmp.lt.s32.totalorder %v4640, 2
      %vm4661 = vcmp.lt.s32.totalorder %v4640, 3
      %vm4662 = vcmp.lt.s32.totalorder %v4640, 4
      %v4663 = vsel %vm4659, %v4643, %v4646
      %v4664 = vsel %vm4662, %v4652, 2102212464
      %v4665 = vsel %vm4661, %v4649, %v4664
      %v4666 = vsel %vm4660, %v4663, %v4665
      %v4667 = vsel %vm4659, %v4646, %v4649
      %v4668 = vsel %vm4662, %v4655, 920167782
      %v4669 = vsel %vm4661, %v4652, %v4668
      %v4670 = vsel %vm4660, %v4667, %v4669
      %v4671 = vsel %vm4659, %v4649, %v4652
      %v4672 = vsel %vm4662, %v4658, 1326507024
      %v4673 = vsel %vm4661, %v4655, %v4672
      %v4674 = vsel %vm4660, %v4671, %v4673
      %v4675 = vshll.u32 %v4635, 8
      %v4676 = vmul.u32.u64.compose %v4675, %v4674
      %v4677 = vextract.low.u32 %v4676
      %v4678 = vextract.high.u32 %v4676
      %v4679 = vmul.u32.u64.compose %v4675, %v4670
      %v4680 = vextract.low.u32 %v4679
      %v4681 = vextract.high.u32 %v4679
      %v4682 = vmul.u32 %v4675, %v4666
      %v4683 = vadd.s32 %v4678, %v4680
      %vm4684 = vc.u32 %v4678, %v4680
      %v4685 = vadd.s32 %v4681, 1
      %v4686 = vsel %vm4684, %v4685, %v4681
      %v4687 = vadd.s32 %v4682, %v4686
      %v4688 = vadd.s32 %v4687, 536870912
      %v4689 = vshrl.u32 %v4688, 30
      %v4690 = vshll.u32 %v4689, 30
      %v4691 = vsub.s32 %v4687, %v4690
      %vm4692 = vcmp.lt.s32.totalorder %v4691, 0
      %v4693 = vsub.s32 0, %v4691
      %v4694 = vsel %vm4692, %v4693, %v4691
      %v4695 = vclz %v4694
      %v4696 = vsub.s32 %v4695, 2
      %vm4697 = vcmp.gt.s32.totalorder 0, %v4696
      %v4698 = vsel %vm4697, 0, %v4696
      %v4699 = vsub.s32 32, %v4698
      %v4700 = vshll.u32 %v4691, %v4698
      %v4701 = vshrl.u32 %v4683, %v4699
      %v4702 = vor.u32 %v4700, %v4701
      %v4703 = vsub.s32 4294967266, %v4698
      %v4704 = vadd.s32 %v4703, 127
      %v4705 = vshll.u32 %v4704, 23
      %v4706 = vor.u32 4788187, %v4705
      %v4707 = vand.u32 2147483647, %v4706
      %v4709 = vcvt.s32.f32 %v4702
      %v4710 = vmul.f32 %v4709, %v4707
      %v4711 = vxor.u32 %v4710, 2147483648
      %v4712 = vsel %vm4629, %v4711, %v4710
      %v4713 = vsub.s32 4, %v4689
      %v4714 = vsel %vm4629, %v4713, %v4689
      %v4715 = vsel %vm4628, %v4329, %v4712
      %v4716 = vsel %vm4628, 0, %v4714
      %v4717 = vcosq.f32.pop %v4715
      %v4718 = vsinq.f32.pop %v4715
      %vm4719 = vweird.f32 %v4329
      %v4720 = vand.u32 %v4716, 3
      %vm4721 = vcmp.lt.s32.totalorder %v4720, 2
      %vm4722 = vcmp.eq.s32.totalorder %v4720, 0
      %v4723 = vxor.u32 %v4718, 2147483648
      %v4724 = vsel %vm4722, %v4717, %v4723
      %vm4725 = vcmp.eq.s32.totalorder %v4720, 2
      %v4726 = vxor.u32 %v4717, 2147483648
      %v4727 = vsel %vm4725, %v4726, %v4718
      %v4728 = vsel %vm4721, %v4724, %v4727
      %v4729 = vsel %vm4719, nan, %v4728
      %v4730 = vand.u32 2147483647, %v4330
      %vm4731 = vcmp.le.f32.partialorder %v4730, 0.7853982
      %vm4732 = vcmp.lt.s32.totalorder %v4330, 0
      %v4733 = vand.u32 %v4330, 2139095040
      %v4734 = vshrl.u32 %v4733, 23
      %v4735 = vsub.s32 %v4734, 127
      %v4736 = vand.u32 2147483647, %v4330
      %v4737 = vand.u32 %v4736, 8388607
      %v4738 = vor.u32 %v4737, 8388608
      %v4739 = vsub.s32 0, %v4738
      %v4740 = vadd.s32 %v4735, 1
      %vm4741 = vcmp.gt.s32.totalorder %v4740, 0
      %v4742 = vsel %vm4741, %v4740, 0
      %v4743 = vshrl.u32 %v4742, 5
      %v4744 = vand.u32 %v4742, 31
      %v4745 = vsub.s32 32, %v4744
      %v4746 = vshrl.u32 683565275, %v4745
      %v4747 = vshll.u32 683565275, %v4744
      %v4748 = vshrl.u32 2475754826, %v4745
      %v4749 = vor.u32 %v4747, %v4748
      %v4750 = vshll.u32 2475754826, %v4744
      %v4751 = vshrl.u32 2131351028, %v4745
      %v4752 = vor.u32 %v4750, %v4751
      %v4753 = vshll.u32 2131351028, %v4744
      %v4754 = vshrl.u32 2102212464, %v4745
      %v4755 = vor.u32 %v4753, %v4754
      %v4756 = vshll.u32 2102212464, %v4744
      %v4757 = vshrl.u32 920167782, %v4745
      %v4758 = vor.u32 %v4756, %v4757
      %v4759 = vshll.u32 920167782, %v4744
      %v4760 = vshrl.u32 1326507024, %v4745
      %v4761 = vor.u32 %v4759, %v4760
      %vm4762 = vcmp.lt.s32.totalorder %v4743, 1
      %vm4763 = vcmp.lt.s32.totalorder %v4743, 2
      %vm4764 = vcmp.lt.s32.totalorder %v4743, 3
      %vm4765 = vcmp.lt.s32.totalorder %v4743, 4
      %v4766 = vsel %vm4762, %v4746, %v4749
      %v4767 = vsel %vm4765, %v4755, 2102212464
      %v4768 = vsel %vm4764, %v4752, %v4767
      %v4769 = vsel %vm4763, %v4766, %v4768
      %v4770 = vsel %vm4762, %v4749, %v4752
      %v4771 = vsel %vm4765, %v4758, 920167782
      %v4772 = vsel %vm4764, %v4755, %v4771
      %v4773 = vsel %vm4763, %v4770, %v4772
      %v4774 = vsel %vm4762, %v4752, %v4755
      %v4775 = vsel %vm4765, %v4761, 1326507024
      %v4776 = vsel %vm4764, %v4758, %v4775
      %v4777 = vsel %vm4763, %v4774, %v4776
      %v4778 = vshll.u32 %v4738, 8
      %v4779 = vmul.u32.u64.compose %v4778, %v4777
      %v4780 = vextract.low.u32 %v4779
      %v4781 = vextract.high.u32 %v4779
      %v4782 = vmul.u32.u64.compose %v4778, %v4773
      %v4783 = vextract.low.u32 %v4782
      %v4784 = vextract.high.u32 %v4782
      %v4785 = vmul.u32 %v4778, %v4769
      %v4786 = vadd.s32 %v4781, %v4783
      %vm4787 = vc.u32 %v4781, %v4783
      %v4788 = vadd.s32 %v4784, 1
      %v4789 = vsel %vm4787, %v4788, %v4784
      %v4790 = vadd.s32 %v4785, %v4789
      %v4791 = vadd.s32 %v4790, 536870912
      %v4792 = vshrl.u32 %v4791, 30
      %v4793 = vshll.u32 %v4792, 30
      %v4794 = vsub.s32 %v4790, %v4793
      %vm4795 = vcmp.lt.s32.totalorder %v4794, 0
      %v4796 = vsub.s32 0, %v4794
      %v4797 = vsel %vm4795, %v4796, %v4794
      %v4798 = vclz %v4797
      %v4799 = vsub.s32 %v4798, 2
      %vm4800 = vcmp.gt.s32.totalorder 0, %v4799
      %v4801 = vsel %vm4800, 0, %v4799
      %v4802 = vsub.s32 32, %v4801
      %v4803 = vshll.u32 %v4794, %v4801
      %v4804 = vshrl.u32 %v4786, %v4802
      %v4805 = vor.u32 %v4803, %v4804
      %v4806 = vsub.s32 4294967266, %v4801
      %v4807 = vadd.s32 %v4806, 127
      %v4808 = vshll.u32 %v4807, 23
      %v4809 = vor.u32 4788187, %v4808
      %v4810 = vand.u32 2147483647, %v4809
      %v4812 = vcvt.s32.f32 %v4805
      %v4813 = vmul.f32 %v4812, %v4810
      %v4814 = vxor.u32 %v4813, 2147483648
      %v4815 = vsel %vm4732, %v4814, %v4813
      %v4816 = vsub.s32 4, %v4792
      %v4817 = vsel %vm4732, %v4816, %v4792
      %v4818 = vsel %vm4731, %v4330, %v4815
      %v4819 = vsel %vm4731, 0, %v4817
      %v4820 = vcosq.f32.pop %v4818
      %v4821 = vsinq.f32.pop %v4818
      %vm4822 = vweird.f32 %v4330
      %v4823 = vand.u32 %v4819, 3
      %vm4824 = vcmp.lt.s32.totalorder %v4823, 2
      %vm4825 = vcmp.eq.s32.totalorder %v4823, 0
      %v4826 = vxor.u32 %v4821, 2147483648
      %v4827 = vsel %vm4825, %v4820, %v4826
      %vm4828 = vcmp.eq.s32.totalorder %v4823, 2
      %v4829 = vxor.u32 %v4820, 2147483648
      %v4830 = vsel %vm4828, %v4829, %v4821
      %v4831 = vsel %vm4824, %v4827, %v4830
      %v4832 = vsel %vm4822, nan, %v4831
      %v4833 = vld [vmem:[%s49] sm:$0xf]
      %v4834 = vld [vmem:[%s49 + $0x4] sm:$0xf]
      %v4835 = vld [vmem:[%s49 + $0x8] sm:$0xf]
      %v4836 = vld [vmem:[%s49 + $0xc] sm:$0xf]
      %v4837 = vld [vmem:[%s49 + $0x10] sm:$0xf]
      %v4838 = vld [vmem:[%s49 + $0x14] sm:$0xf]
      %v4839 = vld [vmem:[%s49 + $0x18] sm:$0xf]
      %v4840 = vld [vmem:[%s49 + $0x1c] sm:$0xf]
      %v4841 = vpack.c.bf16 %v4832, %v4729
      %v4850 = vunpack.c.l.b16 %v4833
      %v4851 = vunpack.c.l.b16 %v4834
      %v4852 = vunpack.c.l.b16 %v4835
      %v4853 = vunpack.c.l.b16 %v4836
      %v4854 = vunpack.c.l.b16 %v4837
      %v4855 = vunpack.c.l.b16 %v4838
      %v4856 = vunpack.c.l.b16 %v4839
      %v4857 = vunpack.c.l.b16 %v4840
      %v4858 = vpack.c.b16 %v4851, %v4850
      %v4859 = vpack.c.b16 %v4853, %v4852
      %v4860 = vpack.c.b16 %v4855, %v4854
      %v4861 = vpack.c.b16 %v4857, %v4856
      %v4867 = vsel %vm1616, %v4841, 0
      %4869 = vmatprep.subr.bf16.mxu0 0
      %4870 = vmatpush1.bf16.msra.mxu0 %v4858
      %4871 = vmatprep.subr.bf16.mxu0 0
      %4872 = vmatpush1.bf16.msra.mxu0 %v4859
      %4873 = vmatprep.subr.bf16.mxu0 0
      %4874 = vmatpush1.bf16.msra.mxu0 %v4860
      %4875 = vmatprep.subr.bf16.mxu0 0
      %4876 = vmatpush1.bf16.msra.mxu0 %v4861
      %4877 = vmatprep.subr.bf16.mxu0 0
      %4878 = vmatpush1.bf16.msra.mxu0 0
      %4879 = vmatprep.subr.bf16.mxu0 0
      %4880 = vmatpush1.bf16.msra.mxu0 0
      %4881 = vmatprep.subr.bf16.mxu0 0
      %4882 = vmatpush1.bf16.msra.mxu0 0
      %4883 = vmatprep.subr.bf16.mxu0 0
      %4884 = vmatpush1.bf16.msra.mxu0 0
      %4885 = vmatprep.subr.bf16.mxu0 0
      %4886 = vmatpush1.bf16.msra.mxu0 0
      %4887 = vmatprep.subr.bf16.mxu0 0
      %4888 = vmatpush1.bf16.msra.mxu0 0
      %4889 = vmatprep.subr.bf16.mxu0 0
      %4890 = vmatpush1.bf16.msra.mxu0 0
      %4891 = vmatprep.subr.bf16.mxu0 0
      %4892 = vmatpush1.bf16.msra.mxu0 0
      %4893 = vmatprep.subr.bf16.mxu0 0
      %4894 = vmatpush1.bf16.msra.mxu0 0
      %4895 = vmatprep.subr.bf16.mxu0 0
      %4896 = vmatpush1.bf16.msra.mxu0 0
      %4897 = vmatprep.subr.bf16.mxu0 0
      %4898 = vmatpush1.bf16.msra.mxu0 0
      %4899 = vmatprep.subr.bf16.mxu0 0
      %4900 = vmatpush1.bf16.msra.mxu0 0
      %4901 = vmatprep.mubr.bf16.mxu0 0
      %4902 = vmatmul.mubr.bf16.gmra.mrb[0].mxu0 %v4867
      %v4903 = vpop.f32.mrb[0].mxu0
      %v4904 = vadd.f32 0.0, %v4903
      %v4905 = vpop.f32.mrb[0].mxu0
      %v4906 = vpop.f32.mrb[0].mxu0
      %v4907 = vadd.f32 0.0, %v4906
      %v4908 = vpop.f32.mrb[0].mxu0
      %4909 = vdwg.mxu0
      %v4910 = vadd.f32 %v4625, %v4904
      %v4911 = vadd.f32 %v4626, %v4907
      %v4912 = vld [vmem:[%s51] sm:$0x1]
      %v4914 = vlaneseq
      %v4915 = vshrl.u32 %v4914, 7
      %v4916 = vsub.s32 0, %v4915
      %v4917 = vrot.slane %v4912, %v4916
      %v4919 = vadd.f32 %v4910, %v4917
      %v4920 = vadd.f32 %v4911, %v4917
      %v4921 = vadd.f32 %v4919, %v4286
      %v4922 = vadd.f32 %v4920, %v4287
      %v4923 = vxor.u32 %v4921, 2147483648
      %v4924 = vxor.u32 %v4922, 2147483648
      %v4925 = vmul.f32 %v4923, 1.442695
      %v4926 = vpow.pop %v4925
      %v4927 = vmul.f32 %v4924, 1.442695
      %v4928 = vpow.pop %v4927
      %v4929 = vadd.f32 %v4926, 1.0
      %v4930 = vadd.f32 %v4928, 1.0
      %v4931 = vrcp.pop %v4929
      %v4932 = vmul.f32 1.0, %v4931
      %v4933 = vrcp.pop %v4930
      %v4934 = vmul.f32 1.0, %v4933
      %v4935 = vmul.f32 %v4921, %v4932
      %v4936 = vmul.f32 %v4922, %v4934
      %v4937 = vpack.c.bf16 %v4936, %v4935
      %4939 = vset.pattern.permute.xlu0 0
      %4940 = vperm.xlu0 %4939, %v1030
      %v4941 = vpop.permute.xlu0 %4940
      %4944 = vset.pattern.permute.xlu0 0
      %4945 = vperm.xlu0 %4944, %v1031
      %v4946 = vpop.permute.xlu0 %4945
      %v4948 = vmul.f32 %v4941, %v1028
      %v4949 = vmul.f32 %v4946, %v1029
      %v4950 = vadd.f32 %v1026, %v4948
      %v4951 = vadd.f32 %v1027, %v4949
      %4953 = vset.pattern.permute.xlu0 0
      %4954 = vperm.xlu0 %4953, %v4292
      %v4955 = vpop.permute.xlu0 %4954
      %4958 = vset.pattern.permute.xlu0 0
      %4959 = vperm.xlu0 %4958, %v4293
      %v4960 = vpop.permute.xlu0 %4959
      %v4962 = vmul.f32 %v4955, %v4950
      %v4963 = vmul.f32 %v4960, %v4951
      %v4964 = vld [vmem:[%s53] sm:$0xf]
      %v4965 = vld [vmem:[%s53 + $0x4] sm:$0xf]
      %v4966 = vld [vmem:[%s53 + $0x8] sm:$0xf]
      %v4967 = vld [vmem:[%s53 + $0xc] sm:$0xf]
      %v4968 = vld [vmem:[%s53 + $0x10] sm:$0xf]
      %v4969 = vld [vmem:[%s53 + $0x14] sm:$0xf]
      %v4970 = vld [vmem:[%s53 + $0x18] sm:$0xf]
      %v4971 = vld [vmem:[%s53 + $0x1c] sm:$0xf]
      %v4972 = vld [vmem:[%s53 + $0x20] sm:$0xf]
      %v4973 = vld [vmem:[%s53 + $0x24] sm:$0xf]
      %v4974 = vld [vmem:[%s53 + $0x28] sm:$0xf]
      %v4975 = vld [vmem:[%s53 + $0x2c] sm:$0xf]
      %v4976 = vld [vmem:[%s53 + $0x30] sm:$0xf]
      %v4977 = vld [vmem:[%s53 + $0x34] sm:$0xf]
      %v4978 = vld [vmem:[%s53 + $0x38] sm:$0xf]
      %v4979 = vld [vmem:[%s53 + $0x3c] sm:$0xf]
      %4980 = vadd.xlane.f32.xlu0 %v4962
      %v4981 = vpop.xlane.xlu0 %4980
      %4982 = vadd.xlane.f32.xlu0 %v4963
      %v4983 = vpop.xlane.xlu0 %4982
      %v4984 = vmul.f32 %v4981, %v1262
      %v4985 = vmul.f32 %v4983, %v1262
      %v4986 = vsub.f32 %v4962, %v4984
      %v4987 = vsub.f32 %v4963, %v4985
      %v4988 = vmul.f32 %v4986, %v4986
      %v4989 = vmul.f32 %v4987, %v4987
      %4990 = vadd.xlane.f32.xlu0 %v4988
      %v4991 = vpop.xlane.xlu0 %4990
      %4992 = vadd.xlane.f32.xlu0 %v4989
      %v4993 = vpop.xlane.xlu0 %4992
      %v4994 = vmul.f32 %v4991, %v1262
      %v4995 = vmul.f32 %v4993, %v1262
      %v4996 = vadd.f32 %v4994, 1e-05
      %v4997 = vadd.f32 %v4995, 1e-05
      %v4998 = vrsqrt.pop %v4996
      %v4999 = vrsqrt.pop %v4997
      %v5000 = vmul.f32 %v4986, %v4998
      %v5001 = vmul.f32 %v4987, %v4999
      %v5018 = vunpack.c.l.b16 %v4964
      %v5019 = vunpack.c.l.b16 %v4965
      %v5020 = vunpack.c.l.b16 %v4966
      %v5021 = vunpack.c.l.b16 %v4967
      %v5022 = vunpack.c.l.b16 %v4968
      %v5023 = vunpack.c.l.b16 %v4969
      %v5024 = vunpack.c.l.b16 %v4970
      %v5025 = vunpack.c.l.b16 %v4971
      %v5026 = vunpack.c.l.b16 %v4972
      %v5027 = vunpack.c.l.b16 %v4973
      %v5028 = vunpack.c.l.b16 %v4974
      %v5029 = vunpack.c.l.b16 %v4975
      %v5030 = vunpack.c.l.b16 %v4976
      %v5031 = vunpack.c.l.b16 %v4977
      %v5032 = vunpack.c.l.b16 %v4978
      %v5033 = vunpack.c.l.b16 %v4979
      %v5034 = vpack.c.b16 %v5019, %v5018
      %v5035 = vpack.c.b16 %v5021, %v5020
      %v5036 = vpack.c.b16 %v5023, %v5022
      %v5037 = vpack.c.b16 %v5025, %v5024
      %v5038 = vpack.c.b16 %v5027, %v5026
      %v5039 = vpack.c.b16 %v5029, %v5028
      %v5040 = vpack.c.b16 %v5031, %v5030
      %v5041 = vpack.c.b16 %v5033, %v5032
      %5050 = vmatprep.subr.bf16.mxu0 0
      %5051 = vmatpush1.bf16.msra.mxu0 %v5034
      %5052 = vmatprep.subr.bf16.mxu0 0
      %5053 = vmatpush1.bf16.msra.mxu0 %v5035
      %5054 = vmatprep.subr.bf16.mxu0 0
      %5055 = vmatpush1.bf16.msra.mxu0 %v5036
      %5056 = vmatprep.subr.bf16.mxu0 0
      %5057 = vmatpush1.bf16.msra.mxu0 %v5037
      %5058 = vmatprep.subr.bf16.mxu0 0
      %5059 = vmatpush1.bf16.msra.mxu0 %v5038
      %5060 = vmatprep.subr.bf16.mxu0 0
      %5061 = vmatpush1.bf16.msra.mxu0 %v5039
      %5062 = vmatprep.subr.bf16.mxu0 0
      %5063 = vmatpush1.bf16.msra.mxu0 %v5040
      %5064 = vmatprep.subr.bf16.mxu0 0
      %5065 = vmatpush1.bf16.msra.mxu0 %v5041
      %5066 = vmatprep.subr.bf16.mxu0 0
      %5067 = vmatpush1.bf16.msra.mxu0 0
      %5068 = vmatprep.subr.bf16.mxu0 0
      %5069 = vmatpush1.bf16.msra.mxu0 0
      %5070 = vmatprep.subr.bf16.mxu0 0
      %5071 = vmatpush1.bf16.msra.mxu0 0
      %5072 = vmatprep.subr.bf16.mxu0 0
      %5073 = vmatpush1.bf16.msra.mxu0 0
      %5074 = vmatprep.subr.bf16.mxu0 0
      %5075 = vmatpush1.bf16.msra.mxu0 0
      %5076 = vmatprep.subr.bf16.mxu0 0
      %5077 = vmatpush1.bf16.msra.mxu0 0
      %5078 = vmatprep.subr.bf16.mxu0 0
      %5079 = vmatpush1.bf16.msra.mxu0 0
      %5080 = vmatprep.subr.bf16.mxu0 0
      %5081 = vmatpush1.bf16.msra.mxu0 0
      %5082 = vmatprep.mubr.bf16.mxu0 0
      %5083 = vmatmul.mubr.bf16.gmra.mrb[0].mxu0 %v4937
      %v5084 = vpop.f32.mrb[0].mxu0
      %v5085 = vadd.f32 1.0, %v5084
      %v5086 = vpop.f32.mrb[0].mxu0
      %v5087 = vpop.f32.mrb[0].mxu0
      %v5088 = vadd.f32 1.0, %v5087
      %v5089 = vpop.f32.mrb[0].mxu0
      %5090 = vdwg.mxu0
      %v5091 = vmul.f32 %v5000, %v5085
      %v5092 = vmul.f32 %v5001, %v5088
      %v5093 = vld [vmem:[%s55] sm:$0xf]
      %v5094 = vld [vmem:[%s55 + $0x4] sm:$0xf]
      %v5095 = vld [vmem:[%s55 + $0x8] sm:$0xf]
      %v5096 = vld [vmem:[%s55 + $0xc] sm:$0xf]
      %v5097 = vld [vmem:[%s55 + $0x10] sm:$0xf]
      %v5098 = vld [vmem:[%s55 + $0x14] sm:$0xf]
      %v5099 = vld [vmem:[%s55 + $0x18] sm:$0xf]
      %v5100 = vld [vmem:[%s55 + $0x1c] sm:$0xf]
      %v5101 = vld [vmem:[%s55 + $0x20] sm:$0xf]
      %v5102 = vld [vmem:[%s55 + $0x24] sm:$0xf]
      %v5103 = vld [vmem:[%s55 + $0x28] sm:$0xf]
      %v5104 = vld [vmem:[%s55 + $0x2c] sm:$0xf]
      %v5105 = vld [vmem:[%s55 + $0x30] sm:$0xf]
      %v5106 = vld [vmem:[%s55 + $0x34] sm:$0xf]
      %v5107 = vld [vmem:[%s55 + $0x38] sm:$0xf]
      %v5108 = vld [vmem:[%s55 + $0x3c] sm:$0xf]
      %v5109 = vpack.c.bf16 %v5092, %v5091
      %v5110 = vld [vmem:[%s57] sm:$0x1]
      %v5112 = vlaneseq
      %v5113 = vshrl.u32 %v5112, 7
      %v5114 = vsub.s32 0, %v5113
      %v5115 = vrot.slane %v5110, %v5114
      %v5133 = vunpack.c.l.b16 %v5093
      %v5134 = vunpack.c.l.b16 %v5094
      %v5135 = vunpack.c.l.b16 %v5095
      %v5136 = vunpack.c.l.b16 %v5096
      %v5137 = vunpack.c.l.b16 %v5097
      %v5138 = vunpack.c.l.b16 %v5098
      %v5139 = vunpack.c.l.b16 %v5099
      %v5140 = vunpack.c.l.b16 %v5100
      %v5141 = vunpack.c.l.b16 %v5101
      %v5142 = vunpack.c.l.b16 %v5102
      %v5143 = vunpack.c.l.b16 %v5103
      %v5144 = vunpack.c.l.b16 %v5104
      %v5145 = vunpack.c.l.b16 %v5105
      %v5146 = vunpack.c.l.b16 %v5106
      %v5147 = vunpack.c.l.b16 %v5107
      %v5148 = vunpack.c.l.b16 %v5108
      %v5149 = vpack.c.b16 %v5134, %v5133
      %v5150 = vpack.c.b16 %v5136, %v5135
      %v5151 = vpack.c.b16 %v5138, %v5137
      %v5152 = vpack.c.b16 %v5140, %v5139
      %v5153 = vpack.c.b16 %v5142, %v5141
      %v5154 = vpack.c.b16 %v5144, %v5143
      %v5155 = vpack.c.b16 %v5146, %v5145
      %v5156 = vpack.c.b16 %v5148, %v5147
      %5165 = vmatprep.subr.bf16.mxu0 0
      %5166 = vmatpush1.bf16.msra.mxu0 %v5149
      %5167 = vmatprep.subr.bf16.mxu0 0
      %5168 = vmatpush1.bf16.msra.mxu0 %v5150
      %5169 = vmatprep.subr.bf16.mxu0 0
      %5170 = vmatpush1.bf16.msra.mxu0 %v5151
      %5171 = vmatprep.subr.bf16.mxu0 0
      %5172 = vmatpush1.bf16.msra.mxu0 %v5152
      %5173 = vmatprep.subr.bf16.mxu0 0
      %5174 = vmatpush1.bf16.msra.mxu0 %v5153
      %5175 = vmatprep.subr.bf16.mxu0 0
      %5176 = vmatpush1.bf16.msra.mxu0 %v5154
      %5177 = vmatprep.subr.bf16.mxu0 0
      %5178 = vmatpush1.bf16.msra.mxu0 %v5155
      %5179 = vmatprep.subr.bf16.mxu0 0
      %5180 = vmatpush1.bf16.msra.mxu0 %v5156
      %5181 = vmatprep.subr.bf16.mxu0 0
      %5182 = vmatpush1.bf16.msra.mxu0 0
      %5183 = vmatprep.subr.bf16.mxu0 0
      %5184 = vmatpush1.bf16.msra.mxu0 0
      %5185 = vmatprep.subr.bf16.mxu0 0
      %5186 = vmatpush1.bf16.msra.mxu0 0
      %5187 = vmatprep.subr.bf16.mxu0 0
      %5188 = vmatpush1.bf16.msra.mxu0 0
      %5189 = vmatprep.subr.bf16.mxu0 0
      %5190 = vmatpush1.bf16.msra.mxu0 0
      %5191 = vmatprep.subr.bf16.mxu0 0
      %5192 = vmatpush1.bf16.msra.mxu0 0
      %5193 = vmatprep.subr.bf16.mxu0 0
      %5194 = vmatpush1.bf16.msra.mxu0 0
      %5195 = vmatprep.subr.bf16.mxu0 0
      %5196 = vmatpush1.bf16.msra.mxu0 0
      %5197 = vmatprep.mubr.bf16.mxu0 0
      %5198 = vmatmul.mubr.bf16.gmra.mrb[0].mxu0 %v5109
      %v5199 = vpop.f32.mrb[0].mxu0
      %v5200 = vadd.f32 %v5115, %v5199
      %v5201 = vpop.f32.mrb[0].mxu0
      %v5202 = vpop.f32.mrb[0].mxu0
      %v5203 = vadd.f32 %v5115, %v5202
      %v5204 = vpop.f32.mrb[0].mxu0
      %5205 = vdwg.mxu0
      %v5206 = vxor.u32 %v5200, 2147483648
      %v5207 = vxor.u32 %v5203, 2147483648
      %v5208 = vmul.f32 %v5206, 1.442695
      %v5209 = vpow.pop %v5208
      %v5210 = vmul.f32 %v5207, 1.442695
      %v5211 = vpow.pop %v5210
      %v5212 = vadd.f32 %v5209, 1.0
      %v5213 = vadd.f32 %v5211, 1.0
      %v5214 = vrcp.pop %v5212
      %v5215 = vmul.f32 1.0, %v5214
      %v5216 = vrcp.pop %v5213
      %v5217 = vmul.f32 1.0, %v5216
      %v5218 = vmul.f32 %v5200, %v5215
      %v5219 = vmul.f32 %v5203, %v5217
      %v5220 = vld [vmem:[%s59] sm:$0xf]
      %v5221 = vld [vmem:[%s59 + $0x4] sm:$0xf]
      %v5222 = vld [vmem:[%s59 + $0x8] sm:$0xf]
      %v5223 = vld [vmem:[%s59 + $0xc] sm:$0xf]
      %v5224 = vld [vmem:[%s59 + $0x10] sm:$0xf]
      %v5225 = vld [vmem:[%s59 + $0x14] sm:$0xf]
      %v5226 = vld [vmem:[%s59 + $0x18] sm:$0xf]
      %v5227 = vld [vmem:[%s59 + $0x1c] sm:$0xf]
      %v5228 = vld [vmem:[%s59 + $0x20] sm:$0xf]
      %v5229 = vld [vmem:[%s59 + $0x24] sm:$0xf]
      %v5230 = vld [vmem:[%s59 + $0x28] sm:$0xf]
      %v5231 = vld [vmem:[%s59 + $0x2c] sm:$0xf]
      %v5232 = vld [vmem:[%s59 + $0x30] sm:$0xf]
      %v5233 = vld [vmem:[%s59 + $0x34] sm:$0xf]
      %v5234 = vld [vmem:[%s59 + $0x38] sm:$0xf]
      %v5235 = vld [vmem:[%s59 + $0x3c] sm:$0xf]
      %v5236 = vpack.c.bf16 %v5219, %v5218
      %v5237 = vld [vmem:[%s61] sm:$0x1]
      %v5239 = vlaneseq
      %v5240 = vshrl.u32 %v5239, 7
      %v5241 = vsub.s32 0, %v5240
      %v5242 = vrot.slane %v5237, %v5241
      %v5260 = vunpack.c.l.b16 %v5220
      %v5261 = vunpack.c.l.b16 %v5221
      %v5262 = vunpack.c.l.b16 %v5222
      %v5263 = vunpack.c.l.b16 %v5223
      %v5264 = vunpack.c.l.b16 %v5224
      %v5265 = vunpack.c.l.b16 %v5225
      %v5266 = vunpack.c.l.b16 %v5226
      %v5267 = vunpack.c.l.b16 %v5227
      %v5268 = vunpack.c.l.b16 %v5228
      %v5269 = vunpack.c.l.b16 %v5229
      %v5270 = vunpack.c.l.b16 %v5230
      %v5271 = vunpack.c.l.b16 %v5231
      %v5272 = vunpack.c.l.b16 %v5232
      %v5273 = vunpack.c.l.b16 %v5233
      %v5274 = vunpack.c.l.b16 %v5234
      %v5275 = vunpack.c.l.b16 %v5235
      %v5276 = vpack.c.b16 %v5261, %v5260
      %v5277 = vpack.c.b16 %v5263, %v5262
      %v5278 = vpack.c.b16 %v5265, %v5264
      %v5279 = vpack.c.b16 %v5267, %v5266
      %v5280 = vpack.c.b16 %v5269, %v5268
      %v5281 = vpack.c.b16 %v5271, %v5270
      %v5282 = vpack.c.b16 %v5273, %v5272
      %v5283 = vpack.c.b16 %v5275, %v5274
      %5292 = vmatprep.subr.bf16.mxu0 0
      %5293 = vmatpush1.bf16.msra.mxu0 %v5276
      %5294 = vmatprep.subr.bf16.mxu0 0
      %5295 = vmatpush1.bf16.msra.mxu0 %v5277
      %5296 = vmatprep.subr.bf16.mxu0 0
      %5297 = vmatpush1.bf16.msra.mxu0 %v5278
      %5298 = vmatprep.subr.bf16.mxu0 0
      %5299 = vmatpush1.bf16.msra.mxu0 %v5279
      %5300 = vmatprep.subr.bf16.mxu0 0
      %5301 = vmatpush1.bf16.msra.mxu0 %v5280
      %5302 = vmatprep.subr.bf16.mxu0 0
      %5303 = vmatpush1.bf16.msra.mxu0 %v5281
      %5304 = vmatprep.subr.bf16.mxu0 0
      %5305 = vmatpush1.bf16.msra.mxu0 %v5282
      %5306 = vmatprep.subr.bf16.mxu0 0
      %5307 = vmatpush1.bf16.msra.mxu0 %v5283
      %5308 = vmatprep.subr.bf16.mxu0 0
      %5309 = vmatpush1.bf16.msra.mxu0 0
      %5310 = vmatprep.subr.bf16.mxu0 0
      %5311 = vmatpush1.bf16.msra.mxu0 0
      %5312 = vmatprep.subr.bf16.mxu0 0
      %5313 = vmatpush1.bf16.msra.mxu0 0
      %5314 = vmatprep.subr.bf16.mxu0 0
      %5315 = vmatpush1.bf16.msra.mxu0 0
      %5316 = vmatprep.subr.bf16.mxu0 0
      %5317 = vmatpush1.bf16.msra.mxu0 0
      %5318 = vmatprep.subr.bf16.mxu0 0
      %5319 = vmatpush1.bf16.msra.mxu0 0
      %5320 = vmatprep.subr.bf16.mxu0 0
      %5321 = vmatpush1.bf16.msra.mxu0 0
      %5322 = vmatprep.subr.bf16.mxu0 0
      %5323 = vmatpush1.bf16.msra.mxu0 0
      %5324 = vmatprep.mubr.bf16.mxu0 0
      %5325 = vmatmul.mubr.bf16.gmra.mrb[0].mxu0 %v5236
      %v5326 = vpop.f32.mrb[0].mxu0
      %v5327 = vadd.f32 %v5242, %v5326
      %v5328 = vpop.f32.mrb[0].mxu0
      %v5329 = vpop.f32.mrb[0].mxu0
      %v5330 = vadd.f32 %v5242, %v5329
      %v5331 = vpop.f32.mrb[0].mxu0
      %5332 = vdwg.mxu0
      %v5333 = vld [vmem:[%s63] sm:$0xf]
      %v5334 = vld [vmem:[%s63 + $0x4] sm:$0xf]
      %v5335 = vld [vmem:[%s63 + $0x8] sm:$0xf]
      %v5336 = vld [vmem:[%s63 + $0xc] sm:$0xf]
      %v5337 = vld [vmem:[%s63 + $0x10] sm:$0xf]
      %v5338 = vld [vmem:[%s63 + $0x14] sm:$0xf]
      %v5339 = vld [vmem:[%s63 + $0x18] sm:$0xf]
      %v5340 = vld [vmem:[%s63 + $0x1c] sm:$0xf]
      %v5341 = vld [vmem:[%s63 + $0x20] sm:$0xf]
      %v5342 = vld [vmem:[%s63 + $0x24] sm:$0xf]
      %v5343 = vld [vmem:[%s63 + $0x28] sm:$0xf]
      %v5344 = vld [vmem:[%s63 + $0x2c] sm:$0xf]
      %v5345 = vld [vmem:[%s63 + $0x30] sm:$0xf]
      %v5346 = vld [vmem:[%s63 + $0x34] sm:$0xf]
      %v5347 = vld [vmem:[%s63 + $0x38] sm:$0xf]
      %v5348 = vld [vmem:[%s63 + $0x3c] sm:$0xf]
      %v5365 = vunpack.c.l.b16 %v5333
      %v5366 = vunpack.c.l.b16 %v5334
      %v5367 = vunpack.c.l.b16 %v5335
      %v5368 = vunpack.c.l.b16 %v5336
      %v5369 = vunpack.c.l.b16 %v5337
      %v5370 = vunpack.c.l.b16 %v5338
      %v5371 = vunpack.c.l.b16 %v5339
      %v5372 = vunpack.c.l.b16 %v5340
      %v5373 = vunpack.c.l.b16 %v5341
      %v5374 = vunpack.c.l.b16 %v5342
      %v5375 = vunpack.c.l.b16 %v5343
      %v5376 = vunpack.c.l.b16 %v5344
      %v5377 = vunpack.c.l.b16 %v5345
      %v5378 = vunpack.c.l.b16 %v5346
      %v5379 = vunpack.c.l.b16 %v5347
      %v5380 = vunpack.c.l.b16 %v5348
      %v5381 = vpack.c.b16 %v5366, %v5365
      %v5382 = vpack.c.b16 %v5368, %v5367
      %v5383 = vpack.c.b16 %v5370, %v5369
      %v5384 = vpack.c.b16 %v5372, %v5371
      %v5385 = vpack.c.b16 %v5374, %v5373
      %v5386 = vpack.c.b16 %v5376, %v5375
      %v5387 = vpack.c.b16 %v5378, %v5377
      %v5388 = vpack.c.b16 %v5380, %v5379
      %5397 = vmatprep.subr.bf16.mxu0 0
      %5398 = vmatpush1.bf16.msra.mxu0 %v5381
      %5399 = vmatprep.subr.bf16.mxu0 0
      %5400 = vmatpush1.bf16.msra.mxu0 %v5382
      %5401 = vmatprep.subr.bf16.mxu0 0
      %5402 = vmatpush1.bf16.msra.mxu0 %v5383
      %5403 = vmatprep.subr.bf16.mxu0 0
      %5404 = vmatpush1.bf16.msra.mxu0 %v5384
      %5405 = vmatprep.subr.bf16.mxu0 0
      %5406 = vmatpush1.bf16.msra.mxu0 %v5385
      %5407 = vmatprep.subr.bf16.mxu0 0
      %5408 = vmatpush1.bf16.msra.mxu0 %v5386
      %5409 = vmatprep.subr.bf16.mxu0 0
      %5410 = vmatpush1.bf16.msra.mxu0 %v5387
      %5411 = vmatprep.subr.bf16.mxu0 0
      %5412 = vmatpush1.bf16.msra.mxu0 %v5388
      %5413 = vmatprep.subr.bf16.mxu0 0
      %5414 = vmatpush1.bf16.msra.mxu0 0
      %5415 = vmatprep.subr.bf16.mxu0 0
      %5416 = vmatpush1.bf16.msra.mxu0 0
      %5417 = vmatprep.subr.bf16.mxu0 0
      %5418 = vmatpush1.bf16.msra.mxu0 0
      %5419 = vmatprep.subr.bf16.mxu0 0
      %5420 = vmatpush1.bf16.msra.mxu0 0
      %5421 = vmatprep.subr.bf16.mxu0 0
      %5422 = vmatpush1.bf16.msra.mxu0 0
      %5423 = vmatprep.subr.bf16.mxu0 0
      %5424 = vmatpush1.bf16.msra.mxu0 0
      %5425 = vmatprep.subr.bf16.mxu0 0
      %5426 = vmatpush1.bf16.msra.mxu0 0
      %5427 = vmatprep.subr.bf16.mxu0 0
      %5428 = vmatpush1.bf16.msra.mxu0 0
      %5429 = vmatprep.mubr.bf16.mxu0 0
      %5430 = vmatmul.mubr.bf16.gmra.mrb[0].mxu0 %v4937
      %v5431 = vpop.f32.mrb[0].mxu0
      %v5432 = vadd.f32 1.0, %v5431
      %v5433 = vpop.f32.mrb[0].mxu0
      %v5434 = vpop.f32.mrb[0].mxu0
      %v5435 = vadd.f32 1.0, %v5434
      %v5436 = vpop.f32.mrb[0].mxu0
      %5437 = vdwg.mxu0
      %v5438 = vmul.f32 %v5327, %v5432
      %v5439 = vmul.f32 %v5330, %v5435
      %v5440 = vadd.f32 %v5438, %v4962
      %v5441 = vadd.f32 %v5439, %v4963
      %s5442 = scalar_lea.vmem %s53, 64
      %v5443 = vld [vmem:[%s5442] sm:$0xf]
      %v5444 = vld [vmem:[%s5442 + $0x4] sm:$0xf]
      %v5445 = vld [vmem:[%s5442 + $0x8] sm:$0xf]
      %v5446 = vld [vmem:[%s5442 + $0xc] sm:$0xf]
      %v5447 = vld [vmem:[%s5442 + $0x10] sm:$0xf]
      %v5448 = vld [vmem:[%s5442 + $0x14] sm:$0xf]
      %v5449 = vld [vmem:[%s5442 + $0x18] sm:$0xf]
      %v5450 = vld [vmem:[%s5442 + $0x1c] sm:$0xf]
      %v5451 = vld [vmem:[%s5442 + $0x20] sm:$0xf]
      %v5452 = vld [vmem:[%s5442 + $0x24] sm:$0xf]
      %v5453 = vld [vmem:[%s5442 + $0x28] sm:$0xf]
      %v5454 = vld [vmem:[%s5442 + $0x2c] sm:$0xf]
      %v5455 = vld [vmem:[%s5442 + $0x30] sm:$0xf]
      %v5456 = vld [vmem:[%s5442 + $0x34] sm:$0xf]
      %v5457 = vld [vmem:[%s5442 + $0x38] sm:$0xf]
      %v5458 = vld [vmem:[%s5442 + $0x3c] sm:$0xf]
      %5459 = vadd.xlane.f32.xlu0 %v5440
      %v5460 = vpop.xlane.xlu0 %5459
      %5461 = vadd.xlane.f32.xlu0 %v5441
      %v5462 = vpop.xlane.xlu0 %5461
      %v5463 = vmul.f32 %v5460, %v1262
      %v5464 = vmul.f32 %v5462, %v1262
      %v5465 = vsub.f32 %v5440, %v5463
      %v5466 = vsub.f32 %v5441, %v5464
      %v5467 = vmul.f32 %v5465, %v5465
      %v5468 = vmul.f32 %v5466, %v5466
      %5469 = vadd.xlane.f32.xlu0 %v5467
      %v5470 = vpop.xlane.xlu0 %5469
      %5471 = vadd.xlane.f32.xlu0 %v5468
      %v5472 = vpop.xlane.xlu0 %5471
      %v5473 = vmul.f32 %v5470, %v1262
      %v5474 = vmul.f32 %v5472, %v1262
      %v5475 = vadd.f32 %v5473, 1e-05
      %v5476 = vadd.f32 %v5474, 1e-05
      %v5477 = vrsqrt.pop %v5475
      %v5478 = vrsqrt.pop %v5476
      %v5479 = vmul.f32 %v5465, %v5477
      %v5480 = vmul.f32 %v5466, %v5478
      %v5497 = vunpack.c.l.b16 %v5443
      %v5498 = vunpack.c.l.b16 %v5444
      %v5499 = vunpack.c.l.b16 %v5445
      %v5500 = vunpack.c.l.b16 %v5446
      %v5501 = vunpack.c.l.b16 %v5447
      %v5502 = vunpack.c.l.b16 %v5448
      %v5503 = vunpack.c.l.b16 %v5449
      %v5504 = vunpack.c.l.b16 %v5450
      %v5505 = vunpack.c.l.b16 %v5451
      %v5506 = vunpack.c.l.b16 %v5452
      %v5507 = vunpack.c.l.b16 %v5453
      %v5508 = vunpack.c.l.b16 %v5454
      %v5509 = vunpack.c.l.b16 %v5455
      %v5510 = vunpack.c.l.b16 %v5456
      %v5511 = vunpack.c.l.b16 %v5457
      %v5512 = vunpack.c.l.b16 %v5458
      %v5513 = vpack.c.b16 %v5498, %v5497
      %v5514 = vpack.c.b16 %v5500, %v5499
      %v5515 = vpack.c.b16 %v5502, %v5501
      %v5516 = vpack.c.b16 %v5504, %v5503
      %v5517 = vpack.c.b16 %v5506, %v5505
      %v5518 = vpack.c.b16 %v5508, %v5507
      %v5519 = vpack.c.b16 %v5510, %v5509
      %v5520 = vpack.c.b16 %v5512, %v5511
      %5529 = vmatprep.subr.bf16.mxu0 0
      %5530 = vmatpush1.bf16.msra.mxu0 %v5513
      %5531 = vmatprep.subr.bf16.mxu0 0
      %5532 = vmatpush1.bf16.msra.mxu0 %v5514
      %5533 = vmatprep.subr.bf16.mxu0 0
      %5534 = vmatpush1.bf16.msra.mxu0 %v5515
      %5535 = vmatprep.subr.bf16.mxu0 0
      %5536 = vmatpush1.bf16.msra.mxu0 %v5516
      %5537 = vmatprep.subr.bf16.mxu0 0
      %5538 = vmatpush1.bf16.msra.mxu0 %v5517
      %5539 = vmatprep.subr.bf16.mxu0 0
      %5540 = vmatpush1.bf16.msra.mxu0 %v5518
      %5541 = vmatprep.subr.bf16.mxu0 0
      %5542 = vmatpush1.bf16.msra.mxu0 %v5519
      %5543 = vmatprep.subr.bf16.mxu0 0
      %5544 = vmatpush1.bf16.msra.mxu0 %v5520
      %5545 = vmatprep.subr.bf16.mxu0 0
      %5546 = vmatpush1.bf16.msra.mxu0 0
      %5547 = vmatprep.subr.bf16.mxu0 0
      %5548 = vmatpush1.bf16.msra.mxu0 0
      %5549 = vmatprep.subr.bf16.mxu0 0
      %5550 = vmatpush1.bf16.msra.mxu0 0
      %5551 = vmatprep.subr.bf16.mxu0 0
      %5552 = vmatpush1.bf16.msra.mxu0 0
      %5553 = vmatprep.subr.bf16.mxu0 0
      %5554 = vmatpush1.bf16.msra.mxu0 0
      %5555 = vmatprep.subr.bf16.mxu0 0
      %5556 = vmatpush1.bf16.msra.mxu0 0
      %5557 = vmatprep.subr.bf16.mxu0 0
      %5558 = vmatpush1.bf16.msra.mxu0 0
      %5559 = vmatprep.subr.bf16.mxu0 0
      %5560 = vmatpush1.bf16.msra.mxu0 0
      %5561 = vmatprep.mubr.bf16.mxu0 0
      %5562 = vmatmul.mubr.bf16.gmra.mrb[0].mxu0 %v4937
      %v5563 = vpop.f32.mrb[0].mxu0
      %v5564 = vadd.f32 1.0, %v5563
      %v5565 = vpop.f32.mrb[0].mxu0
      %v5566 = vpop.f32.mrb[0].mxu0
      %v5567 = vadd.f32 1.0, %v5566
      %v5568 = vpop.f32.mrb[0].mxu0
      %5569 = vdwg.mxu0
      %v5570 = vmul.f32 %v5479, %v5564
      %v5571 = vmul.f32 %v5480, %v5567
      %s5572 = scalar_lea.vmem %s55, 64
      %v5573 = vld [vmem:[%s5572] sm:$0xf]
      %v5574 = vld [vmem:[%s5572 + $0x4] sm:$0xf]
      %v5575 = vld [vmem:[%s5572 + $0x8] sm:$0xf]
      %v5576 = vld [vmem:[%s5572 + $0xc] sm:$0xf]
      %v5577 = vld [vmem:[%s5572 + $0x10] sm:$0xf]
      %v5578 = vld [vmem:[%s5572 + $0x14] sm:$0xf]
      %v5579 = vld [vmem:[%s5572 + $0x18] sm:$0xf]
      %v5580 = vld [vmem:[%s5572 + $0x1c] sm:$0xf]
      %v5581 = vld [vmem:[%s5572 + $0x20] sm:$0xf]
      %v5582 = vld [vmem:[%s5572 + $0x24] sm:$0xf]
      %v5583 = vld [vmem:[%s5572 + $0x28] sm:$0xf]
      %v5584 = vld [vmem:[%s5572 + $0x2c] sm:$0xf]
      %v5585 = vld [vmem:[%s5572 + $0x30] sm:$0xf]
      %v5586 = vld [vmem:[%s5572 + $0x34] sm:$0xf]
      %v5587 = vld [vmem:[%s5572 + $0x38] sm:$0xf]
      %v5588 = vld [vmem:[%s5572 + $0x3c] sm:$0xf]
      %v5589 = vpack.c.bf16 %v5571, %v5570
      %s5590 = scalar_lea.vmem %s57, 1
      %v5591 = vld [vmem:[%s5590] sm:$0x1]
      %v5593 = vlaneseq
      %v5594 = vshrl.u32 %v5593, 7
      %v5595 = vsub.s32 0, %v5594
      %v5596 = vrot.slane %v5591, %v5595
      %v5614 = vunpack.c.l.b16 %v5573
      %v5615 = vunpack.c.l.b16 %v5574
      %v5616 = vunpack.c.l.b16 %v5575
      %v5617 = vunpack.c.l.b16 %v5576
      %v5618 = vunpack.c.l.b16 %v5577
      %v5619 = vunpack.c.l.b16 %v5578
      %v5620 = vunpack.c.l.b16 %v5579
      %v5621 = vunpack.c.l.b16 %v5580
      %v5622 = vunpack.c.l.b16 %v5581
      %v5623 = vunpack.c.l.b16 %v5582
      %v5624 = vunpack.c.l.b16 %v5583
      %v5625 = vunpack.c.l.b16 %v5584
      %v5626 = vunpack.c.l.b16 %v5585
      %v5627 = vunpack.c.l.b16 %v5586
      %v5628 = vunpack.c.l.b16 %v5587
      %v5629 = vunpack.c.l.b16 %v5588
      %v5630 = vpack.c.b16 %v5615, %v5614
      %v5631 = vpack.c.b16 %v5617, %v5616
      %v5632 = vpack.c.b16 %v5619, %v5618
      %v5633 = vpack.c.b16 %v5621, %v5620
      %v5634 = vpack.c.b16 %v5623, %v5622
      %v5635 = vpack.c.b16 %v5625, %v5624
      %v5636 = vpack.c.b16 %v5627, %v5626
      %v5637 = vpack.c.b16 %v5629, %v5628
      %5646 = vmatprep.subr.bf16.mxu0 0
      %5647 = vmatpush1.bf16.msra.mxu0 %v5630
      %5648 = vmatprep.subr.bf16.mxu0 0
      %5649 = vmatpush1.bf16.msra.mxu0 %v5631
      %5650 = vmatprep.subr.bf16.mxu0 0
      %5651 = vmatpush1.bf16.msra.mxu0 %v5632
      %5652 = vmatprep.subr.bf16.mxu0 0
      %5653 = vmatpush1.bf16.msra.mxu0 %v5633
      %5654 = vmatprep.subr.bf16.mxu0 0
      %5655 = vmatpush1.bf16.msra.mxu0 %v5634
      %5656 = vmatprep.subr.bf16.mxu0 0
      %5657 = vmatpush1.bf16.msra.mxu0 %v5635
      %5658 = vmatprep.subr.bf16.mxu0 0
      %5659 = vmatpush1.bf16.msra.mxu0 %v5636
      %5660 = vmatprep.subr.bf16.mxu0 0
      %5661 = vmatpush1.bf16.msra.mxu0 %v5637
      %5662 = vmatprep.subr.bf16.mxu0 0
      %5663 = vmatpush1.bf16.msra.mxu0 0
      %5664 = vmatprep.subr.bf16.mxu0 0
      %5665 = vmatpush1.bf16.msra.mxu0 0
      %5666 = vmatprep.subr.bf16.mxu0 0
      %5667 = vmatpush1.bf16.msra.mxu0 0
      %5668 = vmatprep.subr.bf16.mxu0 0
      %5669 = vmatpush1.bf16.msra.mxu0 0
      %5670 = vmatprep.subr.bf16.mxu0 0
      %5671 = vmatpush1.bf16.msra.mxu0 0
      %5672 = vmatprep.subr.bf16.mxu0 0
      %5673 = vmatpush1.bf16.msra.mxu0 0
      %5674 = vmatprep.subr.bf16.mxu0 0
      %5675 = vmatpush1.bf16.msra.mxu0 0
      %5676 = vmatprep.subr.bf16.mxu0 0
      %5677 = vmatpush1.bf16.msra.mxu0 0
      %5678 = vmatprep.mubr.bf16.mxu0 0
      %5679 = vmatmul.mubr.bf16.gmra.mrb[0].mxu0 %v5589
      %v5680 = vpop.f32.mrb[0].mxu0
      %v5681 = vadd.f32 %v5596, %v5680
      %v5682 = vpop.f32.mrb[0].mxu0
      %v5683 = vpop.f32.mrb[0].mxu0
      %v5684 = vadd.f32 %v5596, %v5683
      %v5685 = vpop.f32.mrb[0].mxu0
      %5686 = vdwg.mxu0
      %v5687 = vxor.u32 %v5681, 2147483648
      %v5688 = vxor.u32 %v5684, 2147483648
      %v5689 = vmul.f32 %v5687, 1.442695
      %v5690 = vpow.pop %v5689
      %v5691 = vmul.f32 %v5688, 1.442695
      %v5692 = vpow.pop %v5691
      %v5693 = vadd.f32 %v5690, 1.0
      %v5694 = vadd.f32 %v5692, 1.0
      %v5695 = vrcp.pop %v5693
      %v5696 = vmul.f32 1.0, %v5695
      %v5697 = vrcp.pop %v5694
      %v5698 = vmul.f32 1.0, %v5697
      %v5699 = vmul.f32 %v5681, %v5696
      %v5700 = vmul.f32 %v5684, %v5698
      %s5701 = scalar_lea.vmem %s59, 64
      %v5702 = vld [vmem:[%s5701] sm:$0xf]
      %v5703 = vld [vmem:[%s5701 + $0x4] sm:$0xf]
      %v5704 = vld [vmem:[%s5701 + $0x8] sm:$0xf]
      %v5705 = vld [vmem:[%s5701 + $0xc] sm:$0xf]
      %v5706 = vld [vmem:[%s5701 + $0x10] sm:$0xf]
      %v5707 = vld [vmem:[%s5701 + $0x14] sm:$0xf]
      %v5708 = vld [vmem:[%s5701 + $0x18] sm:$0xf]
      %v5709 = vld [vmem:[%s5701 + $0x1c] sm:$0xf]
      %v5710 = vld [vmem:[%s5701 + $0x20] sm:$0xf]
      %v5711 = vld [vmem:[%s5701 + $0x24] sm:$0xf]
      %v5712 = vld [vmem:[%s5701 + $0x28] sm:$0xf]
      %v5713 = vld [vmem:[%s5701 + $0x2c] sm:$0xf]
      %v5714 = vld [vmem:[%s5701 + $0x30] sm:$0xf]
      %v5715 = vld [vmem:[%s5701 + $0x34] sm:$0xf]
      %v5716 = vld [vmem:[%s5701 + $0x38] sm:$0xf]
      %v5717 = vld [vmem:[%s5701 + $0x3c] sm:$0xf]
      %v5718 = vpack.c.bf16 %v5700, %v5699
      %s5719 = scalar_lea.vmem %s61, 1
      %v5720 = vld [vmem:[%s5719] sm:$0x1]
      %v5722 = vlaneseq
      %v5723 = vshrl.u32 %v5722, 7
      %v5724 = vsub.s32 0, %v5723
      %v5725 = vrot.slane %v5720, %v5724
      %v5743 = vunpack.c.l.b16 %v5702
      %v5744 = vunpack.c.l.b16 %v5703
      %v5745 = vunpack.c.l.b16 %v5704
      %v5746 = vunpack.c.l.b16 %v5705
      %v5747 = vunpack.c.l.b16 %v5706
      %v5748 = vunpack.c.l.b16 %v5707
      %v5749 = vunpack.c.l.b16 %v5708
      %v5750 = vunpack.c.l.b16 %v5709
      %v5751 = vunpack.c.l.b16 %v5710
      %v5752 = vunpack.c.l.b16 %v5711
      %v5753 = vunpack.c.l.b16 %v5712
      %v5754 = vunpack.c.l.b16 %v5713
      %v5755 = vunpack.c.l.b16 %v5714
      %v5756 = vunpack.c.l.b16 %v5715
      %v5757 = vunpack.c.l.b16 %v5716
      %v5758 = vunpack.c.l.b16 %v5717
      %v5759 = vpack.c.b16 %v5744, %v5743
      %v5760 = vpack.c.b16 %v5746, %v5745
      %v5761 = vpack.c.b16 %v5748, %v5747
      %v5762 = vpack.c.b16 %v5750, %v5749
      %v5763 = vpack.c.b16 %v5752, %v5751
      %v5764 = vpack.c.b16 %v5754, %v5753
      %v5765 = vpack.c.b16 %v5756, %v5755
      %v5766 = vpack.c.b16 %v5758, %v5757
      %5775 = vmatprep.subr.bf16.mxu0 0
      %5776 = vmatpush1.bf16.msra.mxu0 %v5759
      %5777 = vmatprep.subr.bf16.mxu0 0
      %5778 = vmatpush1.bf16.msra.mxu0 %v5760
      %5779 = vmatprep.subr.bf16.mxu0 0
      %5780 = vmatpush1.bf16.msra.mxu0 %v5761
      %5781 = vmatprep.subr.bf16.mxu0 0
      %5782 = vmatpush1.bf16.msra.mxu0 %v5762
      %5783 = vmatprep.subr.bf16.mxu0 0
      %5784 = vmatpush1.bf16.msra.mxu0 %v5763
      %5785 = vmatprep.subr.bf16.mxu0 0
      %5786 = vmatpush1.bf16.msra.mxu0 %v5764
      %5787 = vmatprep.subr.bf16.mxu0 0
      %5788 = vmatpush1.bf16.msra.mxu0 %v5765
      %5789 = vmatprep.subr.bf16.mxu0 0
      %5790 = vmatpush1.bf16.msra.mxu0 %v5766
      %5791 = vmatprep.subr.bf16.mxu0 0
      %5792 = vmatpush1.bf16.msra.mxu0 0
      %5793 = vmatprep.subr.bf16.mxu0 0
      %5794 = vmatpush1.bf16.msra.mxu0 0
      %5795 = vmatprep.subr.bf16.mxu0 0
      %5796 = vmatpush1.bf16.msra.mxu0 0
      %5797 = vmatprep.subr.bf16.mxu0 0
      %5798 = vmatpush1.bf16.msra.mxu0 0
      %5799 = vmatprep.subr.bf16.mxu0 0
      %5800 = vmatpush1.bf16.msra.mxu0 0
      %5801 = vmatprep.subr.bf16.mxu0 0
      %5802 = vmatpush1.bf16.msra.mxu0 0
      %5803 = vmatprep.subr.bf16.mxu0 0
      %5804 = vmatpush1.bf16.msra.mxu0 0
      %5805 = vmatprep.subr.bf16.mxu0 0
      %5806 = vmatpush1.bf16.msra.mxu0 0
      %5807 = vmatprep.mubr.bf16.mxu0 0
      %5808 = vmatmul.mubr.bf16.gmra.mrb[0].mxu0 %v5718
      %v5809 = vpop.f32.mrb[0].mxu0
      %v5810 = vadd.f32 %v5725, %v5809
      %v5811 = vpop.f32.mrb[0].mxu0
      %v5812 = vpop.f32.mrb[0].mxu0
      %v5813 = vadd.f32 %v5725, %v5812
      %v5814 = vpop.f32.mrb[0].mxu0
      %5815 = vdwg.mxu0
      %s5816 = scalar_lea.vmem %s63, 64
      %v5817 = vld [vmem:[%s5816] sm:$0xf]
      %v5818 = vld [vmem:[%s5816 + $0x4] sm:$0xf]
      %v5819 = vld [vmem:[%s5816 + $0x8] sm:$0xf]
      %v5820 = vld [vmem:[%s5816 + $0xc] sm:$0xf]
      %v5821 = vld [vmem:[%s5816 + $0x10] sm:$0xf]
      %v5822 = vld [vmem:[%s5816 + $0x14] sm:$0xf]
      %v5823 = vld [vmem:[%s5816 + $0x18] sm:$0xf]
      %v5824 = vld [vmem:[%s5816 + $0x1c] sm:$0xf]
      %v5825 = vld [vmem:[%s5816 + $0x20] sm:$0xf]
      %v5826 = vld [vmem:[%s5816 + $0x24] sm:$0xf]
      %v5827 = vld [vmem:[%s5816 + $0x28] sm:$0xf]
      %v5828 = vld [vmem:[%s5816 + $0x2c] sm:$0xf]
      %v5829 = vld [vmem:[%s5816 + $0x30] sm:$0xf]
      %v5830 = vld [vmem:[%s5816 + $0x34] sm:$0xf]
      %v5831 = vld [vmem:[%s5816 + $0x38] sm:$0xf]
      %v5832 = vld [vmem:[%s5816 + $0x3c] sm:$0xf]
      %v5849 = vunpack.c.l.b16 %v5817
      %v5850 = vunpack.c.l.b16 %v5818
      %v5851 = vunpack.c.l.b16 %v5819
      %v5852 = vunpack.c.l.b16 %v5820
      %v5853 = vunpack.c.l.b16 %v5821
      %v5854 = vunpack.c.l.b16 %v5822
      %v5855 = vunpack.c.l.b16 %v5823
      %v5856 = vunpack.c.l.b16 %v5824
      %v5857 = vunpack.c.l.b16 %v5825
      %v5858 = vunpack.c.l.b16 %v5826
      %v5859 = vunpack.c.l.b16 %v5827
      %v5860 = vunpack.c.l.b16 %v5828
      %v5861 = vunpack.c.l.b16 %v5829
      %v5862 = vunpack.c.l.b16 %v5830
      %v5863 = vunpack.c.l.b16 %v5831
      %v5864 = vunpack.c.l.b16 %v5832
      %v5865 = vpack.c.b16 %v5850, %v5849
      %v5866 = vpack.c.b16 %v5852, %v5851
      %v5867 = vpack.c.b16 %v5854, %v5853
      %v5868 = vpack.c.b16 %v5856, %v5855
      %v5869 = vpack.c.b16 %v5858, %v5857
      %v5870 = vpack.c.b16 %v5860, %v5859
      %v5871 = vpack.c.b16 %v5862, %v5861
      %v5872 = vpack.c.b16 %v5864, %v5863
      %5881 = vmatprep.subr.bf16.mxu0 0
      %5882 = vmatpush1.bf16.msra.mxu0 %v5865
      %5883 = vmatprep.subr.bf16.mxu0 0
      %5884 = vmatpush1.bf16.msra.mxu0 %v5866
      %5885 = vmatprep.subr.bf16.mxu0 0
      %5886 = vmatpush1.bf16.msra.mxu0 %v5867
      %5887 = vmatprep.subr.bf16.mxu0 0
      %5888 = vmatpush1.bf16.msra.mxu0 %v5868
      %5889 = vmatprep.subr.bf16.mxu0 0
      %5890 = vmatpush1.bf16.msra.mxu0 %v5869
      %5891 = vmatprep.subr.bf16.mxu0 0
      %5892 = vmatpush1.bf16.msra.mxu0 %v5870
      %5893 = vmatprep.subr.bf16.mxu0 0
      %5894 = vmatpush1.bf16.msra.mxu0 %v5871
      %5895 = vmatprep.subr.bf16.mxu0 0
      %5896 = vmatpush1.bf16.msra.mxu0 %v5872
      %5897 = vmatprep.subr.bf16.mxu0 0
      %5898 = vmatpush1.bf16.msra.mxu0 0
      %5899 = vmatprep.subr.bf16.mxu0 0
      %5900 = vmatpush1.bf16.msra.mxu0 0
      %5901 = vmatprep.subr.bf16.mxu0 0
      %5902 = vmatpush1.bf16.msra.mxu0 0
      %5903 = vmatprep.subr.bf16.mxu0 0
      %5904 = vmatpush1.bf16.msra.mxu0 0
      %5905 = vmatprep.subr.bf16.mxu0 0
      %5906 = vmatpush1.bf16.msra.mxu0 0
      %5907 = vmatprep.subr.bf16.mxu0 0
      %5908 = vmatpush1.bf16.msra.mxu0 0
      %5909 = vmatprep.subr.bf16.mxu0 0
      %5910 = vmatpush1.bf16.msra.mxu0 0
      %5911 = vmatprep.subr.bf16.mxu0 0
      %5912 = vmatpush1.bf16.msra.mxu0 0
      %5913 = vmatprep.mubr.bf16.mxu0 0
      %5914 = vmatmul.mubr.bf16.gmra.mrb[0].mxu0 %v4937
      %v5915 = vpop.f32.mrb[0].mxu0
      %v5916 = vadd.f32 1.0, %v5915
      %v5917 = vpop.f32.mrb[0].mxu0
      %v5918 = vpop.f32.mrb[0].mxu0
      %v5919 = vadd.f32 1.0, %v5918
      %v5920 = vpop.f32.mrb[0].mxu0
      %5921 = vdwg.mxu0
      %v5922 = vmul.f32 %v5810, %v5916
      %v5923 = vmul.f32 %v5813, %v5919
      %v5924 = vadd.f32 %v5922, %v5440
      %v5925 = vadd.f32 %v5923, %v5441
      %s5926 = scalar_lea.vmem %s53, 128
      %v5927 = vld [vmem:[%s5926] sm:$0xf]
      %v5928 = vld [vmem:[%s5926 + $0x4] sm:$0xf]
      %v5929 = vld [vmem:[%s5926 + $0x8] sm:$0xf]
      %v5930 = vld [vmem:[%s5926 + $0xc] sm:$0xf]
      %v5931 = vld [vmem:[%s5926 + $0x10] sm:$0xf]
      %v5932 = vld [vmem:[%s5926 + $0x14] sm:$0xf]
      %v5933 = vld [vmem:[%s5926 + $0x18] sm:$0xf]
      %v5934 = vld [vmem:[%s5926 + $0x1c] sm:$0xf]
      %v5935 = vld [vmem:[%s5926 + $0x20] sm:$0xf]
      %v5936 = vld [vmem:[%s5926 + $0x24] sm:$0xf]
      %v5937 = vld [vmem:[%s5926 + $0x28] sm:$0xf]
      %v5938 = vld [vmem:[%s5926 + $0x2c] sm:$0xf]
      %v5939 = vld [vmem:[%s5926 + $0x30] sm:$0xf]
      %v5940 = vld [vmem:[%s5926 + $0x34] sm:$0xf]
      %v5941 = vld [vmem:[%s5926 + $0x38] sm:$0xf]
      %v5942 = vld [vmem:[%s5926 + $0x3c] sm:$0xf]
      %5943 = vadd.xlane.f32.xlu0 %v5924
      %v5944 = vpop.xlane.xlu0 %5943
      %5945 = vadd.xlane.f32.xlu0 %v5925
      %v5946 = vpop.xlane.xlu0 %5945
      %v5947 = vmul.f32 %v5944, %v1262
      %v5948 = vmul.f32 %v5946, %v1262
      %v5949 = vsub.f32 %v5924, %v5947
      %v5950 = vsub.f32 %v5925, %v5948
      %v5951 = vmul.f32 %v5949, %v5949
      %v5952 = vmul.f32 %v5950, %v5950
      %5953 = vadd.xlane.f32.xlu0 %v5951
      %v5954 = vpop.xlane.xlu0 %5953
      %5955 = vadd.xlane.f32.xlu0 %v5952
      %v5956 = vpop.xlane.xlu0 %5955
      %v5957 = vmul.f32 %v5954, %v1262
      %v5958 = vmul.f32 %v5956, %v1262
      %v5959 = vadd.f32 %v5957, 1e-05
      %v5960 = vadd.f32 %v5958, 1e-05
      %v5961 = vrsqrt.pop %v5959
      %v5962 = vrsqrt.pop %v5960
      %v5963 = vmul.f32 %v5949, %v5961
      %v5964 = vmul.f32 %v5950, %v5962
      %v5981 = vunpack.c.l.b16 %v5927
      %v5982 = vunpack.c.l.b16 %v5928
      %v5983 = vunpack.c.l.b16 %v5929
      %v5984 = vunpack.c.l.b16 %v5930
      %v5985 = vunpack.c.l.b16 %v5931
      %v5986 = vunpack.c.l.b16 %v5932
      %v5987 = vunpack.c.l.b16 %v5933
      %v5988 = vunpack.c.l.b16 %v5934
      %v5989 = vunpack.c.l.b16 %v5935
      %v5990 = vunpack.c.l.b16 %v5936
      %v5991 = vunpack.c.l.b16 %v5937
      %v5992 = vunpack.c.l.b16 %v5938
      %v5993 = vunpack.c.l.b16 %v5939
      %v5994 = vunpack.c.l.b16 %v5940
      %v5995 = vunpack.c.l.b16 %v5941
      %v5996 = vunpack.c.l.b16 %v5942
      %v5997 = vpack.c.b16 %v5982, %v5981
      %v5998 = vpack.c.b16 %v5984, %v5983
      %v5999 = vpack.c.b16 %v5986, %v5985
      %v6000 = vpack.c.b16 %v5988, %v5987
      %v6001 = vpack.c.b16 %v5990, %v5989
      %v6002 = vpack.c.b16 %v5992, %v5991
      %v6003 = vpack.c.b16 %v5994, %v5993
      %v6004 = vpack.c.b16 %v5996, %v5995
      %6013 = vmatprep.subr.bf16.mxu0 0
      %6014 = vmatpush1.bf16.msra.mxu0 %v5997
      %6015 = vmatprep.subr.bf16.mxu0 0
      %6016 = vmatpush1.bf16.msra.mxu0 %v5998
      %6017 = vmatprep.subr.bf16.mxu0 0
      %6018 = vmatpush1.bf16.msra.mxu0 %v5999
      %6019 = vmatprep.subr.bf16.mxu0 0
      %6020 = vmatpush1.bf16.msra.mxu0 %v6000
      %6021 = vmatprep.subr.bf16.mxu0 0
      %6022 = vmatpush1.bf16.msra.mxu0 %v6001
      %6023 = vmatprep.subr.bf16.mxu0 0
      %6024 = vmatpush1.bf16.msra.mxu0 %v6002
      %6025 = vmatprep.subr.bf16.mxu0 0
      %6026 = vmatpush1.bf16.msra.mxu0 %v6003
      %6027 = vmatprep.subr.bf16.mxu0 0
      %6028 = vmatpush1.bf16.msra.mxu0 %v6004
      %6029 = vmatprep.subr.bf16.mxu0 0
      %6030 = vmatpush1.bf16.msra.mxu0 0
      %6031 = vmatprep.subr.bf16.mxu0 0
      %6032 = vmatpush1.bf16.msra.mxu0 0
      %6033 = vmatprep.subr.bf16.mxu0 0
      %6034 = vmatpush1.bf16.msra.mxu0 0
      %6035 = vmatprep.subr.bf16.mxu0 0
      %6036 = vmatpush1.bf16.msra.mxu0 0
      %6037 = vmatprep.subr.bf16.mxu0 0
      %6038 = vmatpush1.bf16.msra.mxu0 0
      %6039 = vmatprep.subr.bf16.mxu0 0
      %6040 = vmatpush1.bf16.msra.mxu0 0
      %6041 = vmatprep.subr.bf16.mxu0 0
      %6042 = vmatpush1.bf16.msra.mxu0 0
      %6043 = vmatprep.subr.bf16.mxu0 0
      %6044 = vmatpush1.bf16.msra.mxu0 0
      %6045 = vmatprep.mubr.bf16.mxu0 0
      %6046 = vmatmul.mubr.bf16.gmra.mrb[0].mxu0 %v4937
      %v6047 = vpop.f32.mrb[0].mxu0
      %v6048 = vadd.f32 1.0, %v6047
      %v6049 = vpop.f32.mrb[0].mxu0
      %v6050 = vpop.f32.mrb[0].mxu0
      %v6051 = vadd.f32 1.0, %v6050
      %v6052 = vpop.f32.mrb[0].mxu0
      %6053 = vdwg.mxu0
      %v6054 = vmul.f32 %v5963, %v6048
      %v6055 = vmul.f32 %v5964, %v6051
      %s6056 = scalar_lea.vmem %s55, 128
      %v6057 = vld [vmem:[%s6056] sm:$0xf]
      %v6058 = vld [vmem:[%s6056 + $0x4] sm:$0xf]
      %v6059 = vld [vmem:[%s6056 + $0x8] sm:$0xf]
      %v6060 = vld [vmem:[%s6056 + $0xc] sm:$0xf]
      %v6061 = vld [vmem:[%s6056 + $0x10] sm:$0xf]
      %v6062 = vld [vmem:[%s6056 + $0x14] sm:$0xf]
      %v6063 = vld [vmem:[%s6056 + $0x18] sm:$0xf]
      %v6064 = vld [vmem:[%s6056 + $0x1c] sm:$0xf]
      %v6065 = vld [vmem:[%s6056 + $0x20] sm:$0xf]
      %v6066 = vld [vmem:[%s6056 + $0x24] sm:$0xf]
      %v6067 = vld [vmem:[%s6056 + $0x28] sm:$0xf]
      %v6068 = vld [vmem:[%s6056 + $0x2c] sm:$0xf]
      %v6069 = vld [vmem:[%s6056 + $0x30] sm:$0xf]
      %v6070 = vld [vmem:[%s6056 + $0x34] sm:$0xf]
      %v6071 = vld [vmem:[%s6056 + $0x38] sm:$0xf]
      %v6072 = vld [vmem:[%s6056 + $0x3c] sm:$0xf]
      %v6073 = vpack.c.bf16 %v6055, %v6054
      %s6074 = scalar_lea.vmem %s57, 2
      %v6075 = vld [vmem:[%s6074] sm:$0x1]
      %v6077 = vlaneseq
      %v6078 = vshrl.u32 %v6077, 7
      %v6079 = vsub.s32 0, %v6078
      %v6080 = vrot.slane %v6075, %v6079
      %v6098 = vunpack.c.l.b16 %v6057
      %v6099 = vunpack.c.l.b16 %v6058
      %v6100 = vunpack.c.l.b16 %v6059
      %v6101 = vunpack.c.l.b16 %v6060
      %v6102 = vunpack.c.l.b16 %v6061
      %v6103 = vunpack.c.l.b16 %v6062
      %v6104 = vunpack.c.l.b16 %v6063
      %v6105 = vunpack.c.l.b16 %v6064
      %v6106 = vunpack.c.l.b16 %v6065
      %v6107 = vunpack.c.l.b16 %v6066
      %v6108 = vunpack.c.l.b16 %v6067
      %v6109 = vunpack.c.l.b16 %v6068
      %v6110 = vunpack.c.l.b16 %v6069
      %v6111 = vunpack.c.l.b16 %v6070
      %v6112 = vunpack.c.l.b16 %v6071
      %v6113 = vunpack.c.l.b16 %v6072
      %v6114 = vpack.c.b16 %v6099, %v6098
      %v6115 = vpack.c.b16 %v6101, %v6100
      %v6116 = vpack.c.b16 %v6103, %v6102
      %v6117 = vpack.c.b16 %v6105, %v6104
      %v6118 = vpack.c.b16 %v6107, %v6106
      %v6119 = vpack.c.b16 %v6109, %v6108
      %v6120 = vpack.c.b16 %v6111, %v6110
      %v6121 = vpack.c.b16 %v6113, %v6112
      %6130 = vmatprep.subr.bf16.mxu0 0
      %6131 = vmatpush1.bf16.msra.mxu0 %v6114
      %6132 = vmatprep.subr.bf16.mxu0 0
      %6133 = vmatpush1.bf16.msra.mxu0 %v6115
      %6134 = vmatprep.subr.bf16.mxu0 0
      %6135 = vmatpush1.bf16.msra.mxu0 %v6116
      %6136 = vmatprep.subr.bf16.mxu0 0
      %6137 = vmatpush1.bf16.msra.mxu0 %v6117
      %6138 = vmatprep.subr.bf16.mxu0 0
      %6139 = vmatpush1.bf16.msra.mxu0 %v6118
      %6140 = vmatprep.subr.bf16.mxu0 0
      %6141 = vmatpush1.bf16.msra.mxu0 %v6119
      %6142 = vmatprep.subr.bf16.mxu0 0
      %6143 = vmatpush1.bf16.msra.mxu0 %v6120
      %6144 = vmatprep.subr.bf16.mxu0 0
      %6145 = vmatpush1.bf16.msra.mxu0 %v6121
      %6146 = vmatprep.subr.bf16.mxu0 0
      %6147 = vmatpush1.bf16.msra.mxu0 0
      %6148 = vmatprep.subr.bf16.mxu0 0
      %6149 = vmatpush1.bf16.msra.mxu0 0
      %6150 = vmatprep.subr.bf16.mxu0 0
      %6151 = vmatpush1.bf16.msra.mxu0 0
      %6152 = vmatprep.subr.bf16.mxu0 0
      %6153 = vmatpush1.bf16.msra.mxu0 0
      %6154 = vmatprep.subr.bf16.mxu0 0
      %6155 = vmatpush1.bf16.msra.mxu0 0
      %6156 = vmatprep.subr.bf16.mxu0 0
      %6157 = vmatpush1.bf16.msra.mxu0 0
      %6158 = vmatprep.subr.bf16.mxu0 0
      %6159 = vmatpush1.bf16.msra.mxu0 0
      %6160 = vmatprep.subr.bf16.mxu0 0
      %6161 = vmatpush1.bf16.msra.mxu0 0
      %6162 = vmatprep.mubr.bf16.mxu0 0
      %6163 = vmatmul.mubr.bf16.gmra.mrb[0].mxu0 %v6073
      %v6164 = vpop.f32.mrb[0].mxu0
      %v6165 = vadd.f32 %v6080, %v6164
      %v6166 = vpop.f32.mrb[0].mxu0
      %v6167 = vpop.f32.mrb[0].mxu0
      %v6168 = vadd.f32 %v6080, %v6167
      %v6169 = vpop.f32.mrb[0].mxu0
      %6170 = vdwg.mxu0
      %v6171 = vxor.u32 %v6165, 2147483648
      %v6172 = vxor.u32 %v6168, 2147483648
      %v6173 = vmul.f32 %v6171, 1.442695
      %v6174 = vpow.pop %v6173
      %v6175 = vmul.f32 %v6172, 1.442695
      %v6176 = vpow.pop %v6175
      %v6177 = vadd.f32 %v6174, 1.0
      %v6178 = vadd.f32 %v6176, 1.0
      %v6179 = vrcp.pop %v6177
      %v6180 = vmul.f32 1.0, %v6179
      %v6181 = vrcp.pop %v6178
      %v6182 = vmul.f32 1.0, %v6181
      %v6183 = vmul.f32 %v6165, %v6180
      %v6184 = vmul.f32 %v6168, %v6182
      %s6185 = scalar_lea.vmem %s59, 128
      %v6186 = vld [vmem:[%s6185] sm:$0xf]
      %v6187 = vld [vmem:[%s6185 + $0x4] sm:$0xf]
      %v6188 = vld [vmem:[%s6185 + $0x8] sm:$0xf]
      %v6189 = vld [vmem:[%s6185 + $0xc] sm:$0xf]
      %v6190 = vld [vmem:[%s6185 + $0x10] sm:$0xf]
      %v6191 = vld [vmem:[%s6185 + $0x14] sm:$0xf]
      %v6192 = vld [vmem:[%s6185 + $0x18] sm:$0xf]
      %v6193 = vld [vmem:[%s6185 + $0x1c] sm:$0xf]
      %v6194 = vld [vmem:[%s6185 + $0x20] sm:$0xf]
      %v6195 = vld [vmem:[%s6185 + $0x24] sm:$0xf]
      %v6196 = vld [vmem:[%s6185 + $0x28] sm:$0xf]
      %v6197 = vld [vmem:[%s6185 + $0x2c] sm:$0xf]
      %v6198 = vld [vmem:[%s6185 + $0x30] sm:$0xf]
      %v6199 = vld [vmem:[%s6185 + $0x34] sm:$0xf]
      %v6200 = vld [vmem:[%s6185 + $0x38] sm:$0xf]
      %v6201 = vld [vmem:[%s6185 + $0x3c] sm:$0xf]
      %v6202 = vpack.c.bf16 %v6184, %v6183
      %s6203 = scalar_lea.vmem %s61, 2
      %v6204 = vld [vmem:[%s6203] sm:$0x1]
      %v6206 = vlaneseq
      %v6207 = vshrl.u32 %v6206, 7
      %v6208 = vsub.s32 0, %v6207
      %v6209 = vrot.slane %v6204, %v6208
      %v6227 = vunpack.c.l.b16 %v6186
      %v6228 = vunpack.c.l.b16 %v6187
      %v6229 = vunpack.c.l.b16 %v6188
      %v6230 = vunpack.c.l.b16 %v6189
      %v6231 = vunpack.c.l.b16 %v6190
      %v6232 = vunpack.c.l.b16 %v6191
      %v6233 = vunpack.c.l.b16 %v6192
      %v6234 = vunpack.c.l.b16 %v6193
      %v6235 = vunpack.c.l.b16 %v6194
      %v6236 = vunpack.c.l.b16 %v6195
      %v6237 = vunpack.c.l.b16 %v6196
      %v6238 = vunpack.c.l.b16 %v6197
      %v6239 = vunpack.c.l.b16 %v6198
      %v6240 = vunpack.c.l.b16 %v6199
      %v6241 = vunpack.c.l.b16 %v6200
      %v6242 = vunpack.c.l.b16 %v6201
      %v6243 = vpack.c.b16 %v6228, %v6227
      %v6244 = vpack.c.b16 %v6230, %v6229
      %v6245 = vpack.c.b16 %v6232, %v6231
      %v6246 = vpack.c.b16 %v6234, %v6233
      %v6247 = vpack.c.b16 %v6236, %v6235
      %v6248 = vpack.c.b16 %v6238, %v6237
      %v6249 = vpack.c.b16 %v6240, %v6239
      %v6250 = vpack.c.b16 %v6242, %v6241
      %6259 = vmatprep.subr.bf16.mxu0 0
      %6260 = vmatpush1.bf16.msra.mxu0 %v6243
      %6261 = vmatprep.subr.bf16.mxu0 0
      %6262 = vmatpush1.bf16.msra.mxu0 %v6244
      %6263 = vmatprep.subr.bf16.mxu0 0
      %6264 = vmatpush1.bf16.msra.mxu0 %v6245
      %6265 = vmatprep.subr.bf16.mxu0 0
      %6266 = vmatpush1.bf16.msra.mxu0 %v6246
      %6267 = vmatprep.subr.bf16.mxu0 0
      %6268 = vmatpush1.bf16.msra.mxu0 %v6247
      %6269 = vmatprep.subr.bf16.mxu0 0
      %6270 = vmatpush1.bf16.msra.mxu0 %v6248
      %6271 = vmatprep.subr.bf16.mxu0 0
      %6272 = vmatpush1.bf16.msra.mxu0 %v6249
      %6273 = vmatprep.subr.bf16.mxu0 0
      %6274 = vmatpush1.bf16.msra.mxu0 %v6250
      %6275 = vmatprep.subr.bf16.mxu0 0
      %6276 = vmatpush1.bf16.msra.mxu0 0
      %6277 = vmatprep.subr.bf16.mxu0 0
      %6278 = vmatpush1.bf16.msra.mxu0 0
      %6279 = vmatprep.subr.bf16.mxu0 0
      %6280 = vmatpush1.bf16.msra.mxu0 0
      %6281 = vmatprep.subr.bf16.mxu0 0
      %6282 = vmatpush1.bf16.msra.mxu0 0
      %6283 = vmatprep.subr.bf16.mxu0 0
      %6284 = vmatpush1.bf16.msra.mxu0 0
      %6285 = vmatprep.subr.bf16.mxu0 0
      %6286 = vmatpush1.bf16.msra.mxu0 0
      %6287 = vmatprep.subr.bf16.mxu0 0
      %6288 = vmatpush1.bf16.msra.mxu0 0
      %6289 = vmatprep.subr.bf16.mxu0 0
      %6290 = vmatpush1.bf16.msra.mxu0 0
      %6291 = vmatprep.mubr.bf16.mxu0 0
      %6292 = vmatmul.mubr.bf16.gmra.mrb[0].mxu0 %v6202
      %v6293 = vpop.f32.mrb[0].mxu0
      %v6294 = vadd.f32 %v6209, %v6293
      %v6295 = vpop.f32.mrb[0].mxu0
      %v6296 = vpop.f32.mrb[0].mxu0
      %v6297 = vadd.f32 %v6209, %v6296
      %v6298 = vpop.f32.mrb[0].mxu0
      %6299 = vdwg.mxu0
      %s6300 = scalar_lea.vmem %s63, 128
      %v6301 = vld [vmem:[%s6300] sm:$0xf]
      %v6302 = vld [vmem:[%s6300 + $0x4] sm:$0xf]
      %v6303 = vld [vmem:[%s6300 + $0x8] sm:$0xf]
      %v6304 = vld [vmem:[%s6300 + $0xc] sm:$0xf]
      %v6305 = vld [vmem:[%s6300 + $0x10] sm:$0xf]
      %v6306 = vld [vmem:[%s6300 + $0x14] sm:$0xf]
      %v6307 = vld [vmem:[%s6300 + $0x18] sm:$0xf]
      %v6308 = vld [vmem:[%s6300 + $0x1c] sm:$0xf]
      %v6309 = vld [vmem:[%s6300 + $0x20] sm:$0xf]
      %v6310 = vld [vmem:[%s6300 + $0x24] sm:$0xf]
      %v6311 = vld [vmem:[%s6300 + $0x28] sm:$0xf]
      %v6312 = vld [vmem:[%s6300 + $0x2c] sm:$0xf]
      %v6313 = vld [vmem:[%s6300 + $0x30] sm:$0xf]
      %v6314 = vld [vmem:[%s6300 + $0x34] sm:$0xf]
      %v6315 = vld [vmem:[%s6300 + $0x38] sm:$0xf]
      %v6316 = vld [vmem:[%s6300 + $0x3c] sm:$0xf]
      %v6333 = vunpack.c.l.b16 %v6301
      %v6334 = vunpack.c.l.b16 %v6302
      %v6335 = vunpack.c.l.b16 %v6303
      %v6336 = vunpack.c.l.b16 %v6304
      %v6337 = vunpack.c.l.b16 %v6305
      %v6338 = vunpack.c.l.b16 %v6306
      %v6339 = vunpack.c.l.b16 %v6307
      %v6340 = vunpack.c.l.b16 %v6308
      %v6341 = vunpack.c.l.b16 %v6309
      %v6342 = vunpack.c.l.b16 %v6310
      %v6343 = vunpack.c.l.b16 %v6311
      %v6344 = vunpack.c.l.b16 %v6312
      %v6345 = vunpack.c.l.b16 %v6313
      %v6346 = vunpack.c.l.b16 %v6314
      %v6347 = vunpack.c.l.b16 %v6315
      %v6348 = vunpack.c.l.b16 %v6316
      %v6349 = vpack.c.b16 %v6334, %v6333
      %v6350 = vpack.c.b16 %v6336, %v6335
      %v6351 = vpack.c.b16 %v6338, %v6337
      %v6352 = vpack.c.b16 %v6340, %v6339
      %v6353 = vpack.c.b16 %v6342, %v6341
      %v6354 = vpack.c.b16 %v6344, %v6343
      %v6355 = vpack.c.b16 %v6346, %v6345
      %v6356 = vpack.c.b16 %v6348, %v6347
      %6365 = vmatprep.subr.bf16.mxu0 0
      %6366 = vmatpush1.bf16.msra.mxu0 %v6349
      %6367 = vmatprep.subr.bf16.mxu0 0
      %6368 = vmatpush1.bf16.msra.mxu0 %v6350
      %6369 = vmatprep.subr.bf16.mxu0 0
      %6370 = vmatpush1.bf16.msra.mxu0 %v6351
      %6371 = vmatprep.subr.bf16.mxu0 0
      %6372 = vmatpush1.bf16.msra.mxu0 %v6352
      %6373 = vmatprep.subr.bf16.mxu0 0
      %6374 = vmatpush1.bf16.msra.mxu0 %v6353
      %6375 = vmatprep.subr.bf16.mxu0 0
      %6376 = vmatpush1.bf16.msra.mxu0 %v6354
      %6377 = vmatprep.subr.bf16.mxu0 0
      %6378 = vmatpush1.bf16.msra.mxu0 %v6355
      %6379 = vmatprep.subr.bf16.mxu0 0
      %6380 = vmatpush1.bf16.msra.mxu0 %v6356
      %6381 = vmatprep.subr.bf16.mxu0 0
      %6382 = vmatpush1.bf16.msra.mxu0 0
      %6383 = vmatprep.subr.bf16.mxu0 0
      %6384 = vmatpush1.bf16.msra.mxu0 0
      %6385 = vmatprep.subr.bf16.mxu0 0
      %6386 = vmatpush1.bf16.msra.mxu0 0
      %6387 = vmatprep.subr.bf16.mxu0 0
      %6388 = vmatpush1.bf16.msra.mxu0 0
      %6389 = vmatprep.subr.bf16.mxu0 0
      %6390 = vmatpush1.bf16.msra.mxu0 0
      %6391 = vmatprep.subr.bf16.mxu0 0
      %6392 = vmatpush1.bf16.msra.mxu0 0
      %6393 = vmatprep.subr.bf16.mxu0 0
      %6394 = vmatpush1.bf16.msra.mxu0 0
      %6395 = vmatprep.subr.bf16.mxu0 0
      %6396 = vmatpush1.bf16.msra.mxu0 0
      %6397 = vmatprep.mubr.bf16.mxu0 0
      %6398 = vmatmul.mubr.bf16.gmra.mrb[0].mxu0 %v4937
      %v6399 = vpop.f32.mrb[0].mxu0
      %v6400 = vadd.f32 1.0, %v6399
      %v6401 = vpop.f32.mrb[0].mxu0
      %v6402 = vpop.f32.mrb[0].mxu0
      %v6403 = vadd.f32 1.0, %v6402
      %v6404 = vpop.f32.mrb[0].mxu0
      %6405 = vdwg.mxu0
      %v6406 = vmul.f32 %v6294, %v6400
      %v6407 = vmul.f32 %v6297, %v6403
      %v6408 = vadd.f32 %v6406, %v5924
      %v6409 = vadd.f32 %v6407, %v5925
      %6411 = vset.pattern.permute.xlu0 0
      %6412 = vperm.xlu0 %6411, %v4296
      %v6413 = vpop.permute.xlu0 %6412
      %6416 = vset.pattern.permute.xlu0 0
      %6417 = vperm.xlu0 %6416, %v4297
      %v6418 = vpop.permute.xlu0 %6417
      %v6420 = vmul.f32 %v6413, %v4950
      %v6421 = vmul.f32 %v6418, %v4951
      %6423 = vset.pattern.permute.xlu0 0
      %6424 = vperm.xlu0 %6423, %v4300
      %v6425 = vpop.permute.xlu0 %6424
      %6428 = vset.pattern.permute.xlu0 0
      %6429 = vperm.xlu0 %6428, %v4301
      %v6430 = vpop.permute.xlu0 %6429
      %v6432 = vmul.f32 %v6425, %v6408
      %v6433 = vmul.f32 %v6430, %v6409
      %v6434 = vadd.f32 %v6420, %v6432
      %v6435 = vadd.f32 %v6421, %v6433
      %v6436 = vmax.f32 %v6434, -1.0
      %v6437 = vmax.f32 %v6435, -1.0
      %v6438 = vmin.f32 %v6436, 1.0
      %v6439 = vmin.f32 %v6437, 1.0
      %v6440 = vsub.f32 %v6438, %v1026
      %v6441 = vsub.f32 %v6439, %v1027
      %v6442 = vmul.f32 %v6440, %v6440
      %v6443 = vmul.f32 %v6441, %v6441
      %6444 = vadd.xlane.f32.xlu0 %v6442
      %v6445 = vpop.xlane.xlu0 %6444
      %6446 = vadd.xlane.f32.xlu0 %v6443
      %v6447 = vpop.xlane.xlu0 %6446
      %v6448 = vmul.f32 %v6445, %v1262
      %v6449 = vmul.f32 %v6447, %v1262
      %v6450 = vmul.f32 %v4298, %v4298
      %v6451 = vmul.f32 %v4299, %v4299
      %v6452 = vrcp.pop %v6450
      %v6453 = vrcp.pop %v6451
      %v6454 = vmul.f32 %v4290, %v6452
      %v6455 = vmul.f32 %v4291, %v6453
      %v6456 = vmul.f32 %v6448, %v6454
      %v6457 = vmul.f32 %v6449, %v6455
      %vm6458 = vcmask 7168
      %v6459 = vsel %vm6458, %v6456, 0.0
      %v6460 = vsel %vm6458, %v6457, 0.0
      %v6461 = vadd.f32 %v6459, %v6460
      %6462 = vadd.xlane.f32.xlu0 %v6461
      %v6463 = vpop.xlane.xlu0 %6462
      %v6464 = vrot.slane %v6463, 4
      %v6465 = vadd.f32 %v6463, %v6464
      %v6466 = vrot.slane %v6465, 2
      %v6467 = vadd.f32 %v6465, %v6466
      %v6468 = vrot.slane %v6467, 1
      %v6469 = vadd.f32 %v6467, %v6468
      %s6470 = vtos %v6469
      %v6471 = vstv %s6470
      %6472 = vst [vmem:[%s1024] sm:$0xff] %v6471
      %p6473 = scmp.lt.s32.totalorder %s76, 1
      %s6474 = scalar_select %p6473, %s76, 1
      %s6475 = smul.addr %s6474, 8
      %s6476 = scalar_lea.vmem %s65, %s6475
      // Predicated region
      $region149: #{image_ar_diffusion_forward.3} parent=147 // pred_check
        %p6477 = pneg %p781
      $region150: #{image_ar_diffusion_forward.3} parent=147 // pred_check_branch
        %6479 = sbr.rel (%p6477) target = $region152
      $region151: #{image_ar_diffusion_forward.3} parent=147 // pred_region
        _
      $region152: #{image_ar_diffusion_forward.3} parent=147 // pred_fallthru
        _
    $region148: #{image_ar_diffusion_forward.3} parent=5 // pred_fallthru
      _
    %p6480 = scmp.le.s32.totalorder 2, %s71
    // Predicated region
    $region153: #{image_ar_diffusion_forward.3} parent=5 // pred_check
      %p6481 = pneg %p6480
    $region154: #{image_ar_diffusion_forward.3} parent=5 // pred_check_branch
      %6483 = sbr.rel (%p6481) target = $region156
    $region155: #{image_ar_diffusion_forward.3} parent=5 // pred_region
      %s6484 = ssub.s32 %s71, 2
      // Predicated region
      $region157: #{image_ar_diffusion_forward.3} parent=155 // pred_check
        %p6485 = pneg %p787
      $region158: #{image_ar_diffusion_forward.3} parent=155 // pred_check_branch
        %6487 = sbr.rel (%p6485) target = $region160
      $region159: #{image_ar_diffusion_forward.3} parent=155 // pred_region
        %p6488 = scmp.lt.s32.totalorder %s77, 1
        %s6489 = scalar_select %p6488, %s77, 1
        %s6490 = smul.addr %s6489, 8
        %s6491 = scalar_lea.vmem %s65, %s6490
      $region160: #{image_ar_diffusion_forward.3} parent=155 // pred_fallthru
        _
    $region156: #{image_ar_diffusion_forward.3} parent=5 // pred_fallthru
      _
  $region6: #{image_ar_diffusion_forward.3} parent=0 // loop_footer
    %s75 = sadd.s32 1, %s71
  $region7: #{image_ar_diffusion_forward.3} parent=0 // loop_footer_branch
    %70 = sbr.rel target = $region3
  $region8: #{image_ar_diffusion_forward.3} parent=0 // loop_exit
    _

</llo_original>
